<compile_context>
chip_gen: v7x
topology: tpu7x:2x2x1
jax: 0.10.0
libtpu: 0.0.40
codegen_flags: <defaults>
</compile_context>

<pallas_src>
import functools

import numpy as np

import jax
import jax.numpy as jnp
from jax.experimental import pallas as pl
from jax.experimental.pallas import tpu as pltpu


def _round_up(x, m):
    return (x + m - 1) // m * m


# ---------------------------------------------------------------------------
# Pallas kernels
# ---------------------------------------------------------------------------

def _conv_relu_pool_kernel(x_ref, t_ref, b_ref, ws_ref, hs_ref, o_ref, *,
                           kh, ho_big, hp_rows):
    """Conv2d(k=5, valid) + bias + ReLU + MaxPool2d(2) on TB stacked images.

    x_ref : (TB*H, WCpad)        bf16  stacked image slab, lanes = (w, c)
    t_ref : (kh, WCpad, WoCpad)  bf16  width-Toeplitz weight slab per row tap
    b_ref : (1, WoCpad)          f32   bias tiled over output columns (0 in pad)
    ws_ref: (WoCpad, 2*WpCpad)   bf16  0/1 [even | odd] width-pool selector
    hs_ref: (2*TB*Hp, Ho_big)    bf16  0/1 [even ; odd] row-pool selector
    o_ref : (TB*Hp, WpCpad)      bf16  pooled activations, images stacked row-wise
    """
    x = x_ref[...]                                           # (TB*H, WCpad) bf16

    # Convolution: one width-Toeplitz MXU matmul per row tap, f32 accumulation.
    acc = jnp.dot(x[0:ho_big, :], t_ref[0], preferred_element_type=jnp.float32)
    for i in range(1, kh):
        acc = acc + jnp.dot(x[i:i + ho_big, :], t_ref[i],
                            preferred_element_type=jnp.float32)
    acc = jnp.maximum(acc + b_ref[...], 0.0).astype(jnp.bfloat16)  # (Ho_big, WoCpad)

    wpc = o_ref.shape[-1]
    # Width pool: single bf16 selection matmul (even|odd halves), then VPU max.
    ws = jnp.dot(acc, ws_ref[...], preferred_element_type=jnp.float32)
    wmax = jnp.maximum(ws[:, :wpc], ws[:, wpc:]).astype(jnp.bfloat16)  # (Ho_big, WpCpad)
    # Height pool: single bf16 row-selection matmul (even;odd halves), then max.
    # Garbage rows at image boundaries are never selected (zero columns in hs).
    hs = jnp.dot(hs_ref[...], wmax, preferred_element_type=jnp.float32)
    o_ref[...] = jnp.maximum(hs[:hp_rows, :], hs[hp_rows:, :]).astype(o_ref.dtype)


def _fc_head_kernel(x_ref, w1_ref, b1_ref, w2_ref, b2_ref, wh_ref, bh_ref, o_ref):
    """Fused fc1 + ReLU + fc2 + ReLU + head; bf16 intermediates stay in VMEM."""
    h1 = jnp.dot(x_ref[...], w1_ref[...],
                 preferred_element_type=jnp.float32) + b1_ref[...]
    h1 = jnp.maximum(h1, 0.0).astype(jnp.bfloat16)
    h2 = jnp.dot(h1, w2_ref[...],
                 preferred_element_type=jnp.float32) + b2_ref[...]
    h2 = jnp.maximum(h2, 0.0).astype(jnp.bfloat16)
    o_ref[...] = jnp.dot(h2, wh_ref[...],
                         preferred_element_type=jnp.float32) + bh_ref[...]


# ---------------------------------------------------------------------------
# pallas_call wrappers
# ---------------------------------------------------------------------------

def conv_relu_pool(x_slab, t, bias_row, ws, hs, *, tb, h_img, hp):
    """x_slab: (B_pad*H, WCpad) bf16 -> (B_pad*Hp, WpCpad) bf16."""
    kh = t.shape[0]
    wc_pad = x_slab.shape[1]
    woc_pad = t.shape[2]
    wpc_pad = ws.shape[1] // 2
    rows = x_slab.shape[0]
    nblk = rows // (tb * h_img)
    ho_big = tb * h_img - kh + 1
    hp_rows = tb * hp

    flops = 2 * nblk * (kh * ho_big * wc_pad * woc_pad
                        + ho_big * woc_pad * 2 * wpc_pad
                        + 2 * hp_rows * ho_big * wpc_pad)
    bytes_accessed = (x_slab.size * 2 + t.size * 2 + ws.size * 2 + hs.size * 2
                      + bias_row.size * 4 + nblk * hp_rows * wpc_pad * 2)

    return pl.pallas_call(
        functools.partial(_conv_relu_pool_kernel,
                          kh=kh, ho_big=ho_big, hp_rows=hp_rows),
        out_shape=jax.ShapeDtypeStruct((nblk * hp_rows, wpc_pad), jnp.bfloat16),
        grid=(nblk,),
        in_specs=[
            pl.BlockSpec((tb * h_img, wc_pad), lambda b: (b, 0)),
            pl.BlockSpec(t.shape, lambda b: (0, 0, 0)),
            pl.BlockSpec(bias_row.shape, lambda b: (0, 0)),
            pl.BlockSpec(ws.shape, lambda b: (0, 0)),
            pl.BlockSpec(hs.shape, lambda b: (0, 0)),
        ],
        out_specs=pl.BlockSpec((hp_rows, wpc_pad), lambda b: (b, 0)),
        compiler_params=pltpu.CompilerParams(
            dimension_semantics=("parallel",)),
        cost_estimate=pl.CostEstimate(flops=flops, transcendentals=0,
                                      bytes_accessed=bytes_accessed),
    )(x_slab, t, bias_row, ws, hs)


def fc_head(x, w1, b1, w2, b2, wh, bh, *, tb_fc):
    """x: (B_fc, dim) bf16 -> (B_fc, n_pad) f32 (head padded to 128-lane mult)."""
    bsz, dim = x.shape
    n_pad = wh.shape[1]
    nblk = bsz // tb_fc

    flops = 2 * bsz * (dim * w1.shape[1] + w1.shape[1] * w2.shape[1]
                       + w2.shape[1] * n_pad)
    bytes_accessed = (x.size * 2 + w1.size * 2 + w2.size * 2 + wh.size * 2
                      + (b1.size + b2.size + bh.size) * 4 + bsz * n_pad * 4)

    return pl.pallas_call(
        _fc_head_kernel,
        out_shape=jax.ShapeDtypeStruct((bsz, n_pad), jnp.float32),
        grid=(nblk,),
        in_specs=[
            pl.BlockSpec((tb_fc, dim), lambda b: (b, 0)),
            pl.BlockSpec(w1.shape, lambda b: (0, 0)),
            pl.BlockSpec(b1.shape, lambda b: (0, 0)),
            pl.BlockSpec(w2.shape, lambda b: (0, 0)),
            pl.BlockSpec(b2.shape, lambda b: (0, 0)),
            pl.BlockSpec(wh.shape, lambda b: (0, 0)),
            pl.BlockSpec(bh.shape, lambda b: (0, 0)),
        ],
        out_specs=pl.BlockSpec((tb_fc, n_pad), lambda b: (b, 0)),
        compiler_params=pltpu.CompilerParams(
            dimension_semantics=("parallel",)),
        cost_estimate=pl.CostEstimate(flops=flops, transcendentals=0,
                                      bytes_accessed=bytes_accessed),
    )(x, w1, b1, w2, b2, wh, bh)


# ---------------------------------------------------------------------------
# Forward pass
# ---------------------------------------------------------------------------

def pfmcnn2_forward(kp, x_nchw, *, cfg):
    """Forward matching pFMCNN_2.forward; x_nchw: (B, C, H, W) float32."""
    bsz = x_nchw.shape[0]
    tb = cfg["tb"]
    h_in, w_in, c_in = cfg["h_in"], cfg["w_in"], cfg["c_in"]
    b_pad = _round_up(bsz, tb)

    # NCHW -> NHWC -> stacked (B_pad*H, WCpad) bf16 slab (zero-padded batch/lanes).
    x = jnp.transpose(x_nchw, (0, 2, 3, 1)).reshape(bsz, h_in, w_in * c_in)
    x = jnp.pad(x, ((0, b_pad - bsz), (0, 0),
                    (0, cfg["wc1_pad"] - w_in * c_in)))
    x = x.reshape(b_pad * h_in, cfg["wc1_pad"]).astype(jnp.bfloat16)

    h = conv_relu_pool(x, kp["t1"], kp["b1"], kp["ws1"], kp["hs1"],
                       tb=tb, h_img=h_in, hp=cfg["hp1"])
    h = conv_relu_pool(h, kp["t2"], kp["b2"], kp["ws2"], kp["hs2"],
                       tb=tb, h_img=cfg["hp1"], hp=cfg["hp2"])

    # (B_pad*hp2, 128) -> (B_pad, hp2*128).  Padded lanes are zero and absorbed
    # by zero rows in w_fc1; row permutation in w_fc1 gives torch.flatten order.
    h = h.reshape(b_pad, cfg["hp2"] * cfg["wpc2_pad"])

    tb_fc = min(b_pad, 128)
    b_fc = _round_up(b_pad, tb_fc)
    if b_fc != b_pad:
        h = jnp.pad(h, ((0, b_fc - b_pad), (0, 0)))
    out = fc_head(h, kp["w_fc1"], kp["b_fc1"], kp["w_fc2"], kp["b_fc2"],
                  kp["w_head"], kp["b_head"], tb_fc=tb_fc)
    return out[:bsz, :cfg["num_classes"]]


# ---------------------------------------------------------------------------
# Host-side parameter preparation
# ---------------------------------------------------------------------------

def _build_toeplitz(w, width_in, wc_in_pad, woc_out_pad):
    """w: (Cout, Cin, kh, kw) torch layout -> (kh, wc_in_pad, woc_out_pad)."""
    w = np.asarray(w, np.float32)
    c_out, c_in, kh, kw = w.shape
    w_out = width_in - kw + 1
    t = np.zeros((kh, wc_in_pad, woc_out_pad), np.float32)
    for i in range(kh):
        for j in range(kw):
            blk = w[:, :, i, j].T                       # (Cin, Cout)
            for wo in range(w_out):
                wi = wo + j
                t[i, wi * c_in:(wi + 1) * c_in,
                  wo * c_out:(wo + 1) * c_out] = blk
    return t


def _build_width_selector(w_out, c_out, woc_pad, wpc_pad):
    """0/1 [even | odd] column-selection matrix for width max-pool via matmul."""
    wp = w_out // 2
    s = np.zeros((woc_pad, 2 * wpc_pad), np.float32)
    for wc in range(wp):
        for c in range(c_out):
            s[(2 * wc) * c_out + c, wc * c_out + c] = 1.0
            s[(2 * wc + 1) * c_out + c, wpc_pad + wc * c_out + c] = 1.0
    return s


def _build_height_selector(tb, h_img, h_out, kh):
    """0/1 [even ; odd] row-selection matrix for TB stacked images."""
    hp = h_out // 2
    ho_big = tb * h_img - kh + 1
    s = np.zeros((2 * tb * hp, ho_big), np.float32)
    for b in range(tb):
        for h in range(hp):
            s[b * hp + h, b * h_img + 2 * h] = 1.0
            s[tb * hp + b * hp + h, b * h_img + 2 * h + 1] = 1.0
    return s


def prepare_kernel_params(p, height, width, num_classes, batch_tile):
    c_in = p["conv1_w"].shape[1]
    c1 = p["conv1_w"].shape[0]
    c2 = p["conv2_w"].shape[0]
    kh, kw = p["conv1_w"].shape[2], p["conv1_w"].shape[3]
    tb = batch_tile

    h1o, w1o = height - kh + 1, width - kw + 1       # 28, 28
    h1p, w1p = h1o // 2, w1o // 2                    # 14, 14
    h2o, w2o = h1p - kh + 1, w1p - kw + 1            # 10, 10
    h2p, w2p = h2o // 2, w2o // 2                    # 5, 5

    wc1_pad = _round_up(width * c_in, 128)           # 96  -> 128
    woc1_pad = _round_up(w1o * c1, 128)              # 448 -> 512
    wpc1_pad = _round_up(w1p * c1, 128)              # 224 -> 256
    woc2_pad = _round_up(w2o * c2, 128)              # 160 -> 256
    wpc2_pad = _round_up(w2p * c2, 128)              # 80  -> 128

    t1 = _build_toeplitz(p["conv1_w"], width, wc1_pad, woc1_pad)
    ws1 = _build_width_selector(w1o, c1, woc1_pad, wpc1_pad)
    hs1 = _build_height_selector(tb, height, h1o, kh)
    b1 = np.zeros((1, woc1_pad), np.float32)
    b1[0, :w1o * c1] = np.tile(np.asarray(p["conv1_b"], np.float32), w1o)

    t2 = _build_toeplitz(p["conv2_w"], w1p, wpc1_pad, woc2_pad)
    ws2 = _build_width_selector(w2o, c2, woc2_pad, wpc2_pad)
    hs2 = _build_height_selector(tb, h1p, h2o, kh)
    b2 = np.zeros((1, woc2_pad), np.float32)
    b2[0, :w2o * c2] = np.tile(np.asarray(p["conv2_b"], np.float32), w2o)

    # fc1: our feature order is f = h*wpc2_pad + w*c2 + c (padded lanes -> zero
    # rows); torch.flatten(NCHW,1) order is c*h2p*w2p + h*w2p + w.
    fc1_t = np.asarray(p["fc1_w"], np.float32)            # (2000, dim)
    n_hid1 = fc1_t.shape[0]
    w_fc1 = np.zeros((h2p * wpc2_pad, n_hid1), np.float32)
    for h in range(h2p):
        for w in range(w2p):
            for c in range(c2):
                w_fc1[h * wpc2_pad + w * c2 + c, :] = \
                    fc1_t[:, c * h2p * w2p + h * w2p + w]

    w_fc2 = np.asarray(p["fc2_w"], np.float32).T           # (2000, 500)

    n_pad = _round_up(num_classes, 128)
    head_t = np.asarray(p["head_w"], np.float32)            # (num_classes, 500)
    w_head = np.zeros((head_t.shape[1], n_pad), np.float32)
    w_head[:, :num_classes] = head_t.T
    b_head = np.zeros((1, n_pad), np.float32)
    b_head[0, :num_classes] = np.asarray(p["head_b"], np.float32)

    bf16, f32 = jnp.bfloat16, jnp.float32
    kp = {
        "t1": jnp.asarray(t1, bf16), "b1": jnp.asarray(b1, f32),
        "ws1": jnp.asarray(ws1, bf16), "hs1": jnp.asarray(hs1, bf16),
        "t2": jnp.asarray(t2, bf16), "b2": jnp.asarray(b2, f32),
        "ws2": jnp.asarray(ws2, bf16), "hs2": jnp.asarray(hs2, bf16),
        "w_fc1": jnp.asarray(w_fc1, bf16),
        "b_fc1": jnp.asarray(np.asarray(p["fc1_b"], np.float32)[None, :], f32),
        "w_fc2": jnp.asarray(w_fc2, bf16),
        "b_fc2": jnp.asarray(np.asarray(p["fc2_b"], np.float32)[None, :], f32),
        "w_head": jnp.asarray(w_head, bf16),
        "b_head": jnp.asarray(b_head, f32),
    }
    cfg = {
        "tb": tb, "h_in": height, "w_in": width, "c_in": c_in,
        "hp1": h1p, "hp2": h2p,
        "wc1_pad": wc1_pad, "wpc1_pad": wpc1_pad, "wpc2_pad": wpc2_pad,
        "num_classes": num_classes,
    }
    return kp, cfg


# ---------------------------------------------------------------------------
# Parameter init (torch layout) + pure-JAX reference
# ---------------------------------------------------------------------------

def init_torch_params(key, in_channels=3, num_classes=10, dim=400):
    """Deterministic init mimicking PyTorch's U(-1/sqrt(fan_in), 1/sqrt(fan_in))."""
    ks = jax.random.split(key, 10)

    def u(k, fan_in, shape):
        bound = 1.0 / (fan_in ** 0.5)
        return jax.random.uniform(k, shape, jnp.float32, -bound, bound)

    return {
        "conv1_w": u(ks[0], in_channels * 25, (16, in_channels, 5, 5)),
        "conv1_b": u(ks[1], in_channels * 25, (16,)),
        "conv2_w": u(ks[2], 16 * 25, (16, 16, 5, 5)),
        "conv2_b": u(ks[3], 16 * 25, (16,)),
        "fc1_w": u(ks[4], dim, (2000, dim)),
        "fc1_b": u(ks[5], dim, (2000,)),
        "fc2_w": u(ks[6], 2000, (500, 2000)),
        "fc2_b": u(ks[7], 2000, (500,)),
        "head_w": u(ks[8], 500, (num_classes, 500)),
        "head_b": u(ks[9], 500, (num_classes,)),
    }


def reference_forward(p, x_nchw):
    """Pure-JAX f32 reference with identical semantics to the torch module."""
    def conv_relu_pool_ref(x, w, b):
        y = jax.lax.conv_general_dilated(
            x, w, window_strides=(1, 1), padding="VALID",
            dimension_numbers=("NCHW", "OIHW", "NCHW"))
        y = jax.nn.relu(y + b[None, :, None, None])
        return jax.lax.reduce_window(y, -jnp.inf, jax.lax.max,
                                     (1, 1, 2, 2), (1, 1, 2, 2), "VALID")

    h = conv_relu_pool_ref(x_nchw, p["conv1_w"], p["conv1_b"])
    h = conv_relu_pool_ref(h, p["conv2_w"], p["conv2_b"])
    h = h.reshape(h.shape[0], -1)
    h = jax.nn.relu(h @ p["fc1_w"].T + p["fc1_b"])
    h = jax.nn.relu(h @ p["fc2_w"].T + p["fc2_b"])
    return h @ p["head_w"].T + p["head_b"]


# ---------------------------------------------------------------------------

if __name__ == "__main__":
    key = jax.random.PRNGKey(0)
    pkey, xkey = jax.random.split(key)

    # Input implied by dim=400: 32x32x3 -> conv5 -> 28 -> pool -> 14
    # -> conv5 -> 10 -> pool -> 5; 16*5*5 = 400.
    B, C, H, W = 2, 3, 32, 32
    x = jax.random.normal(xkey, (B, C, H, W), dtype=jnp.float32)

    torch_params = init_torch_params(pkey, in_channels=C, num_classes=10, dim=400)
    kparams, cfg = prepare_kernel_params(torch_params, height=H, width=W,
                                         num_classes=10, batch_tile=min(B, 8))

    fwd = jax.jit(functools.partial(pfmcnn2_forward, cfg=cfg))
    out = jax.block_until_ready(fwd(kparams, x))

    assert out.shape == (B, 10), out.shape
    assert out.dtype == jnp.float32, out.dtype
    assert bool(jnp.all(jnp.isfinite(out)))

    # Numerical check vs. an f32 reference (loose tol: bf16 matmul operands,
    # f32 accumulation; pooling on bf16-rounded values is equivalent to the
    # previous f32 pooling since max commutes with monotone rounding).
    ref = jax.block_until_ready(reference_forward(torch_params, x))
    np.testing.assert_allclose(np.asarray(out), np.asarray(ref),
                               rtol=1e-1, atol=2e-2)

    print("KERNEL_OK")
</pallas_src>

<mosaic_0001>
module attributes {stable_mosaic.version = 11 : i64} {
  func.func @_conv_relu_pool_kernel(%arg0: i32, %arg1: memref<28x256xbf16, #tpu.memory_space<vmem>>, %arg2: memref<5x256x256xbf16, #tpu.memory_space<vmem>>, %arg3: memref<1x256xf32, #tpu.memory_space<vmem>>, %arg4: memref<256x256xbf16, #tpu.memory_space<vmem>>, %arg5: memref<20x24xbf16, #tpu.memory_space<vmem>>, %arg6: memref<10x128xbf16, #tpu.memory_space<vmem>>) attributes {dimension_semantics = [#tpu.dimension_semantics<parallel>], iteration_bounds = array<i64: 1>, scalar_prefetch = 0 : i64, scratch_operands = 0 : i64, tpu.core_type = #tpu.core_type<tc>, window_params = [{transform_indices = @transform_0, window_bounds = array<i64: 28, 256>}, {pipeline_mode = #tpu.pipeline_mode<synchronous>, transform_indices = @transform_1, window_bounds = array<i64: 5, 256, 256>}, {pipeline_mode = #tpu.pipeline_mode<synchronous>, transform_indices = @transform_2, window_bounds = array<i64: 1, 256>}, {pipeline_mode = #tpu.pipeline_mode<synchronous>, transform_indices = @transform_3, window_bounds = array<i64: 256, 256>}, {pipeline_mode = #tpu.pipeline_mode<synchronous>, transform_indices = @transform_4, window_bounds = array<i64: 20, 24>}, {transform_indices = @transform_5, window_bounds = array<i64: 10, 128>}]} {
    %c0 = arith.constant 0 : index
    %c0_0 = arith.constant 0 : index
    %0 = vector.load %arg1[%c0, %c0_0] : memref<28x256xbf16, #tpu.memory_space<vmem>>, vector<28x256xbf16>
    %1 = vector.extract_strided_slice %0 {offsets = [0, 0], sizes = [24, 256], strides = [1, 1]} : vector<28x256xbf16> to vector<24x256xbf16>
    %c0_1 = arith.constant 0 : index
    %c0_2 = arith.constant 0 : index
    %c0_3 = arith.constant 0 : index
    %2 = vector.load %arg2[%c0_1, %c0_2, %c0_3] : memref<5x256x256xbf16, #tpu.memory_space<vmem>>, vector<1x256x256xbf16>
    %3 = vector.shape_cast %2 : vector<1x256x256xbf16> to vector<256x256xbf16>
    %cst = arith.constant dense<0.000000e+00> : vector<24x256xf32>
    %4 = tpu.matmul %1, %3, %cst {dimension_numbers = #tpu.dot_dimension_numbers<[1], [0], [0], [1], [0, 0, 1, 1], [], []>} : vector<24x256xbf16>, vector<256x256xbf16>, vector<24x256xf32> -> vector<24x256xf32>
    %5 = vector.extract_strided_slice %0 {offsets = [1, 0], sizes = [24, 256], strides = [1, 1]} : vector<28x256xbf16> to vector<24x256xbf16>
    %c1 = arith.constant 1 : index
    %c0_4 = arith.constant 0 : index
    %c0_5 = arith.constant 0 : index
    %6 = vector.load %arg2[%c1, %c0_4, %c0_5] : memref<5x256x256xbf16, #tpu.memory_space<vmem>>, vector<1x256x256xbf16>
    %7 = vector.shape_cast %6 : vector<1x256x256xbf16> to vector<256x256xbf16>
    %cst_6 = arith.constant dense<0.000000e+00> : vector<24x256xf32>
    %8 = tpu.matmul %5, %7, %cst_6 {dimension_numbers = #tpu.dot_dimension_numbers<[1], [0], [0], [1], [0, 0, 1, 1], [], []>} : vector<24x256xbf16>, vector<256x256xbf16>, vector<24x256xf32> -> vector<24x256xf32>
    %9 = arith.addf %4, %8 : vector<24x256xf32>
    %10 = vector.extract_strided_slice %0 {offsets = [2, 0], sizes = [24, 256], strides = [1, 1]} : vector<28x256xbf16> to vector<24x256xbf16>
    %c2 = arith.constant 2 : index
    %c0_7 = arith.constant 0 : index
    %c0_8 = arith.constant 0 : index
    %11 = vector.load %arg2[%c2, %c0_7, %c0_8] : memref<5x256x256xbf16, #tpu.memory_space<vmem>>, vector<1x256x256xbf16>
    %12 = vector.shape_cast %11 : vector<1x256x256xbf16> to vector<256x256xbf16>
    %cst_9 = arith.constant dense<0.000000e+00> : vector<24x256xf32>
    %13 = tpu.matmul %10, %12, %cst_9 {dimension_numbers = #tpu.dot_dimension_numbers<[1], [0], [0], [1], [0, 0, 1, 1], [], []>} : vector<24x256xbf16>, vector<256x256xbf16>, vector<24x256xf32> -> vector<24x256xf32>
    %14 = arith.addf %9, %13 : vector<24x256xf32>
    %15 = vector.extract_strided_slice %0 {offsets = [3, 0], sizes = [24, 256], strides = [1, 1]} : vector<28x256xbf16> to vector<24x256xbf16>
    %c3 = arith.constant 3 : index
    %c0_10 = arith.constant 0 : index
    %c0_11 = arith.constant 0 : index
    %16 = vector.load %arg2[%c3, %c0_10, %c0_11] : memref<5x256x256xbf16, #tpu.memory_space<vmem>>, vector<1x256x256xbf16>
    %17 = vector.shape_cast %16 : vector<1x256x256xbf16> to vector<256x256xbf16>
    %cst_12 = arith.constant dense<0.000000e+00> : vector<24x256xf32>
    %18 = tpu.matmul %15, %17, %cst_12 {dimension_numbers = #tpu.dot_dimension_numbers<[1], [0], [0], [1], [0, 0, 1, 1], [], []>} : vector<24x256xbf16>, vector<256x256xbf16>, vector<24x256xf32> -> vector<24x256xf32>
    %19 = arith.addf %14, %18 : vector<24x256xf32>
    %20 = vector.extract_strided_slice %0 {offsets = [4, 0], sizes = [24, 256], strides = [1, 1]} : vector<28x256xbf16> to vector<24x256xbf16>
    %c4 = arith.constant 4 : index
    %c0_13 = arith.constant 0 : index
    %c0_14 = arith.constant 0 : index
    %21 = vector.load %arg2[%c4, %c0_13, %c0_14] : memref<5x256x256xbf16, #tpu.memory_space<vmem>>, vector<1x256x256xbf16>
    %22 = vector.shape_cast %21 : vector<1x256x256xbf16> to vector<256x256xbf16>
    %cst_15 = arith.constant dense<0.000000e+00> : vector<24x256xf32>
    %23 = tpu.matmul %20, %22, %cst_15 {dimension_numbers = #tpu.dot_dimension_numbers<[1], [0], [0], [1], [0, 0, 1, 1], [], []>} : vector<24x256xbf16>, vector<256x256xbf16>, vector<24x256xf32> -> vector<24x256xf32>
    %24 = arith.addf %19, %23 : vector<24x256xf32>
    %c0_16 = arith.constant 0 : index
    %c0_17 = arith.constant 0 : index
    %25 = vector.load %arg3[%c0_16, %c0_17] : memref<1x256xf32, #tpu.memory_space<vmem>>, vector<1x256xf32>
    %26 = vector.broadcast %25 : vector<1x256xf32> to vector<24x256xf32>
    %27 = arith.addf %24, %26 : vector<24x256xf32>
    %cst_18 = arith.constant 0.000000e+00 : f32
    %28 = vector.broadcast %cst_18 : f32 to vector<24x256xf32>
    %29 = arith.maximumf %27, %28 : vector<24x256xf32>
    %30 = arith.truncf %29 : vector<24x256xf32> to vector<24x256xbf16>
    %c0_19 = arith.constant 0 : index
    %c0_20 = arith.constant 0 : index
    %31 = vector.load %arg4[%c0_19, %c0_20] : memref<256x256xbf16, #tpu.memory_space<vmem>>, vector<256x256xbf16>
    %cst_21 = arith.constant dense<0.000000e+00> : vector<24x256xf32>
    %32 = tpu.matmul %30, %31, %cst_21 {dimension_numbers = #tpu.dot_dimension_numbers<[1], [0], [0], [1], [0, 0, 1, 1], [], []>} : vector<24x256xbf16>, vector<256x256xbf16>, vector<24x256xf32> -> vector<24x256xf32>
    %33 = vector.extract_strided_slice %32 {offsets = [0, 0], sizes = [24, 128], strides = [1, 1]} : vector<24x256xf32> to vector<24x128xf32>
    %34 = vector.extract_strided_slice %32 {offsets = [0, 128], sizes = [24, 128], strides = [1, 1]} : vector<24x256xf32> to vector<24x128xf32>
    %35 = arith.maximumf %33, %34 : vector<24x128xf32>
    %36 = arith.truncf %35 : vector<24x128xf32> to vector<24x128xbf16>
    %c0_22 = arith.constant 0 : index
    %c0_23 = arith.constant 0 : index
    %37 = vector.load %arg5[%c0_22, %c0_23] : memref<20x24xbf16, #tpu.memory_space<vmem>>, vector<20x24xbf16>
    %cst_24 = arith.constant dense<0.000000e+00> : vector<20x128xf32>
    %38 = tpu.matmul %37, %36, %cst_24 {dimension_numbers = #tpu.dot_dimension_numbers<[1], [0], [0], [1], [0, 0, 1, 1], [], []>} : vector<20x24xbf16>, vector<24x128xbf16>, vector<20x128xf32> -> vector<20x128xf32>
    %39 = vector.extract_strided_slice %38 {offsets = [0, 0], sizes = [10, 128], strides = [1, 1]} : vector<20x128xf32> to vector<10x128xf32>
    %40 = vector.extract_strided_slice %38 {offsets = [10, 0], sizes = [10, 128], strides = [1, 1]} : vector<20x128xf32> to vector<10x128xf32>
    %41 = arith.maximumf %39, %40 : vector<10x128xf32>
    %42 = arith.truncf %41 : vector<10x128xf32> to vector<10x128xbf16>
    %c0_25 = arith.constant 0 : index
    %c0_26 = arith.constant 0 : index
    %43 = vector.load %arg6[%c0_25, %c0_26] : memref<10x128xbf16, #tpu.memory_space<vmem>>, vector<10x128xbf16>
    tpu.vector_store %arg6[%c0_25, %c0_26], %42 {strides = array<i32>} : memref<10x128xbf16, #tpu.memory_space<vmem>>, vector<10x128xbf16>,
    return
  }
  func.func @transform_0(%arg0: i32) -> (i32, i32) {
    %c0_i32 = arith.constant 0 : i32
    %c0_i32_0 = arith.constant 0 : i32
    return %arg0, %c0_i32 : i32, i32
  }
  func.func @transform_1(%arg0: i32) -> (i32, i32, i32) {
    %c0_i32 = arith.constant 0 : i32
    %c0_i32_0 = arith.constant 0 : i32
    %c0_i32_1 = arith.constant 0 : i32
    %c0_i32_2 = arith.constant 0 : i32
    return %c0_i32, %c0_i32_0, %c0_i32_1 : i32, i32, i32
  }
  func.func @transform_2(%arg0: i32) -> (i32, i32) {
    %c0_i32 = arith.constant 0 : i32
    %c0_i32_0 = arith.constant 0 : i32
    %c0_i32_1 = arith.constant 0 : i32
    return %c0_i32, %c0_i32_0 : i32, i32
  }
  func.func @transform_3(%arg0: i32) -> (i32, i32) {
    %c0_i32 = arith.constant 0 : i32
    %c0_i32_0 = arith.constant 0 : i32
    %c0_i32_1 = arith.constant 0 : i32
    return %c0_i32, %c0_i32_0 : i32, i32
  }
  func.func @transform_4(%arg0: i32) -> (i32, i32) {
    %c0_i32 = arith.constant 0 : i32
    %c0_i32_0 = arith.constant 0 : i32
    %c0_i32_1 = arith.constant 0 : i32
    return %c0_i32, %c0_i32_0 : i32, i32
  }
  func.func @transform_5(%arg0: i32) -> (i32, i32) {
    %c0_i32 = arith.constant 0 : i32
    %c0_i32_0 = arith.constant 0 : i32
    return %arg0, %c0_i32 : i32, i32
  }
}

module attributes {stable_mosaic.version = 11 : i64} {
  func.func @_conv_relu_pool_kernel(%arg0: i32, %arg1: memref<64x128xbf16, #tpu.memory_space<vmem>>, %arg2: memref<5x128x512xbf16, #tpu.memory_space<vmem>>, %arg3: memref<1x512xf32, #tpu.memory_space<vmem>>, %arg4: memref<512x512xbf16, #tpu.memory_space<vmem>>, %arg5: memref<56x60xbf16, #tpu.memory_space<vmem>>, %arg6: memref<28x256xbf16, #tpu.memory_space<vmem>>) attributes {dimension_semantics = [#tpu.dimension_semantics<parallel>], iteration_bounds = array<i64: 1>, scalar_prefetch = 0 : i64, scratch_operands = 0 : i64, tpu.core_type = #tpu.core_type<tc>, window_params = [{transform_indices = @transform_0, window_bounds = array<i64: 64, 128>}, {pipeline_mode = #tpu.pipeline_mode<synchronous>, transform_indices = @transform_1, window_bounds = array<i64: 5, 128, 512>}, {pipeline_mode = #tpu.pipeline_mode<synchronous>, transform_indices = @transform_2, window_bounds = array<i64: 1, 512>}, {pipeline_mode = #tpu.pipeline_mode<synchronous>, transform_indices = @transform_3, window_bounds = array<i64: 512, 512>}, {pipeline_mode = #tpu.pipeline_mode<synchronous>, transform_indices = @transform_4, window_bounds = array<i64: 56, 60>}, {transform_indices = @transform_5, window_bounds = array<i64: 28, 256>}]} {
    %c0 = arith.constant 0 : index
    %c0_0 = arith.constant 0 : index
    %0 = vector.load %arg1[%c0, %c0_0] : memref<64x128xbf16, #tpu.memory_space<vmem>>, vector<64x128xbf16>
    %1 = vector.extract_strided_slice %0 {offsets = [0, 0], sizes = [60, 128], strides = [1, 1]} : vector<64x128xbf16> to vector<60x128xbf16>
    %c0_1 = arith.constant 0 : index
    %c0_2 = arith.constant 0 : index
    %c0_3 = arith.constant 0 : index
    %2 = vector.load %arg2[%c0_1, %c0_2, %c0_3] : memref<5x128x512xbf16, #tpu.memory_space<vmem>>, vector<1x128x512xbf16>
    %3 = vector.shape_cast %2 : vector<1x128x512xbf16> to vector<128x512xbf16>
    %cst = arith.constant dense<0.000000e+00> : vector<60x512xf32>
    %4 = tpu.matmul %1, %3, %cst {dimension_numbers = #tpu.dot_dimension_numbers<[1], [0], [0], [1], [0, 0, 1, 1], [], []>} : vector<60x128xbf16>, vector<128x512xbf16>, vector<60x512xf32> -> vector<60x512xf32>
    %5 = vector.extract_strided_slice %0 {offsets = [1, 0], sizes = [60, 128], strides = [1, 1]} : vector<64x128xbf16> to vector<60x128xbf16>
    %c1 = arith.constant 1 : index
    %c0_4 = arith.constant 0 : index
    %c0_5 = arith.constant 0 : index
    %6 = vector.load %arg2[%c1, %c0_4, %c0_5] : memref<5x128x512xbf16, #tpu.memory_space<vmem>>, vector<1x128x512xbf16>
    %7 = vector.shape_cast %6 : vector<1x128x512xbf16> to vector<128x512xbf16>
    %cst_6 = arith.constant dense<0.000000e+00> : vector<60x512xf32>
    %8 = tpu.matmul %5, %7, %cst_6 {dimension_numbers = #tpu.dot_dimension_numbers<[1], [0], [0], [1], [0, 0, 1, 1], [], []>} : vector<60x128xbf16>, vector<128x512xbf16>, vector<60x512xf32> -> vector<60x512xf32>
    %9 = arith.addf %4, %8 : vector<60x512xf32>
    %10 = vector.extract_strided_slice %0 {offsets = [2, 0], sizes = [60, 128], strides = [1, 1]} : vector<64x128xbf16> to vector<60x128xbf16>
    %c2 = arith.constant 2 : index
    %c0_7 = arith.constant 0 : index
    %c0_8 = arith.constant 0 : index
    %11 = vector.load %arg2[%c2, %c0_7, %c0_8] : memref<5x128x512xbf16, #tpu.memory_space<vmem>>, vector<1x128x512xbf16>
    %12 = vector.shape_cast %11 : vector<1x128x512xbf16> to vector<128x512xbf16>
    %cst_9 = arith.constant dense<0.000000e+00> : vector<60x512xf32>
    %13 = tpu.matmul %10, %12, %cst_9 {dimension_numbers = #tpu.dot_dimension_numbers<[1], [0], [0], [1], [0, 0, 1, 1], [], []>} : vector<60x128xbf16>, vector<128x512xbf16>, vector<60x512xf32> -> vector<60x512xf32>
    %14 = arith.addf %9, %13 : vector<60x512xf32>
    %15 = vector.extract_strided_slice %0 {offsets = [3, 0], sizes = [60, 128], strides = [1, 1]} : vector<64x128xbf16> to vector<60x128xbf16>
    %c3 = arith.constant 3 : index
    %c0_10 = arith.constant 0 : index
    %c0_11 = arith.constant 0 : index
    %16 = vector.load %arg2[%c3, %c0_10, %c0_11] : memref<5x128x512xbf16, #tpu.memory_space<vmem>>, vector<1x128x512xbf16>
    %17 = vector.shape_cast %16 : vector<1x128x512xbf16> to vector<128x512xbf16>
    %cst_12 = arith.constant dense<0.000000e+00> : vector<60x512xf32>
    %18 = tpu.matmul %15, %17, %cst_12 {dimension_numbers = #tpu.dot_dimension_numbers<[1], [0], [0], [1], [0, 0, 1, 1], [], []>} : vector<60x128xbf16>, vector<128x512xbf16>, vector<60x512xf32> -> vector<60x512xf32>
    %19 = arith.addf %14, %18 : vector<60x512xf32>
    %20 = vector.extract_strided_slice %0 {offsets = [4, 0], sizes = [60, 128], strides = [1, 1]} : vector<64x128xbf16> to vector<60x128xbf16>
    %c4 = arith.constant 4 : index
    %c0_13 = arith.constant 0 : index
    %c0_14 = arith.constant 0 : index
    %21 = vector.load %arg2[%c4, %c0_13, %c0_14] : memref<5x128x512xbf16, #tpu.memory_space<vmem>>, vector<1x128x512xbf16>
    %22 = vector.shape_cast %21 : vector<1x128x512xbf16> to vector<128x512xbf16>
    %cst_15 = arith.constant dense<0.000000e+00> : vector<60x512xf32>
    %23 = tpu.matmul %20, %22, %cst_15 {dimension_numbers = #tpu.dot_dimension_numbers<[1], [0], [0], [1], [0, 0, 1, 1], [], []>} : vector<60x128xbf16>, vector<128x512xbf16>, vector<60x512xf32> -> vector<60x512xf32>
    %24 = arith.addf %19, %23 : vector<60x512xf32>
    %c0_16 = arith.constant 0 : index
    %c0_17 = arith.constant 0 : index
    %25 = vector.load %arg3[%c0_16, %c0_17] : memref<1x512xf32, #tpu.memory_space<vmem>>, vector<1x512xf32>
    %26 = vector.broadcast %25 : vector<1x512xf32> to vector<60x512xf32>
    %27 = arith.addf %24, %26 : vector<60x512xf32>
    %cst_18 = arith.constant 0.000000e+00 : f32
    %28 = vector.broadcast %cst_18 : f32 to vector<60x512xf32>
    %29 = arith.maximumf %27, %28 : vector<60x512xf32>
    %30 = arith.truncf %29 : vector<60x512xf32> to vector<60x512xbf16>
    %c0_19 = arith.constant 0 : index
    %c0_20 = arith.constant 0 : index
    %31 = vector.load %arg4[%c0_19, %c0_20] : memref<512x512xbf16, #tpu.memory_space<vmem>>, vector<512x512xbf16>
    %cst_21 = arith.constant dense<0.000000e+00> : vector<60x512xf32>
    %32 = tpu.matmul %30, %31, %cst_21 {dimension_numbers = #tpu.dot_dimension_numbers<[1], [0], [0], [1], [0, 0, 1, 1], [], []>} : vector<60x512xbf16>, vector<512x512xbf16>, vector<60x512xf32> -> vector<60x512xf32>
    %33 = vector.extract_strided_slice %32 {offsets = [0, 0], sizes = [60, 256], strides = [1, 1]} : vector<60x512xf32> to vector<60x256xf32>
    %34 = vector.extract_strided_slice %32 {offsets = [0, 256], sizes = [60, 256], strides = [1, 1]} : vector<60x512xf32> to vector<60x256xf32>
    %35 = arith.maximumf %33, %34 : vector<60x256xf32>
    %36 = arith.truncf %35 : vector<60x256xf32> to vector<60x256xbf16>
    %c0_22 = arith.constant 0 : index
    %c0_23 = arith.constant 0 : index
    %37 = vector.load %arg5[%c0_22, %c0_23] : memref<56x60xbf16, #tpu.memory_space<vmem>>, vector<56x60xbf16>
    %cst_24 = arith.constant dense<0.000000e+00> : vector<56x256xf32>
    %38 = tpu.matmul %37, %36, %cst_24 {dimension_numbers = #tpu.dot_dimension_numbers<[1], [0], [0], [1], [0, 0, 1, 1], [], []>} : vector<56x60xbf16>, vector<60x256xbf16>, vector<56x256xf32> -> vector<56x256xf32>
    %39 = vector.extract_strided_slice %38 {offsets = [0, 0], sizes = [28, 256], strides = [1, 1]} : vector<56x256xf32> to vector<28x256xf32>
    %40 = vector.extract_strided_slice %38 {offsets = [28, 0], sizes = [28, 256], strides = [1, 1]} : vector<56x256xf32> to vector<28x256xf32>
    %41 = arith.maximumf %39, %40 : vector<28x256xf32>
    %42 = arith.truncf %41 : vector<28x256xf32> to vector<28x256xbf16>
    %c0_25 = arith.constant 0 : index
    %c0_26 = arith.constant 0 : index
    %43 = vector.load %arg6[%c0_25, %c0_26] : memref<28x256xbf16, #tpu.memory_space<vmem>>, vector<28x256xbf16>
    tpu.vector_store %arg6[%c0_25, %c0_26], %42 {strides = array<i32>} : memref<28x256xbf16, #tpu.memory_space<vmem>>, vector<28x256xbf16>,
    return
  }
  func.func @transform_0(%arg0: i32) -> (i32, i32) {
    %c0_i32 = arith.constant 0 : i32
    %c0_i32_0 = arith.constant 0 : i32
    return %arg0, %c0_i32 : i32, i32
  }
  func.func @transform_1(%arg0: i32) -> (i32, i32, i32) {
    %c0_i32 = arith.constant 0 : i32
    %c0_i32_0 = arith.constant 0 : i32
    %c0_i32_1 = arith.constant 0 : i32
    %c0_i32_2 = arith.constant 0 : i32
    return %c0_i32, %c0_i32_0, %c0_i32_1 : i32, i32, i32
  }
  func.func @transform_2(%arg0: i32) -> (i32, i32) {
    %c0_i32 = arith.constant 0 : i32
    %c0_i32_0 = arith.constant 0 : i32
    %c0_i32_1 = arith.constant 0 : i32
    return %c0_i32, %c0_i32_0 : i32, i32
  }
  func.func @transform_3(%arg0: i32) -> (i32, i32) {
    %c0_i32 = arith.constant 0 : i32
    %c0_i32_0 = arith.constant 0 : i32
    %c0_i32_1 = arith.constant 0 : i32
    return %c0_i32, %c0_i32_0 : i32, i32
  }
  func.func @transform_4(%arg0: i32) -> (i32, i32) {
    %c0_i32 = arith.constant 0 : i32
    %c0_i32_0 = arith.constant 0 : i32
    %c0_i32_1 = arith.constant 0 : i32
    return %c0_i32, %c0_i32_0 : i32, i32
  }
  func.func @transform_5(%arg0: i32) -> (i32, i32) {
    %c0_i32 = arith.constant 0 : i32
    %c0_i32_0 = arith.constant 0 : i32
    return %arg0, %c0_i32 : i32, i32
  }
}

module attributes {stable_mosaic.version = 11 : i64} {
  func.func @_fc_head_kernel(%arg0: i32, %arg1: memref<2x640xbf16, #tpu.memory_space<vmem>>, %arg2: memref<640x2000xbf16, #tpu.memory_space<vmem>>, %arg3: memref<1x2000xf32, #tpu.memory_space<vmem>>, %arg4: memref<2000x500xbf16, #tpu.memory_space<vmem>>, %arg5: memref<1x500xf32, #tpu.memory_space<vmem>>, %arg6: memref<500x128xbf16, #tpu.memory_space<vmem>>, %arg7: memref<1x128xf32, #tpu.memory_space<vmem>>, %arg8: memref<2x128xf32, #tpu.memory_space<vmem>>) attributes {dimension_semantics = [#tpu.dimension_semantics<parallel>], iteration_bounds = array<i64: 1>, scalar_prefetch = 0 : i64, scratch_operands = 0 : i64, tpu.core_type = #tpu.core_type<tc>, window_params = [{transform_indices = @transform_0, window_bounds = array<i64: 2, 640>}, {pipeline_mode = #tpu.pipeline_mode<synchronous>, transform_indices = @transform_1, window_bounds = array<i64: 640, 2000>}, {pipeline_mode = #tpu.pipeline_mode<synchronous>, transform_indices = @transform_2, window_bounds = array<i64: 1, 2000>}, {pipeline_mode = #tpu.pipeline_mode<synchronous>, transform_indices = @transform_3, window_bounds = array<i64: 2000, 500>}, {pipeline_mode = #tpu.pipeline_mode<synchronous>, transform_indices = @transform_4, window_bounds = array<i64: 1, 500>}, {pipeline_mode = #tpu.pipeline_mode<synchronous>, transform_indices = @transform_5, window_bounds = array<i64: 500, 128>}, {pipeline_mode = #tpu.pipeline_mode<synchronous>, transform_indices = @transform_6, window_bounds = array<i64: 1, 128>}, {transform_indices = @transform_7, window_bounds = array<i64: 2, 128>}]} {
    %c0 = arith.constant 0 : index
    %c0_0 = arith.constant 0 : index
    %0 = vector.load %arg1[%c0, %c0_0] : memref<2x640xbf16, #tpu.memory_space<vmem>>, vector<2x640xbf16>
    %c0_1 = arith.constant 0 : index
    %c0_2 = arith.constant 0 : index
    %1 = vector.load %arg2[%c0_1, %c0_2] : memref<640x2000xbf16, #tpu.memory_space<vmem>>, vector<640x2000xbf16>
    %cst = arith.constant dense<0.000000e+00> : vector<2x2000xf32>
    %2 = tpu.matmul %0, %1, %cst {dimension_numbers = #tpu.dot_dimension_numbers<[1], [0], [0], [1], [0, 0, 1, 1], [], []>} : vector<2x640xbf16>, vector<640x2000xbf16>, vector<2x2000xf32> -> vector<2x2000xf32>
    %c0_3 = arith.constant 0 : index
    %c0_4 = arith.constant 0 : index
    %3 = vector.load %arg3[%c0_3, %c0_4] : memref<1x2000xf32, #tpu.memory_space<vmem>>, vector<1x2000xf32>
    %4 = vector.broadcast %3 : vector<1x2000xf32> to vector<2x2000xf32>
    %5 = arith.addf %2, %4 : vector<2x2000xf32>
    %cst_5 = arith.constant 0.000000e+00 : f32
    %6 = vector.broadcast %cst_5 : f32 to vector<2x2000xf32>
    %7 = arith.maximumf %5, %6 : vector<2x2000xf32>
    %8 = arith.truncf %7 : vector<2x2000xf32> to vector<2x2000xbf16>
    %c0_6 = arith.constant 0 : index
    %c0_7 = arith.constant 0 : index
    %9 = vector.load %arg4[%c0_6, %c0_7] : memref<2000x500xbf16, #tpu.memory_space<vmem>>, vector<2000x500xbf16>
    %cst_8 = arith.constant dense<0.000000e+00> : vector<2x500xf32>
    %10 = tpu.matmul %8, %9, %cst_8 {dimension_numbers = #tpu.dot_dimension_numbers<[1], [0], [0], [1], [0, 0, 1, 1], [], []>} : vector<2x2000xbf16>, vector<2000x500xbf16>, vector<2x500xf32> -> vector<2x500xf32>
    %c0_9 = arith.constant 0 : index
    %c0_10 = arith.constant 0 : index
    %11 = vector.load %arg5[%c0_9, %c0_10] : memref<1x500xf32, #tpu.memory_space<vmem>>, vector<1x500xf32>
    %12 = vector.broadcast %11 : vector<1x500xf32> to vector<2x500xf32>
    %13 = arith.addf %10, %12 : vector<2x500xf32>
    %cst_11 = arith.constant 0.000000e+00 : f32
    %14 = vector.broadcast %cst_11 : f32 to vector<2x500xf32>
    %15 = arith.maximumf %13, %14 : vector<2x500xf32>
    %16 = arith.truncf %15 : vector<2x500xf32> to vector<2x500xbf16>
    %c0_12 = arith.constant 0 : index
    %c0_13 = arith.constant 0 : index
    %17 = vector.load %arg6[%c0_12, %c0_13] : memref<500x128xbf16, #tpu.memory_space<vmem>>, vector<500x128xbf16>
    %cst_14 = arith.constant dense<0.000000e+00> : vector<2x128xf32>
    %18 = tpu.matmul %16, %17, %cst_14 {dimension_numbers = #tpu.dot_dimension_numbers<[1], [0], [0], [1], [0, 0, 1, 1], [], []>} : vector<2x500xbf16>, vector<500x128xbf16>, vector<2x128xf32> -> vector<2x128xf32>
    %c0_15 = arith.constant 0 : index
    %c0_16 = arith.constant 0 : index
    %19 = vector.load %arg7[%c0_15, %c0_16] : memref<1x128xf32, #tpu.memory_space<vmem>>, vector<1x128xf32>
    %20 = vector.broadcast %19 : vector<1x128xf32> to vector<2x128xf32>
    %21 = arith.addf %18, %20 : vector<2x128xf32>
    %c0_17 = arith.constant 0 : index
    %c0_18 = arith.constant 0 : index
    %22 = vector.load %arg8[%c0_17, %c0_18] : memref<2x128xf32, #tpu.memory_space<vmem>>, vector<2x128xf32>
    tpu.vector_store %arg8[%c0_17, %c0_18], %21 {strides = array<i32>} : memref<2x128xf32, #tpu.memory_space<vmem>>, vector<2x128xf32>,
    return
  }
  func.func @transform_0(%arg0: i32) -> (i32, i32) {
    %c0_i32 = arith.constant 0 : i32
    %c0_i32_0 = arith.constant 0 : i32
    return %arg0, %c0_i32 : i32, i32
  }
  func.func @transform_1(%arg0: i32) -> (i32, i32) {
    %c0_i32 = arith.constant 0 : i32
    %c0_i32_0 = arith.constant 0 : i32
    %c0_i32_1 = arith.constant 0 : i32
    return %c0_i32, %c0_i32_0 : i32, i32
  }
  func.func @transform_2(%arg0: i32) -> (i32, i32) {
    %c0_i32 = arith.constant 0 : i32
    %c0_i32_0 = arith.constant 0 : i32
    %c0_i32_1 = arith.constant 0 : i32
    return %c0_i32, %c0_i32_0 : i32, i32
  }
  func.func @transform_3(%arg0: i32) -> (i32, i32) {
    %c0_i32 = arith.constant 0 : i32
    %c0_i32_0 = arith.constant 0 : i32
    %c0_i32_1 = arith.constant 0 : i32
    return %c0_i32, %c0_i32_0 : i32, i32
  }
  func.func @transform_4(%arg0: i32) -> (i32, i32) {
    %c0_i32 = arith.constant 0 : i32
    %c0_i32_0 = arith.constant 0 : i32
    %c0_i32_1 = arith.constant 0 : i32
    return %c0_i32, %c0_i32_0 : i32, i32
  }
  func.func @transform_5(%arg0: i32) -> (i32, i32) {
    %c0_i32 = arith.constant 0 : i32
    %c0_i32_0 = arith.constant 0 : i32
    %c0_i32_1 = arith.constant 0 : i32
    return %c0_i32, %c0_i32_0 : i32, i32
  }
  func.func @transform_6(%arg0: i32) -> (i32, i32) {
    %c0_i32 = arith.constant 0 : i32
    %c0_i32_0 = arith.constant 0 : i32
    %c0_i32_1 = arith.constant 0 : i32
    return %c0_i32, %c0_i32_0 : i32, i32
  }
  func.func @transform_7(%arg0: i32) -> (i32, i32) {
    %c0_i32 = arith.constant 0 : i32
    %c0_i32_0 = arith.constant 0 : i32
    return %arg0, %c0_i32 : i32, i32
  }
}

</mosaic_0001>

<llo_original>
// kernel: pfmcnn2_forward.4
$region0: #{pfmcnn2_forward.4}
  #allocation0 [shape = 'u32[]', space=smem, size = 0x4, offset = 0x4, fixed_abs, tag = 'smem constant byte address 0x4 - core index']
  #allocation1 [shape = 'u32[144,128]{1,0:T(1,128)}', space=vmem, size = 0x12000, scoped, tag = 'internal scratch']
  %s0 = inlined_call_operand.vmem [shape: bf16[28,256], index: 0, kind: input, shape index: {}]
  %s1 = inlined_call_operand.hbm [shape: bf16[5,256,256], index: 1, kind: input, shape index: {}]
  %s2 = inlined_call_operand.hbm [shape: f32[1,256], index: 2, kind: input, shape index: {}]
  %s3 = inlined_call_operand.hbm [shape: bf16[256,256], index: 3, kind: input, shape index: {}]
  %s4 = inlined_call_operand.hbm [shape: bf16[20,24], index: 4, kind: input, shape index: {}]
  %s5 = inlined_call_operand.vmem [shape: bf16[10,128], index: 5, kind: output, shape index: {}]
  %s6 = sld [smem:[#allocation0]]
  $region46: #{pfmcnn2_forward.4} parent=0
    _
  %s8 = ssub.s32 1, %s6
  %s9 = scalar_select 0, %s8, %s6
  $region1: #{pfmcnn2_forward.4} parent=0
    #allocation2 [shape = 'u8[655360]{0}', space=vmem, size = 0xa0000, scoped, tag = 'input window, operand 1, single buffered']
    #allocation3 [shape = 's32[1]{0}', space=sflag, size = 0x4, scoped, tag = 'scoped memory for pfmcnn2_forward.4']
    #allocation4 [shape = 'u8[1024]{0}', space=vmem, size = 0x400, scoped, tag = 'input window, operand 2, single buffered']
    #allocation5 [shape = 's32[1]{0}', space=sflag, size = 0x4, scoped, tag = 'scoped memory for pfmcnn2_forward.4']
    #allocation6 [shape = 'u8[131072]{0}', space=vmem, size = 0x20000, scoped, tag = 'input window, operand 3, single buffered']
    #allocation7 [shape = 'u8[6144]{0}', space=vmem, size = 0x1800, scoped, tag = 'input window, operand 4, single buffered']
    #allocation8 [shape = 's32[1]{0}', space=sflag, size = 0x4, scoped, tag = 'scoped memory for pfmcnn2_forward.4']
    %10 = vsyncpa [#allocation3], 0
    %11 = vsyncpa [#allocation5], 0
    %12 = vsyncpa [#allocation8], 0
    // Predicated region
    $region2: #{pfmcnn2_forward.4} parent=1 // pred_check
      _
    $region3: #{pfmcnn2_forward.4} parent=1 // pred_check_branch
      %14 = sbr.rel (0) target = $region5
    $region4: #{pfmcnn2_forward.4} parent=1 // pred_region
      _
    $region5: #{pfmcnn2_forward.4} parent=1 // pred_fallthru
      _
    // Predicated region
    $region6: #{pfmcnn2_forward.4} parent=1 // pred_check
      _
    $region7: #{pfmcnn2_forward.4} parent=1 // pred_check_branch
      %16 = sbr.rel (0) target = $region9
    $region8: #{pfmcnn2_forward.4} parent=1 // pred_region
      %s18 = ssub.s32 20480, 20480
      %19 = vsyncadd [#allocation3], %s18
      %s20 = sshll.u32 [#allocation2], 4
      %s21 = int_to_ptr.vmem [resolvable:$true] %s20
      %26 = dma.hbm_to_vmem [thread:$0]  %s1, 20480, %s21, [#allocation3], 128, 128, 8
    $region9: #{pfmcnn2_forward.4} parent=1 // pred_fallthru
      _
    // Predicated region
    $region10: #{pfmcnn2_forward.4} parent=1 // pred_check
      _
    $region11: #{pfmcnn2_forward.4} parent=1 // pred_check_branch
      %28 = sbr.rel (0) target = $region13
    $region12: #{pfmcnn2_forward.4} parent=1 // pred_region
      %s30 = ssub.s32 32, 32
      %31 = vsyncadd [#allocation5], %s30
      %s33 = sshll.u32 [#allocation4], 4
      %s34 = int_to_ptr.vmem [resolvable:$true] %s33
      %36 = dma.hbm_to_vmem [thread:$0]  %s2, 32, %s34, [#allocation5]
    $region13: #{pfmcnn2_forward.4} parent=1 // pred_fallthru
      _
    // Predicated region
    $region14: #{pfmcnn2_forward.4} parent=1 // pred_check
      _
    $region15: #{pfmcnn2_forward.4} parent=1 // pred_check_branch
      %38 = sbr.rel (0) target = $region17
    $region16: #{pfmcnn2_forward.4} parent=1 // pred_region
      %s40 = ssub.s32 4096, 4096
      %41 = vsyncadd [#allocation5], %s40
      %s42 = sshll.u32 [#allocation6], 4
      %s43 = int_to_ptr.vmem [resolvable:$true] %s42
      %48 = dma.hbm_to_vmem [thread:$0]  %s3, 4096, %s43, [#allocation5], 128, 128, 8
    $region17: #{pfmcnn2_forward.4} parent=1 // pred_fallthru
      _
    // Predicated region
    $region18: #{pfmcnn2_forward.4} parent=1 // pred_check
      _
    $region19: #{pfmcnn2_forward.4} parent=1 // pred_check_branch
      %50 = sbr.rel (0) target = $region21
    $region20: #{pfmcnn2_forward.4} parent=1 // pred_region
      %s52 = ssub.s32 192, 192
      %53 = vsyncadd [#allocation8], %s52
      %s54 = sshll.u32 [#allocation7], 4
      %s55 = int_to_ptr.vmem [resolvable:$true] %s54
      %60 = dma.hbm_to_vmem [thread:$0]  %s4, 192, %s55, [#allocation8], 64, 64, 4
    $region21: #{pfmcnn2_forward.4} parent=1 // pred_fallthru
      _
    // Predicated region
    $region22: #{pfmcnn2_forward.4} parent=1 // pred_check
      _
    $region23: #{pfmcnn2_forward.4} parent=1 // pred_check_branch
      %62 = sbr.rel (0) target = $region25
    $region24: #{pfmcnn2_forward.4} parent=1 // pred_region
      %63 = dma.done [#allocation3], 20480
    $region25: #{pfmcnn2_forward.4} parent=1 // pred_fallthru
      _
    // Predicated region
    $region26: #{pfmcnn2_forward.4} parent=1 // pred_check
      _
    $region27: #{pfmcnn2_forward.4} parent=1 // pred_check_branch
      %65 = sbr.rel (0) target = $region29
    $region28: #{pfmcnn2_forward.4} parent=1 // pred_region
      %66 = dma.done [#allocation5], 32
    $region29: #{pfmcnn2_forward.4} parent=1 // pred_fallthru
      _
    // Predicated region
    $region30: #{pfmcnn2_forward.4} parent=1 // pred_check
      _
    $region31: #{pfmcnn2_forward.4} parent=1 // pred_check_branch
      %68 = sbr.rel (0) target = $region33
    $region32: #{pfmcnn2_forward.4} parent=1 // pred_region
      %69 = dma.done [#allocation5], 4096
    $region33: #{pfmcnn2_forward.4} parent=1 // pred_fallthru
      _
    // Predicated region
    $region34: #{pfmcnn2_forward.4} parent=1 // pred_check
      _
    $region35: #{pfmcnn2_forward.4} parent=1 // pred_check_branch
      %71 = sbr.rel (0) target = $region37
    $region36: #{pfmcnn2_forward.4} parent=1 // pred_region
      %72 = dma.done [#allocation8], 192
    $region37: #{pfmcnn2_forward.4} parent=1 // pred_fallthru
      _
    %v74 = vld [vmem:[%s0] sm:$0xff]
    %v75 = vld [vmem:[%s0 + $0x8] sm:$0xff]
    %v76 = vld [vmem:[%s0 + $0x10] sm:$0xff]
    %v77 = vld [vmem:[%s0 + $0x18] sm:$0x33]
    %v78 = vld [vmem:[#allocation2] sm:$0xff]
    %v79 = vld [vmem:[#allocation2 + $0x8] sm:$0xff]
    %v80 = vld [vmem:[#allocation2 + $0x10] sm:$0xff]
    %v81 = vld [vmem:[#allocation2 + $0x18] sm:$0xff]
    %v82 = vld [vmem:[#allocation2 + $0x20] sm:$0xff]
    %v83 = vld [vmem:[#allocation2 + $0x28] sm:$0xff]
    %v84 = vld [vmem:[#allocation2 + $0x30] sm:$0xff]
    %v85 = vld [vmem:[#allocation2 + $0x38] sm:$0xff]
    %v86 = vld [vmem:[#allocation2 + $0x40] sm:$0xff]
    %v87 = vld [vmem:[#allocation2 + $0x48] sm:$0xff]
    %v88 = vld [vmem:[#allocation2 + $0x50] sm:$0xff]
    %v89 = vld [vmem:[#allocation2 + $0x58] sm:$0xff]
    %v90 = vld [vmem:[#allocation2 + $0x60] sm:$0xff]
    %v91 = vld [vmem:[#allocation2 + $0x68] sm:$0xff]
    %v92 = vld [vmem:[#allocation2 + $0x70] sm:$0xff]
    %v93 = vld [vmem:[#allocation2 + $0x78] sm:$0xff]
    %v94 = vld [vmem:[#allocation2 + $0x80] sm:$0xff]
    %v95 = vld [vmem:[#allocation2 + $0x88] sm:$0xff]
    %v96 = vld [vmem:[#allocation2 + $0x90] sm:$0xff]
    %v97 = vld [vmem:[#allocation2 + $0x98] sm:$0xff]
    %v98 = vld [vmem:[#allocation2 + $0xa0] sm:$0xff]
    %v99 = vld [vmem:[#allocation2 + $0xa8] sm:$0xff]
    %v100 = vld [vmem:[#allocation2 + $0xb0] sm:$0xff]
    %v101 = vld [vmem:[#allocation2 + $0xb8] sm:$0xff]
    %v102 = vld [vmem:[#allocation2 + $0xc0] sm:$0xff]
    %v103 = vld [vmem:[#allocation2 + $0xc8] sm:$0xff]
    %v104 = vld [vmem:[#allocation2 + $0xd0] sm:$0xff]
    %v105 = vld [vmem:[#allocation2 + $0xd8] sm:$0xff]
    %v106 = vld [vmem:[#allocation2 + $0xe0] sm:$0xff]
    %v107 = vld [vmem:[#allocation2 + $0xe8] sm:$0xff]
    %v108 = vld [vmem:[#allocation2 + $0xf0] sm:$0xff]
    %v109 = vld [vmem:[#allocation2 + $0xf8] sm:$0xff]
    %s110 = scalar_lea.vmem [#allocation2], 256
    %v111 = vld [vmem:[%s110] sm:$0xff]
    %v112 = vld [vmem:[%s110 + $0x8] sm:$0xff]
    %v113 = vld [vmem:[%s110 + $0x10] sm:$0xff]
    %v114 = vld [vmem:[%s110 + $0x18] sm:$0xff]
    %v115 = vld [vmem:[%s110 + $0x20] sm:$0xff]
    %v116 = vld [vmem:[%s110 + $0x28] sm:$0xff]
    %v117 = vld [vmem:[%s110 + $0x30] sm:$0xff]
    %v118 = vld [vmem:[%s110 + $0x38] sm:$0xff]
    %v119 = vld [vmem:[%s110 + $0x40] sm:$0xff]
    %v120 = vld [vmem:[%s110 + $0x48] sm:$0xff]
    %v121 = vld [vmem:[%s110 + $0x50] sm:$0xff]
    %v122 = vld [vmem:[%s110 + $0x58] sm:$0xff]
    %v123 = vld [vmem:[%s110 + $0x60] sm:$0xff]
    %v124 = vld [vmem:[%s110 + $0x68] sm:$0xff]
    %v125 = vld [vmem:[%s110 + $0x70] sm:$0xff]
    %v126 = vld [vmem:[%s110 + $0x78] sm:$0xff]
    %v127 = vld [vmem:[%s110 + $0x80] sm:$0xff]
    %v128 = vld [vmem:[%s110 + $0x88] sm:$0xff]
    %v129 = vld [vmem:[%s110 + $0x90] sm:$0xff]
    %v130 = vld [vmem:[%s110 + $0x98] sm:$0xff]
    %v131 = vld [vmem:[%s110 + $0xa0] sm:$0xff]
    %v132 = vld [vmem:[%s110 + $0xa8] sm:$0xff]
    %v133 = vld [vmem:[%s110 + $0xb0] sm:$0xff]
    %v134 = vld [vmem:[%s110 + $0xb8] sm:$0xff]
    %v135 = vld [vmem:[%s110 + $0xc0] sm:$0xff]
    %v136 = vld [vmem:[%s110 + $0xc8] sm:$0xff]
    %v137 = vld [vmem:[%s110 + $0xd0] sm:$0xff]
    %v138 = vld [vmem:[%s110 + $0xd8] sm:$0xff]
    %v139 = vld [vmem:[%s110 + $0xe0] sm:$0xff]
    %v140 = vld [vmem:[%s110 + $0xe8] sm:$0xff]
    %v141 = vld [vmem:[%s110 + $0xf0] sm:$0xff]
    %v142 = vld [vmem:[%s110 + $0xf8] sm:$0xff]
    %v147 = vunpack.c.l.b16 %v74
    %v148 = vunpack.c.h.b16 %v74
    %v149 = vunpack.c.l.b16 %v75
    %v150 = vunpack.c.h.b16 %v75
    %v151 = vunpack.c.l.b16 %v76
    %v152 = vunpack.c.h.b16 %v76
    %v153 = vunpack.c.l.b16 %v77
    %v154 = vunpack.c.h.b16 %v77
    %v155 = vpack.c.b16 %v149, %v147
    %v156 = vpack.c.b16 %v150, %v148
    %v157 = vpack.c.b16 %v153, %v151
    %v158 = vpack.c.b16 %v154, %v152
    %vm159 = vsmask.f32 7424
    %v161 = vshrl.u32 %v155, 16
    %v163 = vshll.u32 %v155, 16
    %v165 = vrot.slane %v163, 1
    %v166 = vor.u32 %v161, %v165
    %v168 = vshll.u32 %v157, 16
    %v170 = vrot.slane %v168, 1
    %v171 = vsel %vm159, %v166, %v170
    %v173 = vshrl.u32 %v156, 16
    %v175 = vshll.u32 %v156, 16
    %v177 = vrot.slane %v175, 1
    %v178 = vor.u32 %v173, %v177
    %v180 = vshll.u32 %v158, 16
    %v182 = vrot.slane %v180, 1
    %v183 = vsel %vm159, %v178, %v182
    %v184 = vshrl.u32 %v157, 16
    %v186 = vor.u32 %v184, %v170
    %v187 = vshrl.u32 %v158, 16
    %v189 = vor.u32 %v187, %v182
    %v226 = vunpack.c.l.b16 %v111
    %v227 = vunpack.c.h.b16 %v111
    %v228 = vunpack.c.l.b16 %v112
    %v229 = vunpack.c.h.b16 %v112
    %v230 = vunpack.c.l.b16 %v113
    %v231 = vunpack.c.h.b16 %v113
    %v232 = vunpack.c.l.b16 %v114
    %v233 = vunpack.c.h.b16 %v114
    %v234 = vunpack.c.l.b16 %v115
    %v235 = vunpack.c.h.b16 %v115
    %v236 = vunpack.c.l.b16 %v116
    %v237 = vunpack.c.h.b16 %v116
    %v238 = vunpack.c.l.b16 %v117
    %v239 = vunpack.c.h.b16 %v117
    %v240 = vunpack.c.l.b16 %v118
    %v241 = vunpack.c.h.b16 %v118
    %v242 = vunpack.c.l.b16 %v119
    %v243 = vunpack.c.h.b16 %v119
    %v244 = vunpack.c.l.b16 %v120
    %v245 = vunpack.c.h.b16 %v120
    %v246 = vunpack.c.l.b16 %v121
    %v247 = vunpack.c.h.b16 %v121
    %v248 = vunpack.c.l.b16 %v122
    %v249 = vunpack.c.h.b16 %v122
    %v250 = vunpack.c.l.b16 %v123
    %v251 = vunpack.c.h.b16 %v123
    %v252 = vunpack.c.l.b16 %v124
    %v253 = vunpack.c.h.b16 %v124
    %v254 = vunpack.c.l.b16 %v125
    %v255 = vunpack.c.h.b16 %v125
    %v256 = vunpack.c.l.b16 %v126
    %v257 = vunpack.c.h.b16 %v126
    %v258 = vunpack.c.l.b16 %v127
    %v259 = vunpack.c.h.b16 %v127
    %v260 = vunpack.c.l.b16 %v128
    %v261 = vunpack.c.h.b16 %v128
    %v262 = vunpack.c.l.b16 %v129
    %v263 = vunpack.c.h.b16 %v129
    %v264 = vunpack.c.l.b16 %v130
    %v265 = vunpack.c.h.b16 %v130
    %v266 = vunpack.c.l.b16 %v131
    %v267 = vunpack.c.h.b16 %v131
    %v268 = vunpack.c.l.b16 %v132
    %v269 = vunpack.c.h.b16 %v132
    %v270 = vunpack.c.l.b16 %v133
    %v271 = vunpack.c.h.b16 %v133
    %v272 = vunpack.c.l.b16 %v134
    %v273 = vunpack.c.h.b16 %v134
    %v274 = vunpack.c.l.b16 %v135
    %v275 = vunpack.c.h.b16 %v135
    %v276 = vunpack.c.l.b16 %v136
    %v277 = vunpack.c.h.b16 %v136
    %v278 = vunpack.c.l.b16 %v137
    %v279 = vunpack.c.h.b16 %v137
    %v280 = vunpack.c.l.b16 %v138
    %v281 = vunpack.c.h.b16 %v138
    %v282 = vunpack.c.l.b16 %v139
    %v283 = vunpack.c.h.b16 %v139
    %v284 = vunpack.c.l.b16 %v140
    %v285 = vunpack.c.h.b16 %v140
    %v286 = vunpack.c.l.b16 %v141
    %v287 = vunpack.c.h.b16 %v141
    %v288 = vunpack.c.l.b16 %v142
    %v289 = vunpack.c.h.b16 %v142
    %v290 = vpack.c.b16 %v228, %v226
    %v291 = vpack.c.b16 %v229, %v227
    %v292 = vpack.c.b16 %v232, %v230
    %v293 = vpack.c.b16 %v233, %v231
    %v294 = vpack.c.b16 %v236, %v234
    %v295 = vpack.c.b16 %v237, %v235
    %v296 = vpack.c.b16 %v240, %v238
    %v297 = vpack.c.b16 %v241, %v239
    %v298 = vpack.c.b16 %v244, %v242
    %v299 = vpack.c.b16 %v245, %v243
    %v300 = vpack.c.b16 %v248, %v246
    %v301 = vpack.c.b16 %v249, %v247
    %v302 = vpack.c.b16 %v252, %v250
    %v303 = vpack.c.b16 %v253, %v251
    %v304 = vpack.c.b16 %v256, %v254
    %v305 = vpack.c.b16 %v257, %v255
    %v306 = vpack.c.b16 %v260, %v258
    %v307 = vpack.c.b16 %v261, %v259
    %v308 = vpack.c.b16 %v264, %v262
    %v309 = vpack.c.b16 %v265, %v263
    %v310 = vpack.c.b16 %v268, %v266
    %v311 = vpack.c.b16 %v269, %v267
    %v312 = vpack.c.b16 %v272, %v270
    %v313 = vpack.c.b16 %v273, %v271
    %v314 = vpack.c.b16 %v276, %v274
    %v315 = vpack.c.b16 %v277, %v275
    %v316 = vpack.c.b16 %v280, %v278
    %v317 = vpack.c.b16 %v281, %v279
    %v318 = vpack.c.b16 %v284, %v282
    %v319 = vpack.c.b16 %v285, %v283
    %v320 = vpack.c.b16 %v288, %v286
    %v321 = vpack.c.b16 %v289, %v287
    %354 = vmatprep.subr.bf16.mxu0 %v291
    %355 = vmatpush1.bf16.msra.mxu0 %v290
    %356 = vmatprep.subr.bf16.mxu0 %v293
    %357 = vmatpush1.bf16.msra.mxu0 %v292
    %358 = vmatprep.subr.bf16.mxu0 %v295
    %359 = vmatpush1.bf16.msra.mxu0 %v294
    %360 = vmatprep.subr.bf16.mxu0 %v297
    %361 = vmatpush1.bf16.msra.mxu0 %v296
    %362 = vmatprep.subr.bf16.mxu0 %v299
    %363 = vmatpush1.bf16.msra.mxu0 %v298
    %364 = vmatprep.subr.bf16.mxu0 %v301
    %365 = vmatpush1.bf16.msra.mxu0 %v300
    %366 = vmatprep.subr.bf16.mxu0 %v303
    %367 = vmatpush1.bf16.msra.mxu0 %v302
    %368 = vmatprep.subr.bf16.mxu0 %v305
    %369 = vmatpush1.bf16.msra.mxu0 %v304
    %370 = vmatprep.subr.bf16.mxu0 %v307
    %371 = vmatpush1.bf16.msra.mxu0 %v306
    %372 = vmatprep.subr.bf16.mxu0 %v309
    %373 = vmatpush1.bf16.msra.mxu0 %v308
    %374 = vmatprep.subr.bf16.mxu0 %v311
    %375 = vmatpush1.bf16.msra.mxu0 %v310
    %376 = vmatprep.subr.bf16.mxu0 %v313
    %377 = vmatpush1.bf16.msra.mxu0 %v312
    %378 = vmatprep.subr.bf16.mxu0 %v315
    %379 = vmatpush1.bf16.msra.mxu0 %v314
    %380 = vmatprep.subr.bf16.mxu0 %v317
    %381 = vmatpush1.bf16.msra.mxu0 %v316
    %382 = vmatprep.subr.bf16.mxu0 %v319
    %383 = vmatpush1.bf16.msra.mxu0 %v318
    %384 = vmatprep.subr.bf16.mxu0 %v321
    %385 = vmatpush1.bf16.msra.mxu0 %v320
    %386 = vmatprep.mubr.bf16.mxu0 %v183
    %387 = vmatmul.mubr.bf16.gmra.mrb[0].mxu0 %v171
    %v388 = vpop.f32.mrb[0].mxu0
    %v389 = vadd.f32 0.0, %v388
    %v390 = vpop.f32.mrb[0].mxu0
    %v391 = vadd.f32 0.0, %v390
    %v392 = vpop.f32.mrb[0].mxu0
    %v393 = vadd.f32 0.0, %v392
    %v394 = vpop.f32.mrb[0].mxu0
    %v395 = vadd.f32 0.0, %v394
    %396 = vmatprep.mubr.bf16.mxu0 %v189
    %397 = vmatmul.mubr.bf16.gmra.mrb[0].mxu0 %v186
    %v398 = vpop.f32.mrb[0].mxu0
    %v399 = vadd.f32 0.0, %v398
    %v400 = vpop.f32.mrb[0].mxu0
    %v401 = vadd.f32 0.0, %v400
    %v402 = vpop.f32.mrb[0].mxu0
    %v403 = vpop.f32.mrb[0].mxu0
    %404 = vdwg.mxu0
    %v405 = vpack.c.b16 %v151, %v151
    %v406 = vpack.c.b16 %v152, %v152
    %v443 = vunpack.c.l.b16 %v78
    %v444 = vunpack.c.h.b16 %v78
    %v445 = vunpack.c.l.b16 %v79
    %v446 = vunpack.c.h.b16 %v79
    %v447 = vunpack.c.l.b16 %v80
    %v448 = vunpack.c.h.b16 %v80
    %v449 = vunpack.c.l.b16 %v81
    %v450 = vunpack.c.h.b16 %v81
    %v451 = vunpack.c.l.b16 %v82
    %v452 = vunpack.c.h.b16 %v82
    %v453 = vunpack.c.l.b16 %v83
    %v454 = vunpack.c.h.b16 %v83
    %v455 = vunpack.c.l.b16 %v84
    %v456 = vunpack.c.h.b16 %v84
    %v457 = vunpack.c.l.b16 %v85
    %v458 = vunpack.c.h.b16 %v85
    %v459 = vunpack.c.l.b16 %v86
    %v460 = vunpack.c.h.b16 %v86
    %v461 = vunpack.c.l.b16 %v87
    %v462 = vunpack.c.h.b16 %v87
    %v463 = vunpack.c.l.b16 %v88
    %v464 = vunpack.c.h.b16 %v88
    %v465 = vunpack.c.l.b16 %v89
    %v466 = vunpack.c.h.b16 %v89
    %v467 = vunpack.c.l.b16 %v90
    %v468 = vunpack.c.h.b16 %v90
    %v469 = vunpack.c.l.b16 %v91
    %v470 = vunpack.c.h.b16 %v91
    %v471 = vunpack.c.l.b16 %v92
    %v472 = vunpack.c.h.b16 %v92
    %v473 = vunpack.c.l.b16 %v93
    %v474 = vunpack.c.h.b16 %v93
    %v475 = vunpack.c.l.b16 %v94
    %v476 = vunpack.c.h.b16 %v94
    %v477 = vunpack.c.l.b16 %v95
    %v478 = vunpack.c.h.b16 %v95
    %v479 = vunpack.c.l.b16 %v96
    %v480 = vunpack.c.h.b16 %v96
    %v481 = vunpack.c.l.b16 %v97
    %v482 = vunpack.c.h.b16 %v97
    %v483 = vunpack.c.l.b16 %v98
    %v484 = vunpack.c.h.b16 %v98
    %v485 = vunpack.c.l.b16 %v99
    %v486 = vunpack.c.h.b16 %v99
    %v487 = vunpack.c.l.b16 %v100
    %v488 = vunpack.c.h.b16 %v100
    %v489 = vunpack.c.l.b16 %v101
    %v490 = vunpack.c.h.b16 %v101
    %v491 = vunpack.c.l.b16 %v102
    %v492 = vunpack.c.h.b16 %v102
    %v493 = vunpack.c.l.b16 %v103
    %v494 = vunpack.c.h.b16 %v103
    %v495 = vunpack.c.l.b16 %v104
    %v496 = vunpack.c.h.b16 %v104
    %v497 = vunpack.c.l.b16 %v105
    %v498 = vunpack.c.h.b16 %v105
    %v499 = vunpack.c.l.b16 %v106
    %v500 = vunpack.c.h.b16 %v106
    %v501 = vunpack.c.l.b16 %v107
    %v502 = vunpack.c.h.b16 %v107
    %v503 = vunpack.c.l.b16 %v108
    %v504 = vunpack.c.h.b16 %v108
    %v505 = vunpack.c.l.b16 %v109
    %v506 = vunpack.c.h.b16 %v109
    %v507 = vpack.c.b16 %v445, %v443
    %v508 = vpack.c.b16 %v446, %v444
    %v509 = vpack.c.b16 %v449, %v447
    %v510 = vpack.c.b16 %v450, %v448
    %v511 = vpack.c.b16 %v453, %v451
    %v512 = vpack.c.b16 %v454, %v452
    %v513 = vpack.c.b16 %v457, %v455
    %v514 = vpack.c.b16 %v458, %v456
    %v515 = vpack.c.b16 %v461, %v459
    %v516 = vpack.c.b16 %v462, %v460
    %v517 = vpack.c.b16 %v465, %v463
    %v518 = vpack.c.b16 %v466, %v464
    %v519 = vpack.c.b16 %v469, %v467
    %v520 = vpack.c.b16 %v470, %v468
    %v521 = vpack.c.b16 %v473, %v471
    %v522 = vpack.c.b16 %v474, %v472
    %v523 = vpack.c.b16 %v477, %v475
    %v524 = vpack.c.b16 %v478, %v476
    %v525 = vpack.c.b16 %v481, %v479
    %v526 = vpack.c.b16 %v482, %v480
    %v527 = vpack.c.b16 %v485, %v483
    %v528 = vpack.c.b16 %v486, %v484
    %v529 = vpack.c.b16 %v489, %v487
    %v530 = vpack.c.b16 %v490, %v488
    %v531 = vpack.c.b16 %v493, %v491
    %v532 = vpack.c.b16 %v494, %v492
    %v533 = vpack.c.b16 %v497, %v495
    %v534 = vpack.c.b16 %v498, %v496
    %v535 = vpack.c.b16 %v501, %v499
    %v536 = vpack.c.b16 %v502, %v500
    %v537 = vpack.c.b16 %v505, %v503
    %v538 = vpack.c.b16 %v506, %v504
    %571 = vmatprep.subr.bf16.mxu0 %v508
    %572 = vmatpush1.bf16.msra.mxu0 %v507
    %573 = vmatprep.subr.bf16.mxu0 %v510
    %574 = vmatpush1.bf16.msra.mxu0 %v509
    %575 = vmatprep.subr.bf16.mxu0 %v512
    %576 = vmatpush1.bf16.msra.mxu0 %v511
    %577 = vmatprep.subr.bf16.mxu0 %v514
    %578 = vmatpush1.bf16.msra.mxu0 %v513
    %579 = vmatprep.subr.bf16.mxu0 %v516
    %580 = vmatpush1.bf16.msra.mxu0 %v515
    %581 = vmatprep.subr.bf16.mxu0 %v518
    %582 = vmatpush1.bf16.msra.mxu0 %v517
    %583 = vmatprep.subr.bf16.mxu0 %v520
    %584 = vmatpush1.bf16.msra.mxu0 %v519
    %585 = vmatprep.subr.bf16.mxu0 %v522
    %586 = vmatpush1.bf16.msra.mxu0 %v521
    %587 = vmatprep.subr.bf16.mxu0 %v524
    %588 = vmatpush1.bf16.msra.mxu0 %v523
    %589 = vmatprep.subr.bf16.mxu0 %v526
    %590 = vmatpush1.bf16.msra.mxu0 %v525
    %591 = vmatprep.subr.bf16.mxu0 %v528
    %592 = vmatpush1.bf16.msra.mxu0 %v527
    %593 = vmatprep.subr.bf16.mxu0 %v530
    %594 = vmatpush1.bf16.msra.mxu0 %v529
    %595 = vmatprep.subr.bf16.mxu0 %v532
    %596 = vmatpush1.bf16.msra.mxu0 %v531
    %597 = vmatprep.subr.bf16.mxu0 %v534
    %598 = vmatpush1.bf16.msra.mxu0 %v533
    %599 = vmatprep.subr.bf16.mxu0 %v536
    %600 = vmatpush1.bf16.msra.mxu0 %v535
    %601 = vmatprep.subr.bf16.mxu0 %v538
    %602 = vmatpush1.bf16.msra.mxu0 %v537
    %603 = vmatprep.mubr.bf16.mxu0 %v156
    %604 = vmatmul.mubr.bf16.gmra.mrb[0].mxu0 %v155
    %v605 = vpop.f32.mrb[0].mxu0
    %v606 = vadd.f32 %v389, %v605
    %v607 = vpop.f32.mrb[0].mxu0
    %v608 = vadd.f32 %v391, %v607
    %v609 = vpop.f32.mrb[0].mxu0
    %v610 = vadd.f32 %v393, %v609
    %v611 = vpop.f32.mrb[0].mxu0
    %v612 = vadd.f32 %v395, %v611
    %613 = vmatprep.mubr.bf16.mxu0 %v406
    %614 = vmatmul.mubr.bf16.gmra.mrb[0].mxu0 %v405
    %v615 = vpop.f32.mrb[0].mxu0
    %v616 = vadd.f32 %v399, %v615
    %v617 = vpop.f32.mrb[0].mxu0
    %v618 = vadd.f32 %v401, %v617
    %v619 = vpop.f32.mrb[0].mxu0
    %v620 = vpop.f32.mrb[0].mxu0
    %621 = vdwg.mxu0
    %s622 = scalar_lea.vmem [#allocation2], 512
    %v623 = vld [vmem:[%s622] sm:$0xff]
    %v624 = vld [vmem:[%s622 + $0x8] sm:$0xff]
    %v625 = vld [vmem:[%s622 + $0x10] sm:$0xff]
    %v626 = vld [vmem:[%s622 + $0x18] sm:$0xff]
    %v627 = vld [vmem:[%s622 + $0x20] sm:$0xff]
    %v628 = vld [vmem:[%s622 + $0x28] sm:$0xff]
    %v629 = vld [vmem:[%s622 + $0x30] sm:$0xff]
    %v630 = vld [vmem:[%s622 + $0x38] sm:$0xff]
    %v631 = vld [vmem:[%s622 + $0x40] sm:$0xff]
    %v632 = vld [vmem:[%s622 + $0x48] sm:$0xff]
    %v633 = vld [vmem:[%s622 + $0x50] sm:$0xff]
    %v634 = vld [vmem:[%s622 + $0x58] sm:$0xff]
    %v635 = vld [vmem:[%s622 + $0x60] sm:$0xff]
    %v636 = vld [vmem:[%s622 + $0x68] sm:$0xff]
    %v637 = vld [vmem:[%s622 + $0x70] sm:$0xff]
    %v638 = vld [vmem:[%s622 + $0x78] sm:$0xff]
    %v639 = vld [vmem:[%s622 + $0x80] sm:$0xff]
    %v640 = vld [vmem:[%s622 + $0x88] sm:$0xff]
    %v641 = vld [vmem:[%s622 + $0x90] sm:$0xff]
    %v642 = vld [vmem:[%s622 + $0x98] sm:$0xff]
    %v643 = vld [vmem:[%s622 + $0xa0] sm:$0xff]
    %v644 = vld [vmem:[%s622 + $0xa8] sm:$0xff]
    %v645 = vld [vmem:[%s622 + $0xb0] sm:$0xff]
    %v646 = vld [vmem:[%s622 + $0xb8] sm:$0xff]
    %v647 = vld [vmem:[%s622 + $0xc0] sm:$0xff]
    %v648 = vld [vmem:[%s622 + $0xc8] sm:$0xff]
    %v649 = vld [vmem:[%s622 + $0xd0] sm:$0xff]
    %v650 = vld [vmem:[%s622 + $0xd8] sm:$0xff]
    %v651 = vld [vmem:[%s622 + $0xe0] sm:$0xff]
    %v652 = vld [vmem:[%s622 + $0xe8] sm:$0xff]
    %v653 = vld [vmem:[%s622 + $0xf0] sm:$0xff]
    %v654 = vld [vmem:[%s622 + $0xf8] sm:$0xff]
    %vm655 = vcmask 1046528
    %v656 = vrot.slane %v155, 1
    %v657 = vrot.slane %v157, 1
    %v658 = vsel %vm655, %v656, %v657
    %v659 = vrot.slane %v156, 1
    %v660 = vrot.slane %v158, 1
    %v661 = vsel %vm655, %v659, %v660
    %v698 = vunpack.c.l.b16 %v623
    %v699 = vunpack.c.h.b16 %v623
    %v700 = vunpack.c.l.b16 %v624
    %v701 = vunpack.c.h.b16 %v624
    %v702 = vunpack.c.l.b16 %v625
    %v703 = vunpack.c.h.b16 %v625
    %v704 = vunpack.c.l.b16 %v626
    %v705 = vunpack.c.h.b16 %v626
    %v706 = vunpack.c.l.b16 %v627
    %v707 = vunpack.c.h.b16 %v627
    %v708 = vunpack.c.l.b16 %v628
    %v709 = vunpack.c.h.b16 %v628
    %v710 = vunpack.c.l.b16 %v629
    %v711 = vunpack.c.h.b16 %v629
    %v712 = vunpack.c.l.b16 %v630
    %v713 = vunpack.c.h.b16 %v630
    %v714 = vunpack.c.l.b16 %v631
    %v715 = vunpack.c.h.b16 %v631
    %v716 = vunpack.c.l.b16 %v632
    %v717 = vunpack.c.h.b16 %v632
    %v718 = vunpack.c.l.b16 %v633
    %v719 = vunpack.c.h.b16 %v633
    %v720 = vunpack.c.l.b16 %v634
    %v721 = vunpack.c.h.b16 %v634
    %v722 = vunpack.c.l.b16 %v635
    %v723 = vunpack.c.h.b16 %v635
    %v724 = vunpack.c.l.b16 %v636
    %v725 = vunpack.c.h.b16 %v636
    %v726 = vunpack.c.l.b16 %v637
    %v727 = vunpack.c.h.b16 %v637
    %v728 = vunpack.c.l.b16 %v638
    %v729 = vunpack.c.h.b16 %v638
    %v730 = vunpack.c.l.b16 %v639
    %v731 = vunpack.c.h.b16 %v639
    %v732 = vunpack.c.l.b16 %v640
    %v733 = vunpack.c.h.b16 %v640
    %v734 = vunpack.c.l.b16 %v641
    %v735 = vunpack.c.h.b16 %v641
    %v736 = vunpack.c.l.b16 %v642
    %v737 = vunpack.c.h.b16 %v642
    %v738 = vunpack.c.l.b16 %v643
    %v739 = vunpack.c.h.b16 %v643
    %v740 = vunpack.c.l.b16 %v644
    %v741 = vunpack.c.h.b16 %v644
    %v742 = vunpack.c.l.b16 %v645
    %v743 = vunpack.c.h.b16 %v645
    %v744 = vunpack.c.l.b16 %v646
    %v745 = vunpack.c.h.b16 %v646
    %v746 = vunpack.c.l.b16 %v647
    %v747 = vunpack.c.h.b16 %v647
    %v748 = vunpack.c.l.b16 %v648
    %v749 = vunpack.c.h.b16 %v648
    %v750 = vunpack.c.l.b16 %v649
    %v751 = vunpack.c.h.b16 %v649
    %v752 = vunpack.c.l.b16 %v650
    %v753 = vunpack.c.h.b16 %v650
    %v754 = vunpack.c.l.b16 %v651
    %v755 = vunpack.c.h.b16 %v651
    %v756 = vunpack.c.l.b16 %v652
    %v757 = vunpack.c.h.b16 %v652
    %v758 = vunpack.c.l.b16 %v653
    %v759 = vunpack.c.h.b16 %v653
    %v760 = vunpack.c.l.b16 %v654
    %v761 = vunpack.c.h.b16 %v654
    %v762 = vpack.c.b16 %v700, %v698
    %v763 = vpack.c.b16 %v701, %v699
    %v764 = vpack.c.b16 %v704, %v702
    %v765 = vpack.c.b16 %v705, %v703
    %v766 = vpack.c.b16 %v708, %v706
    %v767 = vpack.c.b16 %v709, %v707
    %v768 = vpack.c.b16 %v712, %v710
    %v769 = vpack.c.b16 %v713, %v711
    %v770 = vpack.c.b16 %v716, %v714
    %v771 = vpack.c.b16 %v717, %v715
    %v772 = vpack.c.b16 %v720, %v718
    %v773 = vpack.c.b16 %v721, %v719
    %v774 = vpack.c.b16 %v724, %v722
    %v775 = vpack.c.b16 %v725, %v723
    %v776 = vpack.c.b16 %v728, %v726
    %v777 = vpack.c.b16 %v729, %v727
    %v778 = vpack.c.b16 %v732, %v730
    %v779 = vpack.c.b16 %v733, %v731
    %v780 = vpack.c.b16 %v736, %v734
    %v781 = vpack.c.b16 %v737, %v735
    %v782 = vpack.c.b16 %v740, %v738
    %v783 = vpack.c.b16 %v741, %v739
    %v784 = vpack.c.b16 %v744, %v742
    %v785 = vpack.c.b16 %v745, %v743
    %v786 = vpack.c.b16 %v748, %v746
    %v787 = vpack.c.b16 %v749, %v747
    %v788 = vpack.c.b16 %v752, %v750
    %v789 = vpack.c.b16 %v753, %v751
    %v790 = vpack.c.b16 %v756, %v754
    %v791 = vpack.c.b16 %v757, %v755
    %v792 = vpack.c.b16 %v760, %v758
    %v793 = vpack.c.b16 %v761, %v759
    %826 = vmatprep.subr.bf16.mxu0 %v763
    %827 = vmatpush1.bf16.msra.mxu0 %v762
    %828 = vmatprep.subr.bf16.mxu0 %v765
    %829 = vmatpush1.bf16.msra.mxu0 %v764
    %830 = vmatprep.subr.bf16.mxu0 %v767
    %831 = vmatpush1.bf16.msra.mxu0 %v766
    %832 = vmatprep.subr.bf16.mxu0 %v769
    %833 = vmatpush1.bf16.msra.mxu0 %v768
    %834 = vmatprep.subr.bf16.mxu0 %v771
    %835 = vmatpush1.bf16.msra.mxu0 %v770
    %836 = vmatprep.subr.bf16.mxu0 %v773
    %837 = vmatpush1.bf16.msra.mxu0 %v772
    %838 = vmatprep.subr.bf16.mxu0 %v775
    %839 = vmatpush1.bf16.msra.mxu0 %v774
    %840 = vmatprep.subr.bf16.mxu0 %v777
    %841 = vmatpush1.bf16.msra.mxu0 %v776
    %842 = vmatprep.subr.bf16.mxu0 %v779
    %843 = vmatpush1.bf16.msra.mxu0 %v778
    %844 = vmatprep.subr.bf16.mxu0 %v781
    %845 = vmatpush1.bf16.msra.mxu0 %v780
    %846 = vmatprep.subr.bf16.mxu0 %v783
    %847 = vmatpush1.bf16.msra.mxu0 %v782
    %848 = vmatprep.subr.bf16.mxu0 %v785
    %849 = vmatpush1.bf16.msra.mxu0 %v784
    %850 = vmatprep.subr.bf16.mxu0 %v787
    %851 = vmatpush1.bf16.msra.mxu0 %v786
    %852 = vmatprep.subr.bf16.mxu0 %v789
    %853 = vmatpush1.bf16.msra.mxu0 %v788
    %854 = vmatprep.subr.bf16.mxu0 %v791
    %855 = vmatpush1.bf16.msra.mxu0 %v790
    %856 = vmatprep.subr.bf16.mxu0 %v793
    %857 = vmatpush1.bf16.msra.mxu0 %v792
    %858 = vmatprep.mubr.bf16.mxu0 %v661
    %859 = vmatmul.mubr.bf16.gmra.mrb[0].mxu0 %v658
    %v860 = vpop.f32.mrb[0].mxu0
    %v861 = vadd.f32 0.0, %v860
    %v862 = vpop.f32.mrb[0].mxu0
    %v863 = vadd.f32 0.0, %v862
    %v864 = vpop.f32.mrb[0].mxu0
    %v865 = vadd.f32 0.0, %v864
    %v866 = vpop.f32.mrb[0].mxu0
    %v867 = vadd.f32 0.0, %v866
    %868 = vmatprep.mubr.bf16.mxu0 %v660
    %869 = vmatmul.mubr.bf16.gmra.mrb[0].mxu0 %v657
    %v870 = vpop.f32.mrb[0].mxu0
    %v871 = vadd.f32 0.0, %v870
    %v872 = vpop.f32.mrb[0].mxu0
    %v873 = vadd.f32 0.0, %v872
    %v874 = vpop.f32.mrb[0].mxu0
    %v875 = vpop.f32.mrb[0].mxu0
    %876 = vdwg.mxu0
    %v877 = vadd.f32 %v606, %v861
    %v878 = vadd.f32 %v608, %v863
    %v879 = vadd.f32 %v610, %v865
    %v880 = vadd.f32 %v612, %v867
    %v881 = vadd.f32 %v616, %v871
    %v882 = vadd.f32 %v618, %v873
    %s883 = scalar_lea.vmem [#allocation2], 768
    %v884 = vld [vmem:[%s883] sm:$0xff]
    %v885 = vld [vmem:[%s883 + $0x8] sm:$0xff]
    %v886 = vld [vmem:[%s883 + $0x10] sm:$0xff]
    %v887 = vld [vmem:[%s883 + $0x18] sm:$0xff]
    %v888 = vld [vmem:[%s883 + $0x20] sm:$0xff]
    %v889 = vld [vmem:[%s883 + $0x28] sm:$0xff]
    %v890 = vld [vmem:[%s883 + $0x30] sm:$0xff]
    %v891 = vld [vmem:[%s883 + $0x38] sm:$0xff]
    %v892 = vld [vmem:[%s883 + $0x40] sm:$0xff]
    %v893 = vld [vmem:[%s883 + $0x48] sm:$0xff]
    %v894 = vld [vmem:[%s883 + $0x50] sm:$0xff]
    %v895 = vld [vmem:[%s883 + $0x58] sm:$0xff]
    %v896 = vld [vmem:[%s883 + $0x60] sm:$0xff]
    %v897 = vld [vmem:[%s883 + $0x68] sm:$0xff]
    %v898 = vld [vmem:[%s883 + $0x70] sm:$0xff]
    %v899 = vld [vmem:[%s883 + $0x78] sm:$0xff]
    %v900 = vld [vmem:[%s883 + $0x80] sm:$0xff]
    %v901 = vld [vmem:[%s883 + $0x88] sm:$0xff]
    %v902 = vld [vmem:[%s883 + $0x90] sm:$0xff]
    %v903 = vld [vmem:[%s883 + $0x98] sm:$0xff]
    %v904 = vld [vmem:[%s883 + $0xa0] sm:$0xff]
    %v905 = vld [vmem:[%s883 + $0xa8] sm:$0xff]
    %v906 = vld [vmem:[%s883 + $0xb0] sm:$0xff]
    %v907 = vld [vmem:[%s883 + $0xb8] sm:$0xff]
    %v908 = vld [vmem:[%s883 + $0xc0] sm:$0xff]
    %v909 = vld [vmem:[%s883 + $0xc8] sm:$0xff]
    %v910 = vld [vmem:[%s883 + $0xd0] sm:$0xff]
    %v911 = vld [vmem:[%s883 + $0xd8] sm:$0xff]
    %v912 = vld [vmem:[%s883 + $0xe0] sm:$0xff]
    %v913 = vld [vmem:[%s883 + $0xe8] sm:$0xff]
    %v914 = vld [vmem:[%s883 + $0xf0] sm:$0xff]
    %v915 = vld [vmem:[%s883 + $0xf8] sm:$0xff]
    %vm916 = vsmask.f32 6400
    %v917 = vrot.slane %v161, 1
    %v918 = vrot.slane %v163, 2
    %v919 = vor.u32 %v917, %v918
    %v920 = vrot.slane %v184, 1
    %v921 = vrot.slane %v168, 2
    %v922 = vor.u32 %v920, %v921
    %v923 = vsel %vm916, %v919, %v922
    %v924 = vrot.slane %v173, 1
    %v925 = vrot.slane %v175, 2
    %v926 = vor.u32 %v924, %v925
    %v927 = vrot.slane %v187, 1
    %v928 = vrot.slane %v180, 2
    %v929 = vor.u32 %v927, %v928
    %v930 = vsel %vm916, %v926, %v929
    %v967 = vunpack.c.l.b16 %v884
    %v968 = vunpack.c.h.b16 %v884
    %v969 = vunpack.c.l.b16 %v885
    %v970 = vunpack.c.h.b16 %v885
    %v971 = vunpack.c.l.b16 %v886
    %v972 = vunpack.c.h.b16 %v886
    %v973 = vunpack.c.l.b16 %v887
    %v974 = vunpack.c.h.b16 %v887
    %v975 = vunpack.c.l.b16 %v888
    %v976 = vunpack.c.h.b16 %v888
    %v977 = vunpack.c.l.b16 %v889
    %v978 = vunpack.c.h.b16 %v889
    %v979 = vunpack.c.l.b16 %v890
    %v980 = vunpack.c.h.b16 %v890
    %v981 = vunpack.c.l.b16 %v891
    %v982 = vunpack.c.h.b16 %v891
    %v983 = vunpack.c.l.b16 %v892
    %v984 = vunpack.c.h.b16 %v892
    %v985 = vunpack.c.l.b16 %v893
    %v986 = vunpack.c.h.b16 %v893
    %v987 = vunpack.c.l.b16 %v894
    %v988 = vunpack.c.h.b16 %v894
    %v989 = vunpack.c.l.b16 %v895
    %v990 = vunpack.c.h.b16 %v895
    %v991 = vunpack.c.l.b16 %v896
    %v992 = vunpack.c.h.b16 %v896
    %v993 = vunpack.c.l.b16 %v897
    %v994 = vunpack.c.h.b16 %v897
    %v995 = vunpack.c.l.b16 %v898
    %v996 = vunpack.c.h.b16 %v898
    %v997 = vunpack.c.l.b16 %v899
    %v998 = vunpack.c.h.b16 %v899
    %v999 = vunpack.c.l.b16 %v900
    %v1000 = vunpack.c.h.b16 %v900
    %v1001 = vunpack.c.l.b16 %v901
    %v1002 = vunpack.c.h.b16 %v901
    %v1003 = vunpack.c.l.b16 %v902
    %v1004 = vunpack.c.h.b16 %v902
    %v1005 = vunpack.c.l.b16 %v903
    %v1006 = vunpack.c.h.b16 %v903
    %v1007 = vunpack.c.l.b16 %v904
    %v1008 = vunpack.c.h.b16 %v904
    %v1009 = vunpack.c.l.b16 %v905
    %v1010 = vunpack.c.h.b16 %v905
    %v1011 = vunpack.c.l.b16 %v906
    %v1012 = vunpack.c.h.b16 %v906
    %v1013 = vunpack.c.l.b16 %v907
    %v1014 = vunpack.c.h.b16 %v907
    %v1015 = vunpack.c.l.b16 %v908
    %v1016 = vunpack.c.h.b16 %v908
    %v1017 = vunpack.c.l.b16 %v909
    %v1018 = vunpack.c.h.b16 %v909
    %v1019 = vunpack.c.l.b16 %v910
    %v1020 = vunpack.c.h.b16 %v910
    %v1021 = vunpack.c.l.b16 %v911
    %v1022 = vunpack.c.h.b16 %v911
    %v1023 = vunpack.c.l.b16 %v912
    %v1024 = vunpack.c.h.b16 %v912
    %v1025 = vunpack.c.l.b16 %v913
    %v1026 = vunpack.c.h.b16 %v913
    %v1027 = vunpack.c.l.b16 %v914
    %v1028 = vunpack.c.h.b16 %v914
    %v1029 = vunpack.c.l.b16 %v915
    %v1030 = vunpack.c.h.b16 %v915
    %v1031 = vpack.c.b16 %v969, %v967
    %v1032 = vpack.c.b16 %v970, %v968
    %v1033 = vpack.c.b16 %v973, %v971
    %v1034 = vpack.c.b16 %v974, %v972
    %v1035 = vpack.c.b16 %v977, %v975
    %v1036 = vpack.c.b16 %v978, %v976
    %v1037 = vpack.c.b16 %v981, %v979
    %v1038 = vpack.c.b16 %v982, %v980
    %v1039 = vpack.c.b16 %v985, %v983
    %v1040 = vpack.c.b16 %v986, %v984
    %v1041 = vpack.c.b16 %v989, %v987
    %v1042 = vpack.c.b16 %v990, %v988
    %v1043 = vpack.c.b16 %v993, %v991
    %v1044 = vpack.c.b16 %v994, %v992
    %v1045 = vpack.c.b16 %v997, %v995
    %v1046 = vpack.c.b16 %v998, %v996
    %v1047 = vpack.c.b16 %v1001, %v999
    %v1048 = vpack.c.b16 %v1002, %v1000
    %v1049 = vpack.c.b16 %v1005, %v1003
    %v1050 = vpack.c.b16 %v1006, %v1004
    %v1051 = vpack.c.b16 %v1009, %v1007
    %v1052 = vpack.c.b16 %v1010, %v1008
    %v1053 = vpack.c.b16 %v1013, %v1011
    %v1054 = vpack.c.b16 %v1014, %v1012
    %v1055 = vpack.c.b16 %v1017, %v1015
    %v1056 = vpack.c.b16 %v1018, %v1016
    %v1057 = vpack.c.b16 %v1021, %v1019
    %v1058 = vpack.c.b16 %v1022, %v1020
    %v1059 = vpack.c.b16 %v1025, %v1023
    %v1060 = vpack.c.b16 %v1026, %v1024
    %v1061 = vpack.c.b16 %v1029, %v1027
    %v1062 = vpack.c.b16 %v1030, %v1028
    %1095 = vmatprep.subr.bf16.mxu0 %v1032
    %1096 = vmatpush1.bf16.msra.mxu0 %v1031
    %1097 = vmatprep.subr.bf16.mxu0 %v1034
    %1098 = vmatpush1.bf16.msra.mxu0 %v1033
    %1099 = vmatprep.subr.bf16.mxu0 %v1036
    %1100 = vmatpush1.bf16.msra.mxu0 %v1035
    %1101 = vmatprep.subr.bf16.mxu0 %v1038
    %1102 = vmatpush1.bf16.msra.mxu0 %v1037
    %1103 = vmatprep.subr.bf16.mxu0 %v1040
    %1104 = vmatpush1.bf16.msra.mxu0 %v1039
    %1105 = vmatprep.subr.bf16.mxu0 %v1042
    %1106 = vmatpush1.bf16.msra.mxu0 %v1041
    %1107 = vmatprep.subr.bf16.mxu0 %v1044
    %1108 = vmatpush1.bf16.msra.mxu0 %v1043
    %1109 = vmatprep.subr.bf16.mxu0 %v1046
    %1110 = vmatpush1.bf16.msra.mxu0 %v1045
    %1111 = vmatprep.subr.bf16.mxu0 %v1048
    %1112 = vmatpush1.bf16.msra.mxu0 %v1047
    %1113 = vmatprep.subr.bf16.mxu0 %v1050
    %1114 = vmatpush1.bf16.msra.mxu0 %v1049
    %1115 = vmatprep.subr.bf16.mxu0 %v1052
    %1116 = vmatpush1.bf16.msra.mxu0 %v1051
    %1117 = vmatprep.subr.bf16.mxu0 %v1054
    %1118 = vmatpush1.bf16.msra.mxu0 %v1053
    %1119 = vmatprep.subr.bf16.mxu0 %v1056
    %1120 = vmatpush1.bf16.msra.mxu0 %v1055
    %1121 = vmatprep.subr.bf16.mxu0 %v1058
    %1122 = vmatpush1.bf16.msra.mxu0 %v1057
    %1123 = vmatprep.subr.bf16.mxu0 %v1060
    %1124 = vmatpush1.bf16.msra.mxu0 %v1059
    %1125 = vmatprep.subr.bf16.mxu0 %v1062
    %1126 = vmatpush1.bf16.msra.mxu0 %v1061
    %1127 = vmatprep.mubr.bf16.mxu0 %v930
    %1128 = vmatmul.mubr.bf16.gmra.mrb[0].mxu0 %v923
    %v1129 = vpop.f32.mrb[0].mxu0
    %v1130 = vadd.f32 0.0, %v1129
    %v1131 = vpop.f32.mrb[0].mxu0
    %v1132 = vadd.f32 0.0, %v1131
    %v1133 = vpop.f32.mrb[0].mxu0
    %v1134 = vadd.f32 0.0, %v1133
    %v1135 = vpop.f32.mrb[0].mxu0
    %v1136 = vadd.f32 0.0, %v1135
    %1137 = vmatprep.mubr.bf16.mxu0 %v929
    %1138 = vmatmul.mubr.bf16.gmra.mrb[0].mxu0 %v922
    %v1139 = vpop.f32.mrb[0].mxu0
    %v1140 = vadd.f32 0.0, %v1139
    %v1141 = vpop.f32.mrb[0].mxu0
    %v1142 = vadd.f32 0.0, %v1141
    %v1143 = vpop.f32.mrb[0].mxu0
    %v1144 = vpop.f32.mrb[0].mxu0
    %1145 = vdwg.mxu0
    %v1146 = vadd.f32 %v877, %v1130
    %v1147 = vadd.f32 %v878, %v1132
    %v1148 = vadd.f32 %v879, %v1134
    %v1149 = vadd.f32 %v880, %v1136
    %v1150 = vadd.f32 %v881, %v1140
    %v1151 = vadd.f32 %v882, %v1142
    %s1152 = scalar_lea.vmem [#allocation2], 1024
    %v1153 = vld [vmem:[%s1152] sm:$0xff]
    %v1154 = vld [vmem:[%s1152 + $0x8] sm:$0xff]
    %v1155 = vld [vmem:[%s1152 + $0x10] sm:$0xff]
    %v1156 = vld [vmem:[%s1152 + $0x18] sm:$0xff]
    %v1157 = vld [vmem:[%s1152 + $0x20] sm:$0xff]
    %v1158 = vld [vmem:[%s1152 + $0x28] sm:$0xff]
    %v1159 = vld [vmem:[%s1152 + $0x30] sm:$0xff]
    %v1160 = vld [vmem:[%s1152 + $0x38] sm:$0xff]
    %v1161 = vld [vmem:[%s1152 + $0x40] sm:$0xff]
    %v1162 = vld [vmem:[%s1152 + $0x48] sm:$0xff]
    %v1163 = vld [vmem:[%s1152 + $0x50] sm:$0xff]
    %v1164 = vld [vmem:[%s1152 + $0x58] sm:$0xff]
    %v1165 = vld [vmem:[%s1152 + $0x60] sm:$0xff]
    %v1166 = vld [vmem:[%s1152 + $0x68] sm:$0xff]
    %v1167 = vld [vmem:[%s1152 + $0x70] sm:$0xff]
    %v1168 = vld [vmem:[%s1152 + $0x78] sm:$0xff]
    %v1169 = vld [vmem:[%s1152 + $0x80] sm:$0xff]
    %v1170 = vld [vmem:[%s1152 + $0x88] sm:$0xff]
    %v1171 = vld [vmem:[%s1152 + $0x90] sm:$0xff]
    %v1172 = vld [vmem:[%s1152 + $0x98] sm:$0xff]
    %v1173 = vld [vmem:[%s1152 + $0xa0] sm:$0xff]
    %v1174 = vld [vmem:[%s1152 + $0xa8] sm:$0xff]
    %v1175 = vld [vmem:[%s1152 + $0xb0] sm:$0xff]
    %v1176 = vld [vmem:[%s1152 + $0xb8] sm:$0xff]
    %v1177 = vld [vmem:[%s1152 + $0xc0] sm:$0xff]
    %v1178 = vld [vmem:[%s1152 + $0xc8] sm:$0xff]
    %v1179 = vld [vmem:[%s1152 + $0xd0] sm:$0xff]
    %v1180 = vld [vmem:[%s1152 + $0xd8] sm:$0xff]
    %v1181 = vld [vmem:[%s1152 + $0xe0] sm:$0xff]
    %v1182 = vld [vmem:[%s1152 + $0xe8] sm:$0xff]
    %v1183 = vld [vmem:[%s1152 + $0xf0] sm:$0xff]
    %v1184 = vld [vmem:[%s1152 + $0xf8] sm:$0xff]
    %vm1185 = vcmask 1045504
    %v1186 = vrot.slane %v155, 2
    %v1187 = vrot.slane %v157, 2
    %v1188 = vsel %vm1185, %v1186, %v1187
    %v1189 = vrot.slane %v156, 2
    %v1190 = vrot.slane %v158, 2
    %v1191 = vsel %vm1185, %v1189, %v1190
    %v1228 = vunpack.c.l.b16 %v1153
    %v1229 = vunpack.c.h.b16 %v1153
    %v1230 = vunpack.c.l.b16 %v1154
    %v1231 = vunpack.c.h.b16 %v1154
    %v1232 = vunpack.c.l.b16 %v1155
    %v1233 = vunpack.c.h.b16 %v1155
    %v1234 = vunpack.c.l.b16 %v1156
    %v1235 = vunpack.c.h.b16 %v1156
    %v1236 = vunpack.c.l.b16 %v1157
    %v1237 = vunpack.c.h.b16 %v1157
    %v1238 = vunpack.c.l.b16 %v1158
    %v1239 = vunpack.c.h.b16 %v1158
    %v1240 = vunpack.c.l.b16 %v1159
    %v1241 = vunpack.c.h.b16 %v1159
    %v1242 = vunpack.c.l.b16 %v1160
    %v1243 = vunpack.c.h.b16 %v1160
    %v1244 = vunpack.c.l.b16 %v1161
    %v1245 = vunpack.c.h.b16 %v1161
    %v1246 = vunpack.c.l.b16 %v1162
    %v1247 = vunpack.c.h.b16 %v1162
    %v1248 = vunpack.c.l.b16 %v1163
    %v1249 = vunpack.c.h.b16 %v1163
    %v1250 = vunpack.c.l.b16 %v1164
    %v1251 = vunpack.c.h.b16 %v1164
    %v1252 = vunpack.c.l.b16 %v1165
    %v1253 = vunpack.c.h.b16 %v1165
    %v1254 = vunpack.c.l.b16 %v1166
    %v1255 = vunpack.c.h.b16 %v1166
    %v1256 = vunpack.c.l.b16 %v1167
    %v1257 = vunpack.c.h.b16 %v1167
    %v1258 = vunpack.c.l.b16 %v1168
    %v1259 = vunpack.c.h.b16 %v1168
    %v1260 = vunpack.c.l.b16 %v1169
    %v1261 = vunpack.c.h.b16 %v1169
    %v1262 = vunpack.c.l.b16 %v1170
    %v1263 = vunpack.c.h.b16 %v1170
    %v1264 = vunpack.c.l.b16 %v1171
    %v1265 = vunpack.c.h.b16 %v1171
    %v1266 = vunpack.c.l.b16 %v1172
    %v1267 = vunpack.c.h.b16 %v1172
    %v1268 = vunpack.c.l.b16 %v1173
    %v1269 = vunpack.c.h.b16 %v1173
    %v1270 = vunpack.c.l.b16 %v1174
    %v1271 = vunpack.c.h.b16 %v1174
    %v1272 = vunpack.c.l.b16 %v1175
    %v1273 = vunpack.c.h.b16 %v1175
    %v1274 = vunpack.c.l.b16 %v1176
    %v1275 = vunpack.c.h.b16 %v1176
    %v1276 = vunpack.c.l.b16 %v1177
    %v1277 = vunpack.c.h.b16 %v1177
    %v1278 = vunpack.c.l.b16 %v1178
    %v1279 = vunpack.c.h.b16 %v1178
    %v1280 = vunpack.c.l.b16 %v1179
    %v1281 = vunpack.c.h.b16 %v1179
    %v1282 = vunpack.c.l.b16 %v1180
    %v1283 = vunpack.c.h.b16 %v1180
    %v1284 = vunpack.c.l.b16 %v1181
    %v1285 = vunpack.c.h.b16 %v1181
    %v1286 = vunpack.c.l.b16 %v1182
    %v1287 = vunpack.c.h.b16 %v1182
    %v1288 = vunpack.c.l.b16 %v1183
    %v1289 = vunpack.c.h.b16 %v1183
    %v1290 = vunpack.c.l.b16 %v1184
    %v1291 = vunpack.c.h.b16 %v1184
    %v1292 = vpack.c.b16 %v1230, %v1228
    %v1293 = vpack.c.b16 %v1231, %v1229
    %v1294 = vpack.c.b16 %v1234, %v1232
    %v1295 = vpack.c.b16 %v1235, %v1233
    %v1296 = vpack.c.b16 %v1238, %v1236
    %v1297 = vpack.c.b16 %v1239, %v1237
    %v1298 = vpack.c.b16 %v1242, %v1240
    %v1299 = vpack.c.b16 %v1243, %v1241
    %v1300 = vpack.c.b16 %v1246, %v1244
    %v1301 = vpack.c.b16 %v1247, %v1245
    %v1302 = vpack.c.b16 %v1250, %v1248
    %v1303 = vpack.c.b16 %v1251, %v1249
    %v1304 = vpack.c.b16 %v1254, %v1252
    %v1305 = vpack.c.b16 %v1255, %v1253
    %v1306 = vpack.c.b16 %v1258, %v1256
    %v1307 = vpack.c.b16 %v1259, %v1257
    %v1308 = vpack.c.b16 %v1262, %v1260
    %v1309 = vpack.c.b16 %v1263, %v1261
    %v1310 = vpack.c.b16 %v1266, %v1264
    %v1311 = vpack.c.b16 %v1267, %v1265
    %v1312 = vpack.c.b16 %v1270, %v1268
    %v1313 = vpack.c.b16 %v1271, %v1269
    %v1314 = vpack.c.b16 %v1274, %v1272
    %v1315 = vpack.c.b16 %v1275, %v1273
    %v1316 = vpack.c.b16 %v1278, %v1276
    %v1317 = vpack.c.b16 %v1279, %v1277
    %v1318 = vpack.c.b16 %v1282, %v1280
    %v1319 = vpack.c.b16 %v1283, %v1281
    %v1320 = vpack.c.b16 %v1286, %v1284
    %v1321 = vpack.c.b16 %v1287, %v1285
    %v1322 = vpack.c.b16 %v1290, %v1288
    %v1323 = vpack.c.b16 %v1291, %v1289
    %1356 = vmatprep.subr.bf16.mxu0 %v1293
    %1357 = vmatpush1.bf16.msra.mxu0 %v1292
    %1358 = vmatprep.subr.bf16.mxu0 %v1295
    %1359 = vmatpush1.bf16.msra.mxu0 %v1294
    %1360 = vmatprep.subr.bf16.mxu0 %v1297
    %1361 = vmatpush1.bf16.msra.mxu0 %v1296
    %1362 = vmatprep.subr.bf16.mxu0 %v1299
    %1363 = vmatpush1.bf16.msra.mxu0 %v1298
    %1364 = vmatprep.subr.bf16.mxu0 %v1301
    %1365 = vmatpush1.bf16.msra.mxu0 %v1300
    %1366 = vmatprep.subr.bf16.mxu0 %v1303
    %1367 = vmatpush1.bf16.msra.mxu0 %v1302
    %1368 = vmatprep.subr.bf16.mxu0 %v1305
    %1369 = vmatpush1.bf16.msra.mxu0 %v1304
    %1370 = vmatprep.subr.bf16.mxu0 %v1307
    %1371 = vmatpush1.bf16.msra.mxu0 %v1306
    %1372 = vmatprep.subr.bf16.mxu0 %v1309
    %1373 = vmatpush1.bf16.msra.mxu0 %v1308
    %1374 = vmatprep.subr.bf16.mxu0 %v1311
    %1375 = vmatpush1.bf16.msra.mxu0 %v1310
    %1376 = vmatprep.subr.bf16.mxu0 %v1313
    %1377 = vmatpush1.bf16.msra.mxu0 %v1312
    %1378 = vmatprep.subr.bf16.mxu0 %v1315
    %1379 = vmatpush1.bf16.msra.mxu0 %v1314
    %1380 = vmatprep.subr.bf16.mxu0 %v1317
    %1381 = vmatpush1.bf16.msra.mxu0 %v1316
    %1382 = vmatprep.subr.bf16.mxu0 %v1319
    %1383 = vmatpush1.bf16.msra.mxu0 %v1318
    %1384 = vmatprep.subr.bf16.mxu0 %v1321
    %1385 = vmatpush1.bf16.msra.mxu0 %v1320
    %1386 = vmatprep.subr.bf16.mxu0 %v1323
    %1387 = vmatpush1.bf16.msra.mxu0 %v1322
    %1388 = vmatprep.mubr.bf16.mxu0 %v1191
    %1389 = vmatmul.mubr.bf16.gmra.mrb[0].mxu0 %v1188
    %v1390 = vpop.f32.mrb[0].mxu0
    %v1391 = vadd.f32 0.0, %v1390
    %v1392 = vpop.f32.mrb[0].mxu0
    %v1393 = vadd.f32 0.0, %v1392
    %v1394 = vpop.f32.mrb[0].mxu0
    %v1395 = vadd.f32 0.0, %v1394
    %v1396 = vpop.f32.mrb[0].mxu0
    %v1397 = vadd.f32 0.0, %v1396
    %1398 = vmatprep.mubr.bf16.mxu0 %v1190
    %1399 = vmatmul.mubr.bf16.gmra.mrb[0].mxu0 %v1187
    %v1400 = vpop.f32.mrb[0].mxu0
    %v1401 = vadd.f32 0.0, %v1400
    %v1402 = vpop.f32.mrb[0].mxu0
    %v1403 = vadd.f32 0.0, %v1402
    %v1404 = vpop.f32.mrb[0].mxu0
    %v1405 = vpop.f32.mrb[0].mxu0
    %1406 = vdwg.mxu0
    %v1407 = vadd.f32 %v1146, %v1391
    %v1408 = vadd.f32 %v1147, %v1393
    %v1409 = vadd.f32 %v1148, %v1395
    %v1410 = vadd.f32 %v1149, %v1397
    %v1411 = vadd.f32 %v1150, %v1401
    %v1412 = vadd.f32 %v1151, %v1403
    %v1413 = vld [vmem:[#allocation4] sm:$0x3]
    %v1415 = vlaneseq
    %v1416 = vshrl.u32 %v1415, 7
    %v1417 = vsub.s32 0, %v1416
    %v1418 = vrot.slane %v1413, %v1417
    %v1419 = vlaneseq
    %v1420 = vshrl.u32 %v1419, 7
    %v1421 = vsub.s32 1, %v1420
    %v1422 = vrot.slane %v1413, %v1421
    %v1425 = vadd.f32 %v1407, %v1418
    %v1426 = vadd.f32 %v1408, %v1422
    %v1427 = vadd.f32 %v1409, %v1418
    %v1428 = vadd.f32 %v1410, %v1422
    %v1429 = vadd.f32 %v1411, %v1418
    %v1430 = vadd.f32 %v1412, %v1422
    %v1431 = vmax.f32 %v1425, 0.0
    %v1432 = vmax.f32 %v1426, 0.0
    %v1433 = vmax.f32 %v1427, 0.0
    %v1434 = vmax.f32 %v1428, 0.0
    %v1435 = vmax.f32 %v1429, 0.0
    %v1436 = vmax.f32 %v1430, 0.0
    %v1437 = vpack.c.bf16 %v1433, %v1431
    %v1438 = vpack.c.bf16 %v1434, %v1432
    %v1439 = vpack.c.bf16 %v1435, %v1435
    %v1440 = vpack.c.bf16 %v1436, %v1436
    %v1441 = vld [vmem:[#allocation6] sm:$0xff]
    %v1442 = vld [vmem:[#allocation6 + $0x8] sm:$0xff]
    %v1443 = vld [vmem:[#allocation6 + $0x10] sm:$0xff]
    %v1444 = vld [vmem:[#allocation6 + $0x18] sm:$0xff]
    %v1445 = vld [vmem:[#allocation6 + $0x20] sm:$0xff]
    %v1446 = vld [vmem:[#allocation6 + $0x28] sm:$0xff]
    %v1447 = vld [vmem:[#allocation6 + $0x30] sm:$0xff]
    %v1448 = vld [vmem:[#allocation6 + $0x38] sm:$0xff]
    %v1449 = vld [vmem:[#allocation6 + $0x40] sm:$0xff]
    %v1450 = vld [vmem:[#allocation6 + $0x48] sm:$0xff]
    %v1451 = vld [vmem:[#allocation6 + $0x50] sm:$0xff]
    %v1452 = vld [vmem:[#allocation6 + $0x58] sm:$0xff]
    %v1453 = vld [vmem:[#allocation6 + $0x60] sm:$0xff]
    %v1454 = vld [vmem:[#allocation6 + $0x68] sm:$0xff]
    %v1455 = vld [vmem:[#allocation6 + $0x70] sm:$0xff]
    %v1456 = vld [vmem:[#allocation6 + $0x78] sm:$0xff]
    %v1457 = vld [vmem:[#allocation6 + $0x80] sm:$0xff]
    %v1458 = vld [vmem:[#allocation6 + $0x88] sm:$0xff]
    %v1459 = vld [vmem:[#allocation6 + $0x90] sm:$0xff]
    %v1460 = vld [vmem:[#allocation6 + $0x98] sm:$0xff]
    %v1461 = vld [vmem:[#allocation6 + $0xa0] sm:$0xff]
    %v1462 = vld [vmem:[#allocation6 + $0xa8] sm:$0xff]
    %v1463 = vld [vmem:[#allocation6 + $0xb0] sm:$0xff]
    %v1464 = vld [vmem:[#allocation6 + $0xb8] sm:$0xff]
    %v1465 = vld [vmem:[#allocation6 + $0xc0] sm:$0xff]
    %v1466 = vld [vmem:[#allocation6 + $0xc8] sm:$0xff]
    %v1467 = vld [vmem:[#allocation6 + $0xd0] sm:$0xff]
    %v1468 = vld [vmem:[#allocation6 + $0xd8] sm:$0xff]
    %v1469 = vld [vmem:[#allocation6 + $0xe0] sm:$0xff]
    %v1470 = vld [vmem:[#allocation6 + $0xe8] sm:$0xff]
    %v1471 = vld [vmem:[#allocation6 + $0xf0] sm:$0xff]
    %v1472 = vld [vmem:[#allocation6 + $0xf8] sm:$0xff]
    %v1505 = vunpack.c.l.b16 %v1441
    %v1506 = vunpack.c.h.b16 %v1441
    %v1507 = vunpack.c.l.b16 %v1442
    %v1508 = vunpack.c.h.b16 %v1442
    %v1509 = vunpack.c.l.b16 %v1443
    %v1510 = vunpack.c.h.b16 %v1443
    %v1511 = vunpack.c.l.b16 %v1444
    %v1512 = vunpack.c.h.b16 %v1444
    %v1513 = vunpack.c.l.b16 %v1445
    %v1514 = vunpack.c.h.b16 %v1445
    %v1515 = vunpack.c.l.b16 %v1446
    %v1516 = vunpack.c.h.b16 %v1446
    %v1517 = vunpack.c.l.b16 %v1447
    %v1518 = vunpack.c.h.b16 %v1447
    %v1519 = vunpack.c.l.b16 %v1448
    %v1520 = vunpack.c.h.b16 %v1448
    %v1521 = vunpack.c.l.b16 %v1449
    %v1522 = vunpack.c.h.b16 %v1449
    %v1523 = vunpack.c.l.b16 %v1450
    %v1524 = vunpack.c.h.b16 %v1450
    %v1525 = vunpack.c.l.b16 %v1451
    %v1526 = vunpack.c.h.b16 %v1451
    %v1527 = vunpack.c.l.b16 %v1452
    %v1528 = vunpack.c.h.b16 %v1452
    %v1529 = vunpack.c.l.b16 %v1453
    %v1530 = vunpack.c.h.b16 %v1453
    %v1531 = vunpack.c.l.b16 %v1454
    %v1532 = vunpack.c.h.b16 %v1454
    %v1533 = vunpack.c.l.b16 %v1455
    %v1534 = vunpack.c.h.b16 %v1455
    %v1535 = vunpack.c.l.b16 %v1456
    %v1536 = vunpack.c.h.b16 %v1456
    %v1537 = vunpack.c.l.b16 %v1457
    %v1538 = vunpack.c.h.b16 %v1457
    %v1539 = vunpack.c.l.b16 %v1458
    %v1540 = vunpack.c.h.b16 %v1458
    %v1541 = vunpack.c.l.b16 %v1459
    %v1542 = vunpack.c.h.b16 %v1459
    %v1543 = vunpack.c.l.b16 %v1460
    %v1544 = vunpack.c.h.b16 %v1460
    %v1545 = vunpack.c.l.b16 %v1461
    %v1546 = vunpack.c.h.b16 %v1461
    %v1547 = vunpack.c.l.b16 %v1462
    %v1548 = vunpack.c.h.b16 %v1462
    %v1549 = vunpack.c.l.b16 %v1463
    %v1550 = vunpack.c.h.b16 %v1463
    %v1551 = vunpack.c.l.b16 %v1464
    %v1552 = vunpack.c.h.b16 %v1464
    %v1553 = vunpack.c.l.b16 %v1465
    %v1554 = vunpack.c.h.b16 %v1465
    %v1555 = vunpack.c.l.b16 %v1466
    %v1556 = vunpack.c.h.b16 %v1466
    %v1557 = vunpack.c.l.b16 %v1467
    %v1558 = vunpack.c.h.b16 %v1467
    %v1559 = vunpack.c.l.b16 %v1468
    %v1560 = vunpack.c.h.b16 %v1468
    %v1561 = vunpack.c.l.b16 %v1469
    %v1562 = vunpack.c.h.b16 %v1469
    %v1563 = vunpack.c.l.b16 %v1470
    %v1564 = vunpack.c.h.b16 %v1470
    %v1565 = vunpack.c.l.b16 %v1471
    %v1566 = vunpack.c.h.b16 %v1471
    %v1567 = vunpack.c.l.b16 %v1472
    %v1568 = vunpack.c.h.b16 %v1472
    %v1569 = vpack.c.b16 %v1507, %v1505
    %v1570 = vpack.c.b16 %v1508, %v1506
    %v1571 = vpack.c.b16 %v1511, %v1509
    %v1572 = vpack.c.b16 %v1512, %v1510
    %v1573 = vpack.c.b16 %v1515, %v1513
    %v1574 = vpack.c.b16 %v1516, %v1514
    %v1575 = vpack.c.b16 %v1519, %v1517
    %v1576 = vpack.c.b16 %v1520, %v1518
    %v1577 = vpack.c.b16 %v1523, %v1521
    %v1578 = vpack.c.b16 %v1524, %v1522
    %v1579 = vpack.c.b16 %v1527, %v1525
    %v1580 = vpack.c.b16 %v1528, %v1526
    %v1581 = vpack.c.b16 %v1531, %v1529
    %v1582 = vpack.c.b16 %v1532, %v1530
    %v1583 = vpack.c.b16 %v1535, %v1533
    %v1584 = vpack.c.b16 %v1536, %v1534
    %v1585 = vpack.c.b16 %v1539, %v1537
    %v1586 = vpack.c.b16 %v1540, %v1538
    %v1587 = vpack.c.b16 %v1543, %v1541
    %v1588 = vpack.c.b16 %v1544, %v1542
    %v1589 = vpack.c.b16 %v1547, %v1545
    %v1590 = vpack.c.b16 %v1548, %v1546
    %v1591 = vpack.c.b16 %v1551, %v1549
    %v1592 = vpack.c.b16 %v1552, %v1550
    %v1593 = vpack.c.b16 %v1555, %v1553
    %v1594 = vpack.c.b16 %v1556, %v1554
    %v1595 = vpack.c.b16 %v1559, %v1557
    %v1596 = vpack.c.b16 %v1560, %v1558
    %v1597 = vpack.c.b16 %v1563, %v1561
    %v1598 = vpack.c.b16 %v1564, %v1562
    %v1599 = vpack.c.b16 %v1567, %v1565
    %v1600 = vpack.c.b16 %v1568, %v1566
    %1633 = vmatprep.subr.bf16.mxu0 %v1570
    %1634 = vmatpush1.bf16.msra.mxu0 %v1569
    %1635 = vmatprep.subr.bf16.mxu0 %v1572
    %1636 = vmatpush1.bf16.msra.mxu0 %v1571
    %1637 = vmatprep.subr.bf16.mxu0 %v1574
    %1638 = vmatpush1.bf16.msra.mxu0 %v1573
    %1639 = vmatprep.subr.bf16.mxu0 %v1576
    %1640 = vmatpush1.bf16.msra.mxu0 %v1575
    %1641 = vmatprep.subr.bf16.mxu0 %v1578
    %1642 = vmatpush1.bf16.msra.mxu0 %v1577
    %1643 = vmatprep.subr.bf16.mxu0 %v1580
    %1644 = vmatpush1.bf16.msra.mxu0 %v1579
    %1645 = vmatprep.subr.bf16.mxu0 %v1582
    %1646 = vmatpush1.bf16.msra.mxu0 %v1581
    %1647 = vmatprep.subr.bf16.mxu0 %v1584
    %1648 = vmatpush1.bf16.msra.mxu0 %v1583
    %1649 = vmatprep.subr.bf16.mxu0 %v1586
    %1650 = vmatpush1.bf16.msra.mxu0 %v1585
    %1651 = vmatprep.subr.bf16.mxu0 %v1588
    %1652 = vmatpush1.bf16.msra.mxu0 %v1587
    %1653 = vmatprep.subr.bf16.mxu0 %v1590
    %1654 = vmatpush1.bf16.msra.mxu0 %v1589
    %1655 = vmatprep.subr.bf16.mxu0 %v1592
    %1656 = vmatpush1.bf16.msra.mxu0 %v1591
    %1657 = vmatprep.subr.bf16.mxu0 %v1594
    %1658 = vmatpush1.bf16.msra.mxu0 %v1593
    %1659 = vmatprep.subr.bf16.mxu0 %v1596
    %1660 = vmatpush1.bf16.msra.mxu0 %v1595
    %1661 = vmatprep.subr.bf16.mxu0 %v1598
    %1662 = vmatpush1.bf16.msra.mxu0 %v1597
    %1663 = vmatprep.subr.bf16.mxu0 %v1600
    %1664 = vmatpush1.bf16.msra.mxu0 %v1599
    %1665 = vmatprep.mubr.bf16.mxu0 %v1438
    %1666 = vmatmul.mubr.bf16.gmra.mrb[0].mxu0 %v1437
    %v1667 = vpop.f32.mrb[0].mxu0
    %v1668 = vadd.f32 0.0, %v1667
    %v1669 = vpop.f32.mrb[0].mxu0
    %v1670 = vadd.f32 0.0, %v1669
    %v1671 = vpop.f32.mrb[0].mxu0
    %v1672 = vadd.f32 0.0, %v1671
    %v1673 = vpop.f32.mrb[0].mxu0
    %v1674 = vadd.f32 0.0, %v1673
    %1675 = vmatprep.mubr.bf16.mxu0 %v1440
    %1676 = vmatmul.mubr.bf16.gmra.mrb[0].mxu0 %v1439
    %v1677 = vpop.f32.mrb[0].mxu0
    %v1678 = vadd.f32 0.0, %v1677
    %v1679 = vpop.f32.mrb[0].mxu0
    %v1680 = vadd.f32 0.0, %v1679
    %v1681 = vpop.f32.mrb[0].mxu0
    %v1682 = vpop.f32.mrb[0].mxu0
    %1683 = vdwg.mxu0
    %v1684 = vmax.f32 %v1668, %v1670
    %v1685 = vmax.f32 %v1672, %v1674
    %v1686 = vmax.f32 %v1678, %v1680
    %v1687 = vpack.c.bf16 %v1685, %v1684
    %v1688 = vpack.c.bf16 %v1686, %v1686
    %v1689 = vld [vmem:[#allocation7] sm:$0xf]
    %v1690 = vld [vmem:[#allocation7 + $0x4] sm:$0xf]
    %v1691 = vld [vmem:[#allocation7 + $0x8] sm:$0x3]
    %v1695 = vunpack.c.l.b16 %v1689
    %v1696 = vunpack.c.l.b16 %v1690
    %v1697 = vunpack.c.l.b16 %v1691
    %v1698 = vpack.c.b16 %v1696, %v1695
    %v1699 = vpack.c.b16 %v1697, %v1697
    %vm1700 = vcmask 195584
    %v1702 = vsel %vm1700, %v1698, 0
    %v1705 = vsel %vm1700, %v1699, 0
    %vm1707 = vcmask 1043456
    %v1709 = vsel %vm1707, %v1688, 0
    %1711 = vmatprep.subr.bf16.mxu0 0
    %1712 = vmatpush1.bf16.msra.mxu0 %v1687
    %1713 = vmatprep.subr.bf16.mxu0 0
    %1714 = vmatpush1.bf16.msra.mxu0 %v1709
    %1715 = vmatprep.subr.bf16.mxu0 0
    %1716 = vmatpush1.bf16.msra.mxu0 0
    %1717 = vmatprep.subr.bf16.mxu0 0
    %1718 = vmatpush1.bf16.msra.mxu0 0
    %1719 = vmatprep.subr.bf16.mxu0 0
    %1720 = vmatpush1.bf16.msra.mxu0 0
    %1721 = vmatprep.subr.bf16.mxu0 0
    %1722 = vmatpush1.bf16.msra.mxu0 0
    %1723 = vmatprep.subr.bf16.mxu0 0
    %1724 = vmatpush1.bf16.msra.mxu0 0
    %1725 = vmatprep.subr.bf16.mxu0 0
    %1726 = vmatpush1.bf16.msra.mxu0 0
    %1727 = vmatprep.subr.bf16.mxu0 0
    %1728 = vmatpush1.bf16.msra.mxu0 0
    %1729 = vmatprep.subr.bf16.mxu0 0
    %1730 = vmatpush1.bf16.msra.mxu0 0
    %1731 = vmatprep.subr.bf16.mxu0 0
    %1732 = vmatpush1.bf16.msra.mxu0 0
    %1733 = vmatprep.subr.bf16.mxu0 0
    %1734 = vmatpush1.bf16.msra.mxu0 0
    %1735 = vmatprep.subr.bf16.mxu0 0
    %1736 = vmatpush1.bf16.msra.mxu0 0
    %1737 = vmatprep.subr.bf16.mxu0 0
    %1738 = vmatpush1.bf16.msra.mxu0 0
    %1739 = vmatprep.subr.bf16.mxu0 0
    %1740 = vmatpush1.bf16.msra.mxu0 0
    %1741 = vmatprep.subr.bf16.mxu0 0
    %1742 = vmatpush1.bf16.msra.mxu0 0
    %1743 = vmatprep.mubr.bf16.mxu0 0
    %1744 = vmatmul.mubr.bf16.gmra.mrb[0].mxu0 %v1702
    %v1745 = vpop.f32.mrb[0].mxu0
    %v1746 = vadd.f32 0.0, %v1745
    %v1747 = vpop.f32.mrb[0].mxu0
    %v1748 = vpop.f32.mrb[0].mxu0
    %v1749 = vadd.f32 0.0, %v1748
    %v1750 = vpop.f32.mrb[0].mxu0
    %1751 = vmatprep.mubr.bf16.mxu0 0
    %1752 = vmatmul.mubr.bf16.gmra.mrb[0].mxu0 %v1705
    %v1753 = vpop.f32.mrb[0].mxu0
    %v1754 = vadd.f32 0.0, %v1753
    %v1755 = vpop.f32.mrb[0].mxu0
    %v1756 = vpop.f32.mrb[0].mxu0
    %v1757 = vpop.f32.mrb[0].mxu0
    %1758 = vdwg.mxu0
    %vm1761 = vcmask 1045504
    %v1762 = vrot.slane %v1749, 2
    %v1763 = vrot.slane %v1754, 2
    %v1764 = vsel %vm1761, %v1762, %v1763
    %v1767 = vmax.f32 %v1746, %v1764
    %v1768 = vmax.f32 %v1749, %v1763
    %v1769 = vpack.c.bf16 %v1768, %v1767
    %v1771 = vunpack.c.l.b16 %v1769
    %v1772 = vunpack.c.h.b16 %v1769
    %v1773 = vpack.c.b16 %v1771, %v1771
    %v1774 = vpack.c.b16 %v1772, %v1772
    %1777 = vst [vmem:[%s5] sm:$0xf] %v1773
    %1778 = vst [vmem:[%s5 + $0x4] sm:$0x1] %v1774
    // Predicated region
    $region38: #{pfmcnn2_forward.4} parent=1 // pred_check
      _
    $region39: #{pfmcnn2_forward.4} parent=1 // pred_check_branch
      %1780 = sbr.rel (0) target = $region41
    $region40: #{pfmcnn2_forward.4} parent=1 // pred_region
      _
    $region41: #{pfmcnn2_forward.4} parent=1 // pred_fallthru
      _
    // Predicated region
    $region42: #{pfmcnn2_forward.4} parent=1 // pred_check
      _
    $region43: #{pfmcnn2_forward.4} parent=1 // pred_check_branch
      %1782 = sbr.rel (0) target = $region45
    $region44: #{pfmcnn2_forward.4} parent=1 // pred_region
      _
    $region45: #{pfmcnn2_forward.4} parent=1 // pred_fallthru
      _
    %1783 = vsyncpa [#allocation3], 1
    %1784 = vsyncpa [#allocation5], 1
    %1785 = vsyncpa [#allocation8], 1

// kernel: pfmcnn2_forward.3
$region0: #{pfmcnn2_forward.3}
  #allocation0 [shape = 'u32[]', space=smem, size = 0x4, offset = 0x4, fixed_abs, tag = 'smem constant byte address 0x4 - core index']
  #allocation1 [shape = 'u32[144,128]{1,0:T(1,128)}', space=vmem, size = 0x12000, scoped, tag = 'internal scratch']
  %s0 = inlined_call_operand.vmem [shape: bf16[64,128], index: 0, kind: input, shape index: {}]
  %s1 = inlined_call_operand.hbm [shape: bf16[5,128,512], index: 1, kind: input, shape index: {}]
  %s2 = inlined_call_operand.hbm [shape: f32[1,512], index: 2, kind: input, shape index: {}]
  %s3 = inlined_call_operand.hbm [shape: bf16[512,512], index: 3, kind: input, shape index: {}]
  %s4 = inlined_call_operand.hbm [shape: bf16[56,60], index: 4, kind: input, shape index: {}]
  %s5 = inlined_call_operand.vmem [shape: bf16[28,256], index: 5, kind: output, shape index: {}]
  %s6 = sld [smem:[#allocation0]]
  $region46: #{pfmcnn2_forward.3} parent=0
    _
  %s8 = ssub.s32 1, %s6
  %s9 = scalar_select 0, %s8, %s6
  $region1: #{pfmcnn2_forward.3} parent=0
    #allocation2 [shape = 'u8[655360]{0}', space=vmem, size = 0xa0000, scoped, tag = 'input window, operand 1, single buffered']
    #allocation3 [shape = 's32[1]{0}', space=sflag, size = 0x4, scoped, tag = 'scoped memory for pfmcnn2_forward.3']
    #allocation4 [shape = 'u8[2048]{0}', space=vmem, size = 0x800, scoped, tag = 'input window, operand 2, single buffered']
    #allocation5 [shape = 's32[1]{0}', space=sflag, size = 0x4, scoped, tag = 'scoped memory for pfmcnn2_forward.3']
    #allocation6 [shape = 'u8[524288]{0}', space=vmem, size = 0x80000, scoped, tag = 'input window, operand 3, single buffered']
    #allocation7 [shape = 'u8[14336]{0}', space=vmem, size = 0x3800, scoped, tag = 'input window, operand 4, single buffered']
    #allocation8 [shape = 's32[1]{0}', space=sflag, size = 0x4, scoped, tag = 'scoped memory for pfmcnn2_forward.3']
    %10 = vsyncpa [#allocation3], 0
    %11 = vsyncpa [#allocation5], 0
    %12 = vsyncpa [#allocation8], 0
    // Predicated region
    $region2: #{pfmcnn2_forward.3} parent=1 // pred_check
      _
    $region3: #{pfmcnn2_forward.3} parent=1 // pred_check_branch
      %14 = sbr.rel (0) target = $region5
    $region4: #{pfmcnn2_forward.3} parent=1 // pred_region
      _
    $region5: #{pfmcnn2_forward.3} parent=1 // pred_fallthru
      _
    // Predicated region
    $region6: #{pfmcnn2_forward.3} parent=1 // pred_check
      _
    $region7: #{pfmcnn2_forward.3} parent=1 // pred_check_branch
      %16 = sbr.rel (0) target = $region9
    $region8: #{pfmcnn2_forward.3} parent=1 // pred_region
      %s18 = ssub.s32 20480, 20480
      %19 = vsyncadd [#allocation3], %s18
      %s20 = sshll.u32 [#allocation2], 4
      %s21 = int_to_ptr.vmem [resolvable:$true] %s20
      %26 = dma.hbm_to_vmem [thread:$0]  %s1, 20480, %s21, [#allocation3], 256, 256, 16
    $region9: #{pfmcnn2_forward.3} parent=1 // pred_fallthru
      _
    // Predicated region
    $region10: #{pfmcnn2_forward.3} parent=1 // pred_check
      _
    $region11: #{pfmcnn2_forward.3} parent=1 // pred_check_branch
      %28 = sbr.rel (0) target = $region13
    $region12: #{pfmcnn2_forward.3} parent=1 // pred_region
      %s30 = ssub.s32 64, 64
      %31 = vsyncadd [#allocation5], %s30
      %s33 = sshll.u32 [#allocation4], 4
      %s34 = int_to_ptr.vmem [resolvable:$true] %s33
      %36 = dma.hbm_to_vmem [thread:$0]  %s2, 64, %s34, [#allocation5]
    $region13: #{pfmcnn2_forward.3} parent=1 // pred_fallthru
      _
    // Predicated region
    $region14: #{pfmcnn2_forward.3} parent=1 // pred_check
      _
    $region15: #{pfmcnn2_forward.3} parent=1 // pred_check_branch
      %38 = sbr.rel (0) target = $region17
    $region16: #{pfmcnn2_forward.3} parent=1 // pred_region
      %s40 = ssub.s32 16384, 16384
      %41 = vsyncadd [#allocation5], %s40
      %s42 = sshll.u32 [#allocation6], 4
      %s43 = int_to_ptr.vmem [resolvable:$true] %s42
      %48 = dma.hbm_to_vmem [thread:$0]  %s3, 16384, %s43, [#allocation5], 256, 256, 16
    $region17: #{pfmcnn2_forward.3} parent=1 // pred_fallthru
      _
    // Predicated region
    $region18: #{pfmcnn2_forward.3} parent=1 // pred_check
      _
    $region19: #{pfmcnn2_forward.3} parent=1 // pred_check_branch
      %50 = sbr.rel (0) target = $region21
    $region20: #{pfmcnn2_forward.3} parent=1 // pred_region
      %s52 = ssub.s32 448, 448
      %53 = vsyncadd [#allocation8], %s52
      %s54 = sshll.u32 [#allocation7], 4
      %s55 = int_to_ptr.vmem [resolvable:$true] %s54
      %60 = dma.hbm_to_vmem [thread:$0]  %s4, 448, %s55, [#allocation8], 64, 64, 4
    $region21: #{pfmcnn2_forward.3} parent=1 // pred_fallthru
      _
    // Predicated region
    $region22: #{pfmcnn2_forward.3} parent=1 // pred_check
      _
    $region23: #{pfmcnn2_forward.3} parent=1 // pred_check_branch
      %62 = sbr.rel (0) target = $region25
    $region24: #{pfmcnn2_forward.3} parent=1 // pred_region
      %63 = dma.done [#allocation3], 20480
    $region25: #{pfmcnn2_forward.3} parent=1 // pred_fallthru
      _
    // Predicated region
    $region26: #{pfmcnn2_forward.3} parent=1 // pred_check
      _
    $region27: #{pfmcnn2_forward.3} parent=1 // pred_check_branch
      %65 = sbr.rel (0) target = $region29
    $region28: #{pfmcnn2_forward.3} parent=1 // pred_region
      %66 = dma.done [#allocation5], 64
    $region29: #{pfmcnn2_forward.3} parent=1 // pred_fallthru
      _
    // Predicated region
    $region30: #{pfmcnn2_forward.3} parent=1 // pred_check
      _
    $region31: #{pfmcnn2_forward.3} parent=1 // pred_check_branch
      %68 = sbr.rel (0) target = $region33
    $region32: #{pfmcnn2_forward.3} parent=1 // pred_region
      %69 = dma.done [#allocation5], 16384
    $region33: #{pfmcnn2_forward.3} parent=1 // pred_fallthru
      _
    // Predicated region
    $region34: #{pfmcnn2_forward.3} parent=1 // pred_check
      _
    $region35: #{pfmcnn2_forward.3} parent=1 // pred_check_branch
      %71 = sbr.rel (0) target = $region37
    $region36: #{pfmcnn2_forward.3} parent=1 // pred_region
      %72 = dma.done [#allocation8], 448
    $region37: #{pfmcnn2_forward.3} parent=1 // pred_fallthru
      _
    %v74 = vld [vmem:[%s0] sm:$0xf]
    %v75 = vld [vmem:[%s0 + $0x4] sm:$0xf]
    %v76 = vld [vmem:[%s0 + $0x8] sm:$0xf]
    %v77 = vld [vmem:[%s0 + $0xc] sm:$0xf]
    %v78 = vld [vmem:[%s0 + $0x10] sm:$0xf]
    %v79 = vld [vmem:[%s0 + $0x14] sm:$0xf]
    %v80 = vld [vmem:[%s0 + $0x18] sm:$0xf]
    %v81 = vld [vmem:[%s0 + $0x1c] sm:$0xf]
    %v82 = vld [vmem:[#allocation2] sm:$0xff]
    %v83 = vld [vmem:[#allocation2 + $0x8] sm:$0xff]
    %v84 = vld [vmem:[#allocation2 + $0x10] sm:$0xff]
    %v85 = vld [vmem:[#allocation2 + $0x18] sm:$0xff]
    %v86 = vld [vmem:[#allocation2 + $0x20] sm:$0xff]
    %v87 = vld [vmem:[#allocation2 + $0x28] sm:$0xff]
    %v88 = vld [vmem:[#allocation2 + $0x30] sm:$0xff]
    %v89 = vld [vmem:[#allocation2 + $0x38] sm:$0xff]
    %v90 = vld [vmem:[#allocation2 + $0x40] sm:$0xff]
    %v91 = vld [vmem:[#allocation2 + $0x48] sm:$0xff]
    %v92 = vld [vmem:[#allocation2 + $0x50] sm:$0xff]
    %v93 = vld [vmem:[#allocation2 + $0x58] sm:$0xff]
    %v94 = vld [vmem:[#allocation2 + $0x60] sm:$0xff]
    %v95 = vld [vmem:[#allocation2 + $0x68] sm:$0xff]
    %v96 = vld [vmem:[#allocation2 + $0x70] sm:$0xff]
    %v97 = vld [vmem:[#allocation2 + $0x78] sm:$0xff]
    %v98 = vld [vmem:[#allocation2 + $0x80] sm:$0xff]
    %v99 = vld [vmem:[#allocation2 + $0x88] sm:$0xff]
    %v100 = vld [vmem:[#allocation2 + $0x90] sm:$0xff]
    %v101 = vld [vmem:[#allocation2 + $0x98] sm:$0xff]
    %v102 = vld [vmem:[#allocation2 + $0xa0] sm:$0xff]
    %v103 = vld [vmem:[#allocation2 + $0xa8] sm:$0xff]
    %v104 = vld [vmem:[#allocation2 + $0xb0] sm:$0xff]
    %v105 = vld [vmem:[#allocation2 + $0xb8] sm:$0xff]
    %v106 = vld [vmem:[#allocation2 + $0xc0] sm:$0xff]
    %v107 = vld [vmem:[#allocation2 + $0xc8] sm:$0xff]
    %v108 = vld [vmem:[#allocation2 + $0xd0] sm:$0xff]
    %v109 = vld [vmem:[#allocation2 + $0xd8] sm:$0xff]
    %v110 = vld [vmem:[#allocation2 + $0xe0] sm:$0xff]
    %v111 = vld [vmem:[#allocation2 + $0xe8] sm:$0xff]
    %v112 = vld [vmem:[#allocation2 + $0xf0] sm:$0xff]
    %v113 = vld [vmem:[#allocation2 + $0xf8] sm:$0xff]
    %s114 = scalar_lea.vmem [#allocation2], 256
    %v115 = vld [vmem:[%s114] sm:$0xff]
    %v116 = vld [vmem:[%s114 + $0x8] sm:$0xff]
    %v117 = vld [vmem:[%s114 + $0x10] sm:$0xff]
    %v118 = vld [vmem:[%s114 + $0x18] sm:$0xff]
    %v119 = vld [vmem:[%s114 + $0x20] sm:$0xff]
    %v120 = vld [vmem:[%s114 + $0x28] sm:$0xff]
    %v121 = vld [vmem:[%s114 + $0x30] sm:$0xff]
    %v122 = vld [vmem:[%s114 + $0x38] sm:$0xff]
    %v123 = vld [vmem:[%s114 + $0x40] sm:$0xff]
    %v124 = vld [vmem:[%s114 + $0x48] sm:$0xff]
    %v125 = vld [vmem:[%s114 + $0x50] sm:$0xff]
    %v126 = vld [vmem:[%s114 + $0x58] sm:$0xff]
    %v127 = vld [vmem:[%s114 + $0x60] sm:$0xff]
    %v128 = vld [vmem:[%s114 + $0x68] sm:$0xff]
    %v129 = vld [vmem:[%s114 + $0x70] sm:$0xff]
    %v130 = vld [vmem:[%s114 + $0x78] sm:$0xff]
    %v131 = vld [vmem:[%s114 + $0x80] sm:$0xff]
    %v132 = vld [vmem:[%s114 + $0x88] sm:$0xff]
    %v133 = vld [vmem:[%s114 + $0x90] sm:$0xff]
    %v134 = vld [vmem:[%s114 + $0x98] sm:$0xff]
    %v135 = vld [vmem:[%s114 + $0xa0] sm:$0xff]
    %v136 = vld [vmem:[%s114 + $0xa8] sm:$0xff]
    %v137 = vld [vmem:[%s114 + $0xb0] sm:$0xff]
    %v138 = vld [vmem:[%s114 + $0xb8] sm:$0xff]
    %v139 = vld [vmem:[%s114 + $0xc0] sm:$0xff]
    %v140 = vld [vmem:[%s114 + $0xc8] sm:$0xff]
    %v141 = vld [vmem:[%s114 + $0xd0] sm:$0xff]
    %v142 = vld [vmem:[%s114 + $0xd8] sm:$0xff]
    %v143 = vld [vmem:[%s114 + $0xe0] sm:$0xff]
    %v144 = vld [vmem:[%s114 + $0xe8] sm:$0xff]
    %v145 = vld [vmem:[%s114 + $0xf0] sm:$0xff]
    %v146 = vld [vmem:[%s114 + $0xf8] sm:$0xff]
    %v155 = vunpack.c.l.b16 %v74
    %v156 = vunpack.c.l.b16 %v75
    %v157 = vunpack.c.l.b16 %v76
    %v158 = vunpack.c.l.b16 %v77
    %v159 = vunpack.c.l.b16 %v78
    %v160 = vunpack.c.l.b16 %v79
    %v161 = vunpack.c.l.b16 %v80
    %v162 = vunpack.c.l.b16 %v81
    %v163 = vpack.c.b16 %v156, %v155
    %v164 = vpack.c.b16 %v158, %v157
    %v165 = vpack.c.b16 %v160, %v159
    %v166 = vpack.c.b16 %v162, %v161
    %vm167 = vsmask.f32 7424
    %v169 = vshrl.u32 %v163, 16
    %v171 = vshll.u32 %v163, 16
    %v173 = vrot.slane %v171, 1
    %v174 = vor.u32 %v169, %v173
    %v176 = vshll.u32 %v164, 16
    %v178 = vrot.slane %v176, 1
    %v179 = vsel %vm167, %v174, %v178
    %v180 = vshrl.u32 %v164, 16
    %v182 = vor.u32 %v180, %v178
    %v184 = vshll.u32 %v165, 16
    %v186 = vrot.slane %v184, 1
    %v187 = vsel %vm167, %v182, %v186
    %v188 = vshrl.u32 %v165, 16
    %v190 = vor.u32 %v188, %v186
    %v192 = vshll.u32 %v166, 16
    %v194 = vrot.slane %v192, 1
    %v195 = vsel %vm167, %v190, %v194
    %v196 = vshrl.u32 %v166, 16
    %v198 = vor.u32 %v196, %v194
    %v235 = vunpack.c.l.b16 %v115
    %v236 = vunpack.c.h.b16 %v115
    %v237 = vunpack.c.l.b16 %v116
    %v238 = vunpack.c.h.b16 %v116
    %v239 = vunpack.c.l.b16 %v117
    %v240 = vunpack.c.h.b16 %v117
    %v241 = vunpack.c.l.b16 %v118
    %v242 = vunpack.c.h.b16 %v118
    %v243 = vunpack.c.l.b16 %v119
    %v244 = vunpack.c.h.b16 %v119
    %v245 = vunpack.c.l.b16 %v120
    %v246 = vunpack.c.h.b16 %v120
    %v247 = vunpack.c.l.b16 %v121
    %v248 = vunpack.c.h.b16 %v121
    %v249 = vunpack.c.l.b16 %v122
    %v250 = vunpack.c.h.b16 %v122
    %v251 = vunpack.c.l.b16 %v123
    %v252 = vunpack.c.h.b16 %v123
    %v253 = vunpack.c.l.b16 %v124
    %v254 = vunpack.c.h.b16 %v124
    %v255 = vunpack.c.l.b16 %v125
    %v256 = vunpack.c.h.b16 %v125
    %v257 = vunpack.c.l.b16 %v126
    %v258 = vunpack.c.h.b16 %v126
    %v259 = vunpack.c.l.b16 %v127
    %v260 = vunpack.c.h.b16 %v127
    %v261 = vunpack.c.l.b16 %v128
    %v262 = vunpack.c.h.b16 %v128
    %v263 = vunpack.c.l.b16 %v129
    %v264 = vunpack.c.h.b16 %v129
    %v265 = vunpack.c.l.b16 %v130
    %v266 = vunpack.c.h.b16 %v130
    %v267 = vunpack.c.l.b16 %v131
    %v268 = vunpack.c.h.b16 %v131
    %v269 = vunpack.c.l.b16 %v132
    %v270 = vunpack.c.h.b16 %v132
    %v271 = vunpack.c.l.b16 %v133
    %v272 = vunpack.c.h.b16 %v133
    %v273 = vunpack.c.l.b16 %v134
    %v274 = vunpack.c.h.b16 %v134
    %v275 = vunpack.c.l.b16 %v135
    %v276 = vunpack.c.h.b16 %v135
    %v277 = vunpack.c.l.b16 %v136
    %v278 = vunpack.c.h.b16 %v136
    %v279 = vunpack.c.l.b16 %v137
    %v280 = vunpack.c.h.b16 %v137
    %v281 = vunpack.c.l.b16 %v138
    %v282 = vunpack.c.h.b16 %v138
    %v283 = vunpack.c.l.b16 %v139
    %v284 = vunpack.c.h.b16 %v139
    %v285 = vunpack.c.l.b16 %v140
    %v286 = vunpack.c.h.b16 %v140
    %v287 = vunpack.c.l.b16 %v141
    %v288 = vunpack.c.h.b16 %v141
    %v289 = vunpack.c.l.b16 %v142
    %v290 = vunpack.c.h.b16 %v142
    %v291 = vunpack.c.l.b16 %v143
    %v292 = vunpack.c.h.b16 %v143
    %v293 = vunpack.c.l.b16 %v144
    %v294 = vunpack.c.h.b16 %v144
    %v295 = vunpack.c.l.b16 %v145
    %v296 = vunpack.c.h.b16 %v145
    %v297 = vunpack.c.l.b16 %v146
    %v298 = vunpack.c.h.b16 %v146
    %v299 = vpack.c.b16 %v239, %v235
    %v300 = vpack.c.b16 %v240, %v236
    %v301 = vpack.c.b16 %v241, %v237
    %v302 = vpack.c.b16 %v242, %v238
    %v303 = vpack.c.b16 %v247, %v243
    %v304 = vpack.c.b16 %v248, %v244
    %v305 = vpack.c.b16 %v249, %v245
    %v306 = vpack.c.b16 %v250, %v246
    %v307 = vpack.c.b16 %v255, %v251
    %v308 = vpack.c.b16 %v256, %v252
    %v309 = vpack.c.b16 %v257, %v253
    %v310 = vpack.c.b16 %v258, %v254
    %v311 = vpack.c.b16 %v263, %v259
    %v312 = vpack.c.b16 %v264, %v260
    %v313 = vpack.c.b16 %v265, %v261
    %v314 = vpack.c.b16 %v266, %v262
    %v315 = vpack.c.b16 %v271, %v267
    %v316 = vpack.c.b16 %v272, %v268
    %v317 = vpack.c.b16 %v273, %v269
    %v318 = vpack.c.b16 %v274, %v270
    %v319 = vpack.c.b16 %v279, %v275
    %v320 = vpack.c.b16 %v280, %v276
    %v321 = vpack.c.b16 %v281, %v277
    %v322 = vpack.c.b16 %v282, %v278
    %v323 = vpack.c.b16 %v287, %v283
    %v324 = vpack.c.b16 %v288, %v284
    %v325 = vpack.c.b16 %v289, %v285
    %v326 = vpack.c.b16 %v290, %v286
    %v327 = vpack.c.b16 %v295, %v291
    %v328 = vpack.c.b16 %v296, %v292
    %v329 = vpack.c.b16 %v297, %v293
    %v330 = vpack.c.b16 %v298, %v294
    %363 = vmatprep.subr.bf16.mxu0 %v300
    %364 = vmatpush1.bf16.msra.mxu0 %v299
    %365 = vmatprep.subr.bf16.mxu0 %v304
    %366 = vmatpush1.bf16.msra.mxu0 %v303
    %367 = vmatprep.subr.bf16.mxu0 %v308
    %368 = vmatpush1.bf16.msra.mxu0 %v307
    %369 = vmatprep.subr.bf16.mxu0 %v312
    %370 = vmatpush1.bf16.msra.mxu0 %v311
    %371 = vmatprep.subr.bf16.mxu0 %v316
    %372 = vmatpush1.bf16.msra.mxu0 %v315
    %373 = vmatprep.subr.bf16.mxu0 %v320
    %374 = vmatpush1.bf16.msra.mxu0 %v319
    %375 = vmatprep.subr.bf16.mxu0 %v324
    %376 = vmatpush1.bf16.msra.mxu0 %v323
    %377 = vmatprep.subr.bf16.mxu0 %v328
    %378 = vmatpush1.bf16.msra.mxu0 %v327
    %379 = vmatprep.subr.bf16.mxu0 0
    %380 = vmatpush1.bf16.msra.mxu0 0
    %381 = vmatprep.subr.bf16.mxu0 0
    %382 = vmatpush1.bf16.msra.mxu0 0
    %383 = vmatprep.subr.bf16.mxu0 0
    %384 = vmatpush1.bf16.msra.mxu0 0
    %385 = vmatprep.subr.bf16.mxu0 0
    %386 = vmatpush1.bf16.msra.mxu0 0
    %387 = vmatprep.subr.bf16.mxu0 0
    %388 = vmatpush1.bf16.msra.mxu0 0
    %389 = vmatprep.subr.bf16.mxu0 0
    %390 = vmatpush1.bf16.msra.mxu0 0
    %391 = vmatprep.subr.bf16.mxu0 0
    %392 = vmatpush1.bf16.msra.mxu0 0
    %393 = vmatprep.subr.bf16.mxu0 0
    %394 = vmatpush1.bf16.msra.mxu0 0
    %395 = vmatprep.mubr.bf16.mxu0 0
    %396 = vmatmul.mubr.bf16.gmra.mrb[0].mxu0 %v179
    %v397 = vpop.f32.mrb[0].mxu0
    %v398 = vadd.f32 0.0, %v397
    %v399 = vpop.f32.mrb[0].mxu0
    %v400 = vadd.f32 0.0, %v399
    %v401 = vpop.f32.mrb[0].mxu0
    %v402 = vadd.f32 0.0, %v401
    %v403 = vpop.f32.mrb[0].mxu0
    %v404 = vadd.f32 0.0, %v403
    %405 = vmatprep.mubr.bf16.mxu0 0
    %406 = vmatmul.mubr.bf16.gmra.mrb[0].mxu0 %v187
    %v407 = vpop.f32.mrb[0].mxu0
    %v408 = vadd.f32 0.0, %v407
    %v409 = vpop.f32.mrb[0].mxu0
    %v410 = vadd.f32 0.0, %v409
    %v411 = vpop.f32.mrb[0].mxu0
    %v412 = vadd.f32 0.0, %v411
    %v413 = vpop.f32.mrb[0].mxu0
    %v414 = vadd.f32 0.0, %v413
    %415 = vmatprep.mubr.bf16.mxu0 0
    %416 = vmatmul.mubr.bf16.gmra.mrb[0].mxu0 %v195
    %v417 = vpop.f32.mrb[0].mxu0
    %v418 = vadd.f32 0.0, %v417
    %v419 = vpop.f32.mrb[0].mxu0
    %v420 = vadd.f32 0.0, %v419
    %v421 = vpop.f32.mrb[0].mxu0
    %v422 = vadd.f32 0.0, %v421
    %v423 = vpop.f32.mrb[0].mxu0
    %v424 = vadd.f32 0.0, %v423
    %425 = vmatprep.mubr.bf16.mxu0 0
    %426 = vmatmul.mubr.bf16.gmra.mrb[0].mxu0 %v198
    %v427 = vpop.f32.mrb[0].mxu0
    %v428 = vadd.f32 0.0, %v427
    %v429 = vpop.f32.mrb[0].mxu0
    %v430 = vadd.f32 0.0, %v429
    %v431 = vpop.f32.mrb[0].mxu0
    %v432 = vadd.f32 0.0, %v431
    %v433 = vpop.f32.mrb[0].mxu0
    %v434 = vadd.f32 0.0, %v433
    %435 = vdwg.mxu0
    %436 = vmatprep.subr.bf16.mxu0 %v302
    %437 = vmatpush1.bf16.msra.mxu0 %v301
    %438 = vmatprep.subr.bf16.mxu0 %v306
    %439 = vmatpush1.bf16.msra.mxu0 %v305
    %440 = vmatprep.subr.bf16.mxu0 %v310
    %441 = vmatpush1.bf16.msra.mxu0 %v309
    %442 = vmatprep.subr.bf16.mxu0 %v314
    %443 = vmatpush1.bf16.msra.mxu0 %v313
    %444 = vmatprep.subr.bf16.mxu0 %v318
    %445 = vmatpush1.bf16.msra.mxu0 %v317
    %446 = vmatprep.subr.bf16.mxu0 %v322
    %447 = vmatpush1.bf16.msra.mxu0 %v321
    %448 = vmatprep.subr.bf16.mxu0 %v326
    %449 = vmatpush1.bf16.msra.mxu0 %v325
    %450 = vmatprep.subr.bf16.mxu0 %v330
    %451 = vmatpush1.bf16.msra.mxu0 %v329
    %452 = vmatprep.subr.bf16.mxu0 0
    %453 = vmatpush1.bf16.msra.mxu0 0
    %454 = vmatprep.subr.bf16.mxu0 0
    %455 = vmatpush1.bf16.msra.mxu0 0
    %456 = vmatprep.subr.bf16.mxu0 0
    %457 = vmatpush1.bf16.msra.mxu0 0
    %458 = vmatprep.subr.bf16.mxu0 0
    %459 = vmatpush1.bf16.msra.mxu0 0
    %460 = vmatprep.subr.bf16.mxu0 0
    %461 = vmatpush1.bf16.msra.mxu0 0
    %462 = vmatprep.subr.bf16.mxu0 0
    %463 = vmatpush1.bf16.msra.mxu0 0
    %464 = vmatprep.subr.bf16.mxu0 0
    %465 = vmatpush1.bf16.msra.mxu0 0
    %466 = vmatprep.subr.bf16.mxu0 0
    %467 = vmatpush1.bf16.msra.mxu0 0
    %468 = vmatprep.mubr.bf16.mxu0 0
    %469 = vmatmul.mubr.bf16.gmra.mrb[0].mxu0 %v179
    %v470 = vpop.f32.mrb[0].mxu0
    %v471 = vadd.f32 0.0, %v470
    %v472 = vpop.f32.mrb[0].mxu0
    %v473 = vadd.f32 0.0, %v472
    %v474 = vpop.f32.mrb[0].mxu0
    %v475 = vadd.f32 0.0, %v474
    %v476 = vpop.f32.mrb[0].mxu0
    %v477 = vadd.f32 0.0, %v476
    %478 = vmatprep.mubr.bf16.mxu0 0
    %479 = vmatmul.mubr.bf16.gmra.mrb[0].mxu0 %v187
    %v480 = vpop.f32.mrb[0].mxu0
    %v481 = vadd.f32 0.0, %v480
    %v482 = vpop.f32.mrb[0].mxu0
    %v483 = vadd.f32 0.0, %v482
    %v484 = vpop.f32.mrb[0].mxu0
    %v485 = vadd.f32 0.0, %v484
    %v486 = vpop.f32.mrb[0].mxu0
    %v487 = vadd.f32 0.0, %v486
    %488 = vmatprep.mubr.bf16.mxu0 0
    %489 = vmatmul.mubr.bf16.gmra.mrb[0].mxu0 %v195
    %v490 = vpop.f32.mrb[0].mxu0
    %v491 = vadd.f32 0.0, %v490
    %v492 = vpop.f32.mrb[0].mxu0
    %v493 = vadd.f32 0.0, %v492
    %v494 = vpop.f32.mrb[0].mxu0
    %v495 = vadd.f32 0.0, %v494
    %v496 = vpop.f32.mrb[0].mxu0
    %v497 = vadd.f32 0.0, %v496
    %498 = vmatprep.mubr.bf16.mxu0 0
    %499 = vmatmul.mubr.bf16.gmra.mrb[0].mxu0 %v198
    %v500 = vpop.f32.mrb[0].mxu0
    %v501 = vadd.f32 0.0, %v500
    %v502 = vpop.f32.mrb[0].mxu0
    %v503 = vadd.f32 0.0, %v502
    %v504 = vpop.f32.mrb[0].mxu0
    %v505 = vadd.f32 0.0, %v504
    %v506 = vpop.f32.mrb[0].mxu0
    %v507 = vadd.f32 0.0, %v506
    %508 = vdwg.mxu0
    %v545 = vunpack.c.l.b16 %v82
    %v546 = vunpack.c.h.b16 %v82
    %v547 = vunpack.c.l.b16 %v83
    %v548 = vunpack.c.h.b16 %v83
    %v549 = vunpack.c.l.b16 %v84
    %v550 = vunpack.c.h.b16 %v84
    %v551 = vunpack.c.l.b16 %v85
    %v552 = vunpack.c.h.b16 %v85
    %v553 = vunpack.c.l.b16 %v86
    %v554 = vunpack.c.h.b16 %v86
    %v555 = vunpack.c.l.b16 %v87
    %v556 = vunpack.c.h.b16 %v87
    %v557 = vunpack.c.l.b16 %v88
    %v558 = vunpack.c.h.b16 %v88
    %v559 = vunpack.c.l.b16 %v89
    %v560 = vunpack.c.h.b16 %v89
    %v561 = vunpack.c.l.b16 %v90
    %v562 = vunpack.c.h.b16 %v90
    %v563 = vunpack.c.l.b16 %v91
    %v564 = vunpack.c.h.b16 %v91
    %v565 = vunpack.c.l.b16 %v92
    %v566 = vunpack.c.h.b16 %v92
    %v567 = vunpack.c.l.b16 %v93
    %v568 = vunpack.c.h.b16 %v93
    %v569 = vunpack.c.l.b16 %v94
    %v570 = vunpack.c.h.b16 %v94
    %v571 = vunpack.c.l.b16 %v95
    %v572 = vunpack.c.h.b16 %v95
    %v573 = vunpack.c.l.b16 %v96
    %v574 = vunpack.c.h.b16 %v96
    %v575 = vunpack.c.l.b16 %v97
    %v576 = vunpack.c.h.b16 %v97
    %v577 = vunpack.c.l.b16 %v98
    %v578 = vunpack.c.h.b16 %v98
    %v579 = vunpack.c.l.b16 %v99
    %v580 = vunpack.c.h.b16 %v99
    %v581 = vunpack.c.l.b16 %v100
    %v582 = vunpack.c.h.b16 %v100
    %v583 = vunpack.c.l.b16 %v101
    %v584 = vunpack.c.h.b16 %v101
    %v585 = vunpack.c.l.b16 %v102
    %v586 = vunpack.c.h.b16 %v102
    %v587 = vunpack.c.l.b16 %v103
    %v588 = vunpack.c.h.b16 %v103
    %v589 = vunpack.c.l.b16 %v104
    %v590 = vunpack.c.h.b16 %v104
    %v591 = vunpack.c.l.b16 %v105
    %v592 = vunpack.c.h.b16 %v105
    %v593 = vunpack.c.l.b16 %v106
    %v594 = vunpack.c.h.b16 %v106
    %v595 = vunpack.c.l.b16 %v107
    %v596 = vunpack.c.h.b16 %v107
    %v597 = vunpack.c.l.b16 %v108
    %v598 = vunpack.c.h.b16 %v108
    %v599 = vunpack.c.l.b16 %v109
    %v600 = vunpack.c.h.b16 %v109
    %v601 = vunpack.c.l.b16 %v110
    %v602 = vunpack.c.h.b16 %v110
    %v603 = vunpack.c.l.b16 %v111
    %v604 = vunpack.c.h.b16 %v111
    %v605 = vunpack.c.l.b16 %v112
    %v606 = vunpack.c.h.b16 %v112
    %v607 = vunpack.c.l.b16 %v113
    %v608 = vunpack.c.h.b16 %v113
    %v609 = vpack.c.b16 %v549, %v545
    %v610 = vpack.c.b16 %v550, %v546
    %v611 = vpack.c.b16 %v551, %v547
    %v612 = vpack.c.b16 %v552, %v548
    %v613 = vpack.c.b16 %v557, %v553
    %v614 = vpack.c.b16 %v558, %v554
    %v615 = vpack.c.b16 %v559, %v555
    %v616 = vpack.c.b16 %v560, %v556
    %v617 = vpack.c.b16 %v565, %v561
    %v618 = vpack.c.b16 %v566, %v562
    %v619 = vpack.c.b16 %v567, %v563
    %v620 = vpack.c.b16 %v568, %v564
    %v621 = vpack.c.b16 %v573, %v569
    %v622 = vpack.c.b16 %v574, %v570
    %v623 = vpack.c.b16 %v575, %v571
    %v624 = vpack.c.b16 %v576, %v572
    %v625 = vpack.c.b16 %v581, %v577
    %v626 = vpack.c.b16 %v582, %v578
    %v627 = vpack.c.b16 %v583, %v579
    %v628 = vpack.c.b16 %v584, %v580
    %v629 = vpack.c.b16 %v589, %v585
    %v630 = vpack.c.b16 %v590, %v586
    %v631 = vpack.c.b16 %v591, %v587
    %v632 = vpack.c.b16 %v592, %v588
    %v633 = vpack.c.b16 %v597, %v593
    %v634 = vpack.c.b16 %v598, %v594
    %v635 = vpack.c.b16 %v599, %v595
    %v636 = vpack.c.b16 %v600, %v596
    %v637 = vpack.c.b16 %v605, %v601
    %v638 = vpack.c.b16 %v606, %v602
    %v639 = vpack.c.b16 %v607, %v603
    %v640 = vpack.c.b16 %v608, %v604
    %673 = vmatprep.subr.bf16.mxu0 %v610
    %674 = vmatpush1.bf16.msra.mxu0 %v609
    %675 = vmatprep.subr.bf16.mxu0 %v614
    %676 = vmatpush1.bf16.msra.mxu0 %v613
    %677 = vmatprep.subr.bf16.mxu0 %v618
    %678 = vmatpush1.bf16.msra.mxu0 %v617
    %679 = vmatprep.subr.bf16.mxu0 %v622
    %680 = vmatpush1.bf16.msra.mxu0 %v621
    %681 = vmatprep.subr.bf16.mxu0 %v626
    %682 = vmatpush1.bf16.msra.mxu0 %v625
    %683 = vmatprep.subr.bf16.mxu0 %v630
    %684 = vmatpush1.bf16.msra.mxu0 %v629
    %685 = vmatprep.subr.bf16.mxu0 %v634
    %686 = vmatpush1.bf16.msra.mxu0 %v633
    %687 = vmatprep.subr.bf16.mxu0 %v638
    %688 = vmatpush1.bf16.msra.mxu0 %v637
    %689 = vmatprep.subr.bf16.mxu0 0
    %690 = vmatpush1.bf16.msra.mxu0 0
    %691 = vmatprep.subr.bf16.mxu0 0
    %692 = vmatpush1.bf16.msra.mxu0 0
    %693 = vmatprep.subr.bf16.mxu0 0
    %694 = vmatpush1.bf16.msra.mxu0 0
    %695 = vmatprep.subr.bf16.mxu0 0
    %696 = vmatpush1.bf16.msra.mxu0 0
    %697 = vmatprep.subr.bf16.mxu0 0
    %698 = vmatpush1.bf16.msra.mxu0 0
    %699 = vmatprep.subr.bf16.mxu0 0
    %700 = vmatpush1.bf16.msra.mxu0 0
    %701 = vmatprep.subr.bf16.mxu0 0
    %702 = vmatpush1.bf16.msra.mxu0 0
    %703 = vmatprep.subr.bf16.mxu0 0
    %704 = vmatpush1.bf16.msra.mxu0 0
    %705 = vmatprep.mubr.bf16.mxu0 0
    %706 = vmatmul.mubr.bf16.gmra.mrb[0].mxu0 %v163
    %v707 = vpop.f32.mrb[0].mxu0
    %v708 = vadd.f32 %v398, %v707
    %v709 = vpop.f32.mrb[0].mxu0
    %v710 = vadd.f32 %v400, %v709
    %v711 = vpop.f32.mrb[0].mxu0
    %v712 = vadd.f32 %v402, %v711
    %v713 = vpop.f32.mrb[0].mxu0
    %v714 = vadd.f32 %v404, %v713
    %715 = vmatprep.mubr.bf16.mxu0 0
    %716 = vmatmul.mubr.bf16.gmra.mrb[0].mxu0 %v164
    %v717 = vpop.f32.mrb[0].mxu0
    %v718 = vadd.f32 %v408, %v717
    %v719 = vpop.f32.mrb[0].mxu0
    %v720 = vadd.f32 %v410, %v719
    %v721 = vpop.f32.mrb[0].mxu0
    %v722 = vadd.f32 %v412, %v721
    %v723 = vpop.f32.mrb[0].mxu0
    %v724 = vadd.f32 %v414, %v723
    %725 = vmatprep.mubr.bf16.mxu0 0
    %726 = vmatmul.mubr.bf16.gmra.mrb[0].mxu0 %v165
    %v727 = vpop.f32.mrb[0].mxu0
    %v728 = vadd.f32 %v418, %v727
    %v729 = vpop.f32.mrb[0].mxu0
    %v730 = vadd.f32 %v420, %v729
    %v731 = vpop.f32.mrb[0].mxu0
    %v732 = vadd.f32 %v422, %v731
    %v733 = vpop.f32.mrb[0].mxu0
    %v734 = vadd.f32 %v424, %v733
    %735 = vmatprep.mubr.bf16.mxu0 0
    %736 = vmatmul.mubr.bf16.gmra.mrb[0].mxu0 %v166
    %v737 = vpop.f32.mrb[0].mxu0
    %v738 = vadd.f32 %v428, %v737
    %v739 = vpop.f32.mrb[0].mxu0
    %v740 = vadd.f32 %v430, %v739
    %v741 = vpop.f32.mrb[0].mxu0
    %v742 = vadd.f32 %v432, %v741
    %v743 = vpop.f32.mrb[0].mxu0
    %v744 = vadd.f32 %v434, %v743
    %745 = vdwg.mxu0
    %746 = vmatprep.subr.bf16.mxu0 %v612
    %747 = vmatpush1.bf16.msra.mxu0 %v611
    %748 = vmatprep.subr.bf16.mxu0 %v616
    %749 = vmatpush1.bf16.msra.mxu0 %v615
    %750 = vmatprep.subr.bf16.mxu0 %v620
    %751 = vmatpush1.bf16.msra.mxu0 %v619
    %752 = vmatprep.subr.bf16.mxu0 %v624
    %753 = vmatpush1.bf16.msra.mxu0 %v623
    %754 = vmatprep.subr.bf16.mxu0 %v628
    %755 = vmatpush1.bf16.msra.mxu0 %v627
    %756 = vmatprep.subr.bf16.mxu0 %v632
    %757 = vmatpush1.bf16.msra.mxu0 %v631
    %758 = vmatprep.subr.bf16.mxu0 %v636
    %759 = vmatpush1.bf16.msra.mxu0 %v635
    %760 = vmatprep.subr.bf16.mxu0 %v640
    %761 = vmatpush1.bf16.msra.mxu0 %v639
    %762 = vmatprep.subr.bf16.mxu0 0
    %763 = vmatpush1.bf16.msra.mxu0 0
    %764 = vmatprep.subr.bf16.mxu0 0
    %765 = vmatpush1.bf16.msra.mxu0 0
    %766 = vmatprep.subr.bf16.mxu0 0
    %767 = vmatpush1.bf16.msra.mxu0 0
    %768 = vmatprep.subr.bf16.mxu0 0
    %769 = vmatpush1.bf16.msra.mxu0 0
    %770 = vmatprep.subr.bf16.mxu0 0
    %771 = vmatpush1.bf16.msra.mxu0 0
    %772 = vmatprep.subr.bf16.mxu0 0
    %773 = vmatpush1.bf16.msra.mxu0 0
    %774 = vmatprep.subr.bf16.mxu0 0
    %775 = vmatpush1.bf16.msra.mxu0 0
    %776 = vmatprep.subr.bf16.mxu0 0
    %777 = vmatpush1.bf16.msra.mxu0 0
    %778 = vmatprep.mubr.bf16.mxu0 0
    %779 = vmatmul.mubr.bf16.gmra.mrb[0].mxu0 %v163
    %v780 = vpop.f32.mrb[0].mxu0
    %v781 = vadd.f32 %v471, %v780
    %v782 = vpop.f32.mrb[0].mxu0
    %v783 = vadd.f32 %v473, %v782
    %v784 = vpop.f32.mrb[0].mxu0
    %v785 = vadd.f32 %v475, %v784
    %v786 = vpop.f32.mrb[0].mxu0
    %v787 = vadd.f32 %v477, %v786
    %788 = vmatprep.mubr.bf16.mxu0 0
    %789 = vmatmul.mubr.bf16.gmra.mrb[0].mxu0 %v164
    %v790 = vpop.f32.mrb[0].mxu0
    %v791 = vadd.f32 %v481, %v790
    %v792 = vpop.f32.mrb[0].mxu0
    %v793 = vadd.f32 %v483, %v792
    %v794 = vpop.f32.mrb[0].mxu0
    %v795 = vadd.f32 %v485, %v794
    %v796 = vpop.f32.mrb[0].mxu0
    %v797 = vadd.f32 %v487, %v796
    %798 = vmatprep.mubr.bf16.mxu0 0
    %799 = vmatmul.mubr.bf16.gmra.mrb[0].mxu0 %v165
    %v800 = vpop.f32.mrb[0].mxu0
    %v801 = vadd.f32 %v491, %v800
    %v802 = vpop.f32.mrb[0].mxu0
    %v803 = vadd.f32 %v493, %v802
    %v804 = vpop.f32.mrb[0].mxu0
    %v805 = vadd.f32 %v495, %v804
    %v806 = vpop.f32.mrb[0].mxu0
    %v807 = vadd.f32 %v497, %v806
    %808 = vmatprep.mubr.bf16.mxu0 0
    %809 = vmatmul.mubr.bf16.gmra.mrb[0].mxu0 %v166
    %v810 = vpop.f32.mrb[0].mxu0
    %v811 = vadd.f32 %v501, %v810
    %v812 = vpop.f32.mrb[0].mxu0
    %v813 = vadd.f32 %v503, %v812
    %v814 = vpop.f32.mrb[0].mxu0
    %v815 = vadd.f32 %v505, %v814
    %v816 = vpop.f32.mrb[0].mxu0
    %v817 = vadd.f32 %v507, %v816
    %818 = vdwg.mxu0
    %s819 = scalar_lea.vmem [#allocation2], 512
    %v820 = vld [vmem:[%s819] sm:$0xff]
    %v821 = vld [vmem:[%s819 + $0x8] sm:$0xff]
    %v822 = vld [vmem:[%s819 + $0x10] sm:$0xff]
    %v823 = vld [vmem:[%s819 + $0x18] sm:$0xff]
    %v824 = vld [vmem:[%s819 + $0x20] sm:$0xff]
    %v825 = vld [vmem:[%s819 + $0x28] sm:$0xff]
    %v826 = vld [vmem:[%s819 + $0x30] sm:$0xff]
    %v827 = vld [vmem:[%s819 + $0x38] sm:$0xff]
    %v828 = vld [vmem:[%s819 + $0x40] sm:$0xff]
    %v829 = vld [vmem:[%s819 + $0x48] sm:$0xff]
    %v830 = vld [vmem:[%s819 + $0x50] sm:$0xff]
    %v831 = vld [vmem:[%s819 + $0x58] sm:$0xff]
    %v832 = vld [vmem:[%s819 + $0x60] sm:$0xff]
    %v833 = vld [vmem:[%s819 + $0x68] sm:$0xff]
    %v834 = vld [vmem:[%s819 + $0x70] sm:$0xff]
    %v835 = vld [vmem:[%s819 + $0x78] sm:$0xff]
    %v836 = vld [vmem:[%s819 + $0x80] sm:$0xff]
    %v837 = vld [vmem:[%s819 + $0x88] sm:$0xff]
    %v838 = vld [vmem:[%s819 + $0x90] sm:$0xff]
    %v839 = vld [vmem:[%s819 + $0x98] sm:$0xff]
    %v840 = vld [vmem:[%s819 + $0xa0] sm:$0xff]
    %v841 = vld [vmem:[%s819 + $0xa8] sm:$0xff]
    %v842 = vld [vmem:[%s819 + $0xb0] sm:$0xff]
    %v843 = vld [vmem:[%s819 + $0xb8] sm:$0xff]
    %v844 = vld [vmem:[%s819 + $0xc0] sm:$0xff]
    %v845 = vld [vmem:[%s819 + $0xc8] sm:$0xff]
    %v846 = vld [vmem:[%s819 + $0xd0] sm:$0xff]
    %v847 = vld [vmem:[%s819 + $0xd8] sm:$0xff]
    %v848 = vld [vmem:[%s819 + $0xe0] sm:$0xff]
    %v849 = vld [vmem:[%s819 + $0xe8] sm:$0xff]
    %v850 = vld [vmem:[%s819 + $0xf0] sm:$0xff]
    %v851 = vld [vmem:[%s819 + $0xf8] sm:$0xff]
    %vm852 = vcmask 1046528
    %v853 = vrot.slane %v163, 1
    %v854 = vrot.slane %v164, 1
    %v855 = vsel %vm852, %v853, %v854
    %v856 = vrot.slane %v165, 1
    %v857 = vsel %vm852, %v854, %v856
    %v858 = vrot.slane %v166, 1
    %v859 = vsel %vm852, %v856, %v858
    %v896 = vunpack.c.l.b16 %v820
    %v897 = vunpack.c.h.b16 %v820
    %v898 = vunpack.c.l.b16 %v821
    %v899 = vunpack.c.h.b16 %v821
    %v900 = vunpack.c.l.b16 %v822
    %v901 = vunpack.c.h.b16 %v822
    %v902 = vunpack.c.l.b16 %v823
    %v903 = vunpack.c.h.b16 %v823
    %v904 = vunpack.c.l.b16 %v824
    %v905 = vunpack.c.h.b16 %v824
    %v906 = vunpack.c.l.b16 %v825
    %v907 = vunpack.c.h.b16 %v825
    %v908 = vunpack.c.l.b16 %v826
    %v909 = vunpack.c.h.b16 %v826
    %v910 = vunpack.c.l.b16 %v827
    %v911 = vunpack.c.h.b16 %v827
    %v912 = vunpack.c.l.b16 %v828
    %v913 = vunpack.c.h.b16 %v828
    %v914 = vunpack.c.l.b16 %v829
    %v915 = vunpack.c.h.b16 %v829
    %v916 = vunpack.c.l.b16 %v830
    %v917 = vunpack.c.h.b16 %v830
    %v918 = vunpack.c.l.b16 %v831
    %v919 = vunpack.c.h.b16 %v831
    %v920 = vunpack.c.l.b16 %v832
    %v921 = vunpack.c.h.b16 %v832
    %v922 = vunpack.c.l.b16 %v833
    %v923 = vunpack.c.h.b16 %v833
    %v924 = vunpack.c.l.b16 %v834
    %v925 = vunpack.c.h.b16 %v834
    %v926 = vunpack.c.l.b16 %v835
    %v927 = vunpack.c.h.b16 %v835
    %v928 = vunpack.c.l.b16 %v836
    %v929 = vunpack.c.h.b16 %v836
    %v930 = vunpack.c.l.b16 %v837
    %v931 = vunpack.c.h.b16 %v837
    %v932 = vunpack.c.l.b16 %v838
    %v933 = vunpack.c.h.b16 %v838
    %v934 = vunpack.c.l.b16 %v839
    %v935 = vunpack.c.h.b16 %v839
    %v936 = vunpack.c.l.b16 %v840
    %v937 = vunpack.c.h.b16 %v840
    %v938 = vunpack.c.l.b16 %v841
    %v939 = vunpack.c.h.b16 %v841
    %v940 = vunpack.c.l.b16 %v842
    %v941 = vunpack.c.h.b16 %v842
    %v942 = vunpack.c.l.b16 %v843
    %v943 = vunpack.c.h.b16 %v843
    %v944 = vunpack.c.l.b16 %v844
    %v945 = vunpack.c.h.b16 %v844
    %v946 = vunpack.c.l.b16 %v845
    %v947 = vunpack.c.h.b16 %v845
    %v948 = vunpack.c.l.b16 %v846
    %v949 = vunpack.c.h.b16 %v846
    %v950 = vunpack.c.l.b16 %v847
    %v951 = vunpack.c.h.b16 %v847
    %v952 = vunpack.c.l.b16 %v848
    %v953 = vunpack.c.h.b16 %v848
    %v954 = vunpack.c.l.b16 %v849
    %v955 = vunpack.c.h.b16 %v849
    %v956 = vunpack.c.l.b16 %v850
    %v957 = vunpack.c.h.b16 %v850
    %v958 = vunpack.c.l.b16 %v851
    %v959 = vunpack.c.h.b16 %v851
    %v960 = vpack.c.b16 %v900, %v896
    %v961 = vpack.c.b16 %v901, %v897
    %v962 = vpack.c.b16 %v902, %v898
    %v963 = vpack.c.b16 %v903, %v899
    %v964 = vpack.c.b16 %v908, %v904
    %v965 = vpack.c.b16 %v909, %v905
    %v966 = vpack.c.b16 %v910, %v906
    %v967 = vpack.c.b16 %v911, %v907
    %v968 = vpack.c.b16 %v916, %v912
    %v969 = vpack.c.b16 %v917, %v913
    %v970 = vpack.c.b16 %v918, %v914
    %v971 = vpack.c.b16 %v919, %v915
    %v972 = vpack.c.b16 %v924, %v920
    %v973 = vpack.c.b16 %v925, %v921
    %v974 = vpack.c.b16 %v926, %v922
    %v975 = vpack.c.b16 %v927, %v923
    %v976 = vpack.c.b16 %v932, %v928
    %v977 = vpack.c.b16 %v933, %v929
    %v978 = vpack.c.b16 %v934, %v930
    %v979 = vpack.c.b16 %v935, %v931
    %v980 = vpack.c.b16 %v940, %v936
    %v981 = vpack.c.b16 %v941, %v937
    %v982 = vpack.c.b16 %v942, %v938
    %v983 = vpack.c.b16 %v943, %v939
    %v984 = vpack.c.b16 %v948, %v944
    %v985 = vpack.c.b16 %v949, %v945
    %v986 = vpack.c.b16 %v950, %v946
    %v987 = vpack.c.b16 %v951, %v947
    %v988 = vpack.c.b16 %v956, %v952
    %v989 = vpack.c.b16 %v957, %v953
    %v990 = vpack.c.b16 %v958, %v954
    %v991 = vpack.c.b16 %v959, %v955
    %1024 = vmatprep.subr.bf16.mxu0 %v961
    %1025 = vmatpush1.bf16.msra.mxu0 %v960
    %1026 = vmatprep.subr.bf16.mxu0 %v965
    %1027 = vmatpush1.bf16.msra.mxu0 %v964
    %1028 = vmatprep.subr.bf16.mxu0 %v969
    %1029 = vmatpush1.bf16.msra.mxu0 %v968
    %1030 = vmatprep.subr.bf16.mxu0 %v973
    %1031 = vmatpush1.bf16.msra.mxu0 %v972
    %1032 = vmatprep.subr.bf16.mxu0 %v977
    %1033 = vmatpush1.bf16.msra.mxu0 %v976
    %1034 = vmatprep.subr.bf16.mxu0 %v981
    %1035 = vmatpush1.bf16.msra.mxu0 %v980
    %1036 = vmatprep.subr.bf16.mxu0 %v985
    %1037 = vmatpush1.bf16.msra.mxu0 %v984
    %1038 = vmatprep.subr.bf16.mxu0 %v989
    %1039 = vmatpush1.bf16.msra.mxu0 %v988
    %1040 = vmatprep.subr.bf16.mxu0 0
    %1041 = vmatpush1.bf16.msra.mxu0 0
    %1042 = vmatprep.subr.bf16.mxu0 0
    %1043 = vmatpush1.bf16.msra.mxu0 0
    %1044 = vmatprep.subr.bf16.mxu0 0
    %1045 = vmatpush1.bf16.msra.mxu0 0
    %1046 = vmatprep.subr.bf16.mxu0 0
    %1047 = vmatpush1.bf16.msra.mxu0 0
    %1048 = vmatprep.subr.bf16.mxu0 0
    %1049 = vmatpush1.bf16.msra.mxu0 0
    %1050 = vmatprep.subr.bf16.mxu0 0
    %1051 = vmatpush1.bf16.msra.mxu0 0
    %1052 = vmatprep.subr.bf16.mxu0 0
    %1053 = vmatpush1.bf16.msra.mxu0 0
    %1054 = vmatprep.subr.bf16.mxu0 0
    %1055 = vmatpush1.bf16.msra.mxu0 0
    %1056 = vmatprep.mubr.bf16.mxu0 0
    %1057 = vmatmul.mubr.bf16.gmra.mrb[0].mxu0 %v855
    %v1058 = vpop.f32.mrb[0].mxu0
    %v1059 = vadd.f32 0.0, %v1058
    %v1060 = vpop.f32.mrb[0].mxu0
    %v1061 = vadd.f32 0.0, %v1060
    %v1062 = vpop.f32.mrb[0].mxu0
    %v1063 = vadd.f32 0.0, %v1062
    %v1064 = vpop.f32.mrb[0].mxu0
    %v1065 = vadd.f32 0.0, %v1064
    %1066 = vmatprep.mubr.bf16.mxu0 0
    %1067 = vmatmul.mubr.bf16.gmra.mrb[0].mxu0 %v857
    %v1068 = vpop.f32.mrb[0].mxu0
    %v1069 = vadd.f32 0.0, %v1068
    %v1070 = vpop.f32.mrb[0].mxu0
    %v1071 = vadd.f32 0.0, %v1070
    %v1072 = vpop.f32.mrb[0].mxu0
    %v1073 = vadd.f32 0.0, %v1072
    %v1074 = vpop.f32.mrb[0].mxu0
    %v1075 = vadd.f32 0.0, %v1074
    %1076 = vmatprep.mubr.bf16.mxu0 0
    %1077 = vmatmul.mubr.bf16.gmra.mrb[0].mxu0 %v859
    %v1078 = vpop.f32.mrb[0].mxu0
    %v1079 = vadd.f32 0.0, %v1078
    %v1080 = vpop.f32.mrb[0].mxu0
    %v1081 = vadd.f32 0.0, %v1080
    %v1082 = vpop.f32.mrb[0].mxu0
    %v1083 = vadd.f32 0.0, %v1082
    %v1084 = vpop.f32.mrb[0].mxu0
    %v1085 = vadd.f32 0.0, %v1084
    %1086 = vmatprep.mubr.bf16.mxu0 0
    %1087 = vmatmul.mubr.bf16.gmra.mrb[0].mxu0 %v858
    %v1088 = vpop.f32.mrb[0].mxu0
    %v1089 = vadd.f32 0.0, %v1088
    %v1090 = vpop.f32.mrb[0].mxu0
    %v1091 = vadd.f32 0.0, %v1090
    %v1092 = vpop.f32.mrb[0].mxu0
    %v1093 = vadd.f32 0.0, %v1092
    %v1094 = vpop.f32.mrb[0].mxu0
    %v1095 = vadd.f32 0.0, %v1094
    %1096 = vdwg.mxu0
    %1097 = vmatprep.subr.bf16.mxu0 %v963
    %1098 = vmatpush1.bf16.msra.mxu0 %v962
    %1099 = vmatprep.subr.bf16.mxu0 %v967
    %1100 = vmatpush1.bf16.msra.mxu0 %v966
    %1101 = vmatprep.subr.bf16.mxu0 %v971
    %1102 = vmatpush1.bf16.msra.mxu0 %v970
    %1103 = vmatprep.subr.bf16.mxu0 %v975
    %1104 = vmatpush1.bf16.msra.mxu0 %v974
    %1105 = vmatprep.subr.bf16.mxu0 %v979
    %1106 = vmatpush1.bf16.msra.mxu0 %v978
    %1107 = vmatprep.subr.bf16.mxu0 %v983
    %1108 = vmatpush1.bf16.msra.mxu0 %v982
    %1109 = vmatprep.subr.bf16.mxu0 %v987
    %1110 = vmatpush1.bf16.msra.mxu0 %v986
    %1111 = vmatprep.subr.bf16.mxu0 %v991
    %1112 = vmatpush1.bf16.msra.mxu0 %v990
    %1113 = vmatprep.subr.bf16.mxu0 0
    %1114 = vmatpush1.bf16.msra.mxu0 0
    %1115 = vmatprep.subr.bf16.mxu0 0
    %1116 = vmatpush1.bf16.msra.mxu0 0
    %1117 = vmatprep.subr.bf16.mxu0 0
    %1118 = vmatpush1.bf16.msra.mxu0 0
    %1119 = vmatprep.subr.bf16.mxu0 0
    %1120 = vmatpush1.bf16.msra.mxu0 0
    %1121 = vmatprep.subr.bf16.mxu0 0
    %1122 = vmatpush1.bf16.msra.mxu0 0
    %1123 = vmatprep.subr.bf16.mxu0 0
    %1124 = vmatpush1.bf16.msra.mxu0 0
    %1125 = vmatprep.subr.bf16.mxu0 0
    %1126 = vmatpush1.bf16.msra.mxu0 0
    %1127 = vmatprep.subr.bf16.mxu0 0
    %1128 = vmatpush1.bf16.msra.mxu0 0
    %1129 = vmatprep.mubr.bf16.mxu0 0
    %1130 = vmatmul.mubr.bf16.gmra.mrb[0].mxu0 %v855
    %v1131 = vpop.f32.mrb[0].mxu0
    %v1132 = vadd.f32 0.0, %v1131
    %v1133 = vpop.f32.mrb[0].mxu0
    %v1134 = vadd.f32 0.0, %v1133
    %v1135 = vpop.f32.mrb[0].mxu0
    %v1136 = vadd.f32 0.0, %v1135
    %v1137 = vpop.f32.mrb[0].mxu0
    %v1138 = vadd.f32 0.0, %v1137
    %1139 = vmatprep.mubr.bf16.mxu0 0
    %1140 = vmatmul.mubr.bf16.gmra.mrb[0].mxu0 %v857
    %v1141 = vpop.f32.mrb[0].mxu0
    %v1142 = vadd.f32 0.0, %v1141
    %v1143 = vpop.f32.mrb[0].mxu0
    %v1144 = vadd.f32 0.0, %v1143
    %v1145 = vpop.f32.mrb[0].mxu0
    %v1146 = vadd.f32 0.0, %v1145
    %v1147 = vpop.f32.mrb[0].mxu0
    %v1148 = vadd.f32 0.0, %v1147
    %1149 = vmatprep.mubr.bf16.mxu0 0
    %1150 = vmatmul.mubr.bf16.gmra.mrb[0].mxu0 %v859
    %v1151 = vpop.f32.mrb[0].mxu0
    %v1152 = vadd.f32 0.0, %v1151
    %v1153 = vpop.f32.mrb[0].mxu0
    %v1154 = vadd.f32 0.0, %v1153
    %v1155 = vpop.f32.mrb[0].mxu0
    %v1156 = vadd.f32 0.0, %v1155
    %v1157 = vpop.f32.mrb[0].mxu0
    %v1158 = vadd.f32 0.0, %v1157
    %1159 = vmatprep.mubr.bf16.mxu0 0
    %1160 = vmatmul.mubr.bf16.gmra.mrb[0].mxu0 %v858
    %v1161 = vpop.f32.mrb[0].mxu0
    %v1162 = vadd.f32 0.0, %v1161
    %v1163 = vpop.f32.mrb[0].mxu0
    %v1164 = vadd.f32 0.0, %v1163
    %v1165 = vpop.f32.mrb[0].mxu0
    %v1166 = vadd.f32 0.0, %v1165
    %v1167 = vpop.f32.mrb[0].mxu0
    %v1168 = vadd.f32 0.0, %v1167
    %1169 = vdwg.mxu0
    %v1170 = vadd.f32 %v708, %v1059
    %v1171 = vadd.f32 %v710, %v1061
    %v1172 = vadd.f32 %v781, %v1132
    %v1173 = vadd.f32 %v783, %v1134
    %v1174 = vadd.f32 %v712, %v1063
    %v1175 = vadd.f32 %v714, %v1065
    %v1176 = vadd.f32 %v785, %v1136
    %v1177 = vadd.f32 %v787, %v1138
    %v1178 = vadd.f32 %v718, %v1069
    %v1179 = vadd.f32 %v720, %v1071
    %v1180 = vadd.f32 %v791, %v1142
    %v1181 = vadd.f32 %v793, %v1144
    %v1182 = vadd.f32 %v722, %v1073
    %v1183 = vadd.f32 %v724, %v1075
    %v1184 = vadd.f32 %v795, %v1146
    %v1185 = vadd.f32 %v797, %v1148
    %v1186 = vadd.f32 %v728, %v1079
    %v1187 = vadd.f32 %v730, %v1081
    %v1188 = vadd.f32 %v801, %v1152
    %v1189 = vadd.f32 %v803, %v1154
    %v1190 = vadd.f32 %v732, %v1083
    %v1191 = vadd.f32 %v734, %v1085
    %v1192 = vadd.f32 %v805, %v1156
    %v1193 = vadd.f32 %v807, %v1158
    %v1194 = vadd.f32 %v738, %v1089
    %v1195 = vadd.f32 %v740, %v1091
    %v1196 = vadd.f32 %v811, %v1162
    %v1197 = vadd.f32 %v813, %v1164
    %v1198 = vadd.f32 %v742, %v1093
    %v1199 = vadd.f32 %v744, %v1095
    %v1200 = vadd.f32 %v815, %v1166
    %v1201 = vadd.f32 %v817, %v1168
    %s1202 = scalar_lea.vmem [#allocation2], 768
    %v1203 = vld [vmem:[%s1202] sm:$0xff]
    %v1204 = vld [vmem:[%s1202 + $0x8] sm:$0xff]
    %v1205 = vld [vmem:[%s1202 + $0x10] sm:$0xff]
    %v1206 = vld [vmem:[%s1202 + $0x18] sm:$0xff]
    %v1207 = vld [vmem:[%s1202 + $0x20] sm:$0xff]
    %v1208 = vld [vmem:[%s1202 + $0x28] sm:$0xff]
    %v1209 = vld [vmem:[%s1202 + $0x30] sm:$0xff]
    %v1210 = vld [vmem:[%s1202 + $0x38] sm:$0xff]
    %v1211 = vld [vmem:[%s1202 + $0x40] sm:$0xff]
    %v1212 = vld [vmem:[%s1202 + $0x48] sm:$0xff]
    %v1213 = vld [vmem:[%s1202 + $0x50] sm:$0xff]
    %v1214 = vld [vmem:[%s1202 + $0x58] sm:$0xff]
    %v1215 = vld [vmem:[%s1202 + $0x60] sm:$0xff]
    %v1216 = vld [vmem:[%s1202 + $0x68] sm:$0xff]
    %v1217 = vld [vmem:[%s1202 + $0x70] sm:$0xff]
    %v1218 = vld [vmem:[%s1202 + $0x78] sm:$0xff]
    %v1219 = vld [vmem:[%s1202 + $0x80] sm:$0xff]
    %v1220 = vld [vmem:[%s1202 + $0x88] sm:$0xff]
    %v1221 = vld [vmem:[%s1202 + $0x90] sm:$0xff]
    %v1222 = vld [vmem:[%s1202 + $0x98] sm:$0xff]
    %v1223 = vld [vmem:[%s1202 + $0xa0] sm:$0xff]
    %v1224 = vld [vmem:[%s1202 + $0xa8] sm:$0xff]
    %v1225 = vld [vmem:[%s1202 + $0xb0] sm:$0xff]
    %v1226 = vld [vmem:[%s1202 + $0xb8] sm:$0xff]
    %v1227 = vld [vmem:[%s1202 + $0xc0] sm:$0xff]
    %v1228 = vld [vmem:[%s1202 + $0xc8] sm:$0xff]
    %v1229 = vld [vmem:[%s1202 + $0xd0] sm:$0xff]
    %v1230 = vld [vmem:[%s1202 + $0xd8] sm:$0xff]
    %v1231 = vld [vmem:[%s1202 + $0xe0] sm:$0xff]
    %v1232 = vld [vmem:[%s1202 + $0xe8] sm:$0xff]
    %v1233 = vld [vmem:[%s1202 + $0xf0] sm:$0xff]
    %v1234 = vld [vmem:[%s1202 + $0xf8] sm:$0xff]
    %vm1235 = vsmask.f32 6400
    %v1236 = vrot.slane %v169, 1
    %v1237 = vrot.slane %v171, 2
    %v1238 = vor.u32 %v1236, %v1237
    %v1239 = vrot.slane %v180, 1
    %v1240 = vrot.slane %v176, 2
    %v1241 = vor.u32 %v1239, %v1240
    %v1242 = vsel %vm1235, %v1238, %v1241
    %v1243 = vrot.slane %v188, 1
    %v1244 = vrot.slane %v184, 2
    %v1245 = vor.u32 %v1243, %v1244
    %v1246 = vsel %vm1235, %v1241, %v1245
    %v1247 = vrot.slane %v196, 1
    %v1248 = vrot.slane %v192, 2
    %v1249 = vor.u32 %v1247, %v1248
    %v1250 = vsel %vm1235, %v1245, %v1249
    %v1287 = vunpack.c.l.b16 %v1203
    %v1288 = vunpack.c.h.b16 %v1203
    %v1289 = vunpack.c.l.b16 %v1204
    %v1290 = vunpack.c.h.b16 %v1204
    %v1291 = vunpack.c.l.b16 %v1205
    %v1292 = vunpack.c.h.b16 %v1205
    %v1293 = vunpack.c.l.b16 %v1206
    %v1294 = vunpack.c.h.b16 %v1206
    %v1295 = vunpack.c.l.b16 %v1207
    %v1296 = vunpack.c.h.b16 %v1207
    %v1297 = vunpack.c.l.b16 %v1208
    %v1298 = vunpack.c.h.b16 %v1208
    %v1299 = vunpack.c.l.b16 %v1209
    %v1300 = vunpack.c.h.b16 %v1209
    %v1301 = vunpack.c.l.b16 %v1210
    %v1302 = vunpack.c.h.b16 %v1210
    %v1303 = vunpack.c.l.b16 %v1211
    %v1304 = vunpack.c.h.b16 %v1211
    %v1305 = vunpack.c.l.b16 %v1212
    %v1306 = vunpack.c.h.b16 %v1212
    %v1307 = vunpack.c.l.b16 %v1213
    %v1308 = vunpack.c.h.b16 %v1213
    %v1309 = vunpack.c.l.b16 %v1214
    %v1310 = vunpack.c.h.b16 %v1214
    %v1311 = vunpack.c.l.b16 %v1215
    %v1312 = vunpack.c.h.b16 %v1215
    %v1313 = vunpack.c.l.b16 %v1216
    %v1314 = vunpack.c.h.b16 %v1216
    %v1315 = vunpack.c.l.b16 %v1217
    %v1316 = vunpack.c.h.b16 %v1217
    %v1317 = vunpack.c.l.b16 %v1218
    %v1318 = vunpack.c.h.b16 %v1218
    %v1319 = vunpack.c.l.b16 %v1219
    %v1320 = vunpack.c.h.b16 %v1219
    %v1321 = vunpack.c.l.b16 %v1220
    %v1322 = vunpack.c.h.b16 %v1220
    %v1323 = vunpack.c.l.b16 %v1221
    %v1324 = vunpack.c.h.b16 %v1221
    %v1325 = vunpack.c.l.b16 %v1222
    %v1326 = vunpack.c.h.b16 %v1222
    %v1327 = vunpack.c.l.b16 %v1223
    %v1328 = vunpack.c.h.b16 %v1223
    %v1329 = vunpack.c.l.b16 %v1224
    %v1330 = vunpack.c.h.b16 %v1224
    %v1331 = vunpack.c.l.b16 %v1225
    %v1332 = vunpack.c.h.b16 %v1225
    %v1333 = vunpack.c.l.b16 %v1226
    %v1334 = vunpack.c.h.b16 %v1226
    %v1335 = vunpack.c.l.b16 %v1227
    %v1336 = vunpack.c.h.b16 %v1227
    %v1337 = vunpack.c.l.b16 %v1228
    %v1338 = vunpack.c.h.b16 %v1228
    %v1339 = vunpack.c.l.b16 %v1229
    %v1340 = vunpack.c.h.b16 %v1229
    %v1341 = vunpack.c.l.b16 %v1230
    %v1342 = vunpack.c.h.b16 %v1230
    %v1343 = vunpack.c.l.b16 %v1231
    %v1344 = vunpack.c.h.b16 %v1231
    %v1345 = vunpack.c.l.b16 %v1232
    %v1346 = vunpack.c.h.b16 %v1232
    %v1347 = vunpack.c.l.b16 %v1233
    %v1348 = vunpack.c.h.b16 %v1233
    %v1349 = vunpack.c.l.b16 %v1234
    %v1350 = vunpack.c.h.b16 %v1234
    %v1351 = vpack.c.b16 %v1291, %v1287
    %v1352 = vpack.c.b16 %v1292, %v1288
    %v1353 = vpack.c.b16 %v1293, %v1289
    %v1354 = vpack.c.b16 %v1294, %v1290
    %v1355 = vpack.c.b16 %v1299, %v1295
    %v1356 = vpack.c.b16 %v1300, %v1296
    %v1357 = vpack.c.b16 %v1301, %v1297
    %v1358 = vpack.c.b16 %v1302, %v1298
    %v1359 = vpack.c.b16 %v1307, %v1303
    %v1360 = vpack.c.b16 %v1308, %v1304
    %v1361 = vpack.c.b16 %v1309, %v1305
    %v1362 = vpack.c.b16 %v1310, %v1306
    %v1363 = vpack.c.b16 %v1315, %v1311
    %v1364 = vpack.c.b16 %v1316, %v1312
    %v1365 = vpack.c.b16 %v1317, %v1313
    %v1366 = vpack.c.b16 %v1318, %v1314
    %v1367 = vpack.c.b16 %v1323, %v1319
    %v1368 = vpack.c.b16 %v1324, %v1320
    %v1369 = vpack.c.b16 %v1325, %v1321
    %v1370 = vpack.c.b16 %v1326, %v1322
    %v1371 = vpack.c.b16 %v1331, %v1327
    %v1372 = vpack.c.b16 %v1332, %v1328
    %v1373 = vpack.c.b16 %v1333, %v1329
    %v1374 = vpack.c.b16 %v1334, %v1330
    %v1375 = vpack.c.b16 %v1339, %v1335
    %v1376 = vpack.c.b16 %v1340, %v1336
    %v1377 = vpack.c.b16 %v1341, %v1337
    %v1378 = vpack.c.b16 %v1342, %v1338
    %v1379 = vpack.c.b16 %v1347, %v1343
    %v1380 = vpack.c.b16 %v1348, %v1344
    %v1381 = vpack.c.b16 %v1349, %v1345
    %v1382 = vpack.c.b16 %v1350, %v1346
    %1415 = vmatprep.subr.bf16.mxu0 %v1352
    %1416 = vmatpush1.bf16.msra.mxu0 %v1351
    %1417 = vmatprep.subr.bf16.mxu0 %v1356
    %1418 = vmatpush1.bf16.msra.mxu0 %v1355
    %1419 = vmatprep.subr.bf16.mxu0 %v1360
    %1420 = vmatpush1.bf16.msra.mxu0 %v1359
    %1421 = vmatprep.subr.bf16.mxu0 %v1364
    %1422 = vmatpush1.bf16.msra.mxu0 %v1363
    %1423 = vmatprep.subr.bf16.mxu0 %v1368
    %1424 = vmatpush1.bf16.msra.mxu0 %v1367
    %1425 = vmatprep.subr.bf16.mxu0 %v1372
    %1426 = vmatpush1.bf16.msra.mxu0 %v1371
    %1427 = vmatprep.subr.bf16.mxu0 %v1376
    %1428 = vmatpush1.bf16.msra.mxu0 %v1375
    %1429 = vmatprep.subr.bf16.mxu0 %v1380
    %1430 = vmatpush1.bf16.msra.mxu0 %v1379
    %1431 = vmatprep.subr.bf16.mxu0 0
    %1432 = vmatpush1.bf16.msra.mxu0 0
    %1433 = vmatprep.subr.bf16.mxu0 0
    %1434 = vmatpush1.bf16.msra.mxu0 0
    %1435 = vmatprep.subr.bf16.mxu0 0
    %1436 = vmatpush1.bf16.msra.mxu0 0
    %1437 = vmatprep.subr.bf16.mxu0 0
    %1438 = vmatpush1.bf16.msra.mxu0 0
    %1439 = vmatprep.subr.bf16.mxu0 0
    %1440 = vmatpush1.bf16.msra.mxu0 0
    %1441 = vmatprep.subr.bf16.mxu0 0
    %1442 = vmatpush1.bf16.msra.mxu0 0
    %1443 = vmatprep.subr.bf16.mxu0 0
    %1444 = vmatpush1.bf16.msra.mxu0 0
    %1445 = vmatprep.subr.bf16.mxu0 0
    %1446 = vmatpush1.bf16.msra.mxu0 0
    %1447 = vmatprep.mubr.bf16.mxu0 0
    %1448 = vmatmul.mubr.bf16.gmra.mrb[0].mxu0 %v1242
    %v1449 = vpop.f32.mrb[0].mxu0
    %v1450 = vadd.f32 0.0, %v1449
    %v1451 = vpop.f32.mrb[0].mxu0
    %v1452 = vadd.f32 0.0, %v1451
    %v1453 = vpop.f32.mrb[0].mxu0
    %v1454 = vadd.f32 0.0, %v1453
    %v1455 = vpop.f32.mrb[0].mxu0
    %v1456 = vadd.f32 0.0, %v1455
    %1457 = vmatprep.mubr.bf16.mxu0 0
    %1458 = vmatmul.mubr.bf16.gmra.mrb[0].mxu0 %v1246
    %v1459 = vpop.f32.mrb[0].mxu0
    %v1460 = vadd.f32 0.0, %v1459
    %v1461 = vpop.f32.mrb[0].mxu0
    %v1462 = vadd.f32 0.0, %v1461
    %v1463 = vpop.f32.mrb[0].mxu0
    %v1464 = vadd.f32 0.0, %v1463
    %v1465 = vpop.f32.mrb[0].mxu0
    %v1466 = vadd.f32 0.0, %v1465
    %1467 = vmatprep.mubr.bf16.mxu0 0
    %1468 = vmatmul.mubr.bf16.gmra.mrb[0].mxu0 %v1250
    %v1469 = vpop.f32.mrb[0].mxu0
    %v1470 = vadd.f32 0.0, %v1469
    %v1471 = vpop.f32.mrb[0].mxu0
    %v1472 = vadd.f32 0.0, %v1471
    %v1473 = vpop.f32.mrb[0].mxu0
    %v1474 = vadd.f32 0.0, %v1473
    %v1475 = vpop.f32.mrb[0].mxu0
    %v1476 = vadd.f32 0.0, %v1475
    %1477 = vmatprep.mubr.bf16.mxu0 0
    %1478 = vmatmul.mubr.bf16.gmra.mrb[0].mxu0 %v1249
    %v1479 = vpop.f32.mrb[0].mxu0
    %v1480 = vadd.f32 0.0, %v1479
    %v1481 = vpop.f32.mrb[0].mxu0
    %v1482 = vadd.f32 0.0, %v1481
    %v1483 = vpop.f32.mrb[0].mxu0
    %v1484 = vadd.f32 0.0, %v1483
    %v1485 = vpop.f32.mrb[0].mxu0
    %v1486 = vadd.f32 0.0, %v1485
    %1487 = vdwg.mxu0
    %1488 = vmatprep.subr.bf16.mxu0 %v1354
    %1489 = vmatpush1.bf16.msra.mxu0 %v1353
    %1490 = vmatprep.subr.bf16.mxu0 %v1358
    %1491 = vmatpush1.bf16.msra.mxu0 %v1357
    %1492 = vmatprep.subr.bf16.mxu0 %v1362
    %1493 = vmatpush1.bf16.msra.mxu0 %v1361
    %1494 = vmatprep.subr.bf16.mxu0 %v1366
    %1495 = vmatpush1.bf16.msra.mxu0 %v1365
    %1496 = vmatprep.subr.bf16.mxu0 %v1370
    %1497 = vmatpush1.bf16.msra.mxu0 %v1369
    %1498 = vmatprep.subr.bf16.mxu0 %v1374
    %1499 = vmatpush1.bf16.msra.mxu0 %v1373
    %1500 = vmatprep.subr.bf16.mxu0 %v1378
    %1501 = vmatpush1.bf16.msra.mxu0 %v1377
    %1502 = vmatprep.subr.bf16.mxu0 %v1382
    %1503 = vmatpush1.bf16.msra.mxu0 %v1381
    %1504 = vmatprep.subr.bf16.mxu0 0
    %1505 = vmatpush1.bf16.msra.mxu0 0
    %1506 = vmatprep.subr.bf16.mxu0 0
    %1507 = vmatpush1.bf16.msra.mxu0 0
    %1508 = vmatprep.subr.bf16.mxu0 0
    %1509 = vmatpush1.bf16.msra.mxu0 0
    %1510 = vmatprep.subr.bf16.mxu0 0
    %1511 = vmatpush1.bf16.msra.mxu0 0
    %1512 = vmatprep.subr.bf16.mxu0 0
    %1513 = vmatpush1.bf16.msra.mxu0 0
    %1514 = vmatprep.subr.bf16.mxu0 0
    %1515 = vmatpush1.bf16.msra.mxu0 0
    %1516 = vmatprep.subr.bf16.mxu0 0
    %1517 = vmatpush1.bf16.msra.mxu0 0
    %1518 = vmatprep.subr.bf16.mxu0 0
    %1519 = vmatpush1.bf16.msra.mxu0 0
    %1520 = vmatprep.mubr.bf16.mxu0 0
    %1521 = vmatmul.mubr.bf16.gmra.mrb[0].mxu0 %v1242
    %v1522 = vpop.f32.mrb[0].mxu0
    %v1523 = vadd.f32 0.0, %v1522
    %v1524 = vpop.f32.mrb[0].mxu0
    %v1525 = vadd.f32 0.0, %v1524
    %v1526 = vpop.f32.mrb[0].mxu0
    %v1527 = vadd.f32 0.0, %v1526
    %v1528 = vpop.f32.mrb[0].mxu0
    %v1529 = vadd.f32 0.0, %v1528
    %1530 = vmatprep.mubr.bf16.mxu0 0
    %1531 = vmatmul.mubr.bf16.gmra.mrb[0].mxu0 %v1246
    %v1532 = vpop.f32.mrb[0].mxu0
    %v1533 = vadd.f32 0.0, %v1532
    %v1534 = vpop.f32.mrb[0].mxu0
    %v1535 = vadd.f32 0.0, %v1534
    %v1536 = vpop.f32.mrb[0].mxu0
    %v1537 = vadd.f32 0.0, %v1536
    %v1538 = vpop.f32.mrb[0].mxu0
    %v1539 = vadd.f32 0.0, %v1538
    %1540 = vmatprep.mubr.bf16.mxu0 0
    %1541 = vmatmul.mubr.bf16.gmra.mrb[0].mxu0 %v1250
    %v1542 = vpop.f32.mrb[0].mxu0
    %v1543 = vadd.f32 0.0, %v1542
    %v1544 = vpop.f32.mrb[0].mxu0
    %v1545 = vadd.f32 0.0, %v1544
    %v1546 = vpop.f32.mrb[0].mxu0
    %v1547 = vadd.f32 0.0, %v1546
    %v1548 = vpop.f32.mrb[0].mxu0
    %v1549 = vadd.f32 0.0, %v1548
    %1550 = vmatprep.mubr.bf16.mxu0 0
    %1551 = vmatmul.mubr.bf16.gmra.mrb[0].mxu0 %v1249
    %v1552 = vpop.f32.mrb[0].mxu0
    %v1553 = vadd.f32 0.0, %v1552
    %v1554 = vpop.f32.mrb[0].mxu0
    %v1555 = vadd.f32 0.0, %v1554
    %v1556 = vpop.f32.mrb[0].mxu0
    %v1557 = vadd.f32 0.0, %v1556
    %v1558 = vpop.f32.mrb[0].mxu0
    %v1559 = vadd.f32 0.0, %v1558
    %1560 = vdwg.mxu0
    %v1561 = vadd.f32 %v1170, %v1450
    %v1562 = vadd.f32 %v1171, %v1452
    %v1563 = vadd.f32 %v1172, %v1523
    %v1564 = vadd.f32 %v1173, %v1525
    %v1565 = vadd.f32 %v1174, %v1454
    %v1566 = vadd.f32 %v1175, %v1456
    %v1567 = vadd.f32 %v1176, %v1527
    %v1568 = vadd.f32 %v1177, %v1529
    %v1569 = vadd.f32 %v1178, %v1460
    %v1570 = vadd.f32 %v1179, %v1462
    %v1571 = vadd.f32 %v1180, %v1533
    %v1572 = vadd.f32 %v1181, %v1535
    %v1573 = vadd.f32 %v1182, %v1464
    %v1574 = vadd.f32 %v1183, %v1466
    %v1575 = vadd.f32 %v1184, %v1537
    %v1576 = vadd.f32 %v1185, %v1539
    %v1577 = vadd.f32 %v1186, %v1470
    %v1578 = vadd.f32 %v1187, %v1472
    %v1579 = vadd.f32 %v1188, %v1543
    %v1580 = vadd.f32 %v1189, %v1545
    %v1581 = vadd.f32 %v1190, %v1474
    %v1582 = vadd.f32 %v1191, %v1476
    %v1583 = vadd.f32 %v1192, %v1547
    %v1584 = vadd.f32 %v1193, %v1549
    %v1585 = vadd.f32 %v1194, %v1480
    %v1586 = vadd.f32 %v1195, %v1482
    %v1587 = vadd.f32 %v1196, %v1553
    %v1588 = vadd.f32 %v1197, %v1555
    %v1589 = vadd.f32 %v1198, %v1484
    %v1590 = vadd.f32 %v1199, %v1486
    %v1591 = vadd.f32 %v1200, %v1557
    %v1592 = vadd.f32 %v1201, %v1559
    %s1593 = scalar_lea.vmem [#allocation2], 1024
    %v1594 = vld [vmem:[%s1593] sm:$0xff]
    %v1595 = vld [vmem:[%s1593 + $0x8] sm:$0xff]
    %v1596 = vld [vmem:[%s1593 + $0x10] sm:$0xff]
    %v1597 = vld [vmem:[%s1593 + $0x18] sm:$0xff]
    %v1598 = vld [vmem:[%s1593 + $0x20] sm:$0xff]
    %v1599 = vld [vmem:[%s1593 + $0x28] sm:$0xff]
    %v1600 = vld [vmem:[%s1593 + $0x30] sm:$0xff]
    %v1601 = vld [vmem:[%s1593 + $0x38] sm:$0xff]
    %v1602 = vld [vmem:[%s1593 + $0x40] sm:$0xff]
    %v1603 = vld [vmem:[%s1593 + $0x48] sm:$0xff]
    %v1604 = vld [vmem:[%s1593 + $0x50] sm:$0xff]
    %v1605 = vld [vmem:[%s1593 + $0x58] sm:$0xff]
    %v1606 = vld [vmem:[%s1593 + $0x60] sm:$0xff]
    %v1607 = vld [vmem:[%s1593 + $0x68] sm:$0xff]
    %v1608 = vld [vmem:[%s1593 + $0x70] sm:$0xff]
    %v1609 = vld [vmem:[%s1593 + $0x78] sm:$0xff]
    %v1610 = vld [vmem:[%s1593 + $0x80] sm:$0xff]
    %v1611 = vld [vmem:[%s1593 + $0x88] sm:$0xff]
    %v1612 = vld [vmem:[%s1593 + $0x90] sm:$0xff]
    %v1613 = vld [vmem:[%s1593 + $0x98] sm:$0xff]
    %v1614 = vld [vmem:[%s1593 + $0xa0] sm:$0xff]
    %v1615 = vld [vmem:[%s1593 + $0xa8] sm:$0xff]
    %v1616 = vld [vmem:[%s1593 + $0xb0] sm:$0xff]
    %v1617 = vld [vmem:[%s1593 + $0xb8] sm:$0xff]
    %v1618 = vld [vmem:[%s1593 + $0xc0] sm:$0xff]
    %v1619 = vld [vmem:[%s1593 + $0xc8] sm:$0xff]
    %v1620 = vld [vmem:[%s1593 + $0xd0] sm:$0xff]
    %v1621 = vld [vmem:[%s1593 + $0xd8] sm:$0xff]
    %v1622 = vld [vmem:[%s1593 + $0xe0] sm:$0xff]
    %v1623 = vld [vmem:[%s1593 + $0xe8] sm:$0xff]
    %v1624 = vld [vmem:[%s1593 + $0xf0] sm:$0xff]
    %v1625 = vld [vmem:[%s1593 + $0xf8] sm:$0xff]
    %vm1626 = vcmask 1045504
    %v1627 = vrot.slane %v163, 2
    %v1628 = vrot.slane %v164, 2
    %v1629 = vsel %vm1626, %v1627, %v1628
    %v1630 = vrot.slane %v165, 2
    %v1631 = vsel %vm1626, %v1628, %v1630
    %v1632 = vrot.slane %v166, 2
    %v1633 = vsel %vm1626, %v1630, %v1632
    %v1670 = vunpack.c.l.b16 %v1594
    %v1671 = vunpack.c.h.b16 %v1594
    %v1672 = vunpack.c.l.b16 %v1595
    %v1673 = vunpack.c.h.b16 %v1595
    %v1674 = vunpack.c.l.b16 %v1596
    %v1675 = vunpack.c.h.b16 %v1596
    %v1676 = vunpack.c.l.b16 %v1597
    %v1677 = vunpack.c.h.b16 %v1597
    %v1678 = vunpack.c.l.b16 %v1598
    %v1679 = vunpack.c.h.b16 %v1598
    %v1680 = vunpack.c.l.b16 %v1599
    %v1681 = vunpack.c.h.b16 %v1599
    %v1682 = vunpack.c.l.b16 %v1600
    %v1683 = vunpack.c.h.b16 %v1600
    %v1684 = vunpack.c.l.b16 %v1601
    %v1685 = vunpack.c.h.b16 %v1601
    %v1686 = vunpack.c.l.b16 %v1602
    %v1687 = vunpack.c.h.b16 %v1602
    %v1688 = vunpack.c.l.b16 %v1603
    %v1689 = vunpack.c.h.b16 %v1603
    %v1690 = vunpack.c.l.b16 %v1604
    %v1691 = vunpack.c.h.b16 %v1604
    %v1692 = vunpack.c.l.b16 %v1605
    %v1693 = vunpack.c.h.b16 %v1605
    %v1694 = vunpack.c.l.b16 %v1606
    %v1695 = vunpack.c.h.b16 %v1606
    %v1696 = vunpack.c.l.b16 %v1607
    %v1697 = vunpack.c.h.b16 %v1607
    %v1698 = vunpack.c.l.b16 %v1608
    %v1699 = vunpack.c.h.b16 %v1608
    %v1700 = vunpack.c.l.b16 %v1609
    %v1701 = vunpack.c.h.b16 %v1609
    %v1702 = vunpack.c.l.b16 %v1610
    %v1703 = vunpack.c.h.b16 %v1610
    %v1704 = vunpack.c.l.b16 %v1611
    %v1705 = vunpack.c.h.b16 %v1611
    %v1706 = vunpack.c.l.b16 %v1612
    %v1707 = vunpack.c.h.b16 %v1612
    %v1708 = vunpack.c.l.b16 %v1613
    %v1709 = vunpack.c.h.b16 %v1613
    %v1710 = vunpack.c.l.b16 %v1614
    %v1711 = vunpack.c.h.b16 %v1614
    %v1712 = vunpack.c.l.b16 %v1615
    %v1713 = vunpack.c.h.b16 %v1615
    %v1714 = vunpack.c.l.b16 %v1616
    %v1715 = vunpack.c.h.b16 %v1616
    %v1716 = vunpack.c.l.b16 %v1617
    %v1717 = vunpack.c.h.b16 %v1617
    %v1718 = vunpack.c.l.b16 %v1618
    %v1719 = vunpack.c.h.b16 %v1618
    %v1720 = vunpack.c.l.b16 %v1619
    %v1721 = vunpack.c.h.b16 %v1619
    %v1722 = vunpack.c.l.b16 %v1620
    %v1723 = vunpack.c.h.b16 %v1620
    %v1724 = vunpack.c.l.b16 %v1621
    %v1725 = vunpack.c.h.b16 %v1621
    %v1726 = vunpack.c.l.b16 %v1622
    %v1727 = vunpack.c.h.b16 %v1622
    %v1728 = vunpack.c.l.b16 %v1623
    %v1729 = vunpack.c.h.b16 %v1623
    %v1730 = vunpack.c.l.b16 %v1624
    %v1731 = vunpack.c.h.b16 %v1624
    %v1732 = vunpack.c.l.b16 %v1625
    %v1733 = vunpack.c.h.b16 %v1625
    %v1734 = vpack.c.b16 %v1674, %v1670
    %v1735 = vpack.c.b16 %v1675, %v1671
    %v1736 = vpack.c.b16 %v1676, %v1672
    %v1737 = vpack.c.b16 %v1677, %v1673
    %v1738 = vpack.c.b16 %v1682, %v1678
    %v1739 = vpack.c.b16 %v1683, %v1679
    %v1740 = vpack.c.b16 %v1684, %v1680
    %v1741 = vpack.c.b16 %v1685, %v1681
    %v1742 = vpack.c.b16 %v1690, %v1686
    %v1743 = vpack.c.b16 %v1691, %v1687
    %v1744 = vpack.c.b16 %v1692, %v1688
    %v1745 = vpack.c.b16 %v1693, %v1689
    %v1746 = vpack.c.b16 %v1698, %v1694
    %v1747 = vpack.c.b16 %v1699, %v1695
    %v1748 = vpack.c.b16 %v1700, %v1696
    %v1749 = vpack.c.b16 %v1701, %v1697
    %v1750 = vpack.c.b16 %v1706, %v1702
    %v1751 = vpack.c.b16 %v1707, %v1703
    %v1752 = vpack.c.b16 %v1708, %v1704
    %v1753 = vpack.c.b16 %v1709, %v1705
    %v1754 = vpack.c.b16 %v1714, %v1710
    %v1755 = vpack.c.b16 %v1715, %v1711
    %v1756 = vpack.c.b16 %v1716, %v1712
    %v1757 = vpack.c.b16 %v1717, %v1713
    %v1758 = vpack.c.b16 %v1722, %v1718
    %v1759 = vpack.c.b16 %v1723, %v1719
    %v1760 = vpack.c.b16 %v1724, %v1720
    %v1761 = vpack.c.b16 %v1725, %v1721
    %v1762 = vpack.c.b16 %v1730, %v1726
    %v1763 = vpack.c.b16 %v1731, %v1727
    %v1764 = vpack.c.b16 %v1732, %v1728
    %v1765 = vpack.c.b16 %v1733, %v1729
    %1798 = vmatprep.subr.bf16.mxu0 %v1735
    %1799 = vmatpush1.bf16.msra.mxu0 %v1734
    %1800 = vmatprep.subr.bf16.mxu0 %v1739
    %1801 = vmatpush1.bf16.msra.mxu0 %v1738
    %1802 = vmatprep.subr.bf16.mxu0 %v1743
    %1803 = vmatpush1.bf16.msra.mxu0 %v1742
    %1804 = vmatprep.subr.bf16.mxu0 %v1747
    %1805 = vmatpush1.bf16.msra.mxu0 %v1746
    %1806 = vmatprep.subr.bf16.mxu0 %v1751
    %1807 = vmatpush1.bf16.msra.mxu0 %v1750
    %1808 = vmatprep.subr.bf16.mxu0 %v1755
    %1809 = vmatpush1.bf16.msra.mxu0 %v1754
    %1810 = vmatprep.subr.bf16.mxu0 %v1759
    %1811 = vmatpush1.bf16.msra.mxu0 %v1758
    %1812 = vmatprep.subr.bf16.mxu0 %v1763
    %1813 = vmatpush1.bf16.msra.mxu0 %v1762
    %1814 = vmatprep.subr.bf16.mxu0 0
    %1815 = vmatpush1.bf16.msra.mxu0 0
    %1816 = vmatprep.subr.bf16.mxu0 0
    %1817 = vmatpush1.bf16.msra.mxu0 0
    %1818 = vmatprep.subr.bf16.mxu0 0
    %1819 = vmatpush1.bf16.msra.mxu0 0
    %1820 = vmatprep.subr.bf16.mxu0 0
    %1821 = vmatpush1.bf16.msra.mxu0 0
    %1822 = vmatprep.subr.bf16.mxu0 0
    %1823 = vmatpush1.bf16.msra.mxu0 0
    %1824 = vmatprep.subr.bf16.mxu0 0
    %1825 = vmatpush1.bf16.msra.mxu0 0
    %1826 = vmatprep.subr.bf16.mxu0 0
    %1827 = vmatpush1.bf16.msra.mxu0 0
    %1828 = vmatprep.subr.bf16.mxu0 0
    %1829 = vmatpush1.bf16.msra.mxu0 0
    %1830 = vmatprep.mubr.bf16.mxu0 0
    %1831 = vmatmul.mubr.bf16.gmra.mrb[0].mxu0 %v1629
    %v1832 = vpop.f32.mrb[0].mxu0
    %v1833 = vadd.f32 0.0, %v1832
    %v1834 = vpop.f32.mrb[0].mxu0
    %v1835 = vadd.f32 0.0, %v1834
    %v1836 = vpop.f32.mrb[0].mxu0
    %v1837 = vadd.f32 0.0, %v1836
    %v1838 = vpop.f32.mrb[0].mxu0
    %v1839 = vadd.f32 0.0, %v1838
    %1840 = vmatprep.mubr.bf16.mxu0 0
    %1841 = vmatmul.mubr.bf16.gmra.mrb[0].mxu0 %v1631
    %v1842 = vpop.f32.mrb[0].mxu0
    %v1843 = vadd.f32 0.0, %v1842
    %v1844 = vpop.f32.mrb[0].mxu0
    %v1845 = vadd.f32 0.0, %v1844
    %v1846 = vpop.f32.mrb[0].mxu0
    %v1847 = vadd.f32 0.0, %v1846
    %v1848 = vpop.f32.mrb[0].mxu0
    %v1849 = vadd.f32 0.0, %v1848
    %1850 = vmatprep.mubr.bf16.mxu0 0
    %1851 = vmatmul.mubr.bf16.gmra.mrb[0].mxu0 %v1633
    %v1852 = vpop.f32.mrb[0].mxu0
    %v1853 = vadd.f32 0.0, %v1852
    %v1854 = vpop.f32.mrb[0].mxu0
    %v1855 = vadd.f32 0.0, %v1854
    %v1856 = vpop.f32.mrb[0].mxu0
    %v1857 = vadd.f32 0.0, %v1856
    %v1858 = vpop.f32.mrb[0].mxu0
    %v1859 = vadd.f32 0.0, %v1858
    %1860 = vmatprep.mubr.bf16.mxu0 0
    %1861 = vmatmul.mubr.bf16.gmra.mrb[0].mxu0 %v1632
    %v1862 = vpop.f32.mrb[0].mxu0
    %v1863 = vadd.f32 0.0, %v1862
    %v1864 = vpop.f32.mrb[0].mxu0
    %v1865 = vadd.f32 0.0, %v1864
    %v1866 = vpop.f32.mrb[0].mxu0
    %v1867 = vadd.f32 0.0, %v1866
    %v1868 = vpop.f32.mrb[0].mxu0
    %v1869 = vadd.f32 0.0, %v1868
    %1870 = vdwg.mxu0
    %1871 = vmatprep.subr.bf16.mxu0 %v1737
    %1872 = vmatpush1.bf16.msra.mxu0 %v1736
    %1873 = vmatprep.subr.bf16.mxu0 %v1741
    %1874 = vmatpush1.bf16.msra.mxu0 %v1740
    %1875 = vmatprep.subr.bf16.mxu0 %v1745
    %1876 = vmatpush1.bf16.msra.mxu0 %v1744
    %1877 = vmatprep.subr.bf16.mxu0 %v1749
    %1878 = vmatpush1.bf16.msra.mxu0 %v1748
    %1879 = vmatprep.subr.bf16.mxu0 %v1753
    %1880 = vmatpush1.bf16.msra.mxu0 %v1752
    %1881 = vmatprep.subr.bf16.mxu0 %v1757
    %1882 = vmatpush1.bf16.msra.mxu0 %v1756
    %1883 = vmatprep.subr.bf16.mxu0 %v1761
    %1884 = vmatpush1.bf16.msra.mxu0 %v1760
    %1885 = vmatprep.subr.bf16.mxu0 %v1765
    %1886 = vmatpush1.bf16.msra.mxu0 %v1764
    %1887 = vmatprep.subr.bf16.mxu0 0
    %1888 = vmatpush1.bf16.msra.mxu0 0
    %1889 = vmatprep.subr.bf16.mxu0 0
    %1890 = vmatpush1.bf16.msra.mxu0 0
    %1891 = vmatprep.subr.bf16.mxu0 0
    %1892 = vmatpush1.bf16.msra.mxu0 0
    %1893 = vmatprep.subr.bf16.mxu0 0
    %1894 = vmatpush1.bf16.msra.mxu0 0
    %1895 = vmatprep.subr.bf16.mxu0 0
    %1896 = vmatpush1.bf16.msra.mxu0 0
    %1897 = vmatprep.subr.bf16.mxu0 0
    %1898 = vmatpush1.bf16.msra.mxu0 0
    %1899 = vmatprep.subr.bf16.mxu0 0
    %1900 = vmatpush1.bf16.msra.mxu0 0
    %1901 = vmatprep.subr.bf16.mxu0 0
    %1902 = vmatpush1.bf16.msra.mxu0 0
    %1903 = vmatprep.mubr.bf16.mxu0 0
    %1904 = vmatmul.mubr.bf16.gmra.mrb[0].mxu0 %v1629
    %v1905 = vpop.f32.mrb[0].mxu0
    %v1906 = vadd.f32 0.0, %v1905
    %v1907 = vpop.f32.mrb[0].mxu0
    %v1908 = vadd.f32 0.0, %v1907
    %v1909 = vpop.f32.mrb[0].mxu0
    %v1910 = vadd.f32 0.0, %v1909
    %v1911 = vpop.f32.mrb[0].mxu0
    %v1912 = vadd.f32 0.0, %v1911
    %1913 = vmatprep.mubr.bf16.mxu0 0
    %1914 = vmatmul.mubr.bf16.gmra.mrb[0].mxu0 %v1631
    %v1915 = vpop.f32.mrb[0].mxu0
    %v1916 = vadd.f32 0.0, %v1915
    %v1917 = vpop.f32.mrb[0].mxu0
    %v1918 = vadd.f32 0.0, %v1917
    %v1919 = vpop.f32.mrb[0].mxu0
    %v1920 = vadd.f32 0.0, %v1919
    %v1921 = vpop.f32.mrb[0].mxu0
    %v1922 = vadd.f32 0.0, %v1921
    %1923 = vmatprep.mubr.bf16.mxu0 0
    %1924 = vmatmul.mubr.bf16.gmra.mrb[0].mxu0 %v1633
    %v1925 = vpop.f32.mrb[0].mxu0
    %v1926 = vadd.f32 0.0, %v1925
    %v1927 = vpop.f32.mrb[0].mxu0
    %v1928 = vadd.f32 0.0, %v1927
    %v1929 = vpop.f32.mrb[0].mxu0
    %v1930 = vadd.f32 0.0, %v1929
    %v1931 = vpop.f32.mrb[0].mxu0
    %v1932 = vadd.f32 0.0, %v1931
    %1933 = vmatprep.mubr.bf16.mxu0 0
    %1934 = vmatmul.mubr.bf16.gmra.mrb[0].mxu0 %v1632
    %v1935 = vpop.f32.mrb[0].mxu0
    %v1936 = vadd.f32 0.0, %v1935
    %v1937 = vpop.f32.mrb[0].mxu0
    %v1938 = vadd.f32 0.0, %v1937
    %v1939 = vpop.f32.mrb[0].mxu0
    %v1940 = vadd.f32 0.0, %v1939
    %v1941 = vpop.f32.mrb[0].mxu0
    %v1942 = vadd.f32 0.0, %v1941
    %1943 = vdwg.mxu0
    %v1944 = vadd.f32 %v1561, %v1833
    %v1945 = vadd.f32 %v1562, %v1835
    %v1946 = vadd.f32 %v1563, %v1906
    %v1947 = vadd.f32 %v1564, %v1908
    %v1948 = vadd.f32 %v1565, %v1837
    %v1949 = vadd.f32 %v1566, %v1839
    %v1950 = vadd.f32 %v1567, %v1910
    %v1951 = vadd.f32 %v1568, %v1912
    %v1952 = vadd.f32 %v1569, %v1843
    %v1953 = vadd.f32 %v1570, %v1845
    %v1954 = vadd.f32 %v1571, %v1916
    %v1955 = vadd.f32 %v1572, %v1918
    %v1956 = vadd.f32 %v1573, %v1847
    %v1957 = vadd.f32 %v1574, %v1849
    %v1958 = vadd.f32 %v1575, %v1920
    %v1959 = vadd.f32 %v1576, %v1922
    %v1960 = vadd.f32 %v1577, %v1853
    %v1961 = vadd.f32 %v1578, %v1855
    %v1962 = vadd.f32 %v1579, %v1926
    %v1963 = vadd.f32 %v1580, %v1928
    %v1964 = vadd.f32 %v1581, %v1857
    %v1965 = vadd.f32 %v1582, %v1859
    %v1966 = vadd.f32 %v1583, %v1930
    %v1967 = vadd.f32 %v1584, %v1932
    %v1968 = vadd.f32 %v1585, %v1863
    %v1969 = vadd.f32 %v1586, %v1865
    %v1970 = vadd.f32 %v1587, %v1936
    %v1971 = vadd.f32 %v1588, %v1938
    %v1972 = vadd.f32 %v1589, %v1867
    %v1973 = vadd.f32 %v1590, %v1869
    %v1974 = vadd.f32 %v1591, %v1940
    %v1975 = vadd.f32 %v1592, %v1942
    %v1976 = vld [vmem:[#allocation4] sm:$0xf]
    %v1978 = vlaneseq
    %v1979 = vshrl.u32 %v1978, 7
    %v1980 = vsub.s32 0, %v1979
    %v1981 = vrot.slane %v1976, %v1980
    %v1982 = vlaneseq
    %v1983 = vshrl.u32 %v1982, 7
    %v1984 = vsub.s32 1, %v1983
    %v1985 = vrot.slane %v1976, %v1984
    %v1986 = vlaneseq
    %v1987 = vshrl.u32 %v1986, 7
    %v1988 = vsub.s32 2, %v1987
    %v1989 = vrot.slane %v1976, %v1988
    %v1990 = vlaneseq
    %v1991 = vshrl.u32 %v1990, 7
    %v1992 = vsub.s32 3, %v1991
    %v1993 = vrot.slane %v1976, %v1992
    %v1998 = vadd.f32 %v1944, %v1981
    %v1999 = vadd.f32 %v1945, %v1985
    %v2000 = vadd.f32 %v1946, %v1989
    %v2001 = vadd.f32 %v1947, %v1993
    %v2002 = vadd.f32 %v1948, %v1981
    %v2003 = vadd.f32 %v1949, %v1985
    %v2004 = vadd.f32 %v1950, %v1989
    %v2005 = vadd.f32 %v1951, %v1993
    %v2006 = vadd.f32 %v1952, %v1981
    %v2007 = vadd.f32 %v1953, %v1985
    %v2008 = vadd.f32 %v1954, %v1989
    %v2009 = vadd.f32 %v1955, %v1993
    %v2010 = vadd.f32 %v1956, %v1981
    %v2011 = vadd.f32 %v1957, %v1985
    %v2012 = vadd.f32 %v1958, %v1989
    %v2013 = vadd.f32 %v1959, %v1993
    %v2014 = vadd.f32 %v1960, %v1981
    %v2015 = vadd.f32 %v1961, %v1985
    %v2016 = vadd.f32 %v1962, %v1989
    %v2017 = vadd.f32 %v1963, %v1993
    %v2018 = vadd.f32 %v1964, %v1981
    %v2019 = vadd.f32 %v1965, %v1985
    %v2020 = vadd.f32 %v1966, %v1989
    %v2021 = vadd.f32 %v1967, %v1993
    %v2022 = vadd.f32 %v1968, %v1981
    %v2023 = vadd.f32 %v1969, %v1985
    %v2024 = vadd.f32 %v1970, %v1989
    %v2025 = vadd.f32 %v1971, %v1993
    %v2026 = vadd.f32 %v1972, %v1981
    %v2027 = vadd.f32 %v1973, %v1985
    %v2028 = vadd.f32 %v1974, %v1989
    %v2029 = vadd.f32 %v1975, %v1993
    %v2030 = vmax.f32 %v1998, 0.0
    %v2031 = vmax.f32 %v1999, 0.0
    %v2032 = vmax.f32 %v2000, 0.0
    %v2033 = vmax.f32 %v2001, 0.0
    %v2034 = vmax.f32 %v2002, 0.0
    %v2035 = vmax.f32 %v2003, 0.0
    %v2036 = vmax.f32 %v2004, 0.0
    %v2037 = vmax.f32 %v2005, 0.0
    %v2038 = vmax.f32 %v2006, 0.0
    %v2039 = vmax.f32 %v2007, 0.0
    %v2040 = vmax.f32 %v2008, 0.0
    %v2041 = vmax.f32 %v2009, 0.0
    %v2042 = vmax.f32 %v2010, 0.0
    %v2043 = vmax.f32 %v2011, 0.0
    %v2044 = vmax.f32 %v2012, 0.0
    %v2045 = vmax.f32 %v2013, 0.0
    %v2046 = vmax.f32 %v2014, 0.0
    %v2047 = vmax.f32 %v2015, 0.0
    %v2048 = vmax.f32 %v2016, 0.0
    %v2049 = vmax.f32 %v2017, 0.0
    %v2050 = vmax.f32 %v2018, 0.0
    %v2051 = vmax.f32 %v2019, 0.0
    %v2052 = vmax.f32 %v2020, 0.0
    %v2053 = vmax.f32 %v2021, 0.0
    %v2054 = vmax.f32 %v2022, 0.0
    %v2055 = vmax.f32 %v2023, 0.0
    %v2056 = vmax.f32 %v2024, 0.0
    %v2057 = vmax.f32 %v2025, 0.0
    %v2058 = vmax.f32 %v2026, 0.0
    %v2059 = vmax.f32 %v2027, 0.0
    %v2060 = vmax.f32 %v2028, 0.0
    %v2061 = vmax.f32 %v2029, 0.0
    %v2062 = vpack.c.bf16 %v2034, %v2030
    %v2063 = vpack.c.bf16 %v2035, %v2031
    %v2064 = vpack.c.bf16 %v2036, %v2032
    %v2065 = vpack.c.bf16 %v2037, %v2033
    %v2066 = vpack.c.bf16 %v2042, %v2038
    %v2067 = vpack.c.bf16 %v2043, %v2039
    %v2068 = vpack.c.bf16 %v2044, %v2040
    %v2069 = vpack.c.bf16 %v2045, %v2041
    %v2070 = vpack.c.bf16 %v2050, %v2046
    %v2071 = vpack.c.bf16 %v2051, %v2047
    %v2072 = vpack.c.bf16 %v2052, %v2048
    %v2073 = vpack.c.bf16 %v2053, %v2049
    %v2074 = vpack.c.bf16 %v2058, %v2054
    %v2075 = vpack.c.bf16 %v2059, %v2055
    %v2076 = vpack.c.bf16 %v2060, %v2056
    %v2077 = vpack.c.bf16 %v2061, %v2057
    %v2078 = vld [vmem:[#allocation6] sm:$0xff]
    %v2079 = vld [vmem:[#allocation6 + $0x8] sm:$0xff]
    %v2080 = vld [vmem:[#allocation6 + $0x10] sm:$0xff]
    %v2081 = vld [vmem:[#allocation6 + $0x18] sm:$0xff]
    %v2082 = vld [vmem:[#allocation6 + $0x20] sm:$0xff]
    %v2083 = vld [vmem:[#allocation6 + $0x28] sm:$0xff]
    %v2084 = vld [vmem:[#allocation6 + $0x30] sm:$0xff]
    %v2085 = vld [vmem:[#allocation6 + $0x38] sm:$0xff]
    %v2086 = vld [vmem:[#allocation6 + $0x40] sm:$0xff]
    %v2087 = vld [vmem:[#allocation6 + $0x48] sm:$0xff]
    %v2088 = vld [vmem:[#allocation6 + $0x50] sm:$0xff]
    %v2089 = vld [vmem:[#allocation6 + $0x58] sm:$0xff]
    %v2090 = vld [vmem:[#allocation6 + $0x60] sm:$0xff]
    %v2091 = vld [vmem:[#allocation6 + $0x68] sm:$0xff]
    %v2092 = vld [vmem:[#allocation6 + $0x70] sm:$0xff]
    %v2093 = vld [vmem:[#allocation6 + $0x78] sm:$0xff]
    %v2094 = vld [vmem:[#allocation6 + $0x80] sm:$0xff]
    %v2095 = vld [vmem:[#allocation6 + $0x88] sm:$0xff]
    %v2096 = vld [vmem:[#allocation6 + $0x90] sm:$0xff]
    %v2097 = vld [vmem:[#allocation6 + $0x98] sm:$0xff]
    %v2098 = vld [vmem:[#allocation6 + $0xa0] sm:$0xff]
    %v2099 = vld [vmem:[#allocation6 + $0xa8] sm:$0xff]
    %v2100 = vld [vmem:[#allocation6 + $0xb0] sm:$0xff]
    %v2101 = vld [vmem:[#allocation6 + $0xb8] sm:$0xff]
    %v2102 = vld [vmem:[#allocation6 + $0xc0] sm:$0xff]
    %v2103 = vld [vmem:[#allocation6 + $0xc8] sm:$0xff]
    %v2104 = vld [vmem:[#allocation6 + $0xd0] sm:$0xff]
    %v2105 = vld [vmem:[#allocation6 + $0xd8] sm:$0xff]
    %v2106 = vld [vmem:[#allocation6 + $0xe0] sm:$0xff]
    %v2107 = vld [vmem:[#allocation6 + $0xe8] sm:$0xff]
    %v2108 = vld [vmem:[#allocation6 + $0xf0] sm:$0xff]
    %v2109 = vld [vmem:[#allocation6 + $0xf8] sm:$0xff]
    %v2110 = vld [vmem:[#allocation6 + $0x100] sm:$0xff]
    %v2111 = vld [vmem:[#allocation6 + $0x108] sm:$0xff]
    %v2112 = vld [vmem:[#allocation6 + $0x110] sm:$0xff]
    %v2113 = vld [vmem:[#allocation6 + $0x118] sm:$0xff]
    %v2114 = vld [vmem:[#allocation6 + $0x120] sm:$0xff]
    %v2115 = vld [vmem:[#allocation6 + $0x128] sm:$0xff]
    %v2116 = vld [vmem:[#allocation6 + $0x130] sm:$0xff]
    %v2117 = vld [vmem:[#allocation6 + $0x138] sm:$0xff]
    %v2118 = vld [vmem:[#allocation6 + $0x140] sm:$0xff]
    %v2119 = vld [vmem:[#allocation6 + $0x148] sm:$0xff]
    %v2120 = vld [vmem:[#allocation6 + $0x150] sm:$0xff]
    %v2121 = vld [vmem:[#allocation6 + $0x158] sm:$0xff]
    %v2122 = vld [vmem:[#allocation6 + $0x160] sm:$0xff]
    %v2123 = vld [vmem:[#allocation6 + $0x168] sm:$0xff]
    %v2124 = vld [vmem:[#allocation6 + $0x170] sm:$0xff]
    %v2125 = vld [vmem:[#allocation6 + $0x178] sm:$0xff]
    %v2126 = vld [vmem:[#allocation6 + $0x180] sm:$0xff]
    %v2127 = vld [vmem:[#allocation6 + $0x188] sm:$0xff]
    %v2128 = vld [vmem:[#allocation6 + $0x190] sm:$0xff]
    %v2129 = vld [vmem:[#allocation6 + $0x198] sm:$0xff]
    %v2130 = vld [vmem:[#allocation6 + $0x1a0] sm:$0xff]
    %v2131 = vld [vmem:[#allocation6 + $0x1a8] sm:$0xff]
    %v2132 = vld [vmem:[#allocation6 + $0x1b0] sm:$0xff]
    %v2133 = vld [vmem:[#allocation6 + $0x1b8] sm:$0xff]
    %v2134 = vld [vmem:[#allocation6 + $0x1c0] sm:$0xff]
    %v2135 = vld [vmem:[#allocation6 + $0x1c8] sm:$0xff]
    %v2136 = vld [vmem:[#allocation6 + $0x1d0] sm:$0xff]
    %v2137 = vld [vmem:[#allocation6 + $0x1d8] sm:$0xff]
    %v2138 = vld [vmem:[#allocation6 + $0x1e0] sm:$0xff]
    %v2139 = vld [vmem:[#allocation6 + $0x1e8] sm:$0xff]
    %v2140 = vld [vmem:[#allocation6 + $0x1f0] sm:$0xff]
    %v2141 = vld [vmem:[#allocation6 + $0x1f8] sm:$0xff]
    %v2142 = vld [vmem:[#allocation6 + $0x200] sm:$0xff]
    %v2143 = vld [vmem:[#allocation6 + $0x208] sm:$0xff]
    %v2144 = vld [vmem:[#allocation6 + $0x210] sm:$0xff]
    %v2145 = vld [vmem:[#allocation6 + $0x218] sm:$0xff]
    %v2146 = vld [vmem:[#allocation6 + $0x220] sm:$0xff]
    %v2147 = vld [vmem:[#allocation6 + $0x228] sm:$0xff]
    %v2148 = vld [vmem:[#allocation6 + $0x230] sm:$0xff]
    %v2149 = vld [vmem:[#allocation6 + $0x238] sm:$0xff]
    %v2150 = vld [vmem:[#allocation6 + $0x240] sm:$0xff]
    %v2151 = vld [vmem:[#allocation6 + $0x248] sm:$0xff]
    %v2152 = vld [vmem:[#allocation6 + $0x250] sm:$0xff]
    %v2153 = vld [vmem:[#allocation6 + $0x258] sm:$0xff]
    %v2154 = vld [vmem:[#allocation6 + $0x260] sm:$0xff]
    %v2155 = vld [vmem:[#allocation6 + $0x268] sm:$0xff]
    %v2156 = vld [vmem:[#allocation6 + $0x270] sm:$0xff]
    %v2157 = vld [vmem:[#allocation6 + $0x278] sm:$0xff]
    %v2158 = vld [vmem:[#allocation6 + $0x280] sm:$0xff]
    %v2159 = vld [vmem:[#allocation6 + $0x288] sm:$0xff]
    %v2160 = vld [vmem:[#allocation6 + $0x290] sm:$0xff]
    %v2161 = vld [vmem:[#allocation6 + $0x298] sm:$0xff]
    %v2162 = vld [vmem:[#allocation6 + $0x2a0] sm:$0xff]
    %v2163 = vld [vmem:[#allocation6 + $0x2a8] sm:$0xff]
    %v2164 = vld [vmem:[#allocation6 + $0x2b0] sm:$0xff]
    %v2165 = vld [vmem:[#allocation6 + $0x2b8] sm:$0xff]
    %v2166 = vld [vmem:[#allocation6 + $0x2c0] sm:$0xff]
    %v2167 = vld [vmem:[#allocation6 + $0x2c8] sm:$0xff]
    %v2168 = vld [vmem:[#allocation6 + $0x2d0] sm:$0xff]
    %v2169 = vld [vmem:[#allocation6 + $0x2d8] sm:$0xff]
    %v2170 = vld [vmem:[#allocation6 + $0x2e0] sm:$0xff]
    %v2171 = vld [vmem:[#allocation6 + $0x2e8] sm:$0xff]
    %v2172 = vld [vmem:[#allocation6 + $0x2f0] sm:$0xff]
    %v2173 = vld [vmem:[#allocation6 + $0x2f8] sm:$0xff]
    %v2174 = vld [vmem:[#allocation6 + $0x300] sm:$0xff]
    %v2175 = vld [vmem:[#allocation6 + $0x308] sm:$0xff]
    %v2176 = vld [vmem:[#allocation6 + $0x310] sm:$0xff]
    %v2177 = vld [vmem:[#allocation6 + $0x318] sm:$0xff]
    %v2178 = vld [vmem:[#allocation6 + $0x320] sm:$0xff]
    %v2179 = vld [vmem:[#allocation6 + $0x328] sm:$0xff]
    %v2180 = vld [vmem:[#allocation6 + $0x330] sm:$0xff]
    %v2181 = vld [vmem:[#allocation6 + $0x338] sm:$0xff]
    %v2182 = vld [vmem:[#allocation6 + $0x340] sm:$0xff]
    %v2183 = vld [vmem:[#allocation6 + $0x348] sm:$0xff]
    %v2184 = vld [vmem:[#allocation6 + $0x350] sm:$0xff]
    %v2185 = vld [vmem:[#allocation6 + $0x358] sm:$0xff]
    %v2186 = vld [vmem:[#allocation6 + $0x360] sm:$0xff]
    %v2187 = vld [vmem:[#allocation6 + $0x368] sm:$0xff]
    %v2188 = vld [vmem:[#allocation6 + $0x370] sm:$0xff]
    %v2189 = vld [vmem:[#allocation6 + $0x378] sm:$0xff]
    %v2190 = vld [vmem:[#allocation6 + $0x380] sm:$0xff]
    %v2191 = vld [vmem:[#allocation6 + $0x388] sm:$0xff]
    %v2192 = vld [vmem:[#allocation6 + $0x390] sm:$0xff]
    %v2193 = vld [vmem:[#allocation6 + $0x398] sm:$0xff]
    %v2194 = vld [vmem:[#allocation6 + $0x3a0] sm:$0xff]
    %v2195 = vld [vmem:[#allocation6 + $0x3a8] sm:$0xff]
    %v2196 = vld [vmem:[#allocation6 + $0x3b0] sm:$0xff]
    %v2197 = vld [vmem:[#allocation6 + $0x3b8] sm:$0xff]
    %v2198 = vld [vmem:[#allocation6 + $0x3c0] sm:$0xff]
    %v2199 = vld [vmem:[#allocation6 + $0x3c8] sm:$0xff]
    %v2200 = vld [vmem:[#allocation6 + $0x3d0] sm:$0xff]
    %v2201 = vld [vmem:[#allocation6 + $0x3d8] sm:$0xff]
    %v2202 = vld [vmem:[#allocation6 + $0x3e0] sm:$0xff]
    %v2203 = vld [vmem:[#allocation6 + $0x3e8] sm:$0xff]
    %v2204 = vld [vmem:[#allocation6 + $0x3f0] sm:$0xff]
    %v2205 = vld [vmem:[#allocation6 + $0x3f8] sm:$0xff]
    %v2334 = vunpack.c.l.b16 %v2078
    %v2335 = vunpack.c.h.b16 %v2078
    %v2336 = vunpack.c.l.b16 %v2079
    %v2337 = vunpack.c.h.b16 %v2079
    %v2338 = vunpack.c.l.b16 %v2080
    %v2339 = vunpack.c.h.b16 %v2080
    %v2340 = vunpack.c.l.b16 %v2081
    %v2341 = vunpack.c.h.b16 %v2081
    %v2342 = vunpack.c.l.b16 %v2082
    %v2343 = vunpack.c.h.b16 %v2082
    %v2344 = vunpack.c.l.b16 %v2083
    %v2345 = vunpack.c.h.b16 %v2083
    %v2346 = vunpack.c.l.b16 %v2084
    %v2347 = vunpack.c.h.b16 %v2084
    %v2348 = vunpack.c.l.b16 %v2085
    %v2349 = vunpack.c.h.b16 %v2085
    %v2350 = vunpack.c.l.b16 %v2086
    %v2351 = vunpack.c.h.b16 %v2086
    %v2352 = vunpack.c.l.b16 %v2087
    %v2353 = vunpack.c.h.b16 %v2087
    %v2354 = vunpack.c.l.b16 %v2088
    %v2355 = vunpack.c.h.b16 %v2088
    %v2356 = vunpack.c.l.b16 %v2089
    %v2357 = vunpack.c.h.b16 %v2089
    %v2358 = vunpack.c.l.b16 %v2090
    %v2359 = vunpack.c.h.b16 %v2090
    %v2360 = vunpack.c.l.b16 %v2091
    %v2361 = vunpack.c.h.b16 %v2091
    %v2362 = vunpack.c.l.b16 %v2092
    %v2363 = vunpack.c.h.b16 %v2092
    %v2364 = vunpack.c.l.b16 %v2093
    %v2365 = vunpack.c.h.b16 %v2093
    %v2366 = vunpack.c.l.b16 %v2094
    %v2367 = vunpack.c.h.b16 %v2094
    %v2368 = vunpack.c.l.b16 %v2095
    %v2369 = vunpack.c.h.b16 %v2095
    %v2370 = vunpack.c.l.b16 %v2096
    %v2371 = vunpack.c.h.b16 %v2096
    %v2372 = vunpack.c.l.b16 %v2097
    %v2373 = vunpack.c.h.b16 %v2097
    %v2374 = vunpack.c.l.b16 %v2098
    %v2375 = vunpack.c.h.b16 %v2098
    %v2376 = vunpack.c.l.b16 %v2099
    %v2377 = vunpack.c.h.b16 %v2099
    %v2378 = vunpack.c.l.b16 %v2100
    %v2379 = vunpack.c.h.b16 %v2100
    %v2380 = vunpack.c.l.b16 %v2101
    %v2381 = vunpack.c.h.b16 %v2101
    %v2382 = vunpack.c.l.b16 %v2102
    %v2383 = vunpack.c.h.b16 %v2102
    %v2384 = vunpack.c.l.b16 %v2103
    %v2385 = vunpack.c.h.b16 %v2103
    %v2386 = vunpack.c.l.b16 %v2104
    %v2387 = vunpack.c.h.b16 %v2104
    %v2388 = vunpack.c.l.b16 %v2105
    %v2389 = vunpack.c.h.b16 %v2105
    %v2390 = vunpack.c.l.b16 %v2106
    %v2391 = vunpack.c.h.b16 %v2106
    %v2392 = vunpack.c.l.b16 %v2107
    %v2393 = vunpack.c.h.b16 %v2107
    %v2394 = vunpack.c.l.b16 %v2108
    %v2395 = vunpack.c.h.b16 %v2108
    %v2396 = vunpack.c.l.b16 %v2109
    %v2397 = vunpack.c.h.b16 %v2109
    %v2398 = vunpack.c.l.b16 %v2110
    %v2399 = vunpack.c.h.b16 %v2110
    %v2400 = vunpack.c.l.b16 %v2111
    %v2401 = vunpack.c.h.b16 %v2111
    %v2402 = vunpack.c.l.b16 %v2112
    %v2403 = vunpack.c.h.b16 %v2112
    %v2404 = vunpack.c.l.b16 %v2113
    %v2405 = vunpack.c.h.b16 %v2113
    %v2406 = vunpack.c.l.b16 %v2114
    %v2407 = vunpack.c.h.b16 %v2114
    %v2408 = vunpack.c.l.b16 %v2115
    %v2409 = vunpack.c.h.b16 %v2115
    %v2410 = vunpack.c.l.b16 %v2116
    %v2411 = vunpack.c.h.b16 %v2116
    %v2412 = vunpack.c.l.b16 %v2117
    %v2413 = vunpack.c.h.b16 %v2117
    %v2414 = vunpack.c.l.b16 %v2118
    %v2415 = vunpack.c.h.b16 %v2118
    %v2416 = vunpack.c.l.b16 %v2119
    %v2417 = vunpack.c.h.b16 %v2119
    %v2418 = vunpack.c.l.b16 %v2120
    %v2419 = vunpack.c.h.b16 %v2120
    %v2420 = vunpack.c.l.b16 %v2121
    %v2421 = vunpack.c.h.b16 %v2121
    %v2422 = vunpack.c.l.b16 %v2122
    %v2423 = vunpack.c.h.b16 %v2122
    %v2424 = vunpack.c.l.b16 %v2123
    %v2425 = vunpack.c.h.b16 %v2123
    %v2426 = vunpack.c.l.b16 %v2124
    %v2427 = vunpack.c.h.b16 %v2124
    %v2428 = vunpack.c.l.b16 %v2125
    %v2429 = vunpack.c.h.b16 %v2125
    %v2430 = vunpack.c.l.b16 %v2126
    %v2431 = vunpack.c.h.b16 %v2126
    %v2432 = vunpack.c.l.b16 %v2127
    %v2433 = vunpack.c.h.b16 %v2127
    %v2434 = vunpack.c.l.b16 %v2128
    %v2435 = vunpack.c.h.b16 %v2128
    %v2436 = vunpack.c.l.b16 %v2129
    %v2437 = vunpack.c.h.b16 %v2129
    %v2438 = vunpack.c.l.b16 %v2130
    %v2439 = vunpack.c.h.b16 %v2130
    %v2440 = vunpack.c.l.b16 %v2131
    %v2441 = vunpack.c.h.b16 %v2131
    %v2442 = vunpack.c.l.b16 %v2132
    %v2443 = vunpack.c.h.b16 %v2132
    %v2444 = vunpack.c.l.b16 %v2133
    %v2445 = vunpack.c.h.b16 %v2133
    %v2446 = vunpack.c.l.b16 %v2134
    %v2447 = vunpack.c.h.b16 %v2134
    %v2448 = vunpack.c.l.b16 %v2135
    %v2449 = vunpack.c.h.b16 %v2135
    %v2450 = vunpack.c.l.b16 %v2136
    %v2451 = vunpack.c.h.b16 %v2136
    %v2452 = vunpack.c.l.b16 %v2137
    %v2453 = vunpack.c.h.b16 %v2137
    %v2454 = vunpack.c.l.b16 %v2138
    %v2455 = vunpack.c.h.b16 %v2138
    %v2456 = vunpack.c.l.b16 %v2139
    %v2457 = vunpack.c.h.b16 %v2139
    %v2458 = vunpack.c.l.b16 %v2140
    %v2459 = vunpack.c.h.b16 %v2140
    %v2460 = vunpack.c.l.b16 %v2141
    %v2461 = vunpack.c.h.b16 %v2141
    %v2462 = vunpack.c.l.b16 %v2142
    %v2463 = vunpack.c.h.b16 %v2142
    %v2464 = vunpack.c.l.b16 %v2143
    %v2465 = vunpack.c.h.b16 %v2143
    %v2466 = vunpack.c.l.b16 %v2144
    %v2467 = vunpack.c.h.b16 %v2144
    %v2468 = vunpack.c.l.b16 %v2145
    %v2469 = vunpack.c.h.b16 %v2145
    %v2470 = vunpack.c.l.b16 %v2146
    %v2471 = vunpack.c.h.b16 %v2146
    %v2472 = vunpack.c.l.b16 %v2147
    %v2473 = vunpack.c.h.b16 %v2147
    %v2474 = vunpack.c.l.b16 %v2148
    %v2475 = vunpack.c.h.b16 %v2148
    %v2476 = vunpack.c.l.b16 %v2149
    %v2477 = vunpack.c.h.b16 %v2149
    %v2478 = vunpack.c.l.b16 %v2150
    %v2479 = vunpack.c.h.b16 %v2150
    %v2480 = vunpack.c.l.b16 %v2151
    %v2481 = vunpack.c.h.b16 %v2151
    %v2482 = vunpack.c.l.b16 %v2152
    %v2483 = vunpack.c.h.b16 %v2152
    %v2484 = vunpack.c.l.b16 %v2153
    %v2485 = vunpack.c.h.b16 %v2153
    %v2486 = vunpack.c.l.b16 %v2154
    %v2487 = vunpack.c.h.b16 %v2154
    %v2488 = vunpack.c.l.b16 %v2155
    %v2489 = vunpack.c.h.b16 %v2155
    %v2490 = vunpack.c.l.b16 %v2156
    %v2491 = vunpack.c.h.b16 %v2156
    %v2492 = vunpack.c.l.b16 %v2157
    %v2493 = vunpack.c.h.b16 %v2157
    %v2494 = vunpack.c.l.b16 %v2158
    %v2495 = vunpack.c.h.b16 %v2158
    %v2496 = vunpack.c.l.b16 %v2159
    %v2497 = vunpack.c.h.b16 %v2159
    %v2498 = vunpack.c.l.b16 %v2160
    %v2499 = vunpack.c.h.b16 %v2160
    %v2500 = vunpack.c.l.b16 %v2161
    %v2501 = vunpack.c.h.b16 %v2161
    %v2502 = vunpack.c.l.b16 %v2162
    %v2503 = vunpack.c.h.b16 %v2162
    %v2504 = vunpack.c.l.b16 %v2163
    %v2505 = vunpack.c.h.b16 %v2163
    %v2506 = vunpack.c.l.b16 %v2164
    %v2507 = vunpack.c.h.b16 %v2164
    %v2508 = vunpack.c.l.b16 %v2165
    %v2509 = vunpack.c.h.b16 %v2165
    %v2510 = vunpack.c.l.b16 %v2166
    %v2511 = vunpack.c.h.b16 %v2166
    %v2512 = vunpack.c.l.b16 %v2167
    %v2513 = vunpack.c.h.b16 %v2167
    %v2514 = vunpack.c.l.b16 %v2168
    %v2515 = vunpack.c.h.b16 %v2168
    %v2516 = vunpack.c.l.b16 %v2169
    %v2517 = vunpack.c.h.b16 %v2169
    %v2518 = vunpack.c.l.b16 %v2170
    %v2519 = vunpack.c.h.b16 %v2170
    %v2520 = vunpack.c.l.b16 %v2171
    %v2521 = vunpack.c.h.b16 %v2171
    %v2522 = vunpack.c.l.b16 %v2172
    %v2523 = vunpack.c.h.b16 %v2172
    %v2524 = vunpack.c.l.b16 %v2173
    %v2525 = vunpack.c.h.b16 %v2173
    %v2526 = vunpack.c.l.b16 %v2174
    %v2527 = vunpack.c.h.b16 %v2174
    %v2528 = vunpack.c.l.b16 %v2175
    %v2529 = vunpack.c.h.b16 %v2175
    %v2530 = vunpack.c.l.b16 %v2176
    %v2531 = vunpack.c.h.b16 %v2176
    %v2532 = vunpack.c.l.b16 %v2177
    %v2533 = vunpack.c.h.b16 %v2177
    %v2534 = vunpack.c.l.b16 %v2178
    %v2535 = vunpack.c.h.b16 %v2178
    %v2536 = vunpack.c.l.b16 %v2179
    %v2537 = vunpack.c.h.b16 %v2179
    %v2538 = vunpack.c.l.b16 %v2180
    %v2539 = vunpack.c.h.b16 %v2180
    %v2540 = vunpack.c.l.b16 %v2181
    %v2541 = vunpack.c.h.b16 %v2181
    %v2542 = vunpack.c.l.b16 %v2182
    %v2543 = vunpack.c.h.b16 %v2182
    %v2544 = vunpack.c.l.b16 %v2183
    %v2545 = vunpack.c.h.b16 %v2183
    %v2546 = vunpack.c.l.b16 %v2184
    %v2547 = vunpack.c.h.b16 %v2184
    %v2548 = vunpack.c.l.b16 %v2185
    %v2549 = vunpack.c.h.b16 %v2185
    %v2550 = vunpack.c.l.b16 %v2186
    %v2551 = vunpack.c.h.b16 %v2186
    %v2552 = vunpack.c.l.b16 %v2187
    %v2553 = vunpack.c.h.b16 %v2187
    %v2554 = vunpack.c.l.b16 %v2188
    %v2555 = vunpack.c.h.b16 %v2188
    %v2556 = vunpack.c.l.b16 %v2189
    %v2557 = vunpack.c.h.b16 %v2189
    %v2558 = vunpack.c.l.b16 %v2190
    %v2559 = vunpack.c.h.b16 %v2190
    %v2560 = vunpack.c.l.b16 %v2191
    %v2561 = vunpack.c.h.b16 %v2191
    %v2562 = vunpack.c.l.b16 %v2192
    %v2563 = vunpack.c.h.b16 %v2192
    %v2564 = vunpack.c.l.b16 %v2193
    %v2565 = vunpack.c.h.b16 %v2193
    %v2566 = vunpack.c.l.b16 %v2194
    %v2567 = vunpack.c.h.b16 %v2194
    %v2568 = vunpack.c.l.b16 %v2195
    %v2569 = vunpack.c.h.b16 %v2195
    %v2570 = vunpack.c.l.b16 %v2196
    %v2571 = vunpack.c.h.b16 %v2196
    %v2572 = vunpack.c.l.b16 %v2197
    %v2573 = vunpack.c.h.b16 %v2197
    %v2574 = vunpack.c.l.b16 %v2198
    %v2575 = vunpack.c.h.b16 %v2198
    %v2576 = vunpack.c.l.b16 %v2199
    %v2577 = vunpack.c.h.b16 %v2199
    %v2578 = vunpack.c.l.b16 %v2200
    %v2579 = vunpack.c.h.b16 %v2200
    %v2580 = vunpack.c.l.b16 %v2201
    %v2581 = vunpack.c.h.b16 %v2201
    %v2582 = vunpack.c.l.b16 %v2202
    %v2583 = vunpack.c.h.b16 %v2202
    %v2584 = vunpack.c.l.b16 %v2203
    %v2585 = vunpack.c.h.b16 %v2203
    %v2586 = vunpack.c.l.b16 %v2204
    %v2587 = vunpack.c.h.b16 %v2204
    %v2588 = vunpack.c.l.b16 %v2205
    %v2589 = vunpack.c.h.b16 %v2205
    %v2590 = vpack.c.b16 %v2338, %v2334
    %v2591 = vpack.c.b16 %v2339, %v2335
    %v2592 = vpack.c.b16 %v2340, %v2336
    %v2593 = vpack.c.b16 %v2341, %v2337
    %v2594 = vpack.c.b16 %v2346, %v2342
    %v2595 = vpack.c.b16 %v2347, %v2343
    %v2596 = vpack.c.b16 %v2348, %v2344
    %v2597 = vpack.c.b16 %v2349, %v2345
    %v2598 = vpack.c.b16 %v2354, %v2350
    %v2599 = vpack.c.b16 %v2355, %v2351
    %v2600 = vpack.c.b16 %v2356, %v2352
    %v2601 = vpack.c.b16 %v2357, %v2353
    %v2602 = vpack.c.b16 %v2362, %v2358
    %v2603 = vpack.c.b16 %v2363, %v2359
    %v2604 = vpack.c.b16 %v2364, %v2360
    %v2605 = vpack.c.b16 %v2365, %v2361
    %v2606 = vpack.c.b16 %v2370, %v2366
    %v2607 = vpack.c.b16 %v2371, %v2367
    %v2608 = vpack.c.b16 %v2372, %v2368
    %v2609 = vpack.c.b16 %v2373, %v2369
    %v2610 = vpack.c.b16 %v2378, %v2374
    %v2611 = vpack.c.b16 %v2379, %v2375
    %v2612 = vpack.c.b16 %v2380, %v2376
    %v2613 = vpack.c.b16 %v2381, %v2377
    %v2614 = vpack.c.b16 %v2386, %v2382
    %v2615 = vpack.c.b16 %v2387, %v2383
    %v2616 = vpack.c.b16 %v2388, %v2384
    %v2617 = vpack.c.b16 %v2389, %v2385
    %v2618 = vpack.c.b16 %v2394, %v2390
    %v2619 = vpack.c.b16 %v2395, %v2391
    %v2620 = vpack.c.b16 %v2396, %v2392
    %v2621 = vpack.c.b16 %v2397, %v2393
    %v2622 = vpack.c.b16 %v2402, %v2398
    %v2623 = vpack.c.b16 %v2403, %v2399
    %v2624 = vpack.c.b16 %v2404, %v2400
    %v2625 = vpack.c.b16 %v2405, %v2401
    %v2626 = vpack.c.b16 %v2410, %v2406
    %v2627 = vpack.c.b16 %v2411, %v2407
    %v2628 = vpack.c.b16 %v2412, %v2408
    %v2629 = vpack.c.b16 %v2413, %v2409
    %v2630 = vpack.c.b16 %v2418, %v2414
    %v2631 = vpack.c.b16 %v2419, %v2415
    %v2632 = vpack.c.b16 %v2420, %v2416
    %v2633 = vpack.c.b16 %v2421, %v2417
    %v2634 = vpack.c.b16 %v2426, %v2422
    %v2635 = vpack.c.b16 %v2427, %v2423
    %v2636 = vpack.c.b16 %v2428, %v2424
    %v2637 = vpack.c.b16 %v2429, %v2425
    %v2638 = vpack.c.b16 %v2434, %v2430
    %v2639 = vpack.c.b16 %v2435, %v2431
    %v2640 = vpack.c.b16 %v2436, %v2432
    %v2641 = vpack.c.b16 %v2437, %v2433
    %v2642 = vpack.c.b16 %v2442, %v2438
    %v2643 = vpack.c.b16 %v2443, %v2439
    %v2644 = vpack.c.b16 %v2444, %v2440
    %v2645 = vpack.c.b16 %v2445, %v2441
    %v2646 = vpack.c.b16 %v2450, %v2446
    %v2647 = vpack.c.b16 %v2451, %v2447
    %v2648 = vpack.c.b16 %v2452, %v2448
    %v2649 = vpack.c.b16 %v2453, %v2449
    %v2650 = vpack.c.b16 %v2458, %v2454
    %v2651 = vpack.c.b16 %v2459, %v2455
    %v2652 = vpack.c.b16 %v2460, %v2456
    %v2653 = vpack.c.b16 %v2461, %v2457
    %v2654 = vpack.c.b16 %v2466, %v2462
    %v2655 = vpack.c.b16 %v2467, %v2463
    %v2656 = vpack.c.b16 %v2468, %v2464
    %v2657 = vpack.c.b16 %v2469, %v2465
    %v2658 = vpack.c.b16 %v2474, %v2470
    %v2659 = vpack.c.b16 %v2475, %v2471
    %v2660 = vpack.c.b16 %v2476, %v2472
    %v2661 = vpack.c.b16 %v2477, %v2473
    %v2662 = vpack.c.b16 %v2482, %v2478
    %v2663 = vpack.c.b16 %v2483, %v2479
    %v2664 = vpack.c.b16 %v2484, %v2480
    %v2665 = vpack.c.b16 %v2485, %v2481
    %v2666 = vpack.c.b16 %v2490, %v2486
    %v2667 = vpack.c.b16 %v2491, %v2487
    %v2668 = vpack.c.b16 %v2492, %v2488
    %v2669 = vpack.c.b16 %v2493, %v2489
    %v2670 = vpack.c.b16 %v2498, %v2494
    %v2671 = vpack.c.b16 %v2499, %v2495
    %v2672 = vpack.c.b16 %v2500, %v2496
    %v2673 = vpack.c.b16 %v2501, %v2497
    %v2674 = vpack.c.b16 %v2506, %v2502
    %v2675 = vpack.c.b16 %v2507, %v2503
    %v2676 = vpack.c.b16 %v2508, %v2504
    %v2677 = vpack.c.b16 %v2509, %v2505
    %v2678 = vpack.c.b16 %v2514, %v2510
    %v2679 = vpack.c.b16 %v2515, %v2511
    %v2680 = vpack.c.b16 %v2516, %v2512
    %v2681 = vpack.c.b16 %v2517, %v2513
    %v2682 = vpack.c.b16 %v2522, %v2518
    %v2683 = vpack.c.b16 %v2523, %v2519
    %v2684 = vpack.c.b16 %v2524, %v2520
    %v2685 = vpack.c.b16 %v2525, %v2521
    %v2686 = vpack.c.b16 %v2530, %v2526
    %v2687 = vpack.c.b16 %v2531, %v2527
    %v2688 = vpack.c.b16 %v2532, %v2528
    %v2689 = vpack.c.b16 %v2533, %v2529
    %v2690 = vpack.c.b16 %v2538, %v2534
    %v2691 = vpack.c.b16 %v2539, %v2535
    %v2692 = vpack.c.b16 %v2540, %v2536
    %v2693 = vpack.c.b16 %v2541, %v2537
    %v2694 = vpack.c.b16 %v2546, %v2542
    %v2695 = vpack.c.b16 %v2547, %v2543
    %v2696 = vpack.c.b16 %v2548, %v2544
    %v2697 = vpack.c.b16 %v2549, %v2545
    %v2698 = vpack.c.b16 %v2554, %v2550
    %v2699 = vpack.c.b16 %v2555, %v2551
    %v2700 = vpack.c.b16 %v2556, %v2552
    %v2701 = vpack.c.b16 %v2557, %v2553
    %v2702 = vpack.c.b16 %v2562, %v2558
    %v2703 = vpack.c.b16 %v2563, %v2559
    %v2704 = vpack.c.b16 %v2564, %v2560
    %v2705 = vpack.c.b16 %v2565, %v2561
    %v2706 = vpack.c.b16 %v2570, %v2566
    %v2707 = vpack.c.b16 %v2571, %v2567
    %v2708 = vpack.c.b16 %v2572, %v2568
    %v2709 = vpack.c.b16 %v2573, %v2569
    %v2710 = vpack.c.b16 %v2578, %v2574
    %v2711 = vpack.c.b16 %v2579, %v2575
    %v2712 = vpack.c.b16 %v2580, %v2576
    %v2713 = vpack.c.b16 %v2581, %v2577
    %v2714 = vpack.c.b16 %v2586, %v2582
    %v2715 = vpack.c.b16 %v2587, %v2583
    %v2716 = vpack.c.b16 %v2588, %v2584
    %v2717 = vpack.c.b16 %v2589, %v2585
    %2846 = vmatprep.subr.bf16.mxu0 %v2591
    %2847 = vmatpush1.bf16.msra.mxu0 %v2590
    %2848 = vmatprep.subr.bf16.mxu0 %v2595
    %2849 = vmatpush1.bf16.msra.mxu0 %v2594
    %2850 = vmatprep.subr.bf16.mxu0 %v2599
    %2851 = vmatpush1.bf16.msra.mxu0 %v2598
    %2852 = vmatprep.subr.bf16.mxu0 %v2603
    %2853 = vmatpush1.bf16.msra.mxu0 %v2602
    %2854 = vmatprep.subr.bf16.mxu0 %v2607
    %2855 = vmatpush1.bf16.msra.mxu0 %v2606
    %2856 = vmatprep.subr.bf16.mxu0 %v2611
    %2857 = vmatpush1.bf16.msra.mxu0 %v2610
    %2858 = vmatprep.subr.bf16.mxu0 %v2615
    %2859 = vmatpush1.bf16.msra.mxu0 %v2614
    %2860 = vmatprep.subr.bf16.mxu0 %v2619
    %2861 = vmatpush1.bf16.msra.mxu0 %v2618
    %2862 = vmatprep.subr.bf16.mxu0 %v2623
    %2863 = vmatpush1.bf16.msra.mxu0 %v2622
    %2864 = vmatprep.subr.bf16.mxu0 %v2627
    %2865 = vmatpush1.bf16.msra.mxu0 %v2626
    %2866 = vmatprep.subr.bf16.mxu0 %v2631
    %2867 = vmatpush1.bf16.msra.mxu0 %v2630
    %2868 = vmatprep.subr.bf16.mxu0 %v2635
    %2869 = vmatpush1.bf16.msra.mxu0 %v2634
    %2870 = vmatprep.subr.bf16.mxu0 %v2639
    %2871 = vmatpush1.bf16.msra.mxu0 %v2638
    %2872 = vmatprep.subr.bf16.mxu0 %v2643
    %2873 = vmatpush1.bf16.msra.mxu0 %v2642
    %2874 = vmatprep.subr.bf16.mxu0 %v2647
    %2875 = vmatpush1.bf16.msra.mxu0 %v2646
    %2876 = vmatprep.subr.bf16.mxu0 %v2651
    %2877 = vmatpush1.bf16.msra.mxu0 %v2650
    %2878 = vmatprep.mubr.bf16.mxu0 %v2063
    %2879 = vmatmul.mubr.bf16.gmra.mrb[0].mxu0 %v2062
    %v2880 = vpop.f32.mrb[0].mxu0
    %v2881 = vadd.f32 0.0, %v2880
    %v2882 = vpop.f32.mrb[0].mxu0
    %v2883 = vadd.f32 0.0, %v2882
    %v2884 = vpop.f32.mrb[0].mxu0
    %v2885 = vadd.f32 0.0, %v2884
    %v2886 = vpop.f32.mrb[0].mxu0
    %v2887 = vadd.f32 0.0, %v2886
    %2888 = vmatprep.mubr.bf16.mxu0 %v2067
    %2889 = vmatmul.mubr.bf16.gmra.mrb[0].mxu0 %v2066
    %v2890 = vpop.f32.mrb[0].mxu0
    %v2891 = vadd.f32 0.0, %v2890
    %v2892 = vpop.f32.mrb[0].mxu0
    %v2893 = vadd.f32 0.0, %v2892
    %v2894 = vpop.f32.mrb[0].mxu0
    %v2895 = vadd.f32 0.0, %v2894
    %v2896 = vpop.f32.mrb[0].mxu0
    %v2897 = vadd.f32 0.0, %v2896
    %2898 = vmatprep.mubr.bf16.mxu0 %v2071
    %2899 = vmatmul.mubr.bf16.gmra.mrb[0].mxu0 %v2070
    %v2900 = vpop.f32.mrb[0].mxu0
    %v2901 = vadd.f32 0.0, %v2900
    %v2902 = vpop.f32.mrb[0].mxu0
    %v2903 = vadd.f32 0.0, %v2902
    %v2904 = vpop.f32.mrb[0].mxu0
    %v2905 = vadd.f32 0.0, %v2904
    %v2906 = vpop.f32.mrb[0].mxu0
    %v2907 = vadd.f32 0.0, %v2906
    %2908 = vmatprep.mubr.bf16.mxu0 %v2075
    %2909 = vmatmul.mubr.bf16.gmra.mrb[0].mxu0 %v2074
    %v2910 = vpop.f32.mrb[0].mxu0
    %v2911 = vadd.f32 0.0, %v2910
    %v2912 = vpop.f32.mrb[0].mxu0
    %v2913 = vadd.f32 0.0, %v2912
    %v2914 = vpop.f32.mrb[0].mxu0
    %v2915 = vadd.f32 0.0, %v2914
    %v2916 = vpop.f32.mrb[0].mxu0
    %v2917 = vadd.f32 0.0, %v2916
    %2918 = vdwg.mxu0
    %2919 = vmatprep.subr.bf16.mxu0 %v2655
    %2920 = vmatpush1.bf16.msra.mxu0 %v2654
    %2921 = vmatprep.subr.bf16.mxu0 %v2659
    %2922 = vmatpush1.bf16.msra.mxu0 %v2658
    %2923 = vmatprep.subr.bf16.mxu0 %v2663
    %2924 = vmatpush1.bf16.msra.mxu0 %v2662
    %2925 = vmatprep.subr.bf16.mxu0 %v2667
    %2926 = vmatpush1.bf16.msra.mxu0 %v2666
    %2927 = vmatprep.subr.bf16.mxu0 %v2671
    %2928 = vmatpush1.bf16.msra.mxu0 %v2670
    %2929 = vmatprep.subr.bf16.mxu0 %v2675
    %2930 = vmatpush1.bf16.msra.mxu0 %v2674
    %2931 = vmatprep.subr.bf16.mxu0 %v2679
    %2932 = vmatpush1.bf16.msra.mxu0 %v2678
    %2933 = vmatprep.subr.bf16.mxu0 %v2683
    %2934 = vmatpush1.bf16.msra.mxu0 %v2682
    %2935 = vmatprep.subr.bf16.mxu0 %v2687
    %2936 = vmatpush1.bf16.msra.mxu0 %v2686
    %2937 = vmatprep.subr.bf16.mxu0 %v2691
    %2938 = vmatpush1.bf16.msra.mxu0 %v2690
    %2939 = vmatprep.subr.bf16.mxu0 %v2695
    %2940 = vmatpush1.bf16.msra.mxu0 %v2694
    %2941 = vmatprep.subr.bf16.mxu0 %v2699
    %2942 = vmatpush1.bf16.msra.mxu0 %v2698
    %2943 = vmatprep.subr.bf16.mxu0 %v2703
    %2944 = vmatpush1.bf16.msra.mxu0 %v2702
    %2945 = vmatprep.subr.bf16.mxu0 %v2707
    %2946 = vmatpush1.bf16.msra.mxu0 %v2706
    %2947 = vmatprep.subr.bf16.mxu0 %v2711
    %2948 = vmatpush1.bf16.msra.mxu0 %v2710
    %2949 = vmatprep.subr.bf16.mxu0 %v2715
    %2950 = vmatpush1.bf16.msra.mxu0 %v2714
    %2951 = vmatprep.mubr.bf16.mxu0 %v2065
    %2952 = vmatmul.mubr.bf16.gmra.mrb[0].mxu0 %v2064
    %v2953 = vpop.f32.mrb[0].mxu0
    %v2954 = vadd.f32 %v2881, %v2953
    %v2955 = vpop.f32.mrb[0].mxu0
    %v2956 = vadd.f32 %v2883, %v2955
    %v2957 = vpop.f32.mrb[0].mxu0
    %v2958 = vadd.f32 %v2885, %v2957
    %v2959 = vpop.f32.mrb[0].mxu0
    %v2960 = vadd.f32 %v2887, %v2959
    %2961 = vmatprep.mubr.bf16.mxu0 %v2069
    %2962 = vmatmul.mubr.bf16.gmra.mrb[0].mxu0 %v2068
    %v2963 = vpop.f32.mrb[0].mxu0
    %v2964 = vadd.f32 %v2891, %v2963
    %v2965 = vpop.f32.mrb[0].mxu0
    %v2966 = vadd.f32 %v2893, %v2965
    %v2967 = vpop.f32.mrb[0].mxu0
    %v2968 = vadd.f32 %v2895, %v2967
    %v2969 = vpop.f32.mrb[0].mxu0
    %v2970 = vadd.f32 %v2897, %v2969
    %2971 = vmatprep.mubr.bf16.mxu0 %v2073
    %2972 = vmatmul.mubr.bf16.gmra.mrb[0].mxu0 %v2072
    %v2973 = vpop.f32.mrb[0].mxu0
    %v2974 = vadd.f32 %v2901, %v2973
    %v2975 = vpop.f32.mrb[0].mxu0
    %v2976 = vadd.f32 %v2903, %v2975
    %v2977 = vpop.f32.mrb[0].mxu0
    %v2978 = vadd.f32 %v2905, %v2977
    %v2979 = vpop.f32.mrb[0].mxu0
    %v2980 = vadd.f32 %v2907, %v2979
    %2981 = vmatprep.mubr.bf16.mxu0 %v2077
    %2982 = vmatmul.mubr.bf16.gmra.mrb[0].mxu0 %v2076
    %v2983 = vpop.f32.mrb[0].mxu0
    %v2984 = vadd.f32 %v2911, %v2983
    %v2985 = vpop.f32.mrb[0].mxu0
    %v2986 = vadd.f32 %v2913, %v2985
    %v2987 = vpop.f32.mrb[0].mxu0
    %v2988 = vadd.f32 %v2915, %v2987
    %v2989 = vpop.f32.mrb[0].mxu0
    %v2990 = vadd.f32 %v2917, %v2989
    %2991 = vdwg.mxu0
    %2992 = vmatprep.subr.bf16.mxu0 %v2593
    %2993 = vmatpush1.bf16.msra.mxu0 %v2592
    %2994 = vmatprep.subr.bf16.mxu0 %v2597
    %2995 = vmatpush1.bf16.msra.mxu0 %v2596
    %2996 = vmatprep.subr.bf16.mxu0 %v2601
    %2997 = vmatpush1.bf16.msra.mxu0 %v2600
    %2998 = vmatprep.subr.bf16.mxu0 %v2605
    %2999 = vmatpush1.bf16.msra.mxu0 %v2604
    %3000 = vmatprep.subr.bf16.mxu0 %v2609
    %3001 = vmatpush1.bf16.msra.mxu0 %v2608
    %3002 = vmatprep.subr.bf16.mxu0 %v2613
    %3003 = vmatpush1.bf16.msra.mxu0 %v2612
    %3004 = vmatprep.subr.bf16.mxu0 %v2617
    %3005 = vmatpush1.bf16.msra.mxu0 %v2616
    %3006 = vmatprep.subr.bf16.mxu0 %v2621
    %3007 = vmatpush1.bf16.msra.mxu0 %v2620
    %3008 = vmatprep.subr.bf16.mxu0 %v2625
    %3009 = vmatpush1.bf16.msra.mxu0 %v2624
    %3010 = vmatprep.subr.bf16.mxu0 %v2629
    %3011 = vmatpush1.bf16.msra.mxu0 %v2628
    %3012 = vmatprep.subr.bf16.mxu0 %v2633
    %3013 = vmatpush1.bf16.msra.mxu0 %v2632
    %3014 = vmatprep.subr.bf16.mxu0 %v2637
    %3015 = vmatpush1.bf16.msra.mxu0 %v2636
    %3016 = vmatprep.subr.bf16.mxu0 %v2641
    %3017 = vmatpush1.bf16.msra.mxu0 %v2640
    %3018 = vmatprep.subr.bf16.mxu0 %v2645
    %3019 = vmatpush1.bf16.msra.mxu0 %v2644
    %3020 = vmatprep.subr.bf16.mxu0 %v2649
    %3021 = vmatpush1.bf16.msra.mxu0 %v2648
    %3022 = vmatprep.subr.bf16.mxu0 %v2653
    %3023 = vmatpush1.bf16.msra.mxu0 %v2652
    %3024 = vmatprep.mubr.bf16.mxu0 %v2063
    %3025 = vmatmul.mubr.bf16.gmra.mrb[0].mxu0 %v2062
    %v3026 = vpop.f32.mrb[0].mxu0
    %v3027 = vadd.f32 0.0, %v3026
    %v3028 = vpop.f32.mrb[0].mxu0
    %v3029 = vadd.f32 0.0, %v3028
    %v3030 = vpop.f32.mrb[0].mxu0
    %v3031 = vadd.f32 0.0, %v3030
    %v3032 = vpop.f32.mrb[0].mxu0
    %v3033 = vadd.f32 0.0, %v3032
    %3034 = vmatprep.mubr.bf16.mxu0 %v2067
    %3035 = vmatmul.mubr.bf16.gmra.mrb[0].mxu0 %v2066
    %v3036 = vpop.f32.mrb[0].mxu0
    %v3037 = vadd.f32 0.0, %v3036
    %v3038 = vpop.f32.mrb[0].mxu0
    %v3039 = vadd.f32 0.0, %v3038
    %v3040 = vpop.f32.mrb[0].mxu0
    %v3041 = vadd.f32 0.0, %v3040
    %v3042 = vpop.f32.mrb[0].mxu0
    %v3043 = vadd.f32 0.0, %v3042
    %3044 = vmatprep.mubr.bf16.mxu0 %v2071
    %3045 = vmatmul.mubr.bf16.gmra.mrb[0].mxu0 %v2070
    %v3046 = vpop.f32.mrb[0].mxu0
    %v3047 = vadd.f32 0.0, %v3046
    %v3048 = vpop.f32.mrb[0].mxu0
    %v3049 = vadd.f32 0.0, %v3048
    %v3050 = vpop.f32.mrb[0].mxu0
    %v3051 = vadd.f32 0.0, %v3050
    %v3052 = vpop.f32.mrb[0].mxu0
    %v3053 = vadd.f32 0.0, %v3052
    %3054 = vmatprep.mubr.bf16.mxu0 %v2075
    %3055 = vmatmul.mubr.bf16.gmra.mrb[0].mxu0 %v2074
    %v3056 = vpop.f32.mrb[0].mxu0
    %v3057 = vadd.f32 0.0, %v3056
    %v3058 = vpop.f32.mrb[0].mxu0
    %v3059 = vadd.f32 0.0, %v3058
    %v3060 = vpop.f32.mrb[0].mxu0
    %v3061 = vadd.f32 0.0, %v3060
    %v3062 = vpop.f32.mrb[0].mxu0
    %v3063 = vadd.f32 0.0, %v3062
    %3064 = vdwg.mxu0
    %3065 = vmatprep.subr.bf16.mxu0 %v2657
    %3066 = vmatpush1.bf16.msra.mxu0 %v2656
    %3067 = vmatprep.subr.bf16.mxu0 %v2661
    %3068 = vmatpush1.bf16.msra.mxu0 %v2660
    %3069 = vmatprep.subr.bf16.mxu0 %v2665
    %3070 = vmatpush1.bf16.msra.mxu0 %v2664
    %3071 = vmatprep.subr.bf16.mxu0 %v2669
    %3072 = vmatpush1.bf16.msra.mxu0 %v2668
    %3073 = vmatprep.subr.bf16.mxu0 %v2673
    %3074 = vmatpush1.bf16.msra.mxu0 %v2672
    %3075 = vmatprep.subr.bf16.mxu0 %v2677
    %3076 = vmatpush1.bf16.msra.mxu0 %v2676
    %3077 = vmatprep.subr.bf16.mxu0 %v2681
    %3078 = vmatpush1.bf16.msra.mxu0 %v2680
    %3079 = vmatprep.subr.bf16.mxu0 %v2685
    %3080 = vmatpush1.bf16.msra.mxu0 %v2684
    %3081 = vmatprep.subr.bf16.mxu0 %v2689
    %3082 = vmatpush1.bf16.msra.mxu0 %v2688
    %3083 = vmatprep.subr.bf16.mxu0 %v2693
    %3084 = vmatpush1.bf16.msra.mxu0 %v2692
    %3085 = vmatprep.subr.bf16.mxu0 %v2697
    %3086 = vmatpush1.bf16.msra.mxu0 %v2696
    %3087 = vmatprep.subr.bf16.mxu0 %v2701
    %3088 = vmatpush1.bf16.msra.mxu0 %v2700
    %3089 = vmatprep.subr.bf16.mxu0 %v2705
    %3090 = vmatpush1.bf16.msra.mxu0 %v2704
    %3091 = vmatprep.subr.bf16.mxu0 %v2709
    %3092 = vmatpush1.bf16.msra.mxu0 %v2708
    %3093 = vmatprep.subr.bf16.mxu0 %v2713
    %3094 = vmatpush1.bf16.msra.mxu0 %v2712
    %3095 = vmatprep.subr.bf16.mxu0 %v2717
    %3096 = vmatpush1.bf16.msra.mxu0 %v2716
    %3097 = vmatprep.mubr.bf16.mxu0 %v2065
    %3098 = vmatmul.mubr.bf16.gmra.mrb[0].mxu0 %v2064
    %v3099 = vpop.f32.mrb[0].mxu0
    %v3100 = vadd.f32 %v3027, %v3099
    %v3101 = vpop.f32.mrb[0].mxu0
    %v3102 = vadd.f32 %v3029, %v3101
    %v3103 = vpop.f32.mrb[0].mxu0
    %v3104 = vadd.f32 %v3031, %v3103
    %v3105 = vpop.f32.mrb[0].mxu0
    %v3106 = vadd.f32 %v3033, %v3105
    %3107 = vmatprep.mubr.bf16.mxu0 %v2069
    %3108 = vmatmul.mubr.bf16.gmra.mrb[0].mxu0 %v2068
    %v3109 = vpop.f32.mrb[0].mxu0
    %v3110 = vadd.f32 %v3037, %v3109
    %v3111 = vpop.f32.mrb[0].mxu0
    %v3112 = vadd.f32 %v3039, %v3111
    %v3113 = vpop.f32.mrb[0].mxu0
    %v3114 = vadd.f32 %v3041, %v3113
    %v3115 = vpop.f32.mrb[0].mxu0
    %v3116 = vadd.f32 %v3043, %v3115
    %3117 = vmatprep.mubr.bf16.mxu0 %v2073
    %3118 = vmatmul.mubr.bf16.gmra.mrb[0].mxu0 %v2072
    %v3119 = vpop.f32.mrb[0].mxu0
    %v3120 = vadd.f32 %v3047, %v3119
    %v3121 = vpop.f32.mrb[0].mxu0
    %v3122 = vadd.f32 %v3049, %v3121
    %v3123 = vpop.f32.mrb[0].mxu0
    %v3124 = vadd.f32 %v3051, %v3123
    %v3125 = vpop.f32.mrb[0].mxu0
    %v3126 = vadd.f32 %v3053, %v3125
    %3127 = vmatprep.mubr.bf16.mxu0 %v2077
    %3128 = vmatmul.mubr.bf16.gmra.mrb[0].mxu0 %v2076
    %v3129 = vpop.f32.mrb[0].mxu0
    %v3130 = vadd.f32 %v3057, %v3129
    %v3131 = vpop.f32.mrb[0].mxu0
    %v3132 = vadd.f32 %v3059, %v3131
    %v3133 = vpop.f32.mrb[0].mxu0
    %v3134 = vadd.f32 %v3061, %v3133
    %v3135 = vpop.f32.mrb[0].mxu0
    %v3136 = vadd.f32 %v3063, %v3135
    %3137 = vdwg.mxu0
    %v3138 = vmax.f32 %v2954, %v3100
    %v3139 = vmax.f32 %v2956, %v3102
    %v3140 = vmax.f32 %v2958, %v3104
    %v3141 = vmax.f32 %v2960, %v3106
    %v3142 = vmax.f32 %v2964, %v3110
    %v3143 = vmax.f32 %v2966, %v3112
    %v3144 = vmax.f32 %v2968, %v3114
    %v3145 = vmax.f32 %v2970, %v3116
    %v3146 = vmax.f32 %v2974, %v3120
    %v3147 = vmax.f32 %v2976, %v3122
    %v3148 = vmax.f32 %v2978, %v3124
    %v3149 = vmax.f32 %v2980, %v3126
    %v3150 = vmax.f32 %v2984, %v3130
    %v3151 = vmax.f32 %v2986, %v3132
    %v3152 = vmax.f32 %v2988, %v3134
    %v3153 = vmax.f32 %v2990, %v3136
    %v3154 = vpack.c.bf16 %v3140, %v3138
    %v3155 = vpack.c.bf16 %v3141, %v3139
    %v3156 = vpack.c.bf16 %v3144, %v3142
    %v3157 = vpack.c.bf16 %v3145, %v3143
    %v3158 = vpack.c.bf16 %v3148, %v3146
    %v3159 = vpack.c.bf16 %v3149, %v3147
    %v3160 = vpack.c.bf16 %v3152, %v3150
    %v3161 = vpack.c.bf16 %v3153, %v3151
    %v3162 = vld [vmem:[#allocation7] sm:$0xf]
    %v3163 = vld [vmem:[#allocation7 + $0x4] sm:$0xf]
    %v3164 = vld [vmem:[#allocation7 + $0x8] sm:$0xf]
    %v3165 = vld [vmem:[#allocation7 + $0xc] sm:$0xf]
    %v3166 = vld [vmem:[#allocation7 + $0x10] sm:$0xf]
    %v3167 = vld [vmem:[#allocation7 + $0x14] sm:$0xf]
    %v3168 = vld [vmem:[#allocation7 + $0x18] sm:$0xf]
    %v3176 = vunpack.c.l.b16 %v3162
    %v3177 = vunpack.c.l.b16 %v3163
    %v3178 = vunpack.c.l.b16 %v3164
    %v3179 = vunpack.c.l.b16 %v3165
    %v3180 = vunpack.c.l.b16 %v3166
    %v3181 = vunpack.c.l.b16 %v3167
    %v3182 = vunpack.c.l.b16 %v3168
    %v3183 = vpack.c.b16 %v3177, %v3176
    %v3184 = vpack.c.b16 %v3179, %v3178
    %v3185 = vpack.c.b16 %v3181, %v3180
    %v3186 = vpack.c.b16 %v3182, %v3182
    %vm3187 = vcmask 490496
    %v3189 = vsel %vm3187, %v3183, 0
    %v3192 = vsel %vm3187, %v3184, 0
    %v3195 = vsel %vm3187, %v3185, 0
    %v3198 = vsel %vm3187, %v3186, 0
    %vm3200 = vcmask 1045504
    %v3202 = vsel %vm3200, %v3160, 0
    %v3205 = vsel %vm3200, %v3161, 0
    %3207 = vmatprep.subr.bf16.mxu0 %v3155
    %3208 = vmatpush1.bf16.msra.mxu0 %v3154
    %3209 = vmatprep.subr.bf16.mxu0 %v3157
    %3210 = vmatpush1.bf16.msra.mxu0 %v3156
    %3211 = vmatprep.subr.bf16.mxu0 %v3159
    %3212 = vmatpush1.bf16.msra.mxu0 %v3158
    %3213 = vmatprep.subr.bf16.mxu0 %v3205
    %3214 = vmatpush1.bf16.msra.mxu0 %v3202
    %3215 = vmatprep.subr.bf16.mxu0 0
    %3216 = vmatpush1.bf16.msra.mxu0 0
    %3217 = vmatprep.subr.bf16.mxu0 0
    %3218 = vmatpush1.bf16.msra.mxu0 0
    %3219 = vmatprep.subr.bf16.mxu0 0
    %3220 = vmatpush1.bf16.msra.mxu0 0
    %3221 = vmatprep.subr.bf16.mxu0 0
    %3222 = vmatpush1.bf16.msra.mxu0 0
    %3223 = vmatprep.subr.bf16.mxu0 0
    %3224 = vmatpush1.bf16.msra.mxu0 0
    %3225 = vmatprep.subr.bf16.mxu0 0
    %3226 = vmatpush1.bf16.msra.mxu0 0
    %3227 = vmatprep.subr.bf16.mxu0 0
    %3228 = vmatpush1.bf16.msra.mxu0 0
    %3229 = vmatprep.subr.bf16.mxu0 0
    %3230 = vmatpush1.bf16.msra.mxu0 0
    %3231 = vmatprep.subr.bf16.mxu0 0
    %3232 = vmatpush1.bf16.msra.mxu0 0
    %3233 = vmatprep.subr.bf16.mxu0 0
    %3234 = vmatpush1.bf16.msra.mxu0 0
    %3235 = vmatprep.subr.bf16.mxu0 0
    %3236 = vmatpush1.bf16.msra.mxu0 0
    %3237 = vmatprep.subr.bf16.mxu0 0
    %3238 = vmatpush1.bf16.msra.mxu0 0
    %3239 = vmatprep.mubr.bf16.mxu0 0
    %3240 = vmatmul.mubr.bf16.gmra.mrb[0].mxu0 %v3189
    %v3241 = vpop.f32.mrb[0].mxu0
    %v3242 = vadd.f32 0.0, %v3241
    %v3243 = vpop.f32.mrb[0].mxu0
    %v3244 = vadd.f32 0.0, %v3243
    %v3245 = vpop.f32.mrb[0].mxu0
    %v3246 = vadd.f32 0.0, %v3245
    %v3247 = vpop.f32.mrb[0].mxu0
    %v3248 = vadd.f32 0.0, %v3247
    %3249 = vmatprep.mubr.bf16.mxu0 0
    %3250 = vmatmul.mubr.bf16.gmra.mrb[0].mxu0 %v3192
    %v3251 = vpop.f32.mrb[0].mxu0
    %v3252 = vadd.f32 0.0, %v3251
    %v3253 = vpop.f32.mrb[0].mxu0
    %v3254 = vadd.f32 0.0, %v3253
    %v3255 = vpop.f32.mrb[0].mxu0
    %v3256 = vadd.f32 0.0, %v3255
    %v3257 = vpop.f32.mrb[0].mxu0
    %v3258 = vadd.f32 0.0, %v3257
    %3259 = vmatprep.mubr.bf16.mxu0 0
    %3260 = vmatmul.mubr.bf16.gmra.mrb[0].mxu0 %v3195
    %v3261 = vpop.f32.mrb[0].mxu0
    %v3262 = vadd.f32 0.0, %v3261
    %v3263 = vpop.f32.mrb[0].mxu0
    %v3264 = vadd.f32 0.0, %v3263
    %v3265 = vpop.f32.mrb[0].mxu0
    %v3266 = vadd.f32 0.0, %v3265
    %v3267 = vpop.f32.mrb[0].mxu0
    %v3268 = vadd.f32 0.0, %v3267
    %3269 = vmatprep.mubr.bf16.mxu0 0
    %3270 = vmatmul.mubr.bf16.gmra.mrb[0].mxu0 %v3198
    %v3271 = vpop.f32.mrb[0].mxu0
    %v3272 = vadd.f32 0.0, %v3271
    %v3273 = vpop.f32.mrb[0].mxu0
    %v3274 = vadd.f32 0.0, %v3273
    %v3275 = vpop.f32.mrb[0].mxu0
    %v3276 = vpop.f32.mrb[0].mxu0
    %3277 = vdwg.mxu0
    %vm3286 = vcmask 1043456
    %v3287 = vrot.slane %v3256, 4
    %v3288 = vrot.slane %v3262, 4
    %v3289 = vsel %vm3286, %v3287, %v3288
    %v3290 = vrot.slane %v3258, 4
    %v3291 = vrot.slane %v3264, 4
    %v3292 = vsel %vm3286, %v3290, %v3291
    %v3293 = vrot.slane %v3266, 4
    %v3294 = vsel %vm3286, %v3288, %v3293
    %v3295 = vrot.slane %v3268, 4
    %v3296 = vsel %vm3286, %v3291, %v3295
    %v3297 = vrot.slane %v3272, 4
    %v3298 = vsel %vm3286, %v3293, %v3297
    %v3299 = vrot.slane %v3274, 4
    %v3300 = vsel %vm3286, %v3295, %v3299
    %v3309 = vmax.f32 %v3242, %v3289
    %v3310 = vmax.f32 %v3244, %v3292
    %v3311 = vmax.f32 %v3246, %v3294
    %v3312 = vmax.f32 %v3248, %v3296
    %v3313 = vmax.f32 %v3252, %v3298
    %v3314 = vmax.f32 %v3254, %v3300
    %v3315 = vmax.f32 %v3256, %v3297
    %v3316 = vmax.f32 %v3258, %v3299
    %v3317 = vpack.c.bf16 %v3311, %v3309
    %v3318 = vpack.c.bf16 %v3312, %v3310
    %v3319 = vpack.c.bf16 %v3315, %v3313
    %v3320 = vpack.c.bf16 %v3316, %v3314
    %v3325 = vunpack.c.l.b16 %v3317
    %v3326 = vunpack.c.l.b16 %v3318
    %v3327 = vunpack.c.h.b16 %v3317
    %v3328 = vunpack.c.h.b16 %v3318
    %v3329 = vunpack.c.l.b16 %v3319
    %v3330 = vunpack.c.l.b16 %v3320
    %v3331 = vunpack.c.h.b16 %v3319
    %v3332 = vunpack.c.h.b16 %v3320
    %v3333 = vpack.c.b16 %v3326, %v3325
    %v3334 = vpack.c.b16 %v3328, %v3327
    %v3335 = vpack.c.b16 %v3330, %v3329
    %v3336 = vpack.c.b16 %v3332, %v3331
    %3341 = vst [vmem:[%s5] sm:$0xff] %v3333
    %3342 = vst [vmem:[%s5 + $0x8] sm:$0xff] %v3334
    %3343 = vst [vmem:[%s5 + $0x10] sm:$0xff] %v3335
    %3344 = vst [vmem:[%s5 + $0x18] sm:$0x33] %v3336
    // Predicated region
    $region38: #{pfmcnn2_forward.3} parent=1 // pred_check
      _
    $region39: #{pfmcnn2_forward.3} parent=1 // pred_check_branch
      %3346 = sbr.rel (0) target = $region41
    $region40: #{pfmcnn2_forward.3} parent=1 // pred_region
      _
    $region41: #{pfmcnn2_forward.3} parent=1 // pred_fallthru
      _
    // Predicated region
    $region42: #{pfmcnn2_forward.3} parent=1 // pred_check
      _
    $region43: #{pfmcnn2_forward.3} parent=1 // pred_check_branch
      %3348 = sbr.rel (0) target = $region45
    $region44: #{pfmcnn2_forward.3} parent=1 // pred_region
      _
    $region45: #{pfmcnn2_forward.3} parent=1 // pred_fallthru
      _
    %3349 = vsyncpa [#allocation3], 1
    %3350 = vsyncpa [#allocation5], 1
    %3351 = vsyncpa [#allocation8], 1

// kernel: pfmcnn2_forward.5
$region0: #{pfmcnn2_forward.5}
  #allocation0 [shape = 'u32[]', space=smem, size = 0x4, offset = 0x4, fixed_abs, tag = 'smem constant byte address 0x4 - core index']
  #allocation1 [shape = 'u32[144,128]{1,0:T(1,128)}', space=vmem, size = 0x12000, scoped, tag = 'internal scratch']
  %s0 = inlined_call_operand.vmem [shape: bf16[2,640], index: 0, kind: input, shape index: {}]
  %s1 = inlined_call_operand.vmem [shape: bf16[640,2000], index: 1, kind: input, shape index: {}]
  %s2 = inlined_call_operand.vmem [shape: f32[1,2000], index: 2, kind: input, shape index: {}]
  %s3 = inlined_call_operand.vmem [shape: bf16[2000,500], index: 3, kind: input, shape index: {}]
  %s4 = inlined_call_operand.vmem [shape: f32[1,500], index: 4, kind: input, shape index: {}]
  %s5 = inlined_call_operand.vmem [shape: bf16[500,128], index: 5, kind: input, shape index: {}]
  %s6 = inlined_call_operand.vmem [shape: f32[1,128], index: 6, kind: input, shape index: {}]
  %s7 = inlined_call_operand.hbm [shape: f32[2,128], index: 7, kind: output, shape index: {}]
  %s8 = sld [smem:[#allocation0]]
  $region38: #{pfmcnn2_forward.5} parent=0
    _
  %s10 = ssub.s32 1, %s8
  %s11 = scalar_select 0, %s10, %s8
  $region1: #{pfmcnn2_forward.5} parent=0
    #allocation2 [shape = 'u8[1024]{0}', space=vmem, size = 0x400, scoped, tag = 'output window, operand 0, single buffered']
    #allocation3 [shape = 's32[1]{0}', space=sflag, size = 0x4, scoped, tag = 'scoped memory for pfmcnn2_forward.5']
    %12 = vsyncpa [#allocation3], 0
    // Predicated region
    $region2: #{pfmcnn2_forward.5} parent=1 // pred_check
      _
    $region3: #{pfmcnn2_forward.5} parent=1 // pred_check_branch
      %14 = sbr.rel (0) target = $region5
    $region4: #{pfmcnn2_forward.5} parent=1 // pred_region
      _
    $region5: #{pfmcnn2_forward.5} parent=1 // pred_fallthru
      _
    // Predicated region
    $region6: #{pfmcnn2_forward.5} parent=1 // pred_check
      _
    $region7: #{pfmcnn2_forward.5} parent=1 // pred_check_branch
      %16 = sbr.rel (0) target = $region9
    $region8: #{pfmcnn2_forward.5} parent=1 // pred_region
      _
    $region9: #{pfmcnn2_forward.5} parent=1 // pred_fallthru
      _
    // Predicated region
    $region10: #{pfmcnn2_forward.5} parent=1 // pred_check
      _
    $region11: #{pfmcnn2_forward.5} parent=1 // pred_check_branch
      %18 = sbr.rel (0) target = $region13
    $region12: #{pfmcnn2_forward.5} parent=1 // pred_region
      _
    $region13: #{pfmcnn2_forward.5} parent=1 // pred_fallthru
      _
    // Predicated region
    $region14: #{pfmcnn2_forward.5} parent=1 // pred_check
      _
    $region15: #{pfmcnn2_forward.5} parent=1 // pred_check_branch
      %20 = sbr.rel (0) target = $region17
    $region16: #{pfmcnn2_forward.5} parent=1 // pred_region
      _
    $region17: #{pfmcnn2_forward.5} parent=1 // pred_fallthru
      _
    // Predicated region
    $region18: #{pfmcnn2_forward.5} parent=1 // pred_check
      _
    $region19: #{pfmcnn2_forward.5} parent=1 // pred_check_branch
      %22 = sbr.rel (0) target = $region21
    $region20: #{pfmcnn2_forward.5} parent=1 // pred_region
      _
    $region21: #{pfmcnn2_forward.5} parent=1 // pred_fallthru
      _
    // Predicated region
    $region22: #{pfmcnn2_forward.5} parent=1 // pred_check
      _
    $region23: #{pfmcnn2_forward.5} parent=1 // pred_check_branch
      %24 = sbr.rel (0) target = $region25
    $region24: #{pfmcnn2_forward.5} parent=1 // pred_region
      _
    $region25: #{pfmcnn2_forward.5} parent=1 // pred_fallthru
      _
    // Predicated region
    $region26: #{pfmcnn2_forward.5} parent=1 // pred_check
      _
    $region27: #{pfmcnn2_forward.5} parent=1 // pred_check_branch
      %26 = sbr.rel (0) target = $region29
    $region28: #{pfmcnn2_forward.5} parent=1 // pred_region
      _
    $region29: #{pfmcnn2_forward.5} parent=1 // pred_fallthru
      _
    %v28 = vld [vmem:[%s0] sm:$0x1f]
    %v29 = vld [vmem:[%s1] sm:$0xff]
    %v30 = vld [vmem:[%s1 + $0x8] sm:$0xff]
    %v31 = vld [vmem:[%s1 + $0x10] sm:$0xff]
    %v32 = vld [vmem:[%s1 + $0x18] sm:$0xff]
    %v33 = vld [vmem:[%s1 + $0x20] sm:$0xff]
    %v34 = vld [vmem:[%s1 + $0x28] sm:$0xff]
    %v35 = vld [vmem:[%s1 + $0x30] sm:$0xff]
    %v36 = vld [vmem:[%s1 + $0x38] sm:$0xff]
    %v37 = vld [vmem:[%s1 + $0x40] sm:$0xff]
    %v38 = vld [vmem:[%s1 + $0x48] sm:$0xff]
    %v39 = vld [vmem:[%s1 + $0x50] sm:$0xff]
    %v40 = vld [vmem:[%s1 + $0x58] sm:$0xff]
    %v41 = vld [vmem:[%s1 + $0x60] sm:$0xff]
    %v42 = vld [vmem:[%s1 + $0x68] sm:$0xff]
    %v43 = vld [vmem:[%s1 + $0x70] sm:$0xff]
    %v44 = vld [vmem:[%s1 + $0x78] sm:$0xff]
    %v45 = vld [vmem:[%s1 + $0x80] sm:$0xff]
    %v46 = vld [vmem:[%s1 + $0x88] sm:$0xff]
    %v47 = vld [vmem:[%s1 + $0x90] sm:$0xff]
    %v48 = vld [vmem:[%s1 + $0x98] sm:$0xff]
    %v49 = vld [vmem:[%s1 + $0xa0] sm:$0xff]
    %v50 = vld [vmem:[%s1 + $0xa8] sm:$0xff]
    %v51 = vld [vmem:[%s1 + $0xb0] sm:$0xff]
    %v52 = vld [vmem:[%s1 + $0xb8] sm:$0xff]
    %v53 = vld [vmem:[%s1 + $0xc0] sm:$0xff]
    %v54 = vld [vmem:[%s1 + $0xc8] sm:$0xff]
    %v55 = vld [vmem:[%s1 + $0xd0] sm:$0xff]
    %v56 = vld [vmem:[%s1 + $0xd8] sm:$0xff]
    %v57 = vld [vmem:[%s1 + $0xe0] sm:$0xff]
    %v58 = vld [vmem:[%s1 + $0xe8] sm:$0xff]
    %v59 = vld [vmem:[%s1 + $0xf0] sm:$0xff]
    %v60 = vld [vmem:[%s1 + $0xf8] sm:$0xff]
    %v61 = vld [vmem:[%s1 + $0x100] sm:$0xff]
    %v62 = vld [vmem:[%s1 + $0x108] sm:$0xff]
    %v63 = vld [vmem:[%s1 + $0x110] sm:$0xff]
    %v64 = vld [vmem:[%s1 + $0x118] sm:$0xff]
    %v65 = vld [vmem:[%s1 + $0x120] sm:$0xff]
    %v66 = vld [vmem:[%s1 + $0x128] sm:$0xff]
    %v67 = vld [vmem:[%s1 + $0x130] sm:$0xff]
    %v68 = vld [vmem:[%s1 + $0x138] sm:$0xff]
    %v69 = vld [vmem:[%s1 + $0x140] sm:$0xff]
    %v70 = vld [vmem:[%s1 + $0x148] sm:$0xff]
    %v71 = vld [vmem:[%s1 + $0x150] sm:$0xff]
    %v72 = vld [vmem:[%s1 + $0x158] sm:$0xff]
    %v73 = vld [vmem:[%s1 + $0x160] sm:$0xff]
    %v74 = vld [vmem:[%s1 + $0x168] sm:$0xff]
    %v75 = vld [vmem:[%s1 + $0x170] sm:$0xff]
    %v76 = vld [vmem:[%s1 + $0x178] sm:$0xff]
    %v77 = vld [vmem:[%s1 + $0x180] sm:$0xff]
    %v78 = vld [vmem:[%s1 + $0x188] sm:$0xff]
    %v79 = vld [vmem:[%s1 + $0x190] sm:$0xff]
    %v80 = vld [vmem:[%s1 + $0x198] sm:$0xff]
    %v81 = vld [vmem:[%s1 + $0x1a0] sm:$0xff]
    %v82 = vld [vmem:[%s1 + $0x1a8] sm:$0xff]
    %v83 = vld [vmem:[%s1 + $0x1b0] sm:$0xff]
    %v84 = vld [vmem:[%s1 + $0x1b8] sm:$0xff]
    %v85 = vld [vmem:[%s1 + $0x1c0] sm:$0xff]
    %v86 = vld [vmem:[%s1 + $0x1c8] sm:$0xff]
    %v87 = vld [vmem:[%s1 + $0x1d0] sm:$0xff]
    %v88 = vld [vmem:[%s1 + $0x1d8] sm:$0xff]
    %v89 = vld [vmem:[%s1 + $0x1e0] sm:$0xff]
    %v90 = vld [vmem:[%s1 + $0x1e8] sm:$0xff]
    %v91 = vld [vmem:[%s1 + $0x1f0] sm:$0xff]
    %v92 = vld [vmem:[%s1 + $0x1f8] sm:$0xff]
    %v93 = vld [vmem:[%s1 + $0x200] sm:$0xff]
    %v94 = vld [vmem:[%s1 + $0x208] sm:$0xff]
    %v95 = vld [vmem:[%s1 + $0x210] sm:$0xff]
    %v96 = vld [vmem:[%s1 + $0x218] sm:$0xff]
    %v97 = vld [vmem:[%s1 + $0x220] sm:$0xff]
    %v98 = vld [vmem:[%s1 + $0x228] sm:$0xff]
    %v99 = vld [vmem:[%s1 + $0x230] sm:$0xff]
    %v100 = vld [vmem:[%s1 + $0x238] sm:$0xff]
    %v101 = vld [vmem:[%s1 + $0x240] sm:$0xff]
    %v102 = vld [vmem:[%s1 + $0x248] sm:$0xff]
    %v103 = vld [vmem:[%s1 + $0x250] sm:$0xff]
    %v104 = vld [vmem:[%s1 + $0x258] sm:$0xff]
    %v105 = vld [vmem:[%s1 + $0x260] sm:$0xff]
    %v106 = vld [vmem:[%s1 + $0x268] sm:$0xff]
    %v107 = vld [vmem:[%s1 + $0x270] sm:$0xff]
    %v108 = vld [vmem:[%s1 + $0x278] sm:$0xff]
    %v109 = vld [vmem:[%s1 + $0x280] sm:$0xff]
    %v110 = vld [vmem:[%s1 + $0x288] sm:$0xff]
    %v111 = vld [vmem:[%s1 + $0x290] sm:$0xff]
    %v112 = vld [vmem:[%s1 + $0x298] sm:$0xff]
    %v113 = vld [vmem:[%s1 + $0x2a0] sm:$0xff]
    %v114 = vld [vmem:[%s1 + $0x2a8] sm:$0xff]
    %v115 = vld [vmem:[%s1 + $0x2b0] sm:$0xff]
    %v116 = vld [vmem:[%s1 + $0x2b8] sm:$0xff]
    %v117 = vld [vmem:[%s1 + $0x2c0] sm:$0xff]
    %v118 = vld [vmem:[%s1 + $0x2c8] sm:$0xff]
    %v119 = vld [vmem:[%s1 + $0x2d0] sm:$0xff]
    %v120 = vld [vmem:[%s1 + $0x2d8] sm:$0xff]
    %v121 = vld [vmem:[%s1 + $0x2e0] sm:$0xff]
    %v122 = vld [vmem:[%s1 + $0x2e8] sm:$0xff]
    %v123 = vld [vmem:[%s1 + $0x2f0] sm:$0xff]
    %v124 = vld [vmem:[%s1 + $0x2f8] sm:$0xff]
    %v125 = vld [vmem:[%s1 + $0x300] sm:$0xff]
    %v126 = vld [vmem:[%s1 + $0x308] sm:$0xff]
    %v127 = vld [vmem:[%s1 + $0x310] sm:$0xff]
    %v128 = vld [vmem:[%s1 + $0x318] sm:$0xff]
    %v129 = vld [vmem:[%s1 + $0x320] sm:$0xff]
    %v130 = vld [vmem:[%s1 + $0x328] sm:$0xff]
    %v131 = vld [vmem:[%s1 + $0x330] sm:$0xff]
    %v132 = vld [vmem:[%s1 + $0x338] sm:$0xff]
    %v133 = vld [vmem:[%s1 + $0x340] sm:$0xff]
    %v134 = vld [vmem:[%s1 + $0x348] sm:$0xff]
    %v135 = vld [vmem:[%s1 + $0x350] sm:$0xff]
    %v136 = vld [vmem:[%s1 + $0x358] sm:$0xff]
    %v137 = vld [vmem:[%s1 + $0x360] sm:$0xff]
    %v138 = vld [vmem:[%s1 + $0x368] sm:$0xff]
    %v139 = vld [vmem:[%s1 + $0x370] sm:$0xff]
    %v140 = vld [vmem:[%s1 + $0x378] sm:$0xff]
    %v141 = vld [vmem:[%s1 + $0x380] sm:$0xff]
    %v142 = vld [vmem:[%s1 + $0x388] sm:$0xff]
    %v143 = vld [vmem:[%s1 + $0x390] sm:$0xff]
    %v144 = vld [vmem:[%s1 + $0x398] sm:$0xff]
    %v145 = vld [vmem:[%s1 + $0x3a0] sm:$0xff]
    %v146 = vld [vmem:[%s1 + $0x3a8] sm:$0xff]
    %v147 = vld [vmem:[%s1 + $0x3b0] sm:$0xff]
    %v148 = vld [vmem:[%s1 + $0x3b8] sm:$0xff]
    %v149 = vld [vmem:[%s1 + $0x3c0] sm:$0xff]
    %v150 = vld [vmem:[%s1 + $0x3c8] sm:$0xff]
    %v151 = vld [vmem:[%s1 + $0x3d0] sm:$0xff]
    %v152 = vld [vmem:[%s1 + $0x3d8] sm:$0xff]
    %v153 = vld [vmem:[%s1 + $0x3e0] sm:$0xff]
    %v154 = vld [vmem:[%s1 + $0x3e8] sm:$0xff]
    %v155 = vld [vmem:[%s1 + $0x3f0] sm:$0xff]
    %v156 = vld [vmem:[%s1 + $0x3f8] sm:$0xff]
    %v157 = vld [vmem:[%s1 + $0x400] sm:$0xff]
    %v158 = vld [vmem:[%s1 + $0x408] sm:$0xff]
    %v159 = vld [vmem:[%s1 + $0x410] sm:$0xff]
    %v160 = vld [vmem:[%s1 + $0x418] sm:$0xff]
    %v161 = vld [vmem:[%s1 + $0x420] sm:$0xff]
    %v162 = vld [vmem:[%s1 + $0x428] sm:$0xff]
    %v163 = vld [vmem:[%s1 + $0x430] sm:$0xff]
    %v164 = vld [vmem:[%s1 + $0x438] sm:$0xff]
    %v165 = vld [vmem:[%s1 + $0x440] sm:$0xff]
    %v166 = vld [vmem:[%s1 + $0x448] sm:$0xff]
    %v167 = vld [vmem:[%s1 + $0x450] sm:$0xff]
    %v168 = vld [vmem:[%s1 + $0x458] sm:$0xff]
    %v169 = vld [vmem:[%s1 + $0x460] sm:$0xff]
    %v170 = vld [vmem:[%s1 + $0x468] sm:$0xff]
    %v171 = vld [vmem:[%s1 + $0x470] sm:$0xff]
    %v172 = vld [vmem:[%s1 + $0x478] sm:$0xff]
    %v173 = vld [vmem:[%s1 + $0x480] sm:$0xff]
    %v174 = vld [vmem:[%s1 + $0x488] sm:$0xff]
    %v175 = vld [vmem:[%s1 + $0x490] sm:$0xff]
    %v176 = vld [vmem:[%s1 + $0x498] sm:$0xff]
    %v177 = vld [vmem:[%s1 + $0x4a0] sm:$0xff]
    %v178 = vld [vmem:[%s1 + $0x4a8] sm:$0xff]
    %v179 = vld [vmem:[%s1 + $0x4b0] sm:$0xff]
    %v180 = vld [vmem:[%s1 + $0x4b8] sm:$0xff]
    %v181 = vld [vmem:[%s1 + $0x4c0] sm:$0xff]
    %v182 = vld [vmem:[%s1 + $0x4c8] sm:$0xff]
    %v183 = vld [vmem:[%s1 + $0x4d0] sm:$0xff]
    %v184 = vld [vmem:[%s1 + $0x4d8] sm:$0xff]
    %v185 = vld [vmem:[%s1 + $0x4e0] sm:$0xff]
    %v186 = vld [vmem:[%s1 + $0x4e8] sm:$0xff]
    %v187 = vld [vmem:[%s1 + $0x4f0] sm:$0xff]
    %v188 = vld [vmem:[%s1 + $0x4f8] sm:$0xff]
    %v189 = vld [vmem:[%s1 + $0x500] sm:$0xff]
    %v190 = vld [vmem:[%s1 + $0x508] sm:$0xff]
    %v191 = vld [vmem:[%s1 + $0x510] sm:$0xff]
    %v192 = vld [vmem:[%s1 + $0x518] sm:$0xff]
    %v193 = vld [vmem:[%s1 + $0x520] sm:$0xff]
    %v194 = vld [vmem:[%s1 + $0x528] sm:$0xff]
    %v195 = vld [vmem:[%s1 + $0x530] sm:$0xff]
    %v196 = vld [vmem:[%s1 + $0x538] sm:$0xff]
    %v197 = vld [vmem:[%s1 + $0x540] sm:$0xff]
    %v198 = vld [vmem:[%s1 + $0x548] sm:$0xff]
    %v199 = vld [vmem:[%s1 + $0x550] sm:$0xff]
    %v200 = vld [vmem:[%s1 + $0x558] sm:$0xff]
    %v201 = vld [vmem:[%s1 + $0x560] sm:$0xff]
    %v202 = vld [vmem:[%s1 + $0x568] sm:$0xff]
    %v203 = vld [vmem:[%s1 + $0x570] sm:$0xff]
    %v204 = vld [vmem:[%s1 + $0x578] sm:$0xff]
    %v205 = vld [vmem:[%s1 + $0x580] sm:$0xff]
    %v206 = vld [vmem:[%s1 + $0x588] sm:$0xff]
    %v207 = vld [vmem:[%s1 + $0x590] sm:$0xff]
    %v208 = vld [vmem:[%s1 + $0x598] sm:$0xff]
    %v209 = vld [vmem:[%s1 + $0x5a0] sm:$0xff]
    %v210 = vld [vmem:[%s1 + $0x5a8] sm:$0xff]
    %v211 = vld [vmem:[%s1 + $0x5b0] sm:$0xff]
    %v212 = vld [vmem:[%s1 + $0x5b8] sm:$0xff]
    %v213 = vld [vmem:[%s1 + $0x5c0] sm:$0xff]
    %v214 = vld [vmem:[%s1 + $0x5c8] sm:$0xff]
    %v215 = vld [vmem:[%s1 + $0x5d0] sm:$0xff]
    %v216 = vld [vmem:[%s1 + $0x5d8] sm:$0xff]
    %v217 = vld [vmem:[%s1 + $0x5e0] sm:$0xff]
    %v218 = vld [vmem:[%s1 + $0x5e8] sm:$0xff]
    %v219 = vld [vmem:[%s1 + $0x5f0] sm:$0xff]
    %v220 = vld [vmem:[%s1 + $0x5f8] sm:$0xff]
    %v221 = vld [vmem:[%s1 + $0x600] sm:$0xff]
    %v222 = vld [vmem:[%s1 + $0x608] sm:$0xff]
    %v223 = vld [vmem:[%s1 + $0x610] sm:$0xff]
    %v224 = vld [vmem:[%s1 + $0x618] sm:$0xff]
    %v225 = vld [vmem:[%s1 + $0x620] sm:$0xff]
    %v226 = vld [vmem:[%s1 + $0x628] sm:$0xff]
    %v227 = vld [vmem:[%s1 + $0x630] sm:$0xff]
    %v228 = vld [vmem:[%s1 + $0x638] sm:$0xff]
    %v229 = vld [vmem:[%s1 + $0x640] sm:$0xff]
    %v230 = vld [vmem:[%s1 + $0x648] sm:$0xff]
    %v231 = vld [vmem:[%s1 + $0x650] sm:$0xff]
    %v232 = vld [vmem:[%s1 + $0x658] sm:$0xff]
    %v233 = vld [vmem:[%s1 + $0x660] sm:$0xff]
    %v234 = vld [vmem:[%s1 + $0x668] sm:$0xff]
    %v235 = vld [vmem:[%s1 + $0x670] sm:$0xff]
    %v236 = vld [vmem:[%s1 + $0x678] sm:$0xff]
    %v237 = vld [vmem:[%s1 + $0x680] sm:$0xff]
    %v238 = vld [vmem:[%s1 + $0x688] sm:$0xff]
    %v239 = vld [vmem:[%s1 + $0x690] sm:$0xff]
    %v240 = vld [vmem:[%s1 + $0x698] sm:$0xff]
    %v241 = vld [vmem:[%s1 + $0x6a0] sm:$0xff]
    %v242 = vld [vmem:[%s1 + $0x6a8] sm:$0xff]
    %v243 = vld [vmem:[%s1 + $0x6b0] sm:$0xff]
    %v244 = vld [vmem:[%s1 + $0x6b8] sm:$0xff]
    %v245 = vld [vmem:[%s1 + $0x6c0] sm:$0xff]
    %v246 = vld [vmem:[%s1 + $0x6c8] sm:$0xff]
    %v247 = vld [vmem:[%s1 + $0x6d0] sm:$0xff]
    %v248 = vld [vmem:[%s1 + $0x6d8] sm:$0xff]
    %v249 = vld [vmem:[%s1 + $0x6e0] sm:$0xff]
    %v250 = vld [vmem:[%s1 + $0x6e8] sm:$0xff]
    %v251 = vld [vmem:[%s1 + $0x6f0] sm:$0xff]
    %v252 = vld [vmem:[%s1 + $0x6f8] sm:$0xff]
    %v253 = vld [vmem:[%s1 + $0x700] sm:$0xff]
    %v254 = vld [vmem:[%s1 + $0x708] sm:$0xff]
    %v255 = vld [vmem:[%s1 + $0x710] sm:$0xff]
    %v256 = vld [vmem:[%s1 + $0x718] sm:$0xff]
    %v257 = vld [vmem:[%s1 + $0x720] sm:$0xff]
    %v258 = vld [vmem:[%s1 + $0x728] sm:$0xff]
    %v259 = vld [vmem:[%s1 + $0x730] sm:$0xff]
    %v260 = vld [vmem:[%s1 + $0x738] sm:$0xff]
    %v261 = vld [vmem:[%s1 + $0x740] sm:$0xff]
    %v262 = vld [vmem:[%s1 + $0x748] sm:$0xff]
    %v263 = vld [vmem:[%s1 + $0x750] sm:$0xff]
    %v264 = vld [vmem:[%s1 + $0x758] sm:$0xff]
    %v265 = vld [vmem:[%s1 + $0x760] sm:$0xff]
    %v266 = vld [vmem:[%s1 + $0x768] sm:$0xff]
    %v267 = vld [vmem:[%s1 + $0x770] sm:$0xff]
    %v268 = vld [vmem:[%s1 + $0x778] sm:$0xff]
    %v269 = vld [vmem:[%s1 + $0x780] sm:$0xff]
    %v270 = vld [vmem:[%s1 + $0x788] sm:$0xff]
    %v271 = vld [vmem:[%s1 + $0x790] sm:$0xff]
    %v272 = vld [vmem:[%s1 + $0x798] sm:$0xff]
    %v273 = vld [vmem:[%s1 + $0x7a0] sm:$0xff]
    %v274 = vld [vmem:[%s1 + $0x7a8] sm:$0xff]
    %v275 = vld [vmem:[%s1 + $0x7b0] sm:$0xff]
    %v276 = vld [vmem:[%s1 + $0x7b8] sm:$0xff]
    %v277 = vld [vmem:[%s1 + $0x7c0] sm:$0xff]
    %v278 = vld [vmem:[%s1 + $0x7c8] sm:$0xff]
    %v279 = vld [vmem:[%s1 + $0x7d0] sm:$0xff]
    %v280 = vld [vmem:[%s1 + $0x7d8] sm:$0xff]
    %v281 = vld [vmem:[%s1 + $0x7e0] sm:$0xff]
    %v282 = vld [vmem:[%s1 + $0x7e8] sm:$0xff]
    %v283 = vld [vmem:[%s1 + $0x7f0] sm:$0xff]
    %v284 = vld [vmem:[%s1 + $0x7f8] sm:$0xff]
    %v285 = vld [vmem:[%s1 + $0x800] sm:$0xff]
    %v286 = vld [vmem:[%s1 + $0x808] sm:$0xff]
    %v287 = vld [vmem:[%s1 + $0x810] sm:$0xff]
    %v288 = vld [vmem:[%s1 + $0x818] sm:$0xff]
    %v289 = vld [vmem:[%s1 + $0x820] sm:$0xff]
    %v290 = vld [vmem:[%s1 + $0x828] sm:$0xff]
    %v291 = vld [vmem:[%s1 + $0x830] sm:$0xff]
    %v292 = vld [vmem:[%s1 + $0x838] sm:$0xff]
    %v293 = vld [vmem:[%s1 + $0x840] sm:$0xff]
    %v294 = vld [vmem:[%s1 + $0x848] sm:$0xff]
    %v295 = vld [vmem:[%s1 + $0x850] sm:$0xff]
    %v296 = vld [vmem:[%s1 + $0x858] sm:$0xff]
    %v297 = vld [vmem:[%s1 + $0x860] sm:$0xff]
    %v298 = vld [vmem:[%s1 + $0x868] sm:$0xff]
    %v299 = vld [vmem:[%s1 + $0x870] sm:$0xff]
    %v300 = vld [vmem:[%s1 + $0x878] sm:$0xff]
    %v301 = vld [vmem:[%s1 + $0x880] sm:$0xff]
    %v302 = vld [vmem:[%s1 + $0x888] sm:$0xff]
    %v303 = vld [vmem:[%s1 + $0x890] sm:$0xff]
    %v304 = vld [vmem:[%s1 + $0x898] sm:$0xff]
    %v305 = vld [vmem:[%s1 + $0x8a0] sm:$0xff]
    %v306 = vld [vmem:[%s1 + $0x8a8] sm:$0xff]
    %v307 = vld [vmem:[%s1 + $0x8b0] sm:$0xff]
    %v308 = vld [vmem:[%s1 + $0x8b8] sm:$0xff]
    %v309 = vld [vmem:[%s1 + $0x8c0] sm:$0xff]
    %v310 = vld [vmem:[%s1 + $0x8c8] sm:$0xff]
    %v311 = vld [vmem:[%s1 + $0x8d0] sm:$0xff]
    %v312 = vld [vmem:[%s1 + $0x8d8] sm:$0xff]
    %v313 = vld [vmem:[%s1 + $0x8e0] sm:$0xff]
    %v314 = vld [vmem:[%s1 + $0x8e8] sm:$0xff]
    %v315 = vld [vmem:[%s1 + $0x8f0] sm:$0xff]
    %v316 = vld [vmem:[%s1 + $0x8f8] sm:$0xff]
    %v317 = vld [vmem:[%s1 + $0x900] sm:$0xff]
    %v318 = vld [vmem:[%s1 + $0x908] sm:$0xff]
    %v319 = vld [vmem:[%s1 + $0x910] sm:$0xff]
    %v320 = vld [vmem:[%s1 + $0x918] sm:$0xff]
    %v321 = vld [vmem:[%s1 + $0x920] sm:$0xff]
    %v322 = vld [vmem:[%s1 + $0x928] sm:$0xff]
    %v323 = vld [vmem:[%s1 + $0x930] sm:$0xff]
    %v324 = vld [vmem:[%s1 + $0x938] sm:$0xff]
    %v325 = vld [vmem:[%s1 + $0x940] sm:$0xff]
    %v326 = vld [vmem:[%s1 + $0x948] sm:$0xff]
    %v327 = vld [vmem:[%s1 + $0x950] sm:$0xff]
    %v328 = vld [vmem:[%s1 + $0x958] sm:$0xff]
    %v329 = vld [vmem:[%s1 + $0x960] sm:$0xff]
    %v330 = vld [vmem:[%s1 + $0x968] sm:$0xff]
    %v331 = vld [vmem:[%s1 + $0x970] sm:$0xff]
    %v332 = vld [vmem:[%s1 + $0x978] sm:$0xff]
    %v333 = vld [vmem:[%s1 + $0x980] sm:$0xff]
    %v334 = vld [vmem:[%s1 + $0x988] sm:$0xff]
    %v335 = vld [vmem:[%s1 + $0x990] sm:$0xff]
    %v336 = vld [vmem:[%s1 + $0x998] sm:$0xff]
    %v337 = vld [vmem:[%s1 + $0x9a0] sm:$0xff]
    %v338 = vld [vmem:[%s1 + $0x9a8] sm:$0xff]
    %v339 = vld [vmem:[%s1 + $0x9b0] sm:$0xff]
    %v340 = vld [vmem:[%s1 + $0x9b8] sm:$0xff]
    %v341 = vld [vmem:[%s1 + $0x9c0] sm:$0xff]
    %v342 = vld [vmem:[%s1 + $0x9c8] sm:$0xff]
    %v343 = vld [vmem:[%s1 + $0x9d0] sm:$0xff]
    %v344 = vld [vmem:[%s1 + $0x9d8] sm:$0xff]
    %v345 = vld [vmem:[%s1 + $0x9e0] sm:$0xff]
    %v346 = vld [vmem:[%s1 + $0x9e8] sm:$0xff]
    %v347 = vld [vmem:[%s1 + $0x9f0] sm:$0xff]
    %v348 = vld [vmem:[%s1 + $0x9f8] sm:$0xff]
    %v349 = vld [vmem:[%s1 + $0xa00] sm:$0xff]
    %v350 = vld [vmem:[%s1 + $0xa08] sm:$0xff]
    %v351 = vld [vmem:[%s1 + $0xa10] sm:$0xff]
    %v352 = vld [vmem:[%s1 + $0xa18] sm:$0xff]
    %v353 = vld [vmem:[%s1 + $0xa20] sm:$0xff]
    %v354 = vld [vmem:[%s1 + $0xa28] sm:$0xff]
    %v355 = vld [vmem:[%s1 + $0xa30] sm:$0xff]
    %v356 = vld [vmem:[%s1 + $0xa38] sm:$0xff]
    %v357 = vld [vmem:[%s1 + $0xa40] sm:$0xff]
    %v358 = vld [vmem:[%s1 + $0xa48] sm:$0xff]
    %v359 = vld [vmem:[%s1 + $0xa50] sm:$0xff]
    %v360 = vld [vmem:[%s1 + $0xa58] sm:$0xff]
    %v361 = vld [vmem:[%s1 + $0xa60] sm:$0xff]
    %v362 = vld [vmem:[%s1 + $0xa68] sm:$0xff]
    %v363 = vld [vmem:[%s1 + $0xa70] sm:$0xff]
    %v364 = vld [vmem:[%s1 + $0xa78] sm:$0xff]
    %v365 = vld [vmem:[%s1 + $0xa80] sm:$0xff]
    %v366 = vld [vmem:[%s1 + $0xa88] sm:$0xff]
    %v367 = vld [vmem:[%s1 + $0xa90] sm:$0xff]
    %v368 = vld [vmem:[%s1 + $0xa98] sm:$0xff]
    %v369 = vld [vmem:[%s1 + $0xaa0] sm:$0xff]
    %v370 = vld [vmem:[%s1 + $0xaa8] sm:$0xff]
    %v371 = vld [vmem:[%s1 + $0xab0] sm:$0xff]
    %v372 = vld [vmem:[%s1 + $0xab8] sm:$0xff]
    %v373 = vld [vmem:[%s1 + $0xac0] sm:$0xff]
    %v374 = vld [vmem:[%s1 + $0xac8] sm:$0xff]
    %v375 = vld [vmem:[%s1 + $0xad0] sm:$0xff]
    %v376 = vld [vmem:[%s1 + $0xad8] sm:$0xff]
    %v377 = vld [vmem:[%s1 + $0xae0] sm:$0xff]
    %v378 = vld [vmem:[%s1 + $0xae8] sm:$0xff]
    %v379 = vld [vmem:[%s1 + $0xaf0] sm:$0xff]
    %v380 = vld [vmem:[%s1 + $0xaf8] sm:$0xff]
    %v381 = vld [vmem:[%s1 + $0xb00] sm:$0xff]
    %v382 = vld [vmem:[%s1 + $0xb08] sm:$0xff]
    %v383 = vld [vmem:[%s1 + $0xb10] sm:$0xff]
    %v384 = vld [vmem:[%s1 + $0xb18] sm:$0xff]
    %v385 = vld [vmem:[%s1 + $0xb20] sm:$0xff]
    %v386 = vld [vmem:[%s1 + $0xb28] sm:$0xff]
    %v387 = vld [vmem:[%s1 + $0xb30] sm:$0xff]
    %v388 = vld [vmem:[%s1 + $0xb38] sm:$0xff]
    %v389 = vld [vmem:[%s1 + $0xb40] sm:$0xff]
    %v390 = vld [vmem:[%s1 + $0xb48] sm:$0xff]
    %v391 = vld [vmem:[%s1 + $0xb50] sm:$0xff]
    %v392 = vld [vmem:[%s1 + $0xb58] sm:$0xff]
    %v393 = vld [vmem:[%s1 + $0xb60] sm:$0xff]
    %v394 = vld [vmem:[%s1 + $0xb68] sm:$0xff]
    %v395 = vld [vmem:[%s1 + $0xb70] sm:$0xff]
    %v396 = vld [vmem:[%s1 + $0xb78] sm:$0xff]
    %v397 = vld [vmem:[%s1 + $0xb80] sm:$0xff]
    %v398 = vld [vmem:[%s1 + $0xb88] sm:$0xff]
    %v399 = vld [vmem:[%s1 + $0xb90] sm:$0xff]
    %v400 = vld [vmem:[%s1 + $0xb98] sm:$0xff]
    %v401 = vld [vmem:[%s1 + $0xba0] sm:$0xff]
    %v402 = vld [vmem:[%s1 + $0xba8] sm:$0xff]
    %v403 = vld [vmem:[%s1 + $0xbb0] sm:$0xff]
    %v404 = vld [vmem:[%s1 + $0xbb8] sm:$0xff]
    %v405 = vld [vmem:[%s1 + $0xbc0] sm:$0xff]
    %v406 = vld [vmem:[%s1 + $0xbc8] sm:$0xff]
    %v407 = vld [vmem:[%s1 + $0xbd0] sm:$0xff]
    %v408 = vld [vmem:[%s1 + $0xbd8] sm:$0xff]
    %v409 = vld [vmem:[%s1 + $0xbe0] sm:$0xff]
    %v410 = vld [vmem:[%s1 + $0xbe8] sm:$0xff]
    %v411 = vld [vmem:[%s1 + $0xbf0] sm:$0xff]
    %v412 = vld [vmem:[%s1 + $0xbf8] sm:$0xff]
    %v413 = vld [vmem:[%s1 + $0xc00] sm:$0xff]
    %v414 = vld [vmem:[%s1 + $0xc08] sm:$0xff]
    %v415 = vld [vmem:[%s1 + $0xc10] sm:$0xff]
    %v416 = vld [vmem:[%s1 + $0xc18] sm:$0xff]
    %v417 = vld [vmem:[%s1 + $0xc20] sm:$0xff]
    %v418 = vld [vmem:[%s1 + $0xc28] sm:$0xff]
    %v419 = vld [vmem:[%s1 + $0xc30] sm:$0xff]
    %v420 = vld [vmem:[%s1 + $0xc38] sm:$0xff]
    %v421 = vld [vmem:[%s1 + $0xc40] sm:$0xff]
    %v422 = vld [vmem:[%s1 + $0xc48] sm:$0xff]
    %v423 = vld [vmem:[%s1 + $0xc50] sm:$0xff]
    %v424 = vld [vmem:[%s1 + $0xc58] sm:$0xff]
    %v425 = vld [vmem:[%s1 + $0xc60] sm:$0xff]
    %v426 = vld [vmem:[%s1 + $0xc68] sm:$0xff]
    %v427 = vld [vmem:[%s1 + $0xc70] sm:$0xff]
    %v428 = vld [vmem:[%s1 + $0xc78] sm:$0xff]
    %v429 = vld [vmem:[%s1 + $0xc80] sm:$0xff]
    %v430 = vld [vmem:[%s1 + $0xc88] sm:$0xff]
    %v431 = vld [vmem:[%s1 + $0xc90] sm:$0xff]
    %v432 = vld [vmem:[%s1 + $0xc98] sm:$0xff]
    %v433 = vld [vmem:[%s1 + $0xca0] sm:$0xff]
    %v434 = vld [vmem:[%s1 + $0xca8] sm:$0xff]
    %v435 = vld [vmem:[%s1 + $0xcb0] sm:$0xff]
    %v436 = vld [vmem:[%s1 + $0xcb8] sm:$0xff]
    %v437 = vld [vmem:[%s1 + $0xcc0] sm:$0xff]
    %v438 = vld [vmem:[%s1 + $0xcc8] sm:$0xff]
    %v439 = vld [vmem:[%s1 + $0xcd0] sm:$0xff]
    %v440 = vld [vmem:[%s1 + $0xcd8] sm:$0xff]
    %v441 = vld [vmem:[%s1 + $0xce0] sm:$0xff]
    %v442 = vld [vmem:[%s1 + $0xce8] sm:$0xff]
    %v443 = vld [vmem:[%s1 + $0xcf0] sm:$0xff]
    %v444 = vld [vmem:[%s1 + $0xcf8] sm:$0xff]
    %v445 = vld [vmem:[%s1 + $0xd00] sm:$0xff]
    %v446 = vld [vmem:[%s1 + $0xd08] sm:$0xff]
    %v447 = vld [vmem:[%s1 + $0xd10] sm:$0xff]
    %v448 = vld [vmem:[%s1 + $0xd18] sm:$0xff]
    %v449 = vld [vmem:[%s1 + $0xd20] sm:$0xff]
    %v450 = vld [vmem:[%s1 + $0xd28] sm:$0xff]
    %v451 = vld [vmem:[%s1 + $0xd30] sm:$0xff]
    %v452 = vld [vmem:[%s1 + $0xd38] sm:$0xff]
    %v453 = vld [vmem:[%s1 + $0xd40] sm:$0xff]
    %v454 = vld [vmem:[%s1 + $0xd48] sm:$0xff]
    %v455 = vld [vmem:[%s1 + $0xd50] sm:$0xff]
    %v456 = vld [vmem:[%s1 + $0xd58] sm:$0xff]
    %v457 = vld [vmem:[%s1 + $0xd60] sm:$0xff]
    %v458 = vld [vmem:[%s1 + $0xd68] sm:$0xff]
    %v459 = vld [vmem:[%s1 + $0xd70] sm:$0xff]
    %v460 = vld [vmem:[%s1 + $0xd78] sm:$0xff]
    %v461 = vld [vmem:[%s1 + $0xd80] sm:$0xff]
    %v462 = vld [vmem:[%s1 + $0xd88] sm:$0xff]
    %v463 = vld [vmem:[%s1 + $0xd90] sm:$0xff]
    %v464 = vld [vmem:[%s1 + $0xd98] sm:$0xff]
    %v465 = vld [vmem:[%s1 + $0xda0] sm:$0xff]
    %v466 = vld [vmem:[%s1 + $0xda8] sm:$0xff]
    %v467 = vld [vmem:[%s1 + $0xdb0] sm:$0xff]
    %v468 = vld [vmem:[%s1 + $0xdb8] sm:$0xff]
    %v469 = vld [vmem:[%s1 + $0xdc0] sm:$0xff]
    %v470 = vld [vmem:[%s1 + $0xdc8] sm:$0xff]
    %v471 = vld [vmem:[%s1 + $0xdd0] sm:$0xff]
    %v472 = vld [vmem:[%s1 + $0xdd8] sm:$0xff]
    %v473 = vld [vmem:[%s1 + $0xde0] sm:$0xff]
    %v474 = vld [vmem:[%s1 + $0xde8] sm:$0xff]
    %v475 = vld [vmem:[%s1 + $0xdf0] sm:$0xff]
    %v476 = vld [vmem:[%s1 + $0xdf8] sm:$0xff]
    %v477 = vld [vmem:[%s1 + $0xe00] sm:$0xff]
    %v478 = vld [vmem:[%s1 + $0xe08] sm:$0xff]
    %v479 = vld [vmem:[%s1 + $0xe10] sm:$0xff]
    %v480 = vld [vmem:[%s1 + $0xe18] sm:$0xff]
    %v481 = vld [vmem:[%s1 + $0xe20] sm:$0xff]
    %v482 = vld [vmem:[%s1 + $0xe28] sm:$0xff]
    %v483 = vld [vmem:[%s1 + $0xe30] sm:$0xff]
    %v484 = vld [vmem:[%s1 + $0xe38] sm:$0xff]
    %v485 = vld [vmem:[%s1 + $0xe40] sm:$0xff]
    %v486 = vld [vmem:[%s1 + $0xe48] sm:$0xff]
    %v487 = vld [vmem:[%s1 + $0xe50] sm:$0xff]
    %v488 = vld [vmem:[%s1 + $0xe58] sm:$0xff]
    %v489 = vld [vmem:[%s1 + $0xe60] sm:$0xff]
    %v490 = vld [vmem:[%s1 + $0xe68] sm:$0xff]
    %v491 = vld [vmem:[%s1 + $0xe70] sm:$0xff]
    %v492 = vld [vmem:[%s1 + $0xe78] sm:$0xff]
    %v493 = vld [vmem:[%s1 + $0xe80] sm:$0xff]
    %v494 = vld [vmem:[%s1 + $0xe88] sm:$0xff]
    %v495 = vld [vmem:[%s1 + $0xe90] sm:$0xff]
    %v496 = vld [vmem:[%s1 + $0xe98] sm:$0xff]
    %v497 = vld [vmem:[%s1 + $0xea0] sm:$0xff]
    %v498 = vld [vmem:[%s1 + $0xea8] sm:$0xff]
    %v499 = vld [vmem:[%s1 + $0xeb0] sm:$0xff]
    %v500 = vld [vmem:[%s1 + $0xeb8] sm:$0xff]
    %v501 = vld [vmem:[%s1 + $0xec0] sm:$0xff]
    %v502 = vld [vmem:[%s1 + $0xec8] sm:$0xff]
    %v503 = vld [vmem:[%s1 + $0xed0] sm:$0xff]
    %v504 = vld [vmem:[%s1 + $0xed8] sm:$0xff]
    %v505 = vld [vmem:[%s1 + $0xee0] sm:$0xff]
    %v506 = vld [vmem:[%s1 + $0xee8] sm:$0xff]
    %v507 = vld [vmem:[%s1 + $0xef0] sm:$0xff]
    %v508 = vld [vmem:[%s1 + $0xef8] sm:$0xff]
    %v509 = vld [vmem:[%s1 + $0xf00] sm:$0xff]
    %v510 = vld [vmem:[%s1 + $0xf08] sm:$0xff]
    %v511 = vld [vmem:[%s1 + $0xf10] sm:$0xff]
    %v512 = vld [vmem:[%s1 + $0xf18] sm:$0xff]
    %v513 = vld [vmem:[%s1 + $0xf20] sm:$0xff]
    %v514 = vld [vmem:[%s1 + $0xf28] sm:$0xff]
    %v515 = vld [vmem:[%s1 + $0xf30] sm:$0xff]
    %v516 = vld [vmem:[%s1 + $0xf38] sm:$0xff]
    %v517 = vld [vmem:[%s1 + $0xf40] sm:$0xff]
    %v518 = vld [vmem:[%s1 + $0xf48] sm:$0xff]
    %v519 = vld [vmem:[%s1 + $0xf50] sm:$0xff]
    %v520 = vld [vmem:[%s1 + $0xf58] sm:$0xff]
    %v521 = vld [vmem:[%s1 + $0xf60] sm:$0xff]
    %v522 = vld [vmem:[%s1 + $0xf68] sm:$0xff]
    %v523 = vld [vmem:[%s1 + $0xf70] sm:$0xff]
    %v524 = vld [vmem:[%s1 + $0xf78] sm:$0xff]
    %v525 = vld [vmem:[%s1 + $0xf80] sm:$0xff]
    %v526 = vld [vmem:[%s1 + $0xf88] sm:$0xff]
    %v527 = vld [vmem:[%s1 + $0xf90] sm:$0xff]
    %v528 = vld [vmem:[%s1 + $0xf98] sm:$0xff]
    %v529 = vld [vmem:[%s1 + $0xfa0] sm:$0xff]
    %v530 = vld [vmem:[%s1 + $0xfa8] sm:$0xff]
    %v531 = vld [vmem:[%s1 + $0xfb0] sm:$0xff]
    %v532 = vld [vmem:[%s1 + $0xfb8] sm:$0xff]
    %v533 = vld [vmem:[%s1 + $0xfc0] sm:$0xff]
    %v534 = vld [vmem:[%s1 + $0xfc8] sm:$0xff]
    %v535 = vld [vmem:[%s1 + $0xfd0] sm:$0xff]
    %v536 = vld [vmem:[%s1 + $0xfd8] sm:$0xff]
    %v537 = vld [vmem:[%s1 + $0xfe0] sm:$0xff]
    %v538 = vld [vmem:[%s1 + $0xfe8] sm:$0xff]
    %v539 = vld [vmem:[%s1 + $0xff0] sm:$0xff]
    %v540 = vld [vmem:[%s1 + $0xff8] sm:$0xff]
    %v541 = vld [vmem:[%s1 + $0x1000] sm:$0xff]
    %v542 = vld [vmem:[%s1 + $0x1008] sm:$0xff]
    %v543 = vld [vmem:[%s1 + $0x1010] sm:$0xff]
    %v544 = vld [vmem:[%s1 + $0x1018] sm:$0xff]
    %v545 = vld [vmem:[%s1 + $0x1020] sm:$0xff]
    %v546 = vld [vmem:[%s1 + $0x1028] sm:$0xff]
    %v547 = vld [vmem:[%s1 + $0x1030] sm:$0xff]
    %v548 = vld [vmem:[%s1 + $0x1038] sm:$0xff]
    %v549 = vld [vmem:[%s1 + $0x1040] sm:$0xff]
    %v550 = vld [vmem:[%s1 + $0x1048] sm:$0xff]
    %v551 = vld [vmem:[%s1 + $0x1050] sm:$0xff]
    %v552 = vld [vmem:[%s1 + $0x1058] sm:$0xff]
    %v553 = vld [vmem:[%s1 + $0x1060] sm:$0xff]
    %v554 = vld [vmem:[%s1 + $0x1068] sm:$0xff]
    %v555 = vld [vmem:[%s1 + $0x1070] sm:$0xff]
    %v556 = vld [vmem:[%s1 + $0x1078] sm:$0xff]
    %v557 = vld [vmem:[%s1 + $0x1080] sm:$0xff]
    %v558 = vld [vmem:[%s1 + $0x1088] sm:$0xff]
    %v559 = vld [vmem:[%s1 + $0x1090] sm:$0xff]
    %v560 = vld [vmem:[%s1 + $0x1098] sm:$0xff]
    %v561 = vld [vmem:[%s1 + $0x10a0] sm:$0xff]
    %v562 = vld [vmem:[%s1 + $0x10a8] sm:$0xff]
    %v563 = vld [vmem:[%s1 + $0x10b0] sm:$0xff]
    %v564 = vld [vmem:[%s1 + $0x10b8] sm:$0xff]
    %v565 = vld [vmem:[%s1 + $0x10c0] sm:$0xff]
    %v566 = vld [vmem:[%s1 + $0x10c8] sm:$0xff]
    %v567 = vld [vmem:[%s1 + $0x10d0] sm:$0xff]
    %v568 = vld [vmem:[%s1 + $0x10d8] sm:$0xff]
    %v569 = vld [vmem:[%s1 + $0x10e0] sm:$0xff]
    %v570 = vld [vmem:[%s1 + $0x10e8] sm:$0xff]
    %v571 = vld [vmem:[%s1 + $0x10f0] sm:$0xff]
    %v572 = vld [vmem:[%s1 + $0x10f8] sm:$0xff]
    %v573 = vld [vmem:[%s1 + $0x1100] sm:$0xff]
    %v574 = vld [vmem:[%s1 + $0x1108] sm:$0xff]
    %v575 = vld [vmem:[%s1 + $0x1110] sm:$0xff]
    %v576 = vld [vmem:[%s1 + $0x1118] sm:$0xff]
    %v577 = vld [vmem:[%s1 + $0x1120] sm:$0xff]
    %v578 = vld [vmem:[%s1 + $0x1128] sm:$0xff]
    %v579 = vld [vmem:[%s1 + $0x1130] sm:$0xff]
    %v580 = vld [vmem:[%s1 + $0x1138] sm:$0xff]
    %v581 = vld [vmem:[%s1 + $0x1140] sm:$0xff]
    %v582 = vld [vmem:[%s1 + $0x1148] sm:$0xff]
    %v583 = vld [vmem:[%s1 + $0x1150] sm:$0xff]
    %v584 = vld [vmem:[%s1 + $0x1158] sm:$0xff]
    %v585 = vld [vmem:[%s1 + $0x1160] sm:$0xff]
    %v586 = vld [vmem:[%s1 + $0x1168] sm:$0xff]
    %v587 = vld [vmem:[%s1 + $0x1170] sm:$0xff]
    %v588 = vld [vmem:[%s1 + $0x1178] sm:$0xff]
    %v589 = vld [vmem:[%s1 + $0x1180] sm:$0xff]
    %v590 = vld [vmem:[%s1 + $0x1188] sm:$0xff]
    %v591 = vld [vmem:[%s1 + $0x1190] sm:$0xff]
    %v592 = vld [vmem:[%s1 + $0x1198] sm:$0xff]
    %v593 = vld [vmem:[%s1 + $0x11a0] sm:$0xff]
    %v594 = vld [vmem:[%s1 + $0x11a8] sm:$0xff]
    %v595 = vld [vmem:[%s1 + $0x11b0] sm:$0xff]
    %v596 = vld [vmem:[%s1 + $0x11b8] sm:$0xff]
    %v597 = vld [vmem:[%s1 + $0x11c0] sm:$0xff]
    %v598 = vld [vmem:[%s1 + $0x11c8] sm:$0xff]
    %v599 = vld [vmem:[%s1 + $0x11d0] sm:$0xff]
    %v600 = vld [vmem:[%s1 + $0x11d8] sm:$0xff]
    %v601 = vld [vmem:[%s1 + $0x11e0] sm:$0xff]
    %v602 = vld [vmem:[%s1 + $0x11e8] sm:$0xff]
    %v603 = vld [vmem:[%s1 + $0x11f0] sm:$0xff]
    %v604 = vld [vmem:[%s1 + $0x11f8] sm:$0xff]
    %v605 = vld [vmem:[%s1 + $0x1200] sm:$0xff]
    %v606 = vld [vmem:[%s1 + $0x1208] sm:$0xff]
    %v607 = vld [vmem:[%s1 + $0x1210] sm:$0xff]
    %v608 = vld [vmem:[%s1 + $0x1218] sm:$0xff]
    %v609 = vld [vmem:[%s1 + $0x1220] sm:$0xff]
    %v610 = vld [vmem:[%s1 + $0x1228] sm:$0xff]
    %v611 = vld [vmem:[%s1 + $0x1230] sm:$0xff]
    %v612 = vld [vmem:[%s1 + $0x1238] sm:$0xff]
    %v613 = vld [vmem:[%s1 + $0x1240] sm:$0xff]
    %v614 = vld [vmem:[%s1 + $0x1248] sm:$0xff]
    %v615 = vld [vmem:[%s1 + $0x1250] sm:$0xff]
    %v616 = vld [vmem:[%s1 + $0x1258] sm:$0xff]
    %v617 = vld [vmem:[%s1 + $0x1260] sm:$0xff]
    %v618 = vld [vmem:[%s1 + $0x1268] sm:$0xff]
    %v619 = vld [vmem:[%s1 + $0x1270] sm:$0xff]
    %v620 = vld [vmem:[%s1 + $0x1278] sm:$0xff]
    %v621 = vld [vmem:[%s1 + $0x1280] sm:$0xff]
    %v622 = vld [vmem:[%s1 + $0x1288] sm:$0xff]
    %v623 = vld [vmem:[%s1 + $0x1290] sm:$0xff]
    %v624 = vld [vmem:[%s1 + $0x1298] sm:$0xff]
    %v625 = vld [vmem:[%s1 + $0x12a0] sm:$0xff]
    %v626 = vld [vmem:[%s1 + $0x12a8] sm:$0xff]
    %v627 = vld [vmem:[%s1 + $0x12b0] sm:$0xff]
    %v628 = vld [vmem:[%s1 + $0x12b8] sm:$0xff]
    %v629 = vld [vmem:[%s1 + $0x12c0] sm:$0xff]
    %v630 = vld [vmem:[%s1 + $0x12c8] sm:$0xff]
    %v631 = vld [vmem:[%s1 + $0x12d0] sm:$0xff]
    %v632 = vld [vmem:[%s1 + $0x12d8] sm:$0xff]
    %v633 = vld [vmem:[%s1 + $0x12e0] sm:$0xff]
    %v634 = vld [vmem:[%s1 + $0x12e8] sm:$0xff]
    %v635 = vld [vmem:[%s1 + $0x12f0] sm:$0xff]
    %v636 = vld [vmem:[%s1 + $0x12f8] sm:$0xff]
    %v637 = vld [vmem:[%s1 + $0x1300] sm:$0xff]
    %v638 = vld [vmem:[%s1 + $0x1308] sm:$0xff]
    %v639 = vld [vmem:[%s1 + $0x1310] sm:$0xff]
    %v640 = vld [vmem:[%s1 + $0x1318] sm:$0xff]
    %v641 = vld [vmem:[%s1 + $0x1320] sm:$0xff]
    %v642 = vld [vmem:[%s1 + $0x1328] sm:$0xff]
    %v643 = vld [vmem:[%s1 + $0x1330] sm:$0xff]
    %v644 = vld [vmem:[%s1 + $0x1338] sm:$0xff]
    %v645 = vld [vmem:[%s1 + $0x1340] sm:$0xff]
    %v646 = vld [vmem:[%s1 + $0x1348] sm:$0xff]
    %v647 = vld [vmem:[%s1 + $0x1350] sm:$0xff]
    %v648 = vld [vmem:[%s1 + $0x1358] sm:$0xff]
    %v649 = vld [vmem:[%s1 + $0x1360] sm:$0xff]
    %v650 = vld [vmem:[%s1 + $0x1368] sm:$0xff]
    %v651 = vld [vmem:[%s1 + $0x1370] sm:$0xff]
    %v652 = vld [vmem:[%s1 + $0x1378] sm:$0xff]
    %v653 = vld [vmem:[%s1 + $0x1380] sm:$0xff]
    %v654 = vld [vmem:[%s1 + $0x1388] sm:$0xff]
    %v655 = vld [vmem:[%s1 + $0x1390] sm:$0xff]
    %v656 = vld [vmem:[%s1 + $0x1398] sm:$0xff]
    %v657 = vld [vmem:[%s1 + $0x13a0] sm:$0xff]
    %v658 = vld [vmem:[%s1 + $0x13a8] sm:$0xff]
    %v659 = vld [vmem:[%s1 + $0x13b0] sm:$0xff]
    %v660 = vld [vmem:[%s1 + $0x13b8] sm:$0xff]
    %v661 = vld [vmem:[%s1 + $0x13c0] sm:$0xff]
    %v662 = vld [vmem:[%s1 + $0x13c8] sm:$0xff]
    %v663 = vld [vmem:[%s1 + $0x13d0] sm:$0xff]
    %v664 = vld [vmem:[%s1 + $0x13d8] sm:$0xff]
    %v665 = vld [vmem:[%s1 + $0x13e0] sm:$0xff]
    %v666 = vld [vmem:[%s1 + $0x13e8] sm:$0xff]
    %v667 = vld [vmem:[%s1 + $0x13f0] sm:$0xff]
    %v668 = vld [vmem:[%s1 + $0x13f8] sm:$0xff]
    %v669 = vld [vmem:[%s2] sm:$0xff]
    %v670 = vld [vmem:[%s2 + $0x8] sm:$0xff]
    %v673 = vlaneseq
    %v674 = vshrl.u32 %v673, 7
    %v675 = vsub.s32 0, %v674
    %v676 = vrot.slane %v669, %v675
    %v677 = vlaneseq
    %v678 = vshrl.u32 %v677, 7
    %v679 = vsub.s32 1, %v678
    %v680 = vrot.slane %v669, %v679
    %v681 = vlaneseq
    %v682 = vshrl.u32 %v681, 7
    %v683 = vsub.s32 2, %v682
    %v684 = vrot.slane %v669, %v683
    %v685 = vlaneseq
    %v686 = vshrl.u32 %v685, 7
    %v687 = vsub.s32 3, %v686
    %v688 = vrot.slane %v669, %v687
    %v689 = vlaneseq
    %v690 = vshrl.u32 %v689, 7
    %v691 = vsub.s32 4, %v690
    %v692 = vrot.slane %v669, %v691
    %v693 = vlaneseq
    %v694 = vshrl.u32 %v693, 7
    %v695 = vsub.s32 5, %v694
    %v696 = vrot.slane %v669, %v695
    %v697 = vlaneseq
    %v698 = vshrl.u32 %v697, 7
    %v699 = vsub.s32 6, %v698
    %v700 = vrot.slane %v669, %v699
    %v701 = vlaneseq
    %v702 = vshrl.u32 %v701, 7
    %v703 = vsub.s32 7, %v702
    %v704 = vrot.slane %v669, %v703
    %v705 = vlaneseq
    %v706 = vshrl.u32 %v705, 7
    %v707 = vsub.s32 0, %v706
    %v708 = vrot.slane %v670, %v707
    %v709 = vlaneseq
    %v710 = vshrl.u32 %v709, 7
    %v711 = vsub.s32 1, %v710
    %v712 = vrot.slane %v670, %v711
    %v713 = vlaneseq
    %v714 = vshrl.u32 %v713, 7
    %v715 = vsub.s32 2, %v714
    %v716 = vrot.slane %v670, %v715
    %v717 = vlaneseq
    %v718 = vshrl.u32 %v717, 7
    %v719 = vsub.s32 3, %v718
    %v720 = vrot.slane %v670, %v719
    %v721 = vlaneseq
    %v722 = vshrl.u32 %v721, 7
    %v723 = vsub.s32 4, %v722
    %v724 = vrot.slane %v670, %v723
    %v725 = vlaneseq
    %v726 = vshrl.u32 %v725, 7
    %v727 = vsub.s32 5, %v726
    %v728 = vrot.slane %v670, %v727
    %v729 = vlaneseq
    %v730 = vshrl.u32 %v729, 7
    %v731 = vsub.s32 6, %v730
    %v732 = vrot.slane %v670, %v731
    %v733 = vlaneseq
    %v734 = vshrl.u32 %v733, 7
    %v735 = vsub.s32 7, %v734
    %v736 = vrot.slane %v670, %v735
    %v754 = vcombine.high %v28, %v28
    %v756 = vunpack.c.l.s4 1966171168
    %v757 = vunpack.c.0.s8 %v756
    %v758 = vlaneseq
    %v759 = vshrl.u32 %v758, 7
    %v760 = vsub.s32 %v757, %v759
    %v761 = vrot.slane %v28, %v760
    %v763 = vunpack.c.l.s4 1966171168
    %v764 = vunpack.c.0.s8 %v763
    %v765 = vlaneseq
    %v766 = vshrl.u32 %v765, 7
    %v767 = vsub.s32 %v764, %v766
    %v768 = vrot.slane %v754, %v767
    %v769 = vcombine.high %v761, %v761
    %v771 = vunpack.c.l.s4 1966171168
    %v772 = vunpack.c.0.s8 %v771
    %v773 = vlaneseq
    %v774 = vshrl.u32 %v773, 7
    %v775 = vsub.s32 %v772, %v774
    %v776 = vrot.slane %v761, %v775
    %v778 = vunpack.c.l.s4 1966171168
    %v779 = vunpack.c.0.s8 %v778
    %v780 = vlaneseq
    %v781 = vshrl.u32 %v780, 7
    %v782 = vsub.s32 %v779, %v781
    %v783 = vrot.slane %v768, %v782
    %v785 = vunpack.c.l.s4 1966171168
    %v786 = vunpack.c.0.s8 %v785
    %v787 = vlaneseq
    %v788 = vshrl.u32 %v787, 7
    %v789 = vsub.s32 %v786, %v788
    %v790 = vrot.slane %v769, %v789
    %v791 = vcombine.high %v776, %v776
    %v792 = vcombine.high %v790, %v790
    %v1438 = vunpack.c.l.b16 %v29
    %v1439 = vunpack.c.h.b16 %v29
    %v1440 = vunpack.c.l.b16 %v30
    %v1441 = vunpack.c.h.b16 %v30
    %v1442 = vunpack.c.l.b16 %v31
    %v1443 = vunpack.c.h.b16 %v31
    %v1444 = vunpack.c.l.b16 %v32
    %v1445 = vunpack.c.h.b16 %v32
    %v1446 = vunpack.c.l.b16 %v33
    %v1447 = vunpack.c.h.b16 %v33
    %v1448 = vunpack.c.l.b16 %v34
    %v1449 = vunpack.c.h.b16 %v34
    %v1450 = vunpack.c.l.b16 %v35
    %v1451 = vunpack.c.h.b16 %v35
    %v1452 = vunpack.c.l.b16 %v36
    %v1453 = vunpack.c.h.b16 %v36
    %v1454 = vunpack.c.l.b16 %v37
    %v1455 = vunpack.c.h.b16 %v37
    %v1456 = vunpack.c.l.b16 %v38
    %v1457 = vunpack.c.h.b16 %v38
    %v1458 = vunpack.c.l.b16 %v39
    %v1459 = vunpack.c.h.b16 %v39
    %v1460 = vunpack.c.l.b16 %v40
    %v1461 = vunpack.c.h.b16 %v40
    %v1462 = vunpack.c.l.b16 %v41
    %v1463 = vunpack.c.h.b16 %v41
    %v1464 = vunpack.c.l.b16 %v42
    %v1465 = vunpack.c.h.b16 %v42
    %v1466 = vunpack.c.l.b16 %v43
    %v1467 = vunpack.c.h.b16 %v43
    %v1468 = vunpack.c.l.b16 %v44
    %v1469 = vunpack.c.h.b16 %v44
    %v1470 = vunpack.c.l.b16 %v45
    %v1471 = vunpack.c.h.b16 %v45
    %v1472 = vunpack.c.l.b16 %v46
    %v1473 = vunpack.c.h.b16 %v46
    %v1474 = vunpack.c.l.b16 %v47
    %v1475 = vunpack.c.h.b16 %v47
    %v1476 = vunpack.c.l.b16 %v48
    %v1477 = vunpack.c.h.b16 %v48
    %v1478 = vunpack.c.l.b16 %v49
    %v1479 = vunpack.c.h.b16 %v49
    %v1480 = vunpack.c.l.b16 %v50
    %v1481 = vunpack.c.h.b16 %v50
    %v1482 = vunpack.c.l.b16 %v51
    %v1483 = vunpack.c.h.b16 %v51
    %v1484 = vunpack.c.l.b16 %v52
    %v1485 = vunpack.c.h.b16 %v52
    %v1486 = vunpack.c.l.b16 %v53
    %v1487 = vunpack.c.h.b16 %v53
    %v1488 = vunpack.c.l.b16 %v54
    %v1489 = vunpack.c.h.b16 %v54
    %v1490 = vunpack.c.l.b16 %v55
    %v1491 = vunpack.c.h.b16 %v55
    %v1492 = vunpack.c.l.b16 %v56
    %v1493 = vunpack.c.h.b16 %v56
    %v1494 = vunpack.c.l.b16 %v57
    %v1495 = vunpack.c.h.b16 %v57
    %v1496 = vunpack.c.l.b16 %v58
    %v1497 = vunpack.c.h.b16 %v58
    %v1498 = vunpack.c.l.b16 %v59
    %v1499 = vunpack.c.h.b16 %v59
    %v1500 = vunpack.c.l.b16 %v60
    %v1501 = vunpack.c.h.b16 %v60
    %v1502 = vunpack.c.l.b16 %v61
    %v1503 = vunpack.c.h.b16 %v61
    %v1504 = vunpack.c.l.b16 %v62
    %v1505 = vunpack.c.h.b16 %v62
    %v1506 = vunpack.c.l.b16 %v63
    %v1507 = vunpack.c.h.b16 %v63
    %v1508 = vunpack.c.l.b16 %v64
    %v1509 = vunpack.c.h.b16 %v64
    %v1510 = vunpack.c.l.b16 %v65
    %v1511 = vunpack.c.h.b16 %v65
    %v1512 = vunpack.c.l.b16 %v66
    %v1513 = vunpack.c.h.b16 %v66
    %v1514 = vunpack.c.l.b16 %v67
    %v1515 = vunpack.c.h.b16 %v67
    %v1516 = vunpack.c.l.b16 %v68
    %v1517 = vunpack.c.h.b16 %v68
    %v1518 = vunpack.c.l.b16 %v69
    %v1519 = vunpack.c.h.b16 %v69
    %v1520 = vunpack.c.l.b16 %v70
    %v1521 = vunpack.c.h.b16 %v70
    %v1522 = vunpack.c.l.b16 %v71
    %v1523 = vunpack.c.h.b16 %v71
    %v1524 = vunpack.c.l.b16 %v72
    %v1525 = vunpack.c.h.b16 %v72
    %v1526 = vunpack.c.l.b16 %v73
    %v1527 = vunpack.c.h.b16 %v73
    %v1528 = vunpack.c.l.b16 %v74
    %v1529 = vunpack.c.h.b16 %v74
    %v1530 = vunpack.c.l.b16 %v75
    %v1531 = vunpack.c.h.b16 %v75
    %v1532 = vunpack.c.l.b16 %v76
    %v1533 = vunpack.c.h.b16 %v76
    %v1534 = vunpack.c.l.b16 %v77
    %v1535 = vunpack.c.h.b16 %v77
    %v1536 = vunpack.c.l.b16 %v78
    %v1537 = vunpack.c.h.b16 %v78
    %v1538 = vunpack.c.l.b16 %v79
    %v1539 = vunpack.c.h.b16 %v79
    %v1540 = vunpack.c.l.b16 %v80
    %v1541 = vunpack.c.h.b16 %v80
    %v1542 = vunpack.c.l.b16 %v81
    %v1543 = vunpack.c.h.b16 %v81
    %v1544 = vunpack.c.l.b16 %v82
    %v1545 = vunpack.c.h.b16 %v82
    %v1546 = vunpack.c.l.b16 %v83
    %v1547 = vunpack.c.h.b16 %v83
    %v1548 = vunpack.c.l.b16 %v84
    %v1549 = vunpack.c.h.b16 %v84
    %v1550 = vunpack.c.l.b16 %v85
    %v1551 = vunpack.c.h.b16 %v85
    %v1552 = vunpack.c.l.b16 %v86
    %v1553 = vunpack.c.h.b16 %v86
    %v1554 = vunpack.c.l.b16 %v87
    %v1555 = vunpack.c.h.b16 %v87
    %v1556 = vunpack.c.l.b16 %v88
    %v1557 = vunpack.c.h.b16 %v88
    %v1558 = vunpack.c.l.b16 %v89
    %v1559 = vunpack.c.h.b16 %v89
    %v1560 = vunpack.c.l.b16 %v90
    %v1561 = vunpack.c.h.b16 %v90
    %v1562 = vunpack.c.l.b16 %v91
    %v1563 = vunpack.c.h.b16 %v91
    %v1564 = vunpack.c.l.b16 %v92
    %v1565 = vunpack.c.h.b16 %v92
    %v1566 = vunpack.c.l.b16 %v93
    %v1567 = vunpack.c.h.b16 %v93
    %v1568 = vunpack.c.l.b16 %v94
    %v1569 = vunpack.c.h.b16 %v94
    %v1570 = vunpack.c.l.b16 %v95
    %v1571 = vunpack.c.h.b16 %v95
    %v1572 = vunpack.c.l.b16 %v96
    %v1573 = vunpack.c.h.b16 %v96
    %v1574 = vunpack.c.l.b16 %v97
    %v1575 = vunpack.c.h.b16 %v97
    %v1576 = vunpack.c.l.b16 %v98
    %v1577 = vunpack.c.h.b16 %v98
    %v1578 = vunpack.c.l.b16 %v99
    %v1579 = vunpack.c.h.b16 %v99
    %v1580 = vunpack.c.l.b16 %v100
    %v1581 = vunpack.c.h.b16 %v100
    %v1582 = vunpack.c.l.b16 %v101
    %v1583 = vunpack.c.h.b16 %v101
    %v1584 = vunpack.c.l.b16 %v102
    %v1585 = vunpack.c.h.b16 %v102
    %v1586 = vunpack.c.l.b16 %v103
    %v1587 = vunpack.c.h.b16 %v103
    %v1588 = vunpack.c.l.b16 %v104
    %v1589 = vunpack.c.h.b16 %v104
    %v1590 = vunpack.c.l.b16 %v105
    %v1591 = vunpack.c.h.b16 %v105
    %v1592 = vunpack.c.l.b16 %v106
    %v1593 = vunpack.c.h.b16 %v106
    %v1594 = vunpack.c.l.b16 %v107
    %v1595 = vunpack.c.h.b16 %v107
    %v1596 = vunpack.c.l.b16 %v108
    %v1597 = vunpack.c.h.b16 %v108
    %v1598 = vunpack.c.l.b16 %v109
    %v1599 = vunpack.c.h.b16 %v109
    %v1600 = vunpack.c.l.b16 %v110
    %v1601 = vunpack.c.h.b16 %v110
    %v1602 = vunpack.c.l.b16 %v111
    %v1603 = vunpack.c.h.b16 %v111
    %v1604 = vunpack.c.l.b16 %v112
    %v1605 = vunpack.c.h.b16 %v112
    %v1606 = vunpack.c.l.b16 %v113
    %v1607 = vunpack.c.h.b16 %v113
    %v1608 = vunpack.c.l.b16 %v114
    %v1609 = vunpack.c.h.b16 %v114
    %v1610 = vunpack.c.l.b16 %v115
    %v1611 = vunpack.c.h.b16 %v115
    %v1612 = vunpack.c.l.b16 %v116
    %v1613 = vunpack.c.h.b16 %v116
    %v1614 = vunpack.c.l.b16 %v117
    %v1615 = vunpack.c.h.b16 %v117
    %v1616 = vunpack.c.l.b16 %v118
    %v1617 = vunpack.c.h.b16 %v118
    %v1618 = vunpack.c.l.b16 %v119
    %v1619 = vunpack.c.h.b16 %v119
    %v1620 = vunpack.c.l.b16 %v120
    %v1621 = vunpack.c.h.b16 %v120
    %v1622 = vunpack.c.l.b16 %v121
    %v1623 = vunpack.c.h.b16 %v121
    %v1624 = vunpack.c.l.b16 %v122
    %v1625 = vunpack.c.h.b16 %v122
    %v1626 = vunpack.c.l.b16 %v123
    %v1627 = vunpack.c.h.b16 %v123
    %v1628 = vunpack.c.l.b16 %v124
    %v1629 = vunpack.c.h.b16 %v124
    %v1630 = vunpack.c.l.b16 %v125
    %v1631 = vunpack.c.h.b16 %v125
    %v1632 = vunpack.c.l.b16 %v126
    %v1633 = vunpack.c.h.b16 %v126
    %v1634 = vunpack.c.l.b16 %v127
    %v1635 = vunpack.c.h.b16 %v127
    %v1636 = vunpack.c.l.b16 %v128
    %v1637 = vunpack.c.h.b16 %v128
    %v1638 = vunpack.c.l.b16 %v129
    %v1639 = vunpack.c.h.b16 %v129
    %v1640 = vunpack.c.l.b16 %v130
    %v1641 = vunpack.c.h.b16 %v130
    %v1642 = vunpack.c.l.b16 %v131
    %v1643 = vunpack.c.h.b16 %v131
    %v1644 = vunpack.c.l.b16 %v132
    %v1645 = vunpack.c.h.b16 %v132
    %v1646 = vunpack.c.l.b16 %v133
    %v1647 = vunpack.c.h.b16 %v133
    %v1648 = vunpack.c.l.b16 %v134
    %v1649 = vunpack.c.h.b16 %v134
    %v1650 = vunpack.c.l.b16 %v135
    %v1651 = vunpack.c.h.b16 %v135
    %v1652 = vunpack.c.l.b16 %v136
    %v1653 = vunpack.c.h.b16 %v136
    %v1654 = vunpack.c.l.b16 %v137
    %v1655 = vunpack.c.h.b16 %v137
    %v1656 = vunpack.c.l.b16 %v138
    %v1657 = vunpack.c.h.b16 %v138
    %v1658 = vunpack.c.l.b16 %v139
    %v1659 = vunpack.c.h.b16 %v139
    %v1660 = vunpack.c.l.b16 %v140
    %v1661 = vunpack.c.h.b16 %v140
    %v1662 = vunpack.c.l.b16 %v141
    %v1663 = vunpack.c.h.b16 %v141
    %v1664 = vunpack.c.l.b16 %v142
    %v1665 = vunpack.c.h.b16 %v142
    %v1666 = vunpack.c.l.b16 %v143
    %v1667 = vunpack.c.h.b16 %v143
    %v1668 = vunpack.c.l.b16 %v144
    %v1669 = vunpack.c.h.b16 %v144
    %v1670 = vunpack.c.l.b16 %v145
    %v1671 = vunpack.c.h.b16 %v145
    %v1672 = vunpack.c.l.b16 %v146
    %v1673 = vunpack.c.h.b16 %v146
    %v1674 = vunpack.c.l.b16 %v147
    %v1675 = vunpack.c.h.b16 %v147
    %v1676 = vunpack.c.l.b16 %v148
    %v1677 = vunpack.c.h.b16 %v148
    %v1678 = vunpack.c.l.b16 %v149
    %v1679 = vunpack.c.h.b16 %v149
    %v1680 = vunpack.c.l.b16 %v150
    %v1681 = vunpack.c.h.b16 %v150
    %v1682 = vunpack.c.l.b16 %v151
    %v1683 = vunpack.c.h.b16 %v151
    %v1684 = vunpack.c.l.b16 %v152
    %v1685 = vunpack.c.h.b16 %v152
    %v1686 = vunpack.c.l.b16 %v153
    %v1687 = vunpack.c.h.b16 %v153
    %v1688 = vunpack.c.l.b16 %v154
    %v1689 = vunpack.c.h.b16 %v154
    %v1690 = vunpack.c.l.b16 %v155
    %v1691 = vunpack.c.h.b16 %v155
    %v1692 = vunpack.c.l.b16 %v156
    %v1693 = vunpack.c.h.b16 %v156
    %v1694 = vunpack.c.l.b16 %v157
    %v1695 = vunpack.c.h.b16 %v157
    %v1696 = vunpack.c.l.b16 %v158
    %v1697 = vunpack.c.h.b16 %v158
    %v1698 = vunpack.c.l.b16 %v159
    %v1699 = vunpack.c.h.b16 %v159
    %v1700 = vunpack.c.l.b16 %v160
    %v1701 = vunpack.c.h.b16 %v160
    %v1702 = vunpack.c.l.b16 %v161
    %v1703 = vunpack.c.h.b16 %v161
    %v1704 = vunpack.c.l.b16 %v162
    %v1705 = vunpack.c.h.b16 %v162
    %v1706 = vunpack.c.l.b16 %v163
    %v1707 = vunpack.c.h.b16 %v163
    %v1708 = vunpack.c.l.b16 %v164
    %v1709 = vunpack.c.h.b16 %v164
    %v1710 = vunpack.c.l.b16 %v165
    %v1711 = vunpack.c.h.b16 %v165
    %v1712 = vunpack.c.l.b16 %v166
    %v1713 = vunpack.c.h.b16 %v166
    %v1714 = vunpack.c.l.b16 %v167
    %v1715 = vunpack.c.h.b16 %v167
    %v1716 = vunpack.c.l.b16 %v168
    %v1717 = vunpack.c.h.b16 %v168
    %v1718 = vunpack.c.l.b16 %v169
    %v1719 = vunpack.c.h.b16 %v169
    %v1720 = vunpack.c.l.b16 %v170
    %v1721 = vunpack.c.h.b16 %v170
    %v1722 = vunpack.c.l.b16 %v171
    %v1723 = vunpack.c.h.b16 %v171
    %v1724 = vunpack.c.l.b16 %v172
    %v1725 = vunpack.c.h.b16 %v172
    %v1726 = vunpack.c.l.b16 %v173
    %v1727 = vunpack.c.h.b16 %v173
    %v1728 = vunpack.c.l.b16 %v174
    %v1729 = vunpack.c.h.b16 %v174
    %v1730 = vunpack.c.l.b16 %v175
    %v1731 = vunpack.c.h.b16 %v175
    %v1732 = vunpack.c.l.b16 %v176
    %v1733 = vunpack.c.h.b16 %v176
    %v1734 = vunpack.c.l.b16 %v177
    %v1735 = vunpack.c.h.b16 %v177
    %v1736 = vunpack.c.l.b16 %v178
    %v1737 = vunpack.c.h.b16 %v178
    %v1738 = vunpack.c.l.b16 %v179
    %v1739 = vunpack.c.h.b16 %v179
    %v1740 = vunpack.c.l.b16 %v180
    %v1741 = vunpack.c.h.b16 %v180
    %v1742 = vunpack.c.l.b16 %v181
    %v1743 = vunpack.c.h.b16 %v181
    %v1744 = vunpack.c.l.b16 %v182
    %v1745 = vunpack.c.h.b16 %v182
    %v1746 = vunpack.c.l.b16 %v183
    %v1747 = vunpack.c.h.b16 %v183
    %v1748 = vunpack.c.l.b16 %v184
    %v1749 = vunpack.c.h.b16 %v184
    %v1750 = vunpack.c.l.b16 %v185
    %v1751 = vunpack.c.h.b16 %v185
    %v1752 = vunpack.c.l.b16 %v186
    %v1753 = vunpack.c.h.b16 %v186
    %v1754 = vunpack.c.l.b16 %v187
    %v1755 = vunpack.c.h.b16 %v187
    %v1756 = vunpack.c.l.b16 %v188
    %v1757 = vunpack.c.h.b16 %v188
    %v1758 = vunpack.c.l.b16 %v189
    %v1759 = vunpack.c.h.b16 %v189
    %v1760 = vunpack.c.l.b16 %v190
    %v1761 = vunpack.c.h.b16 %v190
    %v1762 = vunpack.c.l.b16 %v191
    %v1763 = vunpack.c.h.b16 %v191
    %v1764 = vunpack.c.l.b16 %v192
    %v1765 = vunpack.c.h.b16 %v192
    %v1766 = vunpack.c.l.b16 %v193
    %v1767 = vunpack.c.h.b16 %v193
    %v1768 = vunpack.c.l.b16 %v194
    %v1769 = vunpack.c.h.b16 %v194
    %v1770 = vunpack.c.l.b16 %v195
    %v1771 = vunpack.c.h.b16 %v195
    %v1772 = vunpack.c.l.b16 %v196
    %v1773 = vunpack.c.h.b16 %v196
    %v1774 = vunpack.c.l.b16 %v197
    %v1775 = vunpack.c.h.b16 %v197
    %v1776 = vunpack.c.l.b16 %v198
    %v1777 = vunpack.c.h.b16 %v198
    %v1778 = vunpack.c.l.b16 %v199
    %v1779 = vunpack.c.h.b16 %v199
    %v1780 = vunpack.c.l.b16 %v200
    %v1781 = vunpack.c.h.b16 %v200
    %v1782 = vunpack.c.l.b16 %v201
    %v1783 = vunpack.c.h.b16 %v201
    %v1784 = vunpack.c.l.b16 %v202
    %v1785 = vunpack.c.h.b16 %v202
    %v1786 = vunpack.c.l.b16 %v203
    %v1787 = vunpack.c.h.b16 %v203
    %v1788 = vunpack.c.l.b16 %v204
    %v1789 = vunpack.c.h.b16 %v204
    %v1790 = vunpack.c.l.b16 %v205
    %v1791 = vunpack.c.h.b16 %v205
    %v1792 = vunpack.c.l.b16 %v206
    %v1793 = vunpack.c.h.b16 %v206
    %v1794 = vunpack.c.l.b16 %v207
    %v1795 = vunpack.c.h.b16 %v207
    %v1796 = vunpack.c.l.b16 %v208
    %v1797 = vunpack.c.h.b16 %v208
    %v1798 = vunpack.c.l.b16 %v209
    %v1799 = vunpack.c.h.b16 %v209
    %v1800 = vunpack.c.l.b16 %v210
    %v1801 = vunpack.c.h.b16 %v210
    %v1802 = vunpack.c.l.b16 %v211
    %v1803 = vunpack.c.h.b16 %v211
    %v1804 = vunpack.c.l.b16 %v212
    %v1805 = vunpack.c.h.b16 %v212
    %v1806 = vunpack.c.l.b16 %v213
    %v1807 = vunpack.c.h.b16 %v213
    %v1808 = vunpack.c.l.b16 %v214
    %v1809 = vunpack.c.h.b16 %v214
    %v1810 = vunpack.c.l.b16 %v215
    %v1811 = vunpack.c.h.b16 %v215
    %v1812 = vunpack.c.l.b16 %v216
    %v1813 = vunpack.c.h.b16 %v216
    %v1814 = vunpack.c.l.b16 %v217
    %v1815 = vunpack.c.h.b16 %v217
    %v1816 = vunpack.c.l.b16 %v218
    %v1817 = vunpack.c.h.b16 %v218
    %v1818 = vunpack.c.l.b16 %v219
    %v1819 = vunpack.c.h.b16 %v219
    %v1820 = vunpack.c.l.b16 %v220
    %v1821 = vunpack.c.h.b16 %v220
    %v1822 = vunpack.c.l.b16 %v221
    %v1823 = vunpack.c.h.b16 %v221
    %v1824 = vunpack.c.l.b16 %v222
    %v1825 = vunpack.c.h.b16 %v222
    %v1826 = vunpack.c.l.b16 %v223
    %v1827 = vunpack.c.h.b16 %v223
    %v1828 = vunpack.c.l.b16 %v224
    %v1829 = vunpack.c.h.b16 %v224
    %v1830 = vunpack.c.l.b16 %v225
    %v1831 = vunpack.c.h.b16 %v225
    %v1832 = vunpack.c.l.b16 %v226
    %v1833 = vunpack.c.h.b16 %v226
    %v1834 = vunpack.c.l.b16 %v227
    %v1835 = vunpack.c.h.b16 %v227
    %v1836 = vunpack.c.l.b16 %v228
    %v1837 = vunpack.c.h.b16 %v228
    %v1838 = vunpack.c.l.b16 %v229
    %v1839 = vunpack.c.h.b16 %v229
    %v1840 = vunpack.c.l.b16 %v230
    %v1841 = vunpack.c.h.b16 %v230
    %v1842 = vunpack.c.l.b16 %v231
    %v1843 = vunpack.c.h.b16 %v231
    %v1844 = vunpack.c.l.b16 %v232
    %v1845 = vunpack.c.h.b16 %v232
    %v1846 = vunpack.c.l.b16 %v233
    %v1847 = vunpack.c.h.b16 %v233
    %v1848 = vunpack.c.l.b16 %v234
    %v1849 = vunpack.c.h.b16 %v234
    %v1850 = vunpack.c.l.b16 %v235
    %v1851 = vunpack.c.h.b16 %v235
    %v1852 = vunpack.c.l.b16 %v236
    %v1853 = vunpack.c.h.b16 %v236
    %v1854 = vunpack.c.l.b16 %v237
    %v1855 = vunpack.c.h.b16 %v237
    %v1856 = vunpack.c.l.b16 %v238
    %v1857 = vunpack.c.h.b16 %v238
    %v1858 = vunpack.c.l.b16 %v239
    %v1859 = vunpack.c.h.b16 %v239
    %v1860 = vunpack.c.l.b16 %v240
    %v1861 = vunpack.c.h.b16 %v240
    %v1862 = vunpack.c.l.b16 %v241
    %v1863 = vunpack.c.h.b16 %v241
    %v1864 = vunpack.c.l.b16 %v242
    %v1865 = vunpack.c.h.b16 %v242
    %v1866 = vunpack.c.l.b16 %v243
    %v1867 = vunpack.c.h.b16 %v243
    %v1868 = vunpack.c.l.b16 %v244
    %v1869 = vunpack.c.h.b16 %v244
    %v1870 = vunpack.c.l.b16 %v245
    %v1871 = vunpack.c.h.b16 %v245
    %v1872 = vunpack.c.l.b16 %v246
    %v1873 = vunpack.c.h.b16 %v246
    %v1874 = vunpack.c.l.b16 %v247
    %v1875 = vunpack.c.h.b16 %v247
    %v1876 = vunpack.c.l.b16 %v248
    %v1877 = vunpack.c.h.b16 %v248
    %v1878 = vunpack.c.l.b16 %v249
    %v1879 = vunpack.c.h.b16 %v249
    %v1880 = vunpack.c.l.b16 %v250
    %v1881 = vunpack.c.h.b16 %v250
    %v1882 = vunpack.c.l.b16 %v251
    %v1883 = vunpack.c.h.b16 %v251
    %v1884 = vunpack.c.l.b16 %v252
    %v1885 = vunpack.c.h.b16 %v252
    %v1886 = vunpack.c.l.b16 %v253
    %v1887 = vunpack.c.h.b16 %v253
    %v1888 = vunpack.c.l.b16 %v254
    %v1889 = vunpack.c.h.b16 %v254
    %v1890 = vunpack.c.l.b16 %v255
    %v1891 = vunpack.c.h.b16 %v255
    %v1892 = vunpack.c.l.b16 %v256
    %v1893 = vunpack.c.h.b16 %v256
    %v1894 = vunpack.c.l.b16 %v257
    %v1895 = vunpack.c.h.b16 %v257
    %v1896 = vunpack.c.l.b16 %v258
    %v1897 = vunpack.c.h.b16 %v258
    %v1898 = vunpack.c.l.b16 %v259
    %v1899 = vunpack.c.h.b16 %v259
    %v1900 = vunpack.c.l.b16 %v260
    %v1901 = vunpack.c.h.b16 %v260
    %v1902 = vunpack.c.l.b16 %v261
    %v1903 = vunpack.c.h.b16 %v261
    %v1904 = vunpack.c.l.b16 %v262
    %v1905 = vunpack.c.h.b16 %v262
    %v1906 = vunpack.c.l.b16 %v263
    %v1907 = vunpack.c.h.b16 %v263
    %v1908 = vunpack.c.l.b16 %v264
    %v1909 = vunpack.c.h.b16 %v264
    %v1910 = vunpack.c.l.b16 %v265
    %v1911 = vunpack.c.h.b16 %v265
    %v1912 = vunpack.c.l.b16 %v266
    %v1913 = vunpack.c.h.b16 %v266
    %v1914 = vunpack.c.l.b16 %v267
    %v1915 = vunpack.c.h.b16 %v267
    %v1916 = vunpack.c.l.b16 %v268
    %v1917 = vunpack.c.h.b16 %v268
    %v1918 = vunpack.c.l.b16 %v269
    %v1919 = vunpack.c.h.b16 %v269
    %v1920 = vunpack.c.l.b16 %v270
    %v1921 = vunpack.c.h.b16 %v270
    %v1922 = vunpack.c.l.b16 %v271
    %v1923 = vunpack.c.h.b16 %v271
    %v1924 = vunpack.c.l.b16 %v272
    %v1925 = vunpack.c.h.b16 %v272
    %v1926 = vunpack.c.l.b16 %v273
    %v1927 = vunpack.c.h.b16 %v273
    %v1928 = vunpack.c.l.b16 %v274
    %v1929 = vunpack.c.h.b16 %v274
    %v1930 = vunpack.c.l.b16 %v275
    %v1931 = vunpack.c.h.b16 %v275
    %v1932 = vunpack.c.l.b16 %v276
    %v1933 = vunpack.c.h.b16 %v276
    %v1934 = vunpack.c.l.b16 %v277
    %v1935 = vunpack.c.h.b16 %v277
    %v1936 = vunpack.c.l.b16 %v278
    %v1937 = vunpack.c.h.b16 %v278
    %v1938 = vunpack.c.l.b16 %v279
    %v1939 = vunpack.c.h.b16 %v279
    %v1940 = vunpack.c.l.b16 %v280
    %v1941 = vunpack.c.h.b16 %v280
    %v1942 = vunpack.c.l.b16 %v281
    %v1943 = vunpack.c.h.b16 %v281
    %v1944 = vunpack.c.l.b16 %v282
    %v1945 = vunpack.c.h.b16 %v282
    %v1946 = vunpack.c.l.b16 %v283
    %v1947 = vunpack.c.h.b16 %v283
    %v1948 = vunpack.c.l.b16 %v284
    %v1949 = vunpack.c.h.b16 %v284
    %v1950 = vunpack.c.l.b16 %v285
    %v1951 = vunpack.c.h.b16 %v285
    %v1952 = vunpack.c.l.b16 %v286
    %v1953 = vunpack.c.h.b16 %v286
    %v1954 = vunpack.c.l.b16 %v287
    %v1955 = vunpack.c.h.b16 %v287
    %v1956 = vunpack.c.l.b16 %v288
    %v1957 = vunpack.c.h.b16 %v288
    %v1958 = vunpack.c.l.b16 %v289
    %v1959 = vunpack.c.h.b16 %v289
    %v1960 = vunpack.c.l.b16 %v290
    %v1961 = vunpack.c.h.b16 %v290
    %v1962 = vunpack.c.l.b16 %v291
    %v1963 = vunpack.c.h.b16 %v291
    %v1964 = vunpack.c.l.b16 %v292
    %v1965 = vunpack.c.h.b16 %v292
    %v1966 = vunpack.c.l.b16 %v293
    %v1967 = vunpack.c.h.b16 %v293
    %v1968 = vunpack.c.l.b16 %v294
    %v1969 = vunpack.c.h.b16 %v294
    %v1970 = vunpack.c.l.b16 %v295
    %v1971 = vunpack.c.h.b16 %v295
    %v1972 = vunpack.c.l.b16 %v296
    %v1973 = vunpack.c.h.b16 %v296
    %v1974 = vunpack.c.l.b16 %v297
    %v1975 = vunpack.c.h.b16 %v297
    %v1976 = vunpack.c.l.b16 %v298
    %v1977 = vunpack.c.h.b16 %v298
    %v1978 = vunpack.c.l.b16 %v299
    %v1979 = vunpack.c.h.b16 %v299
    %v1980 = vunpack.c.l.b16 %v300
    %v1981 = vunpack.c.h.b16 %v300
    %v1982 = vunpack.c.l.b16 %v301
    %v1983 = vunpack.c.h.b16 %v301
    %v1984 = vunpack.c.l.b16 %v302
    %v1985 = vunpack.c.h.b16 %v302
    %v1986 = vunpack.c.l.b16 %v303
    %v1987 = vunpack.c.h.b16 %v303
    %v1988 = vunpack.c.l.b16 %v304
    %v1989 = vunpack.c.h.b16 %v304
    %v1990 = vunpack.c.l.b16 %v305
    %v1991 = vunpack.c.h.b16 %v305
    %v1992 = vunpack.c.l.b16 %v306
    %v1993 = vunpack.c.h.b16 %v306
    %v1994 = vunpack.c.l.b16 %v307
    %v1995 = vunpack.c.h.b16 %v307
    %v1996 = vunpack.c.l.b16 %v308
    %v1997 = vunpack.c.h.b16 %v308
    %v1998 = vunpack.c.l.b16 %v309
    %v1999 = vunpack.c.h.b16 %v309
    %v2000 = vunpack.c.l.b16 %v310
    %v2001 = vunpack.c.h.b16 %v310
    %v2002 = vunpack.c.l.b16 %v311
    %v2003 = vunpack.c.h.b16 %v311
    %v2004 = vunpack.c.l.b16 %v312
    %v2005 = vunpack.c.h.b16 %v312
    %v2006 = vunpack.c.l.b16 %v313
    %v2007 = vunpack.c.h.b16 %v313
    %v2008 = vunpack.c.l.b16 %v314
    %v2009 = vunpack.c.h.b16 %v314
    %v2010 = vunpack.c.l.b16 %v315
    %v2011 = vunpack.c.h.b16 %v315
    %v2012 = vunpack.c.l.b16 %v316
    %v2013 = vunpack.c.h.b16 %v316
    %v2014 = vunpack.c.l.b16 %v317
    %v2015 = vunpack.c.h.b16 %v317
    %v2016 = vunpack.c.l.b16 %v318
    %v2017 = vunpack.c.h.b16 %v318
    %v2018 = vunpack.c.l.b16 %v319
    %v2019 = vunpack.c.h.b16 %v319
    %v2020 = vunpack.c.l.b16 %v320
    %v2021 = vunpack.c.h.b16 %v320
    %v2022 = vunpack.c.l.b16 %v321
    %v2023 = vunpack.c.h.b16 %v321
    %v2024 = vunpack.c.l.b16 %v322
    %v2025 = vunpack.c.h.b16 %v322
    %v2026 = vunpack.c.l.b16 %v323
    %v2027 = vunpack.c.h.b16 %v323
    %v2028 = vunpack.c.l.b16 %v324
    %v2029 = vunpack.c.h.b16 %v324
    %v2030 = vunpack.c.l.b16 %v325
    %v2031 = vunpack.c.h.b16 %v325
    %v2032 = vunpack.c.l.b16 %v326
    %v2033 = vunpack.c.h.b16 %v326
    %v2034 = vunpack.c.l.b16 %v327
    %v2035 = vunpack.c.h.b16 %v327
    %v2036 = vunpack.c.l.b16 %v328
    %v2037 = vunpack.c.h.b16 %v328
    %v2038 = vunpack.c.l.b16 %v329
    %v2039 = vunpack.c.h.b16 %v329
    %v2040 = vunpack.c.l.b16 %v330
    %v2041 = vunpack.c.h.b16 %v330
    %v2042 = vunpack.c.l.b16 %v331
    %v2043 = vunpack.c.h.b16 %v331
    %v2044 = vunpack.c.l.b16 %v332
    %v2045 = vunpack.c.h.b16 %v332
    %v2046 = vunpack.c.l.b16 %v333
    %v2047 = vunpack.c.h.b16 %v333
    %v2048 = vunpack.c.l.b16 %v334
    %v2049 = vunpack.c.h.b16 %v334
    %v2050 = vunpack.c.l.b16 %v335
    %v2051 = vunpack.c.h.b16 %v335
    %v2052 = vunpack.c.l.b16 %v336
    %v2053 = vunpack.c.h.b16 %v336
    %v2054 = vunpack.c.l.b16 %v337
    %v2055 = vunpack.c.h.b16 %v337
    %v2056 = vunpack.c.l.b16 %v338
    %v2057 = vunpack.c.h.b16 %v338
    %v2058 = vunpack.c.l.b16 %v339
    %v2059 = vunpack.c.h.b16 %v339
    %v2060 = vunpack.c.l.b16 %v340
    %v2061 = vunpack.c.h.b16 %v340
    %v2062 = vunpack.c.l.b16 %v341
    %v2063 = vunpack.c.h.b16 %v341
    %v2064 = vunpack.c.l.b16 %v342
    %v2065 = vunpack.c.h.b16 %v342
    %v2066 = vunpack.c.l.b16 %v343
    %v2067 = vunpack.c.h.b16 %v343
    %v2068 = vunpack.c.l.b16 %v344
    %v2069 = vunpack.c.h.b16 %v344
    %v2070 = vunpack.c.l.b16 %v345
    %v2071 = vunpack.c.h.b16 %v345
    %v2072 = vunpack.c.l.b16 %v346
    %v2073 = vunpack.c.h.b16 %v346
    %v2074 = vunpack.c.l.b16 %v347
    %v2075 = vunpack.c.h.b16 %v347
    %v2076 = vunpack.c.l.b16 %v348
    %v2077 = vunpack.c.h.b16 %v348
    %v2078 = vunpack.c.l.b16 %v349
    %v2079 = vunpack.c.h.b16 %v349
    %v2080 = vunpack.c.l.b16 %v350
    %v2081 = vunpack.c.h.b16 %v350
    %v2082 = vunpack.c.l.b16 %v351
    %v2083 = vunpack.c.h.b16 %v351
    %v2084 = vunpack.c.l.b16 %v352
    %v2085 = vunpack.c.h.b16 %v352
    %v2086 = vunpack.c.l.b16 %v353
    %v2087 = vunpack.c.h.b16 %v353
    %v2088 = vunpack.c.l.b16 %v354
    %v2089 = vunpack.c.h.b16 %v354
    %v2090 = vunpack.c.l.b16 %v355
    %v2091 = vunpack.c.h.b16 %v355
    %v2092 = vunpack.c.l.b16 %v356
    %v2093 = vunpack.c.h.b16 %v356
    %v2094 = vunpack.c.l.b16 %v357
    %v2095 = vunpack.c.h.b16 %v357
    %v2096 = vunpack.c.l.b16 %v358
    %v2097 = vunpack.c.h.b16 %v358
    %v2098 = vunpack.c.l.b16 %v359
    %v2099 = vunpack.c.h.b16 %v359
    %v2100 = vunpack.c.l.b16 %v360
    %v2101 = vunpack.c.h.b16 %v360
    %v2102 = vunpack.c.l.b16 %v361
    %v2103 = vunpack.c.h.b16 %v361
    %v2104 = vunpack.c.l.b16 %v362
    %v2105 = vunpack.c.h.b16 %v362
    %v2106 = vunpack.c.l.b16 %v363
    %v2107 = vunpack.c.h.b16 %v363
    %v2108 = vunpack.c.l.b16 %v364
    %v2109 = vunpack.c.h.b16 %v364
    %v2110 = vunpack.c.l.b16 %v365
    %v2111 = vunpack.c.h.b16 %v365
    %v2112 = vunpack.c.l.b16 %v366
    %v2113 = vunpack.c.h.b16 %v366
    %v2114 = vunpack.c.l.b16 %v367
    %v2115 = vunpack.c.h.b16 %v367
    %v2116 = vunpack.c.l.b16 %v368
    %v2117 = vunpack.c.h.b16 %v368
    %v2118 = vunpack.c.l.b16 %v369
    %v2119 = vunpack.c.h.b16 %v369
    %v2120 = vunpack.c.l.b16 %v370
    %v2121 = vunpack.c.h.b16 %v370
    %v2122 = vunpack.c.l.b16 %v371
    %v2123 = vunpack.c.h.b16 %v371
    %v2124 = vunpack.c.l.b16 %v372
    %v2125 = vunpack.c.h.b16 %v372
    %v2126 = vunpack.c.l.b16 %v373
    %v2127 = vunpack.c.h.b16 %v373
    %v2128 = vunpack.c.l.b16 %v374
    %v2129 = vunpack.c.h.b16 %v374
    %v2130 = vunpack.c.l.b16 %v375
    %v2131 = vunpack.c.h.b16 %v375
    %v2132 = vunpack.c.l.b16 %v376
    %v2133 = vunpack.c.h.b16 %v376
    %v2134 = vunpack.c.l.b16 %v377
    %v2135 = vunpack.c.h.b16 %v377
    %v2136 = vunpack.c.l.b16 %v378
    %v2137 = vunpack.c.h.b16 %v378
    %v2138 = vunpack.c.l.b16 %v379
    %v2139 = vunpack.c.h.b16 %v379
    %v2140 = vunpack.c.l.b16 %v380
    %v2141 = vunpack.c.h.b16 %v380
    %v2142 = vunpack.c.l.b16 %v381
    %v2143 = vunpack.c.h.b16 %v381
    %v2144 = vunpack.c.l.b16 %v382
    %v2145 = vunpack.c.h.b16 %v382
    %v2146 = vunpack.c.l.b16 %v383
    %v2147 = vunpack.c.h.b16 %v383
    %v2148 = vunpack.c.l.b16 %v384
    %v2149 = vunpack.c.h.b16 %v384
    %v2150 = vunpack.c.l.b16 %v385
    %v2151 = vunpack.c.h.b16 %v385
    %v2152 = vunpack.c.l.b16 %v386
    %v2153 = vunpack.c.h.b16 %v386
    %v2154 = vunpack.c.l.b16 %v387
    %v2155 = vunpack.c.h.b16 %v387
    %v2156 = vunpack.c.l.b16 %v388
    %v2157 = vunpack.c.h.b16 %v388
    %v2158 = vunpack.c.l.b16 %v389
    %v2159 = vunpack.c.h.b16 %v389
    %v2160 = vunpack.c.l.b16 %v390
    %v2161 = vunpack.c.h.b16 %v390
    %v2162 = vunpack.c.l.b16 %v391
    %v2163 = vunpack.c.h.b16 %v391
    %v2164 = vunpack.c.l.b16 %v392
    %v2165 = vunpack.c.h.b16 %v392
    %v2166 = vunpack.c.l.b16 %v393
    %v2167 = vunpack.c.h.b16 %v393
    %v2168 = vunpack.c.l.b16 %v394
    %v2169 = vunpack.c.h.b16 %v394
    %v2170 = vunpack.c.l.b16 %v395
    %v2171 = vunpack.c.h.b16 %v395
    %v2172 = vunpack.c.l.b16 %v396
    %v2173 = vunpack.c.h.b16 %v396
    %v2174 = vunpack.c.l.b16 %v397
    %v2175 = vunpack.c.h.b16 %v397
    %v2176 = vunpack.c.l.b16 %v398
    %v2177 = vunpack.c.h.b16 %v398
    %v2178 = vunpack.c.l.b16 %v399
    %v2179 = vunpack.c.h.b16 %v399
    %v2180 = vunpack.c.l.b16 %v400
    %v2181 = vunpack.c.h.b16 %v400
    %v2182 = vunpack.c.l.b16 %v401
    %v2183 = vunpack.c.h.b16 %v401
    %v2184 = vunpack.c.l.b16 %v402
    %v2185 = vunpack.c.h.b16 %v402
    %v2186 = vunpack.c.l.b16 %v403
    %v2187 = vunpack.c.h.b16 %v403
    %v2188 = vunpack.c.l.b16 %v404
    %v2189 = vunpack.c.h.b16 %v404
    %v2190 = vunpack.c.l.b16 %v405
    %v2191 = vunpack.c.h.b16 %v405
    %v2192 = vunpack.c.l.b16 %v406
    %v2193 = vunpack.c.h.b16 %v406
    %v2194 = vunpack.c.l.b16 %v407
    %v2195 = vunpack.c.h.b16 %v407
    %v2196 = vunpack.c.l.b16 %v408
    %v2197 = vunpack.c.h.b16 %v408
    %v2198 = vunpack.c.l.b16 %v409
    %v2199 = vunpack.c.h.b16 %v409
    %v2200 = vunpack.c.l.b16 %v410
    %v2201 = vunpack.c.h.b16 %v410
    %v2202 = vunpack.c.l.b16 %v411
    %v2203 = vunpack.c.h.b16 %v411
    %v2204 = vunpack.c.l.b16 %v412
    %v2205 = vunpack.c.h.b16 %v412
    %v2206 = vunpack.c.l.b16 %v413
    %v2207 = vunpack.c.h.b16 %v413
    %v2208 = vunpack.c.l.b16 %v414
    %v2209 = vunpack.c.h.b16 %v414
    %v2210 = vunpack.c.l.b16 %v415
    %v2211 = vunpack.c.h.b16 %v415
    %v2212 = vunpack.c.l.b16 %v416
    %v2213 = vunpack.c.h.b16 %v416
    %v2214 = vunpack.c.l.b16 %v417
    %v2215 = vunpack.c.h.b16 %v417
    %v2216 = vunpack.c.l.b16 %v418
    %v2217 = vunpack.c.h.b16 %v418
    %v2218 = vunpack.c.l.b16 %v419
    %v2219 = vunpack.c.h.b16 %v419
    %v2220 = vunpack.c.l.b16 %v420
    %v2221 = vunpack.c.h.b16 %v420
    %v2222 = vunpack.c.l.b16 %v421
    %v2223 = vunpack.c.h.b16 %v421
    %v2224 = vunpack.c.l.b16 %v422
    %v2225 = vunpack.c.h.b16 %v422
    %v2226 = vunpack.c.l.b16 %v423
    %v2227 = vunpack.c.h.b16 %v423
    %v2228 = vunpack.c.l.b16 %v424
    %v2229 = vunpack.c.h.b16 %v424
    %v2230 = vunpack.c.l.b16 %v425
    %v2231 = vunpack.c.h.b16 %v425
    %v2232 = vunpack.c.l.b16 %v426
    %v2233 = vunpack.c.h.b16 %v426
    %v2234 = vunpack.c.l.b16 %v427
    %v2235 = vunpack.c.h.b16 %v427
    %v2236 = vunpack.c.l.b16 %v428
    %v2237 = vunpack.c.h.b16 %v428
    %v2238 = vunpack.c.l.b16 %v429
    %v2239 = vunpack.c.h.b16 %v429
    %v2240 = vunpack.c.l.b16 %v430
    %v2241 = vunpack.c.h.b16 %v430
    %v2242 = vunpack.c.l.b16 %v431
    %v2243 = vunpack.c.h.b16 %v431
    %v2244 = vunpack.c.l.b16 %v432
    %v2245 = vunpack.c.h.b16 %v432
    %v2246 = vunpack.c.l.b16 %v433
    %v2247 = vunpack.c.h.b16 %v433
    %v2248 = vunpack.c.l.b16 %v434
    %v2249 = vunpack.c.h.b16 %v434
    %v2250 = vunpack.c.l.b16 %v435
    %v2251 = vunpack.c.h.b16 %v435
    %v2252 = vunpack.c.l.b16 %v436
    %v2253 = vunpack.c.h.b16 %v436
    %v2254 = vunpack.c.l.b16 %v437
    %v2255 = vunpack.c.h.b16 %v437
    %v2256 = vunpack.c.l.b16 %v438
    %v2257 = vunpack.c.h.b16 %v438
    %v2258 = vunpack.c.l.b16 %v439
    %v2259 = vunpack.c.h.b16 %v439
    %v2260 = vunpack.c.l.b16 %v440
    %v2261 = vunpack.c.h.b16 %v440
    %v2262 = vunpack.c.l.b16 %v441
    %v2263 = vunpack.c.h.b16 %v441
    %v2264 = vunpack.c.l.b16 %v442
    %v2265 = vunpack.c.h.b16 %v442
    %v2266 = vunpack.c.l.b16 %v443
    %v2267 = vunpack.c.h.b16 %v443
    %v2268 = vunpack.c.l.b16 %v444
    %v2269 = vunpack.c.h.b16 %v444
    %v2270 = vunpack.c.l.b16 %v445
    %v2271 = vunpack.c.h.b16 %v445
    %v2272 = vunpack.c.l.b16 %v446
    %v2273 = vunpack.c.h.b16 %v446
    %v2274 = vunpack.c.l.b16 %v447
    %v2275 = vunpack.c.h.b16 %v447
    %v2276 = vunpack.c.l.b16 %v448
    %v2277 = vunpack.c.h.b16 %v448
    %v2278 = vunpack.c.l.b16 %v449
    %v2279 = vunpack.c.h.b16 %v449
    %v2280 = vunpack.c.l.b16 %v450
    %v2281 = vunpack.c.h.b16 %v450
    %v2282 = vunpack.c.l.b16 %v451
    %v2283 = vunpack.c.h.b16 %v451
    %v2284 = vunpack.c.l.b16 %v452
    %v2285 = vunpack.c.h.b16 %v452
    %v2286 = vunpack.c.l.b16 %v453
    %v2287 = vunpack.c.h.b16 %v453
    %v2288 = vunpack.c.l.b16 %v454
    %v2289 = vunpack.c.h.b16 %v454
    %v2290 = vunpack.c.l.b16 %v455
    %v2291 = vunpack.c.h.b16 %v455
    %v2292 = vunpack.c.l.b16 %v456
    %v2293 = vunpack.c.h.b16 %v456
    %v2294 = vunpack.c.l.b16 %v457
    %v2295 = vunpack.c.h.b16 %v457
    %v2296 = vunpack.c.l.b16 %v458
    %v2297 = vunpack.c.h.b16 %v458
    %v2298 = vunpack.c.l.b16 %v459
    %v2299 = vunpack.c.h.b16 %v459
    %v2300 = vunpack.c.l.b16 %v460
    %v2301 = vunpack.c.h.b16 %v460
    %v2302 = vunpack.c.l.b16 %v461
    %v2303 = vunpack.c.h.b16 %v461
    %v2304 = vunpack.c.l.b16 %v462
    %v2305 = vunpack.c.h.b16 %v462
    %v2306 = vunpack.c.l.b16 %v463
    %v2307 = vunpack.c.h.b16 %v463
    %v2308 = vunpack.c.l.b16 %v464
    %v2309 = vunpack.c.h.b16 %v464
    %v2310 = vunpack.c.l.b16 %v465
    %v2311 = vunpack.c.h.b16 %v465
    %v2312 = vunpack.c.l.b16 %v466
    %v2313 = vunpack.c.h.b16 %v466
    %v2314 = vunpack.c.l.b16 %v467
    %v2315 = vunpack.c.h.b16 %v467
    %v2316 = vunpack.c.l.b16 %v468
    %v2317 = vunpack.c.h.b16 %v468
    %v2318 = vunpack.c.l.b16 %v469
    %v2319 = vunpack.c.h.b16 %v469
    %v2320 = vunpack.c.l.b16 %v470
    %v2321 = vunpack.c.h.b16 %v470
    %v2322 = vunpack.c.l.b16 %v471
    %v2323 = vunpack.c.h.b16 %v471
    %v2324 = vunpack.c.l.b16 %v472
    %v2325 = vunpack.c.h.b16 %v472
    %v2326 = vunpack.c.l.b16 %v473
    %v2327 = vunpack.c.h.b16 %v473
    %v2328 = vunpack.c.l.b16 %v474
    %v2329 = vunpack.c.h.b16 %v474
    %v2330 = vunpack.c.l.b16 %v475
    %v2331 = vunpack.c.h.b16 %v475
    %v2332 = vunpack.c.l.b16 %v476
    %v2333 = vunpack.c.h.b16 %v476
    %v2334 = vunpack.c.l.b16 %v477
    %v2335 = vunpack.c.h.b16 %v477
    %v2336 = vunpack.c.l.b16 %v478
    %v2337 = vunpack.c.h.b16 %v478
    %v2338 = vunpack.c.l.b16 %v479
    %v2339 = vunpack.c.h.b16 %v479
    %v2340 = vunpack.c.l.b16 %v480
    %v2341 = vunpack.c.h.b16 %v480
    %v2342 = vunpack.c.l.b16 %v481
    %v2343 = vunpack.c.h.b16 %v481
    %v2344 = vunpack.c.l.b16 %v482
    %v2345 = vunpack.c.h.b16 %v482
    %v2346 = vunpack.c.l.b16 %v483
    %v2347 = vunpack.c.h.b16 %v483
    %v2348 = vunpack.c.l.b16 %v484
    %v2349 = vunpack.c.h.b16 %v484
    %v2350 = vunpack.c.l.b16 %v485
    %v2351 = vunpack.c.h.b16 %v485
    %v2352 = vunpack.c.l.b16 %v486
    %v2353 = vunpack.c.h.b16 %v486
    %v2354 = vunpack.c.l.b16 %v487
    %v2355 = vunpack.c.h.b16 %v487
    %v2356 = vunpack.c.l.b16 %v488
    %v2357 = vunpack.c.h.b16 %v488
    %v2358 = vunpack.c.l.b16 %v489
    %v2359 = vunpack.c.h.b16 %v489
    %v2360 = vunpack.c.l.b16 %v490
    %v2361 = vunpack.c.h.b16 %v490
    %v2362 = vunpack.c.l.b16 %v491
    %v2363 = vunpack.c.h.b16 %v491
    %v2364 = vunpack.c.l.b16 %v492
    %v2365 = vunpack.c.h.b16 %v492
    %v2366 = vunpack.c.l.b16 %v493
    %v2367 = vunpack.c.h.b16 %v493
    %v2368 = vunpack.c.l.b16 %v494
    %v2369 = vunpack.c.h.b16 %v494
    %v2370 = vunpack.c.l.b16 %v495
    %v2371 = vunpack.c.h.b16 %v495
    %v2372 = vunpack.c.l.b16 %v496
    %v2373 = vunpack.c.h.b16 %v496
    %v2374 = vunpack.c.l.b16 %v497
    %v2375 = vunpack.c.h.b16 %v497
    %v2376 = vunpack.c.l.b16 %v498
    %v2377 = vunpack.c.h.b16 %v498
    %v2378 = vunpack.c.l.b16 %v499
    %v2379 = vunpack.c.h.b16 %v499
    %v2380 = vunpack.c.l.b16 %v500
    %v2381 = vunpack.c.h.b16 %v500
    %v2382 = vunpack.c.l.b16 %v501
    %v2383 = vunpack.c.h.b16 %v501
    %v2384 = vunpack.c.l.b16 %v502
    %v2385 = vunpack.c.h.b16 %v502
    %v2386 = vunpack.c.l.b16 %v503
    %v2387 = vunpack.c.h.b16 %v503
    %v2388 = vunpack.c.l.b16 %v504
    %v2389 = vunpack.c.h.b16 %v504
    %v2390 = vunpack.c.l.b16 %v505
    %v2391 = vunpack.c.h.b16 %v505
    %v2392 = vunpack.c.l.b16 %v506
    %v2393 = vunpack.c.h.b16 %v506
    %v2394 = vunpack.c.l.b16 %v507
    %v2395 = vunpack.c.h.b16 %v507
    %v2396 = vunpack.c.l.b16 %v508
    %v2397 = vunpack.c.h.b16 %v508
    %v2398 = vunpack.c.l.b16 %v509
    %v2399 = vunpack.c.h.b16 %v509
    %v2400 = vunpack.c.l.b16 %v510
    %v2401 = vunpack.c.h.b16 %v510
    %v2402 = vunpack.c.l.b16 %v511
    %v2403 = vunpack.c.h.b16 %v511
    %v2404 = vunpack.c.l.b16 %v512
    %v2405 = vunpack.c.h.b16 %v512
    %v2406 = vunpack.c.l.b16 %v513
    %v2407 = vunpack.c.h.b16 %v513
    %v2408 = vunpack.c.l.b16 %v514
    %v2409 = vunpack.c.h.b16 %v514
    %v2410 = vunpack.c.l.b16 %v515
    %v2411 = vunpack.c.h.b16 %v515
    %v2412 = vunpack.c.l.b16 %v516
    %v2413 = vunpack.c.h.b16 %v516
    %v2414 = vunpack.c.l.b16 %v517
    %v2415 = vunpack.c.h.b16 %v517
    %v2416 = vunpack.c.l.b16 %v518
    %v2417 = vunpack.c.h.b16 %v518
    %v2418 = vunpack.c.l.b16 %v519
    %v2419 = vunpack.c.h.b16 %v519
    %v2420 = vunpack.c.l.b16 %v520
    %v2421 = vunpack.c.h.b16 %v520
    %v2422 = vunpack.c.l.b16 %v521
    %v2423 = vunpack.c.h.b16 %v521
    %v2424 = vunpack.c.l.b16 %v522
    %v2425 = vunpack.c.h.b16 %v522
    %v2426 = vunpack.c.l.b16 %v523
    %v2427 = vunpack.c.h.b16 %v523
    %v2428 = vunpack.c.l.b16 %v524
    %v2429 = vunpack.c.h.b16 %v524
    %v2430 = vunpack.c.l.b16 %v525
    %v2431 = vunpack.c.h.b16 %v525
    %v2432 = vunpack.c.l.b16 %v526
    %v2433 = vunpack.c.h.b16 %v526
    %v2434 = vunpack.c.l.b16 %v527
    %v2435 = vunpack.c.h.b16 %v527
    %v2436 = vunpack.c.l.b16 %v528
    %v2437 = vunpack.c.h.b16 %v528
    %v2438 = vunpack.c.l.b16 %v529
    %v2439 = vunpack.c.h.b16 %v529
    %v2440 = vunpack.c.l.b16 %v530
    %v2441 = vunpack.c.h.b16 %v530
    %v2442 = vunpack.c.l.b16 %v531
    %v2443 = vunpack.c.h.b16 %v531
    %v2444 = vunpack.c.l.b16 %v532
    %v2445 = vunpack.c.h.b16 %v532
    %v2446 = vunpack.c.l.b16 %v533
    %v2447 = vunpack.c.h.b16 %v533
    %v2448 = vunpack.c.l.b16 %v534
    %v2449 = vunpack.c.h.b16 %v534
    %v2450 = vunpack.c.l.b16 %v535
    %v2451 = vunpack.c.h.b16 %v535
    %v2452 = vunpack.c.l.b16 %v536
    %v2453 = vunpack.c.h.b16 %v536
    %v2454 = vunpack.c.l.b16 %v537
    %v2455 = vunpack.c.h.b16 %v537
    %v2456 = vunpack.c.l.b16 %v538
    %v2457 = vunpack.c.h.b16 %v538
    %v2458 = vunpack.c.l.b16 %v539
    %v2459 = vunpack.c.h.b16 %v539
    %v2460 = vunpack.c.l.b16 %v540
    %v2461 = vunpack.c.h.b16 %v540
    %v2462 = vunpack.c.l.b16 %v541
    %v2463 = vunpack.c.h.b16 %v541
    %v2464 = vunpack.c.l.b16 %v542
    %v2465 = vunpack.c.h.b16 %v542
    %v2466 = vunpack.c.l.b16 %v543
    %v2467 = vunpack.c.h.b16 %v543
    %v2468 = vunpack.c.l.b16 %v544
    %v2469 = vunpack.c.h.b16 %v544
    %v2470 = vunpack.c.l.b16 %v545
    %v2471 = vunpack.c.h.b16 %v545
    %v2472 = vunpack.c.l.b16 %v546
    %v2473 = vunpack.c.h.b16 %v546
    %v2474 = vunpack.c.l.b16 %v547
    %v2475 = vunpack.c.h.b16 %v547
    %v2476 = vunpack.c.l.b16 %v548
    %v2477 = vunpack.c.h.b16 %v548
    %v2478 = vunpack.c.l.b16 %v549
    %v2479 = vunpack.c.h.b16 %v549
    %v2480 = vunpack.c.l.b16 %v550
    %v2481 = vunpack.c.h.b16 %v550
    %v2482 = vunpack.c.l.b16 %v551
    %v2483 = vunpack.c.h.b16 %v551
    %v2484 = vunpack.c.l.b16 %v552
    %v2485 = vunpack.c.h.b16 %v552
    %v2486 = vunpack.c.l.b16 %v553
    %v2487 = vunpack.c.h.b16 %v553
    %v2488 = vunpack.c.l.b16 %v554
    %v2489 = vunpack.c.h.b16 %v554
    %v2490 = vunpack.c.l.b16 %v555
    %v2491 = vunpack.c.h.b16 %v555
    %v2492 = vunpack.c.l.b16 %v556
    %v2493 = vunpack.c.h.b16 %v556
    %v2494 = vunpack.c.l.b16 %v557
    %v2495 = vunpack.c.h.b16 %v557
    %v2496 = vunpack.c.l.b16 %v558
    %v2497 = vunpack.c.h.b16 %v558
    %v2498 = vunpack.c.l.b16 %v559
    %v2499 = vunpack.c.h.b16 %v559
    %v2500 = vunpack.c.l.b16 %v560
    %v2501 = vunpack.c.h.b16 %v560
    %v2502 = vunpack.c.l.b16 %v561
    %v2503 = vunpack.c.h.b16 %v561
    %v2504 = vunpack.c.l.b16 %v562
    %v2505 = vunpack.c.h.b16 %v562
    %v2506 = vunpack.c.l.b16 %v563
    %v2507 = vunpack.c.h.b16 %v563
    %v2508 = vunpack.c.l.b16 %v564
    %v2509 = vunpack.c.h.b16 %v564
    %v2510 = vunpack.c.l.b16 %v565
    %v2511 = vunpack.c.h.b16 %v565
    %v2512 = vunpack.c.l.b16 %v566
    %v2513 = vunpack.c.h.b16 %v566
    %v2514 = vunpack.c.l.b16 %v567
    %v2515 = vunpack.c.h.b16 %v567
    %v2516 = vunpack.c.l.b16 %v568
    %v2517 = vunpack.c.h.b16 %v568
    %v2518 = vunpack.c.l.b16 %v569
    %v2519 = vunpack.c.h.b16 %v569
    %v2520 = vunpack.c.l.b16 %v570
    %v2521 = vunpack.c.h.b16 %v570
    %v2522 = vunpack.c.l.b16 %v571
    %v2523 = vunpack.c.h.b16 %v571
    %v2524 = vunpack.c.l.b16 %v572
    %v2525 = vunpack.c.h.b16 %v572
    %v2526 = vunpack.c.l.b16 %v573
    %v2527 = vunpack.c.h.b16 %v573
    %v2528 = vunpack.c.l.b16 %v574
    %v2529 = vunpack.c.h.b16 %v574
    %v2530 = vunpack.c.l.b16 %v575
    %v2531 = vunpack.c.h.b16 %v575
    %v2532 = vunpack.c.l.b16 %v576
    %v2533 = vunpack.c.h.b16 %v576
    %v2534 = vunpack.c.l.b16 %v577
    %v2535 = vunpack.c.h.b16 %v577
    %v2536 = vunpack.c.l.b16 %v578
    %v2537 = vunpack.c.h.b16 %v578
    %v2538 = vunpack.c.l.b16 %v579
    %v2539 = vunpack.c.h.b16 %v579
    %v2540 = vunpack.c.l.b16 %v580
    %v2541 = vunpack.c.h.b16 %v580
    %v2542 = vunpack.c.l.b16 %v581
    %v2543 = vunpack.c.h.b16 %v581
    %v2544 = vunpack.c.l.b16 %v582
    %v2545 = vunpack.c.h.b16 %v582
    %v2546 = vunpack.c.l.b16 %v583
    %v2547 = vunpack.c.h.b16 %v583
    %v2548 = vunpack.c.l.b16 %v584
    %v2549 = vunpack.c.h.b16 %v584
    %v2550 = vunpack.c.l.b16 %v585
    %v2551 = vunpack.c.h.b16 %v585
    %v2552 = vunpack.c.l.b16 %v586
    %v2553 = vunpack.c.h.b16 %v586
    %v2554 = vunpack.c.l.b16 %v587
    %v2555 = vunpack.c.h.b16 %v587
    %v2556 = vunpack.c.l.b16 %v588
    %v2557 = vunpack.c.h.b16 %v588
    %v2558 = vunpack.c.l.b16 %v589
    %v2559 = vunpack.c.h.b16 %v589
    %v2560 = vunpack.c.l.b16 %v590
    %v2561 = vunpack.c.h.b16 %v590
    %v2562 = vunpack.c.l.b16 %v591
    %v2563 = vunpack.c.h.b16 %v591
    %v2564 = vunpack.c.l.b16 %v592
    %v2565 = vunpack.c.h.b16 %v592
    %v2566 = vunpack.c.l.b16 %v593
    %v2567 = vunpack.c.h.b16 %v593
    %v2568 = vunpack.c.l.b16 %v594
    %v2569 = vunpack.c.h.b16 %v594
    %v2570 = vunpack.c.l.b16 %v595
    %v2571 = vunpack.c.h.b16 %v595
    %v2572 = vunpack.c.l.b16 %v596
    %v2573 = vunpack.c.h.b16 %v596
    %v2574 = vunpack.c.l.b16 %v597
    %v2575 = vunpack.c.h.b16 %v597
    %v2576 = vunpack.c.l.b16 %v598
    %v2577 = vunpack.c.h.b16 %v598
    %v2578 = vunpack.c.l.b16 %v599
    %v2579 = vunpack.c.h.b16 %v599
    %v2580 = vunpack.c.l.b16 %v600
    %v2581 = vunpack.c.h.b16 %v600
    %v2582 = vunpack.c.l.b16 %v601
    %v2583 = vunpack.c.h.b16 %v601
    %v2584 = vunpack.c.l.b16 %v602
    %v2585 = vunpack.c.h.b16 %v602
    %v2586 = vunpack.c.l.b16 %v603
    %v2587 = vunpack.c.h.b16 %v603
    %v2588 = vunpack.c.l.b16 %v604
    %v2589 = vunpack.c.h.b16 %v604
    %v2590 = vunpack.c.l.b16 %v605
    %v2591 = vunpack.c.h.b16 %v605
    %v2592 = vunpack.c.l.b16 %v606
    %v2593 = vunpack.c.h.b16 %v606
    %v2594 = vunpack.c.l.b16 %v607
    %v2595 = vunpack.c.h.b16 %v607
    %v2596 = vunpack.c.l.b16 %v608
    %v2597 = vunpack.c.h.b16 %v608
    %v2598 = vunpack.c.l.b16 %v609
    %v2599 = vunpack.c.h.b16 %v609
    %v2600 = vunpack.c.l.b16 %v610
    %v2601 = vunpack.c.h.b16 %v610
    %v2602 = vunpack.c.l.b16 %v611
    %v2603 = vunpack.c.h.b16 %v611
    %v2604 = vunpack.c.l.b16 %v612
    %v2605 = vunpack.c.h.b16 %v612
    %v2606 = vunpack.c.l.b16 %v613
    %v2607 = vunpack.c.h.b16 %v613
    %v2608 = vunpack.c.l.b16 %v614
    %v2609 = vunpack.c.h.b16 %v614
    %v2610 = vunpack.c.l.b16 %v615
    %v2611 = vunpack.c.h.b16 %v615
    %v2612 = vunpack.c.l.b16 %v616
    %v2613 = vunpack.c.h.b16 %v616
    %v2614 = vunpack.c.l.b16 %v617
    %v2615 = vunpack.c.h.b16 %v617
    %v2616 = vunpack.c.l.b16 %v618
    %v2617 = vunpack.c.h.b16 %v618
    %v2618 = vunpack.c.l.b16 %v619
    %v2619 = vunpack.c.h.b16 %v619
    %v2620 = vunpack.c.l.b16 %v620
    %v2621 = vunpack.c.h.b16 %v620
    %v2622 = vunpack.c.l.b16 %v621
    %v2623 = vunpack.c.h.b16 %v621
    %v2624 = vunpack.c.l.b16 %v622
    %v2625 = vunpack.c.h.b16 %v622
    %v2626 = vunpack.c.l.b16 %v623
    %v2627 = vunpack.c.h.b16 %v623
    %v2628 = vunpack.c.l.b16 %v624
    %v2629 = vunpack.c.h.b16 %v624
    %v2630 = vunpack.c.l.b16 %v625
    %v2631 = vunpack.c.h.b16 %v625
    %v2632 = vunpack.c.l.b16 %v626
    %v2633 = vunpack.c.h.b16 %v626
    %v2634 = vunpack.c.l.b16 %v627
    %v2635 = vunpack.c.h.b16 %v627
    %v2636 = vunpack.c.l.b16 %v628
    %v2637 = vunpack.c.h.b16 %v628
    %v2638 = vunpack.c.l.b16 %v629
    %v2639 = vunpack.c.h.b16 %v629
    %v2640 = vunpack.c.l.b16 %v630
    %v2641 = vunpack.c.h.b16 %v630
    %v2642 = vunpack.c.l.b16 %v631
    %v2643 = vunpack.c.h.b16 %v631
    %v2644 = vunpack.c.l.b16 %v632
    %v2645 = vunpack.c.h.b16 %v632
    %v2646 = vunpack.c.l.b16 %v633
    %v2647 = vunpack.c.h.b16 %v633
    %v2648 = vunpack.c.l.b16 %v634
    %v2649 = vunpack.c.h.b16 %v634
    %v2650 = vunpack.c.l.b16 %v635
    %v2651 = vunpack.c.h.b16 %v635
    %v2652 = vunpack.c.l.b16 %v636
    %v2653 = vunpack.c.h.b16 %v636
    %v2654 = vunpack.c.l.b16 %v637
    %v2655 = vunpack.c.h.b16 %v637
    %v2656 = vunpack.c.l.b16 %v638
    %v2657 = vunpack.c.h.b16 %v638
    %v2658 = vunpack.c.l.b16 %v639
    %v2659 = vunpack.c.h.b16 %v639
    %v2660 = vunpack.c.l.b16 %v640
    %v2661 = vunpack.c.h.b16 %v640
    %v2662 = vunpack.c.l.b16 %v641
    %v2663 = vunpack.c.h.b16 %v641
    %v2664 = vunpack.c.l.b16 %v642
    %v2665 = vunpack.c.h.b16 %v642
    %v2666 = vunpack.c.l.b16 %v643
    %v2667 = vunpack.c.h.b16 %v643
    %v2668 = vunpack.c.l.b16 %v644
    %v2669 = vunpack.c.h.b16 %v644
    %v2670 = vunpack.c.l.b16 %v645
    %v2671 = vunpack.c.h.b16 %v645
    %v2672 = vunpack.c.l.b16 %v646
    %v2673 = vunpack.c.h.b16 %v646
    %v2674 = vunpack.c.l.b16 %v647
    %v2675 = vunpack.c.h.b16 %v647
    %v2676 = vunpack.c.l.b16 %v648
    %v2677 = vunpack.c.h.b16 %v648
    %v2678 = vunpack.c.l.b16 %v649
    %v2679 = vunpack.c.h.b16 %v649
    %v2680 = vunpack.c.l.b16 %v650
    %v2681 = vunpack.c.h.b16 %v650
    %v2682 = vunpack.c.l.b16 %v651
    %v2683 = vunpack.c.h.b16 %v651
    %v2684 = vunpack.c.l.b16 %v652
    %v2685 = vunpack.c.h.b16 %v652
    %v2686 = vunpack.c.l.b16 %v653
    %v2687 = vunpack.c.h.b16 %v653
    %v2688 = vunpack.c.l.b16 %v654
    %v2689 = vunpack.c.h.b16 %v654
    %v2690 = vunpack.c.l.b16 %v655
    %v2691 = vunpack.c.h.b16 %v655
    %v2692 = vunpack.c.l.b16 %v656
    %v2693 = vunpack.c.h.b16 %v656
    %v2694 = vunpack.c.l.b16 %v657
    %v2695 = vunpack.c.h.b16 %v657
    %v2696 = vunpack.c.l.b16 %v658
    %v2697 = vunpack.c.h.b16 %v658
    %v2698 = vunpack.c.l.b16 %v659
    %v2699 = vunpack.c.h.b16 %v659
    %v2700 = vunpack.c.l.b16 %v660
    %v2701 = vunpack.c.h.b16 %v660
    %v2702 = vunpack.c.l.b16 %v661
    %v2703 = vunpack.c.h.b16 %v661
    %v2704 = vunpack.c.l.b16 %v662
    %v2705 = vunpack.c.h.b16 %v662
    %v2706 = vunpack.c.l.b16 %v663
    %v2707 = vunpack.c.h.b16 %v663
    %v2708 = vunpack.c.l.b16 %v664
    %v2709 = vunpack.c.h.b16 %v664
    %v2710 = vunpack.c.l.b16 %v665
    %v2711 = vunpack.c.h.b16 %v665
    %v2712 = vunpack.c.l.b16 %v666
    %v2713 = vunpack.c.h.b16 %v666
    %v2714 = vunpack.c.l.b16 %v667
    %v2715 = vunpack.c.h.b16 %v667
    %v2716 = vunpack.c.l.b16 %v668
    %v2717 = vunpack.c.h.b16 %v668
    %v2718 = vpack.c.b16 %v1454, %v1438
    %v2719 = vpack.c.b16 %v1455, %v1439
    %v2720 = vpack.c.b16 %v1456, %v1440
    %v2721 = vpack.c.b16 %v1457, %v1441
    %v2722 = vpack.c.b16 %v1458, %v1442
    %v2723 = vpack.c.b16 %v1459, %v1443
    %v2724 = vpack.c.b16 %v1460, %v1444
    %v2725 = vpack.c.b16 %v1461, %v1445
    %v2726 = vpack.c.b16 %v1462, %v1446
    %v2727 = vpack.c.b16 %v1463, %v1447
    %v2728 = vpack.c.b16 %v1464, %v1448
    %v2729 = vpack.c.b16 %v1465, %v1449
    %v2730 = vpack.c.b16 %v1466, %v1450
    %v2731 = vpack.c.b16 %v1467, %v1451
    %v2732 = vpack.c.b16 %v1468, %v1452
    %v2733 = vpack.c.b16 %v1469, %v1453
    %v2734 = vpack.c.b16 %v1486, %v1470
    %v2735 = vpack.c.b16 %v1487, %v1471
    %v2736 = vpack.c.b16 %v1488, %v1472
    %v2737 = vpack.c.b16 %v1489, %v1473
    %v2738 = vpack.c.b16 %v1490, %v1474
    %v2739 = vpack.c.b16 %v1491, %v1475
    %v2740 = vpack.c.b16 %v1492, %v1476
    %v2741 = vpack.c.b16 %v1493, %v1477
    %v2742 = vpack.c.b16 %v1494, %v1478
    %v2743 = vpack.c.b16 %v1495, %v1479
    %v2744 = vpack.c.b16 %v1496, %v1480
    %v2745 = vpack.c.b16 %v1497, %v1481
    %v2746 = vpack.c.b16 %v1498, %v1482
    %v2747 = vpack.c.b16 %v1499, %v1483
    %v2748 = vpack.c.b16 %v1500, %v1484
    %v2749 = vpack.c.b16 %v1501, %v1485
    %v2750 = vpack.c.b16 %v1518, %v1502
    %v2751 = vpack.c.b16 %v1519, %v1503
    %v2752 = vpack.c.b16 %v1520, %v1504
    %v2753 = vpack.c.b16 %v1521, %v1505
    %v2754 = vpack.c.b16 %v1522, %v1506
    %v2755 = vpack.c.b16 %v1523, %v1507
    %v2756 = vpack.c.b16 %v1524, %v1508
    %v2757 = vpack.c.b16 %v1525, %v1509
    %v2758 = vpack.c.b16 %v1526, %v1510
    %v2759 = vpack.c.b16 %v1527, %v1511
    %v2760 = vpack.c.b16 %v1528, %v1512
    %v2761 = vpack.c.b16 %v1529, %v1513
    %v2762 = vpack.c.b16 %v1530, %v1514
    %v2763 = vpack.c.b16 %v1531, %v1515
    %v2764 = vpack.c.b16 %v1532, %v1516
    %v2765 = vpack.c.b16 %v1533, %v1517
    %v2766 = vpack.c.b16 %v1550, %v1534
    %v2767 = vpack.c.b16 %v1551, %v1535
    %v2768 = vpack.c.b16 %v1552, %v1536
    %v2769 = vpack.c.b16 %v1553, %v1537
    %v2770 = vpack.c.b16 %v1554, %v1538
    %v2771 = vpack.c.b16 %v1555, %v1539
    %v2772 = vpack.c.b16 %v1556, %v1540
    %v2773 = vpack.c.b16 %v1557, %v1541
    %v2774 = vpack.c.b16 %v1558, %v1542
    %v2775 = vpack.c.b16 %v1559, %v1543
    %v2776 = vpack.c.b16 %v1560, %v1544
    %v2777 = vpack.c.b16 %v1561, %v1545
    %v2778 = vpack.c.b16 %v1562, %v1546
    %v2779 = vpack.c.b16 %v1563, %v1547
    %v2780 = vpack.c.b16 %v1564, %v1548
    %v2781 = vpack.c.b16 %v1565, %v1549
    %v2782 = vpack.c.b16 %v1582, %v1566
    %v2783 = vpack.c.b16 %v1583, %v1567
    %v2784 = vpack.c.b16 %v1584, %v1568
    %v2785 = vpack.c.b16 %v1585, %v1569
    %v2786 = vpack.c.b16 %v1586, %v1570
    %v2787 = vpack.c.b16 %v1587, %v1571
    %v2788 = vpack.c.b16 %v1588, %v1572
    %v2789 = vpack.c.b16 %v1589, %v1573
    %v2790 = vpack.c.b16 %v1590, %v1574
    %v2791 = vpack.c.b16 %v1591, %v1575
    %v2792 = vpack.c.b16 %v1592, %v1576
    %v2793 = vpack.c.b16 %v1593, %v1577
    %v2794 = vpack.c.b16 %v1594, %v1578
    %v2795 = vpack.c.b16 %v1595, %v1579
    %v2796 = vpack.c.b16 %v1596, %v1580
    %v2797 = vpack.c.b16 %v1597, %v1581
    %v2798 = vpack.c.b16 %v1614, %v1598
    %v2799 = vpack.c.b16 %v1615, %v1599
    %v2800 = vpack.c.b16 %v1616, %v1600
    %v2801 = vpack.c.b16 %v1617, %v1601
    %v2802 = vpack.c.b16 %v1618, %v1602
    %v2803 = vpack.c.b16 %v1619, %v1603
    %v2804 = vpack.c.b16 %v1620, %v1604
    %v2805 = vpack.c.b16 %v1621, %v1605
    %v2806 = vpack.c.b16 %v1622, %v1606
    %v2807 = vpack.c.b16 %v1623, %v1607
    %v2808 = vpack.c.b16 %v1624, %v1608
    %v2809 = vpack.c.b16 %v1625, %v1609
    %v2810 = vpack.c.b16 %v1626, %v1610
    %v2811 = vpack.c.b16 %v1627, %v1611
    %v2812 = vpack.c.b16 %v1628, %v1612
    %v2813 = vpack.c.b16 %v1629, %v1613
    %v2814 = vpack.c.b16 %v1646, %v1630
    %v2815 = vpack.c.b16 %v1647, %v1631
    %v2816 = vpack.c.b16 %v1648, %v1632
    %v2817 = vpack.c.b16 %v1649, %v1633
    %v2818 = vpack.c.b16 %v1650, %v1634
    %v2819 = vpack.c.b16 %v1651, %v1635
    %v2820 = vpack.c.b16 %v1652, %v1636
    %v2821 = vpack.c.b16 %v1653, %v1637
    %v2822 = vpack.c.b16 %v1654, %v1638
    %v2823 = vpack.c.b16 %v1655, %v1639
    %v2824 = vpack.c.b16 %v1656, %v1640
    %v2825 = vpack.c.b16 %v1657, %v1641
    %v2826 = vpack.c.b16 %v1658, %v1642
    %v2827 = vpack.c.b16 %v1659, %v1643
    %v2828 = vpack.c.b16 %v1660, %v1644
    %v2829 = vpack.c.b16 %v1661, %v1645
    %v2830 = vpack.c.b16 %v1678, %v1662
    %v2831 = vpack.c.b16 %v1679, %v1663
    %v2832 = vpack.c.b16 %v1680, %v1664
    %v2833 = vpack.c.b16 %v1681, %v1665
    %v2834 = vpack.c.b16 %v1682, %v1666
    %v2835 = vpack.c.b16 %v1683, %v1667
    %v2836 = vpack.c.b16 %v1684, %v1668
    %v2837 = vpack.c.b16 %v1685, %v1669
    %v2838 = vpack.c.b16 %v1686, %v1670
    %v2839 = vpack.c.b16 %v1687, %v1671
    %v2840 = vpack.c.b16 %v1688, %v1672
    %v2841 = vpack.c.b16 %v1689, %v1673
    %v2842 = vpack.c.b16 %v1690, %v1674
    %v2843 = vpack.c.b16 %v1691, %v1675
    %v2844 = vpack.c.b16 %v1692, %v1676
    %v2845 = vpack.c.b16 %v1693, %v1677
    %v2846 = vpack.c.b16 %v1710, %v1694
    %v2847 = vpack.c.b16 %v1711, %v1695
    %v2848 = vpack.c.b16 %v1712, %v1696
    %v2849 = vpack.c.b16 %v1713, %v1697
    %v2850 = vpack.c.b16 %v1714, %v1698
    %v2851 = vpack.c.b16 %v1715, %v1699
    %v2852 = vpack.c.b16 %v1716, %v1700
    %v2853 = vpack.c.b16 %v1717, %v1701
    %v2854 = vpack.c.b16 %v1718, %v1702
    %v2855 = vpack.c.b16 %v1719, %v1703
    %v2856 = vpack.c.b16 %v1720, %v1704
    %v2857 = vpack.c.b16 %v1721, %v1705
    %v2858 = vpack.c.b16 %v1722, %v1706
    %v2859 = vpack.c.b16 %v1723, %v1707
    %v2860 = vpack.c.b16 %v1724, %v1708
    %v2861 = vpack.c.b16 %v1725, %v1709
    %v2862 = vpack.c.b16 %v1742, %v1726
    %v2863 = vpack.c.b16 %v1743, %v1727
    %v2864 = vpack.c.b16 %v1744, %v1728
    %v2865 = vpack.c.b16 %v1745, %v1729
    %v2866 = vpack.c.b16 %v1746, %v1730
    %v2867 = vpack.c.b16 %v1747, %v1731
    %v2868 = vpack.c.b16 %v1748, %v1732
    %v2869 = vpack.c.b16 %v1749, %v1733
    %v2870 = vpack.c.b16 %v1750, %v1734
    %v2871 = vpack.c.b16 %v1751, %v1735
    %v2872 = vpack.c.b16 %v1752, %v1736
    %v2873 = vpack.c.b16 %v1753, %v1737
    %v2874 = vpack.c.b16 %v1754, %v1738
    %v2875 = vpack.c.b16 %v1755, %v1739
    %v2876 = vpack.c.b16 %v1756, %v1740
    %v2877 = vpack.c.b16 %v1757, %v1741
    %v2878 = vpack.c.b16 %v1774, %v1758
    %v2879 = vpack.c.b16 %v1775, %v1759
    %v2880 = vpack.c.b16 %v1776, %v1760
    %v2881 = vpack.c.b16 %v1777, %v1761
    %v2882 = vpack.c.b16 %v1778, %v1762
    %v2883 = vpack.c.b16 %v1779, %v1763
    %v2884 = vpack.c.b16 %v1780, %v1764
    %v2885 = vpack.c.b16 %v1781, %v1765
    %v2886 = vpack.c.b16 %v1782, %v1766
    %v2887 = vpack.c.b16 %v1783, %v1767
    %v2888 = vpack.c.b16 %v1784, %v1768
    %v2889 = vpack.c.b16 %v1785, %v1769
    %v2890 = vpack.c.b16 %v1786, %v1770
    %v2891 = vpack.c.b16 %v1787, %v1771
    %v2892 = vpack.c.b16 %v1788, %v1772
    %v2893 = vpack.c.b16 %v1789, %v1773
    %v2894 = vpack.c.b16 %v1806, %v1790
    %v2895 = vpack.c.b16 %v1807, %v1791
    %v2896 = vpack.c.b16 %v1808, %v1792
    %v2897 = vpack.c.b16 %v1809, %v1793
    %v2898 = vpack.c.b16 %v1810, %v1794
    %v2899 = vpack.c.b16 %v1811, %v1795
    %v2900 = vpack.c.b16 %v1812, %v1796
    %v2901 = vpack.c.b16 %v1813, %v1797
    %v2902 = vpack.c.b16 %v1814, %v1798
    %v2903 = vpack.c.b16 %v1815, %v1799
    %v2904 = vpack.c.b16 %v1816, %v1800
    %v2905 = vpack.c.b16 %v1817, %v1801
    %v2906 = vpack.c.b16 %v1818, %v1802
    %v2907 = vpack.c.b16 %v1819, %v1803
    %v2908 = vpack.c.b16 %v1820, %v1804
    %v2909 = vpack.c.b16 %v1821, %v1805
    %v2910 = vpack.c.b16 %v1838, %v1822
    %v2911 = vpack.c.b16 %v1839, %v1823
    %v2912 = vpack.c.b16 %v1840, %v1824
    %v2913 = vpack.c.b16 %v1841, %v1825
    %v2914 = vpack.c.b16 %v1842, %v1826
    %v2915 = vpack.c.b16 %v1843, %v1827
    %v2916 = vpack.c.b16 %v1844, %v1828
    %v2917 = vpack.c.b16 %v1845, %v1829
    %v2918 = vpack.c.b16 %v1846, %v1830
    %v2919 = vpack.c.b16 %v1847, %v1831
    %v2920 = vpack.c.b16 %v1848, %v1832
    %v2921 = vpack.c.b16 %v1849, %v1833
    %v2922 = vpack.c.b16 %v1850, %v1834
    %v2923 = vpack.c.b16 %v1851, %v1835
    %v2924 = vpack.c.b16 %v1852, %v1836
    %v2925 = vpack.c.b16 %v1853, %v1837
    %v2926 = vpack.c.b16 %v1870, %v1854
    %v2927 = vpack.c.b16 %v1871, %v1855
    %v2928 = vpack.c.b16 %v1872, %v1856
    %v2929 = vpack.c.b16 %v1873, %v1857
    %v2930 = vpack.c.b16 %v1874, %v1858
    %v2931 = vpack.c.b16 %v1875, %v1859
    %v2932 = vpack.c.b16 %v1876, %v1860
    %v2933 = vpack.c.b16 %v1877, %v1861
    %v2934 = vpack.c.b16 %v1878, %v1862
    %v2935 = vpack.c.b16 %v1879, %v1863
    %v2936 = vpack.c.b16 %v1880, %v1864
    %v2937 = vpack.c.b16 %v1881, %v1865
    %v2938 = vpack.c.b16 %v1882, %v1866
    %v2939 = vpack.c.b16 %v1883, %v1867
    %v2940 = vpack.c.b16 %v1884, %v1868
    %v2941 = vpack.c.b16 %v1885, %v1869
    %v2942 = vpack.c.b16 %v1902, %v1886
    %v2943 = vpack.c.b16 %v1903, %v1887
    %v2944 = vpack.c.b16 %v1904, %v1888
    %v2945 = vpack.c.b16 %v1905, %v1889
    %v2946 = vpack.c.b16 %v1906, %v1890
    %v2947 = vpack.c.b16 %v1907, %v1891
    %v2948 = vpack.c.b16 %v1908, %v1892
    %v2949 = vpack.c.b16 %v1909, %v1893
    %v2950 = vpack.c.b16 %v1910, %v1894
    %v2951 = vpack.c.b16 %v1911, %v1895
    %v2952 = vpack.c.b16 %v1912, %v1896
    %v2953 = vpack.c.b16 %v1913, %v1897
    %v2954 = vpack.c.b16 %v1914, %v1898
    %v2955 = vpack.c.b16 %v1915, %v1899
    %v2956 = vpack.c.b16 %v1916, %v1900
    %v2957 = vpack.c.b16 %v1917, %v1901
    %v2958 = vpack.c.b16 %v1934, %v1918
    %v2959 = vpack.c.b16 %v1935, %v1919
    %v2960 = vpack.c.b16 %v1936, %v1920
    %v2961 = vpack.c.b16 %v1937, %v1921
    %v2962 = vpack.c.b16 %v1938, %v1922
    %v2963 = vpack.c.b16 %v1939, %v1923
    %v2964 = vpack.c.b16 %v1940, %v1924
    %v2965 = vpack.c.b16 %v1941, %v1925
    %v2966 = vpack.c.b16 %v1942, %v1926
    %v2967 = vpack.c.b16 %v1943, %v1927
    %v2968 = vpack.c.b16 %v1944, %v1928
    %v2969 = vpack.c.b16 %v1945, %v1929
    %v2970 = vpack.c.b16 %v1946, %v1930
    %v2971 = vpack.c.b16 %v1947, %v1931
    %v2972 = vpack.c.b16 %v1948, %v1932
    %v2973 = vpack.c.b16 %v1949, %v1933
    %v2974 = vpack.c.b16 %v1966, %v1950
    %v2975 = vpack.c.b16 %v1967, %v1951
    %v2976 = vpack.c.b16 %v1968, %v1952
    %v2977 = vpack.c.b16 %v1969, %v1953
    %v2978 = vpack.c.b16 %v1970, %v1954
    %v2979 = vpack.c.b16 %v1971, %v1955
    %v2980 = vpack.c.b16 %v1972, %v1956
    %v2981 = vpack.c.b16 %v1973, %v1957
    %v2982 = vpack.c.b16 %v1974, %v1958
    %v2983 = vpack.c.b16 %v1975, %v1959
    %v2984 = vpack.c.b16 %v1976, %v1960
    %v2985 = vpack.c.b16 %v1977, %v1961
    %v2986 = vpack.c.b16 %v1978, %v1962
    %v2987 = vpack.c.b16 %v1979, %v1963
    %v2988 = vpack.c.b16 %v1980, %v1964
    %v2989 = vpack.c.b16 %v1981, %v1965
    %v2990 = vpack.c.b16 %v1998, %v1982
    %v2991 = vpack.c.b16 %v1999, %v1983
    %v2992 = vpack.c.b16 %v2000, %v1984
    %v2993 = vpack.c.b16 %v2001, %v1985
    %v2994 = vpack.c.b16 %v2002, %v1986
    %v2995 = vpack.c.b16 %v2003, %v1987
    %v2996 = vpack.c.b16 %v2004, %v1988
    %v2997 = vpack.c.b16 %v2005, %v1989
    %v2998 = vpack.c.b16 %v2006, %v1990
    %v2999 = vpack.c.b16 %v2007, %v1991
    %v3000 = vpack.c.b16 %v2008, %v1992
    %v3001 = vpack.c.b16 %v2009, %v1993
    %v3002 = vpack.c.b16 %v2010, %v1994
    %v3003 = vpack.c.b16 %v2011, %v1995
    %v3004 = vpack.c.b16 %v2012, %v1996
    %v3005 = vpack.c.b16 %v2013, %v1997
    %v3006 = vpack.c.b16 %v2030, %v2014
    %v3007 = vpack.c.b16 %v2031, %v2015
    %v3008 = vpack.c.b16 %v2032, %v2016
    %v3009 = vpack.c.b16 %v2033, %v2017
    %v3010 = vpack.c.b16 %v2034, %v2018
    %v3011 = vpack.c.b16 %v2035, %v2019
    %v3012 = vpack.c.b16 %v2036, %v2020
    %v3013 = vpack.c.b16 %v2037, %v2021
    %v3014 = vpack.c.b16 %v2038, %v2022
    %v3015 = vpack.c.b16 %v2039, %v2023
    %v3016 = vpack.c.b16 %v2040, %v2024
    %v3017 = vpack.c.b16 %v2041, %v2025
    %v3018 = vpack.c.b16 %v2042, %v2026
    %v3019 = vpack.c.b16 %v2043, %v2027
    %v3020 = vpack.c.b16 %v2044, %v2028
    %v3021 = vpack.c.b16 %v2045, %v2029
    %v3022 = vpack.c.b16 %v2062, %v2046
    %v3023 = vpack.c.b16 %v2063, %v2047
    %v3024 = vpack.c.b16 %v2064, %v2048
    %v3025 = vpack.c.b16 %v2065, %v2049
    %v3026 = vpack.c.b16 %v2066, %v2050
    %v3027 = vpack.c.b16 %v2067, %v2051
    %v3028 = vpack.c.b16 %v2068, %v2052
    %v3029 = vpack.c.b16 %v2069, %v2053
    %v3030 = vpack.c.b16 %v2070, %v2054
    %v3031 = vpack.c.b16 %v2071, %v2055
    %v3032 = vpack.c.b16 %v2072, %v2056
    %v3033 = vpack.c.b16 %v2073, %v2057
    %v3034 = vpack.c.b16 %v2074, %v2058
    %v3035 = vpack.c.b16 %v2075, %v2059
    %v3036 = vpack.c.b16 %v2076, %v2060
    %v3037 = vpack.c.b16 %v2077, %v2061
    %v3038 = vpack.c.b16 %v2094, %v2078
    %v3039 = vpack.c.b16 %v2095, %v2079
    %v3040 = vpack.c.b16 %v2096, %v2080
    %v3041 = vpack.c.b16 %v2097, %v2081
    %v3042 = vpack.c.b16 %v2098, %v2082
    %v3043 = vpack.c.b16 %v2099, %v2083
    %v3044 = vpack.c.b16 %v2100, %v2084
    %v3045 = vpack.c.b16 %v2101, %v2085
    %v3046 = vpack.c.b16 %v2102, %v2086
    %v3047 = vpack.c.b16 %v2103, %v2087
    %v3048 = vpack.c.b16 %v2104, %v2088
    %v3049 = vpack.c.b16 %v2105, %v2089
    %v3050 = vpack.c.b16 %v2106, %v2090
    %v3051 = vpack.c.b16 %v2107, %v2091
    %v3052 = vpack.c.b16 %v2108, %v2092
    %v3053 = vpack.c.b16 %v2109, %v2093
    %v3054 = vpack.c.b16 %v2126, %v2110
    %v3055 = vpack.c.b16 %v2127, %v2111
    %v3056 = vpack.c.b16 %v2128, %v2112
    %v3057 = vpack.c.b16 %v2129, %v2113
    %v3058 = vpack.c.b16 %v2130, %v2114
    %v3059 = vpack.c.b16 %v2131, %v2115
    %v3060 = vpack.c.b16 %v2132, %v2116
    %v3061 = vpack.c.b16 %v2133, %v2117
    %v3062 = vpack.c.b16 %v2134, %v2118
    %v3063 = vpack.c.b16 %v2135, %v2119
    %v3064 = vpack.c.b16 %v2136, %v2120
    %v3065 = vpack.c.b16 %v2137, %v2121
    %v3066 = vpack.c.b16 %v2138, %v2122
    %v3067 = vpack.c.b16 %v2139, %v2123
    %v3068 = vpack.c.b16 %v2140, %v2124
    %v3069 = vpack.c.b16 %v2141, %v2125
    %v3070 = vpack.c.b16 %v2158, %v2142
    %v3071 = vpack.c.b16 %v2159, %v2143
    %v3072 = vpack.c.b16 %v2160, %v2144
    %v3073 = vpack.c.b16 %v2161, %v2145
    %v3074 = vpack.c.b16 %v2162, %v2146
    %v3075 = vpack.c.b16 %v2163, %v2147
    %v3076 = vpack.c.b16 %v2164, %v2148
    %v3077 = vpack.c.b16 %v2165, %v2149
    %v3078 = vpack.c.b16 %v2166, %v2150
    %v3079 = vpack.c.b16 %v2167, %v2151
    %v3080 = vpack.c.b16 %v2168, %v2152
    %v3081 = vpack.c.b16 %v2169, %v2153
    %v3082 = vpack.c.b16 %v2170, %v2154
    %v3083 = vpack.c.b16 %v2171, %v2155
    %v3084 = vpack.c.b16 %v2172, %v2156
    %v3085 = vpack.c.b16 %v2173, %v2157
    %v3086 = vpack.c.b16 %v2190, %v2174
    %v3087 = vpack.c.b16 %v2191, %v2175
    %v3088 = vpack.c.b16 %v2192, %v2176
    %v3089 = vpack.c.b16 %v2193, %v2177
    %v3090 = vpack.c.b16 %v2194, %v2178
    %v3091 = vpack.c.b16 %v2195, %v2179
    %v3092 = vpack.c.b16 %v2196, %v2180
    %v3093 = vpack.c.b16 %v2197, %v2181
    %v3094 = vpack.c.b16 %v2198, %v2182
    %v3095 = vpack.c.b16 %v2199, %v2183
    %v3096 = vpack.c.b16 %v2200, %v2184
    %v3097 = vpack.c.b16 %v2201, %v2185
    %v3098 = vpack.c.b16 %v2202, %v2186
    %v3099 = vpack.c.b16 %v2203, %v2187
    %v3100 = vpack.c.b16 %v2204, %v2188
    %v3101 = vpack.c.b16 %v2205, %v2189
    %v3102 = vpack.c.b16 %v2222, %v2206
    %v3103 = vpack.c.b16 %v2223, %v2207
    %v3104 = vpack.c.b16 %v2224, %v2208
    %v3105 = vpack.c.b16 %v2225, %v2209
    %v3106 = vpack.c.b16 %v2226, %v2210
    %v3107 = vpack.c.b16 %v2227, %v2211
    %v3108 = vpack.c.b16 %v2228, %v2212
    %v3109 = vpack.c.b16 %v2229, %v2213
    %v3110 = vpack.c.b16 %v2230, %v2214
    %v3111 = vpack.c.b16 %v2231, %v2215
    %v3112 = vpack.c.b16 %v2232, %v2216
    %v3113 = vpack.c.b16 %v2233, %v2217
    %v3114 = vpack.c.b16 %v2234, %v2218
    %v3115 = vpack.c.b16 %v2235, %v2219
    %v3116 = vpack.c.b16 %v2236, %v2220
    %v3117 = vpack.c.b16 %v2237, %v2221
    %v3118 = vpack.c.b16 %v2254, %v2238
    %v3119 = vpack.c.b16 %v2255, %v2239
    %v3120 = vpack.c.b16 %v2256, %v2240
    %v3121 = vpack.c.b16 %v2257, %v2241
    %v3122 = vpack.c.b16 %v2258, %v2242
    %v3123 = vpack.c.b16 %v2259, %v2243
    %v3124 = vpack.c.b16 %v2260, %v2244
    %v3125 = vpack.c.b16 %v2261, %v2245
    %v3126 = vpack.c.b16 %v2262, %v2246
    %v3127 = vpack.c.b16 %v2263, %v2247
    %v3128 = vpack.c.b16 %v2264, %v2248
    %v3129 = vpack.c.b16 %v2265, %v2249
    %v3130 = vpack.c.b16 %v2266, %v2250
    %v3131 = vpack.c.b16 %v2267, %v2251
    %v3132 = vpack.c.b16 %v2268, %v2252
    %v3133 = vpack.c.b16 %v2269, %v2253
    %v3134 = vpack.c.b16 %v2286, %v2270
    %v3135 = vpack.c.b16 %v2287, %v2271
    %v3136 = vpack.c.b16 %v2288, %v2272
    %v3137 = vpack.c.b16 %v2289, %v2273
    %v3138 = vpack.c.b16 %v2290, %v2274
    %v3139 = vpack.c.b16 %v2291, %v2275
    %v3140 = vpack.c.b16 %v2292, %v2276
    %v3141 = vpack.c.b16 %v2293, %v2277
    %v3142 = vpack.c.b16 %v2294, %v2278
    %v3143 = vpack.c.b16 %v2295, %v2279
    %v3144 = vpack.c.b16 %v2296, %v2280
    %v3145 = vpack.c.b16 %v2297, %v2281
    %v3146 = vpack.c.b16 %v2298, %v2282
    %v3147 = vpack.c.b16 %v2299, %v2283
    %v3148 = vpack.c.b16 %v2300, %v2284
    %v3149 = vpack.c.b16 %v2301, %v2285
    %v3150 = vpack.c.b16 %v2318, %v2302
    %v3151 = vpack.c.b16 %v2319, %v2303
    %v3152 = vpack.c.b16 %v2320, %v2304
    %v3153 = vpack.c.b16 %v2321, %v2305
    %v3154 = vpack.c.b16 %v2322, %v2306
    %v3155 = vpack.c.b16 %v2323, %v2307
    %v3156 = vpack.c.b16 %v2324, %v2308
    %v3157 = vpack.c.b16 %v2325, %v2309
    %v3158 = vpack.c.b16 %v2326, %v2310
    %v3159 = vpack.c.b16 %v2327, %v2311
    %v3160 = vpack.c.b16 %v2328, %v2312
    %v3161 = vpack.c.b16 %v2329, %v2313
    %v3162 = vpack.c.b16 %v2330, %v2314
    %v3163 = vpack.c.b16 %v2331, %v2315
    %v3164 = vpack.c.b16 %v2332, %v2316
    %v3165 = vpack.c.b16 %v2333, %v2317
    %v3166 = vpack.c.b16 %v2350, %v2334
    %v3167 = vpack.c.b16 %v2351, %v2335
    %v3168 = vpack.c.b16 %v2352, %v2336
    %v3169 = vpack.c.b16 %v2353, %v2337
    %v3170 = vpack.c.b16 %v2354, %v2338
    %v3171 = vpack.c.b16 %v2355, %v2339
    %v3172 = vpack.c.b16 %v2356, %v2340
    %v3173 = vpack.c.b16 %v2357, %v2341
    %v3174 = vpack.c.b16 %v2358, %v2342
    %v3175 = vpack.c.b16 %v2359, %v2343
    %v3176 = vpack.c.b16 %v2360, %v2344
    %v3177 = vpack.c.b16 %v2361, %v2345
    %v3178 = vpack.c.b16 %v2362, %v2346
    %v3179 = vpack.c.b16 %v2363, %v2347
    %v3180 = vpack.c.b16 %v2364, %v2348
    %v3181 = vpack.c.b16 %v2365, %v2349
    %v3182 = vpack.c.b16 %v2382, %v2366
    %v3183 = vpack.c.b16 %v2383, %v2367
    %v3184 = vpack.c.b16 %v2384, %v2368
    %v3185 = vpack.c.b16 %v2385, %v2369
    %v3186 = vpack.c.b16 %v2386, %v2370
    %v3187 = vpack.c.b16 %v2387, %v2371
    %v3188 = vpack.c.b16 %v2388, %v2372
    %v3189 = vpack.c.b16 %v2389, %v2373
    %v3190 = vpack.c.b16 %v2390, %v2374
    %v3191 = vpack.c.b16 %v2391, %v2375
    %v3192 = vpack.c.b16 %v2392, %v2376
    %v3193 = vpack.c.b16 %v2393, %v2377
    %v3194 = vpack.c.b16 %v2394, %v2378
    %v3195 = vpack.c.b16 %v2395, %v2379
    %v3196 = vpack.c.b16 %v2396, %v2380
    %v3197 = vpack.c.b16 %v2397, %v2381
    %v3198 = vpack.c.b16 %v2414, %v2398
    %v3199 = vpack.c.b16 %v2415, %v2399
    %v3200 = vpack.c.b16 %v2416, %v2400
    %v3201 = vpack.c.b16 %v2417, %v2401
    %v3202 = vpack.c.b16 %v2418, %v2402
    %v3203 = vpack.c.b16 %v2419, %v2403
    %v3204 = vpack.c.b16 %v2420, %v2404
    %v3205 = vpack.c.b16 %v2421, %v2405
    %v3206 = vpack.c.b16 %v2422, %v2406
    %v3207 = vpack.c.b16 %v2423, %v2407
    %v3208 = vpack.c.b16 %v2424, %v2408
    %v3209 = vpack.c.b16 %v2425, %v2409
    %v3210 = vpack.c.b16 %v2426, %v2410
    %v3211 = vpack.c.b16 %v2427, %v2411
    %v3212 = vpack.c.b16 %v2428, %v2412
    %v3213 = vpack.c.b16 %v2429, %v2413
    %v3214 = vpack.c.b16 %v2446, %v2430
    %v3215 = vpack.c.b16 %v2447, %v2431
    %v3216 = vpack.c.b16 %v2448, %v2432
    %v3217 = vpack.c.b16 %v2449, %v2433
    %v3218 = vpack.c.b16 %v2450, %v2434
    %v3219 = vpack.c.b16 %v2451, %v2435
    %v3220 = vpack.c.b16 %v2452, %v2436
    %v3221 = vpack.c.b16 %v2453, %v2437
    %v3222 = vpack.c.b16 %v2454, %v2438
    %v3223 = vpack.c.b16 %v2455, %v2439
    %v3224 = vpack.c.b16 %v2456, %v2440
    %v3225 = vpack.c.b16 %v2457, %v2441
    %v3226 = vpack.c.b16 %v2458, %v2442
    %v3227 = vpack.c.b16 %v2459, %v2443
    %v3228 = vpack.c.b16 %v2460, %v2444
    %v3229 = vpack.c.b16 %v2461, %v2445
    %v3230 = vpack.c.b16 %v2478, %v2462
    %v3231 = vpack.c.b16 %v2479, %v2463
    %v3232 = vpack.c.b16 %v2480, %v2464
    %v3233 = vpack.c.b16 %v2481, %v2465
    %v3234 = vpack.c.b16 %v2482, %v2466
    %v3235 = vpack.c.b16 %v2483, %v2467
    %v3236 = vpack.c.b16 %v2484, %v2468
    %v3237 = vpack.c.b16 %v2485, %v2469
    %v3238 = vpack.c.b16 %v2486, %v2470
    %v3239 = vpack.c.b16 %v2487, %v2471
    %v3240 = vpack.c.b16 %v2488, %v2472
    %v3241 = vpack.c.b16 %v2489, %v2473
    %v3242 = vpack.c.b16 %v2490, %v2474
    %v3243 = vpack.c.b16 %v2491, %v2475
    %v3244 = vpack.c.b16 %v2492, %v2476
    %v3245 = vpack.c.b16 %v2493, %v2477
    %v3246 = vpack.c.b16 %v2510, %v2494
    %v3247 = vpack.c.b16 %v2511, %v2495
    %v3248 = vpack.c.b16 %v2512, %v2496
    %v3249 = vpack.c.b16 %v2513, %v2497
    %v3250 = vpack.c.b16 %v2514, %v2498
    %v3251 = vpack.c.b16 %v2515, %v2499
    %v3252 = vpack.c.b16 %v2516, %v2500
    %v3253 = vpack.c.b16 %v2517, %v2501
    %v3254 = vpack.c.b16 %v2518, %v2502
    %v3255 = vpack.c.b16 %v2519, %v2503
    %v3256 = vpack.c.b16 %v2520, %v2504
    %v3257 = vpack.c.b16 %v2521, %v2505
    %v3258 = vpack.c.b16 %v2522, %v2506
    %v3259 = vpack.c.b16 %v2523, %v2507
    %v3260 = vpack.c.b16 %v2524, %v2508
    %v3261 = vpack.c.b16 %v2525, %v2509
    %v3262 = vpack.c.b16 %v2542, %v2526
    %v3263 = vpack.c.b16 %v2543, %v2527
    %v3264 = vpack.c.b16 %v2544, %v2528
    %v3265 = vpack.c.b16 %v2545, %v2529
    %v3266 = vpack.c.b16 %v2546, %v2530
    %v3267 = vpack.c.b16 %v2547, %v2531
    %v3268 = vpack.c.b16 %v2548, %v2532
    %v3269 = vpack.c.b16 %v2549, %v2533
    %v3270 = vpack.c.b16 %v2550, %v2534
    %v3271 = vpack.c.b16 %v2551, %v2535
    %v3272 = vpack.c.b16 %v2552, %v2536
    %v3273 = vpack.c.b16 %v2553, %v2537
    %v3274 = vpack.c.b16 %v2554, %v2538
    %v3275 = vpack.c.b16 %v2555, %v2539
    %v3276 = vpack.c.b16 %v2556, %v2540
    %v3277 = vpack.c.b16 %v2557, %v2541
    %v3278 = vpack.c.b16 %v2574, %v2558
    %v3279 = vpack.c.b16 %v2575, %v2559
    %v3280 = vpack.c.b16 %v2576, %v2560
    %v3281 = vpack.c.b16 %v2577, %v2561
    %v3282 = vpack.c.b16 %v2578, %v2562
    %v3283 = vpack.c.b16 %v2579, %v2563
    %v3284 = vpack.c.b16 %v2580, %v2564
    %v3285 = vpack.c.b16 %v2581, %v2565
    %v3286 = vpack.c.b16 %v2582, %v2566
    %v3287 = vpack.c.b16 %v2583, %v2567
    %v3288 = vpack.c.b16 %v2584, %v2568
    %v3289 = vpack.c.b16 %v2585, %v2569
    %v3290 = vpack.c.b16 %v2586, %v2570
    %v3291 = vpack.c.b16 %v2587, %v2571
    %v3292 = vpack.c.b16 %v2588, %v2572
    %v3293 = vpack.c.b16 %v2589, %v2573
    %v3294 = vpack.c.b16 %v2606, %v2590
    %v3295 = vpack.c.b16 %v2607, %v2591
    %v3296 = vpack.c.b16 %v2608, %v2592
    %v3297 = vpack.c.b16 %v2609, %v2593
    %v3298 = vpack.c.b16 %v2610, %v2594
    %v3299 = vpack.c.b16 %v2611, %v2595
    %v3300 = vpack.c.b16 %v2612, %v2596
    %v3301 = vpack.c.b16 %v2613, %v2597
    %v3302 = vpack.c.b16 %v2614, %v2598
    %v3303 = vpack.c.b16 %v2615, %v2599
    %v3304 = vpack.c.b16 %v2616, %v2600
    %v3305 = vpack.c.b16 %v2617, %v2601
    %v3306 = vpack.c.b16 %v2618, %v2602
    %v3307 = vpack.c.b16 %v2619, %v2603
    %v3308 = vpack.c.b16 %v2620, %v2604
    %v3309 = vpack.c.b16 %v2621, %v2605
    %v3310 = vpack.c.b16 %v2638, %v2622
    %v3311 = vpack.c.b16 %v2639, %v2623
    %v3312 = vpack.c.b16 %v2640, %v2624
    %v3313 = vpack.c.b16 %v2641, %v2625
    %v3314 = vpack.c.b16 %v2642, %v2626
    %v3315 = vpack.c.b16 %v2643, %v2627
    %v3316 = vpack.c.b16 %v2644, %v2628
    %v3317 = vpack.c.b16 %v2645, %v2629
    %v3318 = vpack.c.b16 %v2646, %v2630
    %v3319 = vpack.c.b16 %v2647, %v2631
    %v3320 = vpack.c.b16 %v2648, %v2632
    %v3321 = vpack.c.b16 %v2649, %v2633
    %v3322 = vpack.c.b16 %v2650, %v2634
    %v3323 = vpack.c.b16 %v2651, %v2635
    %v3324 = vpack.c.b16 %v2652, %v2636
    %v3325 = vpack.c.b16 %v2653, %v2637
    %v3326 = vpack.c.b16 %v2670, %v2654
    %v3327 = vpack.c.b16 %v2671, %v2655
    %v3328 = vpack.c.b16 %v2672, %v2656
    %v3329 = vpack.c.b16 %v2673, %v2657
    %v3330 = vpack.c.b16 %v2674, %v2658
    %v3331 = vpack.c.b16 %v2675, %v2659
    %v3332 = vpack.c.b16 %v2676, %v2660
    %v3333 = vpack.c.b16 %v2677, %v2661
    %v3334 = vpack.c.b16 %v2678, %v2662
    %v3335 = vpack.c.b16 %v2679, %v2663
    %v3336 = vpack.c.b16 %v2680, %v2664
    %v3337 = vpack.c.b16 %v2681, %v2665
    %v3338 = vpack.c.b16 %v2682, %v2666
    %v3339 = vpack.c.b16 %v2683, %v2667
    %v3340 = vpack.c.b16 %v2684, %v2668
    %v3341 = vpack.c.b16 %v2685, %v2669
    %v3342 = vpack.c.b16 %v2702, %v2686
    %v3343 = vpack.c.b16 %v2703, %v2687
    %v3344 = vpack.c.b16 %v2704, %v2688
    %v3345 = vpack.c.b16 %v2705, %v2689
    %v3346 = vpack.c.b16 %v2706, %v2690
    %v3347 = vpack.c.b16 %v2707, %v2691
    %v3348 = vpack.c.b16 %v2708, %v2692
    %v3349 = vpack.c.b16 %v2709, %v2693
    %v3350 = vpack.c.b16 %v2710, %v2694
    %v3351 = vpack.c.b16 %v2711, %v2695
    %v3352 = vpack.c.b16 %v2712, %v2696
    %v3353 = vpack.c.b16 %v2713, %v2697
    %v3354 = vpack.c.b16 %v2714, %v2698
    %v3355 = vpack.c.b16 %v2715, %v2699
    %v3356 = vpack.c.b16 %v2716, %v2700
    %v3357 = vpack.c.b16 %v2717, %v2701
    %3998 = vmatprep.subr.bf16.mxu0 %v2719
    %3999 = vmatpush1.bf16.msra.mxu0 %v2718
    %4000 = vmatprep.subr.bf16.mxu0 %v2735
    %4001 = vmatpush1.bf16.msra.mxu0 %v2734
    %4002 = vmatprep.subr.bf16.mxu0 %v2751
    %4003 = vmatpush1.bf16.msra.mxu0 %v2750
    %4004 = vmatprep.subr.bf16.mxu0 %v2767
    %4005 = vmatpush1.bf16.msra.mxu0 %v2766
    %4006 = vmatprep.subr.bf16.mxu0 %v2783
    %4007 = vmatpush1.bf16.msra.mxu0 %v2782
    %4008 = vmatprep.subr.bf16.mxu0 %v2799
    %4009 = vmatpush1.bf16.msra.mxu0 %v2798
    %4010 = vmatprep.subr.bf16.mxu0 %v2815
    %4011 = vmatpush1.bf16.msra.mxu0 %v2814
    %4012 = vmatprep.subr.bf16.mxu0 %v2831
    %4013 = vmatpush1.bf16.msra.mxu0 %v2830
    %4014 = vmatprep.subr.bf16.mxu0 %v2847
    %4015 = vmatpush1.bf16.msra.mxu0 %v2846
    %4016 = vmatprep.subr.bf16.mxu0 %v2863
    %4017 = vmatpush1.bf16.msra.mxu0 %v2862
    %4018 = vmatprep.subr.bf16.mxu0 %v2879
    %4019 = vmatpush1.bf16.msra.mxu0 %v2878
    %4020 = vmatprep.subr.bf16.mxu0 %v2895
    %4021 = vmatpush1.bf16.msra.mxu0 %v2894
    %4022 = vmatprep.subr.bf16.mxu0 %v2911
    %4023 = vmatpush1.bf16.msra.mxu0 %v2910
    %4024 = vmatprep.subr.bf16.mxu0 %v2927
    %4025 = vmatpush1.bf16.msra.mxu0 %v2926
    %4026 = vmatprep.subr.bf16.mxu0 %v2943
    %4027 = vmatpush1.bf16.msra.mxu0 %v2942
    %4028 = vmatprep.subr.bf16.mxu0 %v2959
    %4029 = vmatpush1.bf16.msra.mxu0 %v2958
    %4030 = vmatprep.mubr.bf16.mxu0 %v790
    %4031 = vmatmul.mubr.bf16.gmra.mrb[0].mxu0 %v776
    %v4032 = vpop.f32.mrb[0].mxu0
    %v4033 = vadd.f32 %v676, %v4032
    %v4034 = vpop.f32.mrb[0].mxu0
    %v4035 = vadd.f32 %v680, %v4034
    %v4036 = vpop.f32.mrb[0].mxu0
    %v4037 = vpop.f32.mrb[0].mxu0
    %4038 = vdwg.mxu0
    %4039 = vmatprep.subr.bf16.mxu0 %v2975
    %4040 = vmatpush1.bf16.msra.mxu0 %v2974
    %4041 = vmatprep.subr.bf16.mxu0 %v2991
    %4042 = vmatpush1.bf16.msra.mxu0 %v2990
    %4043 = vmatprep.subr.bf16.mxu0 %v3007
    %4044 = vmatpush1.bf16.msra.mxu0 %v3006
    %4045 = vmatprep.subr.bf16.mxu0 %v3023
    %4046 = vmatpush1.bf16.msra.mxu0 %v3022
    %4047 = vmatprep.subr.bf16.mxu0 %v3039
    %4048 = vmatpush1.bf16.msra.mxu0 %v3038
    %4049 = vmatprep.subr.bf16.mxu0 %v3055
    %4050 = vmatpush1.bf16.msra.mxu0 %v3054
    %4051 = vmatprep.subr.bf16.mxu0 %v3071
    %4052 = vmatpush1.bf16.msra.mxu0 %v3070
    %4053 = vmatprep.subr.bf16.mxu0 %v3087
    %4054 = vmatpush1.bf16.msra.mxu0 %v3086
    %4055 = vmatprep.subr.bf16.mxu0 %v3103
    %4056 = vmatpush1.bf16.msra.mxu0 %v3102
    %4057 = vmatprep.subr.bf16.mxu0 %v3119
    %4058 = vmatpush1.bf16.msra.mxu0 %v3118
    %4059 = vmatprep.subr.bf16.mxu0 %v3135
    %4060 = vmatpush1.bf16.msra.mxu0 %v3134
    %4061 = vmatprep.subr.bf16.mxu0 %v3151
    %4062 = vmatpush1.bf16.msra.mxu0 %v3150
    %4063 = vmatprep.subr.bf16.mxu0 %v3167
    %4064 = vmatpush1.bf16.msra.mxu0 %v3166
    %4065 = vmatprep.subr.bf16.mxu0 %v3183
    %4066 = vmatpush1.bf16.msra.mxu0 %v3182
    %4067 = vmatprep.subr.bf16.mxu0 %v3199
    %4068 = vmatpush1.bf16.msra.mxu0 %v3198
    %4069 = vmatprep.subr.bf16.mxu0 %v3215
    %4070 = vmatpush1.bf16.msra.mxu0 %v3214
    %4071 = vmatprep.mubr.bf16.mxu0 %v792
    %4072 = vmatmul.mubr.bf16.gmra.mrb[0].mxu0 %v791
    %v4073 = vpop.f32.mrb[0].mxu0
    %v4074 = vadd.f32 %v4033, %v4073
    %v4075 = vpop.f32.mrb[0].mxu0
    %v4076 = vadd.f32 %v4035, %v4075
    %v4077 = vpop.f32.mrb[0].mxu0
    %v4078 = vpop.f32.mrb[0].mxu0
    %4079 = vdwg.mxu0
    %4080 = vmatprep.subr.bf16.mxu0 %v3231
    %4081 = vmatpush1.bf16.msra.mxu0 %v3230
    %4082 = vmatprep.subr.bf16.mxu0 %v3247
    %4083 = vmatpush1.bf16.msra.mxu0 %v3246
    %4084 = vmatprep.subr.bf16.mxu0 %v3263
    %4085 = vmatpush1.bf16.msra.mxu0 %v3262
    %4086 = vmatprep.subr.bf16.mxu0 %v3279
    %4087 = vmatpush1.bf16.msra.mxu0 %v3278
    %4088 = vmatprep.subr.bf16.mxu0 %v3295
    %4089 = vmatpush1.bf16.msra.mxu0 %v3294
    %4090 = vmatprep.subr.bf16.mxu0 %v3311
    %4091 = vmatpush1.bf16.msra.mxu0 %v3310
    %4092 = vmatprep.subr.bf16.mxu0 %v3327
    %4093 = vmatpush1.bf16.msra.mxu0 %v3326
    %4094 = vmatprep.subr.bf16.mxu0 %v3343
    %4095 = vmatpush1.bf16.msra.mxu0 %v3342
    %4096 = vmatprep.subr.bf16.mxu0 0
    %4097 = vmatpush1.bf16.msra.mxu0 0
    %4098 = vmatprep.subr.bf16.mxu0 0
    %4099 = vmatpush1.bf16.msra.mxu0 0
    %4100 = vmatprep.subr.bf16.mxu0 0
    %4101 = vmatpush1.bf16.msra.mxu0 0
    %4102 = vmatprep.subr.bf16.mxu0 0
    %4103 = vmatpush1.bf16.msra.mxu0 0
    %4104 = vmatprep.subr.bf16.mxu0 0
    %4105 = vmatpush1.bf16.msra.mxu0 0
    %4106 = vmatprep.subr.bf16.mxu0 0
    %4107 = vmatpush1.bf16.msra.mxu0 0
    %4108 = vmatprep.subr.bf16.mxu0 0
    %4109 = vmatpush1.bf16.msra.mxu0 0
    %4110 = vmatprep.subr.bf16.mxu0 0
    %4111 = vmatpush1.bf16.msra.mxu0 0
    %4112 = vmatprep.mubr.bf16.mxu0 0
    %4113 = vmatmul.mubr.bf16.gmra.mrb[0].mxu0 %v783
    %v4114 = vpop.f32.mrb[0].mxu0
    %v4115 = vadd.f32 %v4074, %v4114
    %v4116 = vpop.f32.mrb[0].mxu0
    %v4117 = vadd.f32 %v4076, %v4116
    %v4118 = vpop.f32.mrb[0].mxu0
    %v4119 = vpop.f32.mrb[0].mxu0
    %4120 = vdwg.mxu0
    %4121 = vmatprep.subr.bf16.mxu0 %v2721
    %4122 = vmatpush1.bf16.msra.mxu0 %v2720
    %4123 = vmatprep.subr.bf16.mxu0 %v2737
    %4124 = vmatpush1.bf16.msra.mxu0 %v2736
    %4125 = vmatprep.subr.bf16.mxu0 %v2753
    %4126 = vmatpush1.bf16.msra.mxu0 %v2752
    %4127 = vmatprep.subr.bf16.mxu0 %v2769
    %4128 = vmatpush1.bf16.msra.mxu0 %v2768
    %4129 = vmatprep.subr.bf16.mxu0 %v2785
    %4130 = vmatpush1.bf16.msra.mxu0 %v2784
    %4131 = vmatprep.subr.bf16.mxu0 %v2801
    %4132 = vmatpush1.bf16.msra.mxu0 %v2800
    %4133 = vmatprep.subr.bf16.mxu0 %v2817
    %4134 = vmatpush1.bf16.msra.mxu0 %v2816
    %4135 = vmatprep.subr.bf16.mxu0 %v2833
    %4136 = vmatpush1.bf16.msra.mxu0 %v2832
    %4137 = vmatprep.subr.bf16.mxu0 %v2849
    %4138 = vmatpush1.bf16.msra.mxu0 %v2848
    %4139 = vmatprep.subr.bf16.mxu0 %v2865
    %4140 = vmatpush1.bf16.msra.mxu0 %v2864
    %4141 = vmatprep.subr.bf16.mxu0 %v2881
    %4142 = vmatpush1.bf16.msra.mxu0 %v2880
    %4143 = vmatprep.subr.bf16.mxu0 %v2897
    %4144 = vmatpush1.bf16.msra.mxu0 %v2896
    %4145 = vmatprep.subr.bf16.mxu0 %v2913
    %4146 = vmatpush1.bf16.msra.mxu0 %v2912
    %4147 = vmatprep.subr.bf16.mxu0 %v2929
    %4148 = vmatpush1.bf16.msra.mxu0 %v2928
    %4149 = vmatprep.subr.bf16.mxu0 %v2945
    %4150 = vmatpush1.bf16.msra.mxu0 %v2944
    %4151 = vmatprep.subr.bf16.mxu0 %v2961
    %4152 = vmatpush1.bf16.msra.mxu0 %v2960
    %4153 = vmatprep.mubr.bf16.mxu0 %v790
    %4154 = vmatmul.mubr.bf16.gmra.mrb[0].mxu0 %v776
    %v4155 = vpop.f32.mrb[0].mxu0
    %v4156 = vadd.f32 %v684, %v4155
    %v4157 = vpop.f32.mrb[0].mxu0
    %v4158 = vadd.f32 %v688, %v4157
    %v4159 = vpop.f32.mrb[0].mxu0
    %v4160 = vpop.f32.mrb[0].mxu0
    %4161 = vdwg.mxu0
    %4162 = vmatprep.subr.bf16.mxu0 %v2977
    %4163 = vmatpush1.bf16.msra.mxu0 %v2976
    %4164 = vmatprep.subr.bf16.mxu0 %v2993
    %4165 = vmatpush1.bf16.msra.mxu0 %v2992
    %4166 = vmatprep.subr.bf16.mxu0 %v3009
    %4167 = vmatpush1.bf16.msra.mxu0 %v3008
    %4168 = vmatprep.subr.bf16.mxu0 %v3025
    %4169 = vmatpush1.bf16.msra.mxu0 %v3024
    %4170 = vmatprep.subr.bf16.mxu0 %v3041
    %4171 = vmatpush1.bf16.msra.mxu0 %v3040
    %4172 = vmatprep.subr.bf16.mxu0 %v3057
    %4173 = vmatpush1.bf16.msra.mxu0 %v3056
    %4174 = vmatprep.subr.bf16.mxu0 %v3073
    %4175 = vmatpush1.bf16.msra.mxu0 %v3072
    %4176 = vmatprep.subr.bf16.mxu0 %v3089
    %4177 = vmatpush1.bf16.msra.mxu0 %v3088
    %4178 = vmatprep.subr.bf16.mxu0 %v3105
    %4179 = vmatpush1.bf16.msra.mxu0 %v3104
    %4180 = vmatprep.subr.bf16.mxu0 %v3121
    %4181 = vmatpush1.bf16.msra.mxu0 %v3120
    %4182 = vmatprep.subr.bf16.mxu0 %v3137
    %4183 = vmatpush1.bf16.msra.mxu0 %v3136
    %4184 = vmatprep.subr.bf16.mxu0 %v3153
    %4185 = vmatpush1.bf16.msra.mxu0 %v3152
    %4186 = vmatprep.subr.bf16.mxu0 %v3169
    %4187 = vmatpush1.bf16.msra.mxu0 %v3168
    %4188 = vmatprep.subr.bf16.mxu0 %v3185
    %4189 = vmatpush1.bf16.msra.mxu0 %v3184
    %4190 = vmatprep.subr.bf16.mxu0 %v3201
    %4191 = vmatpush1.bf16.msra.mxu0 %v3200
    %4192 = vmatprep.subr.bf16.mxu0 %v3217
    %4193 = vmatpush1.bf16.msra.mxu0 %v3216
    %4194 = vmatprep.mubr.bf16.mxu0 %v792
    %4195 = vmatmul.mubr.bf16.gmra.mrb[0].mxu0 %v791
    %v4196 = vpop.f32.mrb[0].mxu0
    %v4197 = vadd.f32 %v4156, %v4196
    %v4198 = vpop.f32.mrb[0].mxu0
    %v4199 = vadd.f32 %v4158, %v4198
    %v4200 = vpop.f32.mrb[0].mxu0
    %v4201 = vpop.f32.mrb[0].mxu0
    %4202 = vdwg.mxu0
    %4203 = vmatprep.subr.bf16.mxu0 %v3233
    %4204 = vmatpush1.bf16.msra.mxu0 %v3232
    %4205 = vmatprep.subr.bf16.mxu0 %v3249
    %4206 = vmatpush1.bf16.msra.mxu0 %v3248
    %4207 = vmatprep.subr.bf16.mxu0 %v3265
    %4208 = vmatpush1.bf16.msra.mxu0 %v3264
    %4209 = vmatprep.subr.bf16.mxu0 %v3281
    %4210 = vmatpush1.bf16.msra.mxu0 %v3280
    %4211 = vmatprep.subr.bf16.mxu0 %v3297
    %4212 = vmatpush1.bf16.msra.mxu0 %v3296
    %4213 = vmatprep.subr.bf16.mxu0 %v3313
    %4214 = vmatpush1.bf16.msra.mxu0 %v3312
    %4215 = vmatprep.subr.bf16.mxu0 %v3329
    %4216 = vmatpush1.bf16.msra.mxu0 %v3328
    %4217 = vmatprep.subr.bf16.mxu0 %v3345
    %4218 = vmatpush1.bf16.msra.mxu0 %v3344
    %4219 = vmatprep.subr.bf16.mxu0 0
    %4220 = vmatpush1.bf16.msra.mxu0 0
    %4221 = vmatprep.subr.bf16.mxu0 0
    %4222 = vmatpush1.bf16.msra.mxu0 0
    %4223 = vmatprep.subr.bf16.mxu0 0
    %4224 = vmatpush1.bf16.msra.mxu0 0
    %4225 = vmatprep.subr.bf16.mxu0 0
    %4226 = vmatpush1.bf16.msra.mxu0 0
    %4227 = vmatprep.subr.bf16.mxu0 0
    %4228 = vmatpush1.bf16.msra.mxu0 0
    %4229 = vmatprep.subr.bf16.mxu0 0
    %4230 = vmatpush1.bf16.msra.mxu0 0
    %4231 = vmatprep.subr.bf16.mxu0 0
    %4232 = vmatpush1.bf16.msra.mxu0 0
    %4233 = vmatprep.subr.bf16.mxu0 0
    %4234 = vmatpush1.bf16.msra.mxu0 0
    %4235 = vmatprep.mubr.bf16.mxu0 0
    %4236 = vmatmul.mubr.bf16.gmra.mrb[0].mxu0 %v783
    %v4237 = vpop.f32.mrb[0].mxu0
    %v4238 = vadd.f32 %v4197, %v4237
    %v4239 = vpop.f32.mrb[0].mxu0
    %v4240 = vadd.f32 %v4199, %v4239
    %v4241 = vpop.f32.mrb[0].mxu0
    %v4242 = vpop.f32.mrb[0].mxu0
    %4243 = vdwg.mxu0
    %4244 = vmatprep.subr.bf16.mxu0 %v2723
    %4245 = vmatpush1.bf16.msra.mxu0 %v2722
    %4246 = vmatprep.subr.bf16.mxu0 %v2739
    %4247 = vmatpush1.bf16.msra.mxu0 %v2738
    %4248 = vmatprep.subr.bf16.mxu0 %v2755
    %4249 = vmatpush1.bf16.msra.mxu0 %v2754
    %4250 = vmatprep.subr.bf16.mxu0 %v2771
    %4251 = vmatpush1.bf16.msra.mxu0 %v2770
    %4252 = vmatprep.subr.bf16.mxu0 %v2787
    %4253 = vmatpush1.bf16.msra.mxu0 %v2786
    %4254 = vmatprep.subr.bf16.mxu0 %v2803
    %4255 = vmatpush1.bf16.msra.mxu0 %v2802
    %4256 = vmatprep.subr.bf16.mxu0 %v2819
    %4257 = vmatpush1.bf16.msra.mxu0 %v2818
    %4258 = vmatprep.subr.bf16.mxu0 %v2835
    %4259 = vmatpush1.bf16.msra.mxu0 %v2834
    %4260 = vmatprep.subr.bf16.mxu0 %v2851
    %4261 = vmatpush1.bf16.msra.mxu0 %v2850
    %4262 = vmatprep.subr.bf16.mxu0 %v2867
    %4263 = vmatpush1.bf16.msra.mxu0 %v2866
    %4264 = vmatprep.subr.bf16.mxu0 %v2883
    %4265 = vmatpush1.bf16.msra.mxu0 %v2882
    %4266 = vmatprep.subr.bf16.mxu0 %v2899
    %4267 = vmatpush1.bf16.msra.mxu0 %v2898
    %4268 = vmatprep.subr.bf16.mxu0 %v2915
    %4269 = vmatpush1.bf16.msra.mxu0 %v2914
    %4270 = vmatprep.subr.bf16.mxu0 %v2931
    %4271 = vmatpush1.bf16.msra.mxu0 %v2930
    %4272 = vmatprep.subr.bf16.mxu0 %v2947
    %4273 = vmatpush1.bf16.msra.mxu0 %v2946
    %4274 = vmatprep.subr.bf16.mxu0 %v2963
    %4275 = vmatpush1.bf16.msra.mxu0 %v2962
    %4276 = vmatprep.mubr.bf16.mxu0 %v790
    %4277 = vmatmul.mubr.bf16.gmra.mrb[0].mxu0 %v776
    %v4278 = vpop.f32.mrb[0].mxu0
    %v4279 = vadd.f32 %v692, %v4278
    %v4280 = vpop.f32.mrb[0].mxu0
    %v4281 = vadd.f32 %v696, %v4280
    %v4282 = vpop.f32.mrb[0].mxu0
    %v4283 = vpop.f32.mrb[0].mxu0
    %4284 = vdwg.mxu0
    %4285 = vmatprep.subr.bf16.mxu0 %v2979
    %4286 = vmatpush1.bf16.msra.mxu0 %v2978
    %4287 = vmatprep.subr.bf16.mxu0 %v2995
    %4288 = vmatpush1.bf16.msra.mxu0 %v2994
    %4289 = vmatprep.subr.bf16.mxu0 %v3011
    %4290 = vmatpush1.bf16.msra.mxu0 %v3010
    %4291 = vmatprep.subr.bf16.mxu0 %v3027
    %4292 = vmatpush1.bf16.msra.mxu0 %v3026
    %4293 = vmatprep.subr.bf16.mxu0 %v3043
    %4294 = vmatpush1.bf16.msra.mxu0 %v3042
    %4295 = vmatprep.subr.bf16.mxu0 %v3059
    %4296 = vmatpush1.bf16.msra.mxu0 %v3058
    %4297 = vmatprep.subr.bf16.mxu0 %v3075
    %4298 = vmatpush1.bf16.msra.mxu0 %v3074
    %4299 = vmatprep.subr.bf16.mxu0 %v3091
    %4300 = vmatpush1.bf16.msra.mxu0 %v3090
    %4301 = vmatprep.subr.bf16.mxu0 %v3107
    %4302 = vmatpush1.bf16.msra.mxu0 %v3106
    %4303 = vmatprep.subr.bf16.mxu0 %v3123
    %4304 = vmatpush1.bf16.msra.mxu0 %v3122
    %4305 = vmatprep.subr.bf16.mxu0 %v3139
    %4306 = vmatpush1.bf16.msra.mxu0 %v3138
    %4307 = vmatprep.subr.bf16.mxu0 %v3155
    %4308 = vmatpush1.bf16.msra.mxu0 %v3154
    %4309 = vmatprep.subr.bf16.mxu0 %v3171
    %4310 = vmatpush1.bf16.msra.mxu0 %v3170
    %4311 = vmatprep.subr.bf16.mxu0 %v3187
    %4312 = vmatpush1.bf16.msra.mxu0 %v3186
    %4313 = vmatprep.subr.bf16.mxu0 %v3203
    %4314 = vmatpush1.bf16.msra.mxu0 %v3202
    %4315 = vmatprep.subr.bf16.mxu0 %v3219
    %4316 = vmatpush1.bf16.msra.mxu0 %v3218
    %4317 = vmatprep.mubr.bf16.mxu0 %v792
    %4318 = vmatmul.mubr.bf16.gmra.mrb[0].mxu0 %v791
    %v4319 = vpop.f32.mrb[0].mxu0
    %v4320 = vadd.f32 %v4279, %v4319
    %v4321 = vpop.f32.mrb[0].mxu0
    %v4322 = vadd.f32 %v4281, %v4321
    %v4323 = vpop.f32.mrb[0].mxu0
    %v4324 = vpop.f32.mrb[0].mxu0
    %4325 = vdwg.mxu0
    %4326 = vmatprep.subr.bf16.mxu0 %v3235
    %4327 = vmatpush1.bf16.msra.mxu0 %v3234
    %4328 = vmatprep.subr.bf16.mxu0 %v3251
    %4329 = vmatpush1.bf16.msra.mxu0 %v3250
    %4330 = vmatprep.subr.bf16.mxu0 %v3267
    %4331 = vmatpush1.bf16.msra.mxu0 %v3266
    %4332 = vmatprep.subr.bf16.mxu0 %v3283
    %4333 = vmatpush1.bf16.msra.mxu0 %v3282
    %4334 = vmatprep.subr.bf16.mxu0 %v3299
    %4335 = vmatpush1.bf16.msra.mxu0 %v3298
    %4336 = vmatprep.subr.bf16.mxu0 %v3315
    %4337 = vmatpush1.bf16.msra.mxu0 %v3314
    %4338 = vmatprep.subr.bf16.mxu0 %v3331
    %4339 = vmatpush1.bf16.msra.mxu0 %v3330
    %4340 = vmatprep.subr.bf16.mxu0 %v3347
    %4341 = vmatpush1.bf16.msra.mxu0 %v3346
    %4342 = vmatprep.subr.bf16.mxu0 0
    %4343 = vmatpush1.bf16.msra.mxu0 0
    %4344 = vmatprep.subr.bf16.mxu0 0
    %4345 = vmatpush1.bf16.msra.mxu0 0
    %4346 = vmatprep.subr.bf16.mxu0 0
    %4347 = vmatpush1.bf16.msra.mxu0 0
    %4348 = vmatprep.subr.bf16.mxu0 0
    %4349 = vmatpush1.bf16.msra.mxu0 0
    %4350 = vmatprep.subr.bf16.mxu0 0
    %4351 = vmatpush1.bf16.msra.mxu0 0
    %4352 = vmatprep.subr.bf16.mxu0 0
    %4353 = vmatpush1.bf16.msra.mxu0 0
    %4354 = vmatprep.subr.bf16.mxu0 0
    %4355 = vmatpush1.bf16.msra.mxu0 0
    %4356 = vmatprep.subr.bf16.mxu0 0
    %4357 = vmatpush1.bf16.msra.mxu0 0
    %4358 = vmatprep.mubr.bf16.mxu0 0
    %4359 = vmatmul.mubr.bf16.gmra.mrb[0].mxu0 %v783
    %v4360 = vpop.f32.mrb[0].mxu0
    %v4361 = vadd.f32 %v4320, %v4360
    %v4362 = vpop.f32.mrb[0].mxu0
    %v4363 = vadd.f32 %v4322, %v4362
    %v4364 = vpop.f32.mrb[0].mxu0
    %v4365 = vpop.f32.mrb[0].mxu0
    %4366 = vdwg.mxu0
    %4367 = vmatprep.subr.bf16.mxu0 %v2725
    %4368 = vmatpush1.bf16.msra.mxu0 %v2724
    %4369 = vmatprep.subr.bf16.mxu0 %v2741
    %4370 = vmatpush1.bf16.msra.mxu0 %v2740
    %4371 = vmatprep.subr.bf16.mxu0 %v2757
    %4372 = vmatpush1.bf16.msra.mxu0 %v2756
    %4373 = vmatprep.subr.bf16.mxu0 %v2773
    %4374 = vmatpush1.bf16.msra.mxu0 %v2772
    %4375 = vmatprep.subr.bf16.mxu0 %v2789
    %4376 = vmatpush1.bf16.msra.mxu0 %v2788
    %4377 = vmatprep.subr.bf16.mxu0 %v2805
    %4378 = vmatpush1.bf16.msra.mxu0 %v2804
    %4379 = vmatprep.subr.bf16.mxu0 %v2821
    %4380 = vmatpush1.bf16.msra.mxu0 %v2820
    %4381 = vmatprep.subr.bf16.mxu0 %v2837
    %4382 = vmatpush1.bf16.msra.mxu0 %v2836
    %4383 = vmatprep.subr.bf16.mxu0 %v2853
    %4384 = vmatpush1.bf16.msra.mxu0 %v2852
    %4385 = vmatprep.subr.bf16.mxu0 %v2869
    %4386 = vmatpush1.bf16.msra.mxu0 %v2868
    %4387 = vmatprep.subr.bf16.mxu0 %v2885
    %4388 = vmatpush1.bf16.msra.mxu0 %v2884
    %4389 = vmatprep.subr.bf16.mxu0 %v2901
    %4390 = vmatpush1.bf16.msra.mxu0 %v2900
    %4391 = vmatprep.subr.bf16.mxu0 %v2917
    %4392 = vmatpush1.bf16.msra.mxu0 %v2916
    %4393 = vmatprep.subr.bf16.mxu0 %v2933
    %4394 = vmatpush1.bf16.msra.mxu0 %v2932
    %4395 = vmatprep.subr.bf16.mxu0 %v2949
    %4396 = vmatpush1.bf16.msra.mxu0 %v2948
    %4397 = vmatprep.subr.bf16.mxu0 %v2965
    %4398 = vmatpush1.bf16.msra.mxu0 %v2964
    %4399 = vmatprep.mubr.bf16.mxu0 %v790
    %4400 = vmatmul.mubr.bf16.gmra.mrb[0].mxu0 %v776
    %v4401 = vpop.f32.mrb[0].mxu0
    %v4402 = vadd.f32 %v700, %v4401
    %v4403 = vpop.f32.mrb[0].mxu0
    %v4404 = vadd.f32 %v704, %v4403
    %v4405 = vpop.f32.mrb[0].mxu0
    %v4406 = vpop.f32.mrb[0].mxu0
    %4407 = vdwg.mxu0
    %4408 = vmatprep.subr.bf16.mxu0 %v2981
    %4409 = vmatpush1.bf16.msra.mxu0 %v2980
    %4410 = vmatprep.subr.bf16.mxu0 %v2997
    %4411 = vmatpush1.bf16.msra.mxu0 %v2996
    %4412 = vmatprep.subr.bf16.mxu0 %v3013
    %4413 = vmatpush1.bf16.msra.mxu0 %v3012
    %4414 = vmatprep.subr.bf16.mxu0 %v3029
    %4415 = vmatpush1.bf16.msra.mxu0 %v3028
    %4416 = vmatprep.subr.bf16.mxu0 %v3045
    %4417 = vmatpush1.bf16.msra.mxu0 %v3044
    %4418 = vmatprep.subr.bf16.mxu0 %v3061
    %4419 = vmatpush1.bf16.msra.mxu0 %v3060
    %4420 = vmatprep.subr.bf16.mxu0 %v3077
    %4421 = vmatpush1.bf16.msra.mxu0 %v3076
    %4422 = vmatprep.subr.bf16.mxu0 %v3093
    %4423 = vmatpush1.bf16.msra.mxu0 %v3092
    %4424 = vmatprep.subr.bf16.mxu0 %v3109
    %4425 = vmatpush1.bf16.msra.mxu0 %v3108
    %4426 = vmatprep.subr.bf16.mxu0 %v3125
    %4427 = vmatpush1.bf16.msra.mxu0 %v3124
    %4428 = vmatprep.subr.bf16.mxu0 %v3141
    %4429 = vmatpush1.bf16.msra.mxu0 %v3140
    %4430 = vmatprep.subr.bf16.mxu0 %v3157
    %4431 = vmatpush1.bf16.msra.mxu0 %v3156
    %4432 = vmatprep.subr.bf16.mxu0 %v3173
    %4433 = vmatpush1.bf16.msra.mxu0 %v3172
    %4434 = vmatprep.subr.bf16.mxu0 %v3189
    %4435 = vmatpush1.bf16.msra.mxu0 %v3188
    %4436 = vmatprep.subr.bf16.mxu0 %v3205
    %4437 = vmatpush1.bf16.msra.mxu0 %v3204
    %4438 = vmatprep.subr.bf16.mxu0 %v3221
    %4439 = vmatpush1.bf16.msra.mxu0 %v3220
    %4440 = vmatprep.mubr.bf16.mxu0 %v792
    %4441 = vmatmul.mubr.bf16.gmra.mrb[0].mxu0 %v791
    %v4442 = vpop.f32.mrb[0].mxu0
    %v4443 = vadd.f32 %v4402, %v4442
    %v4444 = vpop.f32.mrb[0].mxu0
    %v4445 = vadd.f32 %v4404, %v4444
    %v4446 = vpop.f32.mrb[0].mxu0
    %v4447 = vpop.f32.mrb[0].mxu0
    %4448 = vdwg.mxu0
    %4449 = vmatprep.subr.bf16.mxu0 %v3237
    %4450 = vmatpush1.bf16.msra.mxu0 %v3236
    %4451 = vmatprep.subr.bf16.mxu0 %v3253
    %4452 = vmatpush1.bf16.msra.mxu0 %v3252
    %4453 = vmatprep.subr.bf16.mxu0 %v3269
    %4454 = vmatpush1.bf16.msra.mxu0 %v3268
    %4455 = vmatprep.subr.bf16.mxu0 %v3285
    %4456 = vmatpush1.bf16.msra.mxu0 %v3284
    %4457 = vmatprep.subr.bf16.mxu0 %v3301
    %4458 = vmatpush1.bf16.msra.mxu0 %v3300
    %4459 = vmatprep.subr.bf16.mxu0 %v3317
    %4460 = vmatpush1.bf16.msra.mxu0 %v3316
    %4461 = vmatprep.subr.bf16.mxu0 %v3333
    %4462 = vmatpush1.bf16.msra.mxu0 %v3332
    %4463 = vmatprep.subr.bf16.mxu0 %v3349
    %4464 = vmatpush1.bf16.msra.mxu0 %v3348
    %4465 = vmatprep.subr.bf16.mxu0 0
    %4466 = vmatpush1.bf16.msra.mxu0 0
    %4467 = vmatprep.subr.bf16.mxu0 0
    %4468 = vmatpush1.bf16.msra.mxu0 0
    %4469 = vmatprep.subr.bf16.mxu0 0
    %4470 = vmatpush1.bf16.msra.mxu0 0
    %4471 = vmatprep.subr.bf16.mxu0 0
    %4472 = vmatpush1.bf16.msra.mxu0 0
    %4473 = vmatprep.subr.bf16.mxu0 0
    %4474 = vmatpush1.bf16.msra.mxu0 0
    %4475 = vmatprep.subr.bf16.mxu0 0
    %4476 = vmatpush1.bf16.msra.mxu0 0
    %4477 = vmatprep.subr.bf16.mxu0 0
    %4478 = vmatpush1.bf16.msra.mxu0 0
    %4479 = vmatprep.subr.bf16.mxu0 0
    %4480 = vmatpush1.bf16.msra.mxu0 0
    %4481 = vmatprep.mubr.bf16.mxu0 0
    %4482 = vmatmul.mubr.bf16.gmra.mrb[0].mxu0 %v783
    %v4483 = vpop.f32.mrb[0].mxu0
    %v4484 = vadd.f32 %v4443, %v4483
    %v4485 = vpop.f32.mrb[0].mxu0
    %v4486 = vadd.f32 %v4445, %v4485
    %v4487 = vpop.f32.mrb[0].mxu0
    %v4488 = vpop.f32.mrb[0].mxu0
    %4489 = vdwg.mxu0
    %4490 = vmatprep.subr.bf16.mxu0 %v2727
    %4491 = vmatpush1.bf16.msra.mxu0 %v2726
    %4492 = vmatprep.subr.bf16.mxu0 %v2743
    %4493 = vmatpush1.bf16.msra.mxu0 %v2742
    %4494 = vmatprep.subr.bf16.mxu0 %v2759
    %4495 = vmatpush1.bf16.msra.mxu0 %v2758
    %4496 = vmatprep.subr.bf16.mxu0 %v2775
    %4497 = vmatpush1.bf16.msra.mxu0 %v2774
    %4498 = vmatprep.subr.bf16.mxu0 %v2791
    %4499 = vmatpush1.bf16.msra.mxu0 %v2790
    %4500 = vmatprep.subr.bf16.mxu0 %v2807
    %4501 = vmatpush1.bf16.msra.mxu0 %v2806
    %4502 = vmatprep.subr.bf16.mxu0 %v2823
    %4503 = vmatpush1.bf16.msra.mxu0 %v2822
    %4504 = vmatprep.subr.bf16.mxu0 %v2839
    %4505 = vmatpush1.bf16.msra.mxu0 %v2838
    %4506 = vmatprep.subr.bf16.mxu0 %v2855
    %4507 = vmatpush1.bf16.msra.mxu0 %v2854
    %4508 = vmatprep.subr.bf16.mxu0 %v2871
    %4509 = vmatpush1.bf16.msra.mxu0 %v2870
    %4510 = vmatprep.subr.bf16.mxu0 %v2887
    %4511 = vmatpush1.bf16.msra.mxu0 %v2886
    %4512 = vmatprep.subr.bf16.mxu0 %v2903
    %4513 = vmatpush1.bf16.msra.mxu0 %v2902
    %4514 = vmatprep.subr.bf16.mxu0 %v2919
    %4515 = vmatpush1.bf16.msra.mxu0 %v2918
    %4516 = vmatprep.subr.bf16.mxu0 %v2935
    %4517 = vmatpush1.bf16.msra.mxu0 %v2934
    %4518 = vmatprep.subr.bf16.mxu0 %v2951
    %4519 = vmatpush1.bf16.msra.mxu0 %v2950
    %4520 = vmatprep.subr.bf16.mxu0 %v2967
    %4521 = vmatpush1.bf16.msra.mxu0 %v2966
    %4522 = vmatprep.mubr.bf16.mxu0 %v790
    %4523 = vmatmul.mubr.bf16.gmra.mrb[0].mxu0 %v776
    %v4524 = vpop.f32.mrb[0].mxu0
    %v4525 = vadd.f32 %v708, %v4524
    %v4526 = vpop.f32.mrb[0].mxu0
    %v4527 = vadd.f32 %v712, %v4526
    %v4528 = vpop.f32.mrb[0].mxu0
    %v4529 = vpop.f32.mrb[0].mxu0
    %4530 = vdwg.mxu0
    %4531 = vmatprep.subr.bf16.mxu0 %v2983
    %4532 = vmatpush1.bf16.msra.mxu0 %v2982
    %4533 = vmatprep.subr.bf16.mxu0 %v2999
    %4534 = vmatpush1.bf16.msra.mxu0 %v2998
    %4535 = vmatprep.subr.bf16.mxu0 %v3015
    %4536 = vmatpush1.bf16.msra.mxu0 %v3014
    %4537 = vmatprep.subr.bf16.mxu0 %v3031
    %4538 = vmatpush1.bf16.msra.mxu0 %v3030
    %4539 = vmatprep.subr.bf16.mxu0 %v3047
    %4540 = vmatpush1.bf16.msra.mxu0 %v3046
    %4541 = vmatprep.subr.bf16.mxu0 %v3063
    %4542 = vmatpush1.bf16.msra.mxu0 %v3062
    %4543 = vmatprep.subr.bf16.mxu0 %v3079
    %4544 = vmatpush1.bf16.msra.mxu0 %v3078
    %4545 = vmatprep.subr.bf16.mxu0 %v3095
    %4546 = vmatpush1.bf16.msra.mxu0 %v3094
    %4547 = vmatprep.subr.bf16.mxu0 %v3111
    %4548 = vmatpush1.bf16.msra.mxu0 %v3110
    %4549 = vmatprep.subr.bf16.mxu0 %v3127
    %4550 = vmatpush1.bf16.msra.mxu0 %v3126
    %4551 = vmatprep.subr.bf16.mxu0 %v3143
    %4552 = vmatpush1.bf16.msra.mxu0 %v3142
    %4553 = vmatprep.subr.bf16.mxu0 %v3159
    %4554 = vmatpush1.bf16.msra.mxu0 %v3158
    %4555 = vmatprep.subr.bf16.mxu0 %v3175
    %4556 = vmatpush1.bf16.msra.mxu0 %v3174
    %4557 = vmatprep.subr.bf16.mxu0 %v3191
    %4558 = vmatpush1.bf16.msra.mxu0 %v3190
    %4559 = vmatprep.subr.bf16.mxu0 %v3207
    %4560 = vmatpush1.bf16.msra.mxu0 %v3206
    %4561 = vmatprep.subr.bf16.mxu0 %v3223
    %4562 = vmatpush1.bf16.msra.mxu0 %v3222
    %4563 = vmatprep.mubr.bf16.mxu0 %v792
    %4564 = vmatmul.mubr.bf16.gmra.mrb[0].mxu0 %v791
    %v4565 = vpop.f32.mrb[0].mxu0
    %v4566 = vadd.f32 %v4525, %v4565
    %v4567 = vpop.f32.mrb[0].mxu0
    %v4568 = vadd.f32 %v4527, %v4567
    %v4569 = vpop.f32.mrb[0].mxu0
    %v4570 = vpop.f32.mrb[0].mxu0
    %4571 = vdwg.mxu0
    %4572 = vmatprep.subr.bf16.mxu0 %v3239
    %4573 = vmatpush1.bf16.msra.mxu0 %v3238
    %4574 = vmatprep.subr.bf16.mxu0 %v3255
    %4575 = vmatpush1.bf16.msra.mxu0 %v3254
    %4576 = vmatprep.subr.bf16.mxu0 %v3271
    %4577 = vmatpush1.bf16.msra.mxu0 %v3270
    %4578 = vmatprep.subr.bf16.mxu0 %v3287
    %4579 = vmatpush1.bf16.msra.mxu0 %v3286
    %4580 = vmatprep.subr.bf16.mxu0 %v3303
    %4581 = vmatpush1.bf16.msra.mxu0 %v3302
    %4582 = vmatprep.subr.bf16.mxu0 %v3319
    %4583 = vmatpush1.bf16.msra.mxu0 %v3318
    %4584 = vmatprep.subr.bf16.mxu0 %v3335
    %4585 = vmatpush1.bf16.msra.mxu0 %v3334
    %4586 = vmatprep.subr.bf16.mxu0 %v3351
    %4587 = vmatpush1.bf16.msra.mxu0 %v3350
    %4588 = vmatprep.subr.bf16.mxu0 0
    %4589 = vmatpush1.bf16.msra.mxu0 0
    %4590 = vmatprep.subr.bf16.mxu0 0
    %4591 = vmatpush1.bf16.msra.mxu0 0
    %4592 = vmatprep.subr.bf16.mxu0 0
    %4593 = vmatpush1.bf16.msra.mxu0 0
    %4594 = vmatprep.subr.bf16.mxu0 0
    %4595 = vmatpush1.bf16.msra.mxu0 0
    %4596 = vmatprep.subr.bf16.mxu0 0
    %4597 = vmatpush1.bf16.msra.mxu0 0
    %4598 = vmatprep.subr.bf16.mxu0 0
    %4599 = vmatpush1.bf16.msra.mxu0 0
    %4600 = vmatprep.subr.bf16.mxu0 0
    %4601 = vmatpush1.bf16.msra.mxu0 0
    %4602 = vmatprep.subr.bf16.mxu0 0
    %4603 = vmatpush1.bf16.msra.mxu0 0
    %4604 = vmatprep.mubr.bf16.mxu0 0
    %4605 = vmatmul.mubr.bf16.gmra.mrb[0].mxu0 %v783
    %v4606 = vpop.f32.mrb[0].mxu0
    %v4607 = vadd.f32 %v4566, %v4606
    %v4608 = vpop.f32.mrb[0].mxu0
    %v4609 = vadd.f32 %v4568, %v4608
    %v4610 = vpop.f32.mrb[0].mxu0
    %v4611 = vpop.f32.mrb[0].mxu0
    %4612 = vdwg.mxu0
    %4613 = vmatprep.subr.bf16.mxu0 %v2729
    %4614 = vmatpush1.bf16.msra.mxu0 %v2728
    %4615 = vmatprep.subr.bf16.mxu0 %v2745
    %4616 = vmatpush1.bf16.msra.mxu0 %v2744
    %4617 = vmatprep.subr.bf16.mxu0 %v2761
    %4618 = vmatpush1.bf16.msra.mxu0 %v2760
    %4619 = vmatprep.subr.bf16.mxu0 %v2777
    %4620 = vmatpush1.bf16.msra.mxu0 %v2776
    %4621 = vmatprep.subr.bf16.mxu0 %v2793
    %4622 = vmatpush1.bf16.msra.mxu0 %v2792
    %4623 = vmatprep.subr.bf16.mxu0 %v2809
    %4624 = vmatpush1.bf16.msra.mxu0 %v2808
    %4625 = vmatprep.subr.bf16.mxu0 %v2825
    %4626 = vmatpush1.bf16.msra.mxu0 %v2824
    %4627 = vmatprep.subr.bf16.mxu0 %v2841
    %4628 = vmatpush1.bf16.msra.mxu0 %v2840
    %4629 = vmatprep.subr.bf16.mxu0 %v2857
    %4630 = vmatpush1.bf16.msra.mxu0 %v2856
    %4631 = vmatprep.subr.bf16.mxu0 %v2873
    %4632 = vmatpush1.bf16.msra.mxu0 %v2872
    %4633 = vmatprep.subr.bf16.mxu0 %v2889
    %4634 = vmatpush1.bf16.msra.mxu0 %v2888
    %4635 = vmatprep.subr.bf16.mxu0 %v2905
    %4636 = vmatpush1.bf16.msra.mxu0 %v2904
    %4637 = vmatprep.subr.bf16.mxu0 %v2921
    %4638 = vmatpush1.bf16.msra.mxu0 %v2920
    %4639 = vmatprep.subr.bf16.mxu0 %v2937
    %4640 = vmatpush1.bf16.msra.mxu0 %v2936
    %4641 = vmatprep.subr.bf16.mxu0 %v2953
    %4642 = vmatpush1.bf16.msra.mxu0 %v2952
    %4643 = vmatprep.subr.bf16.mxu0 %v2969
    %4644 = vmatpush1.bf16.msra.mxu0 %v2968
    %4645 = vmatprep.mubr.bf16.mxu0 %v790
    %4646 = vmatmul.mubr.bf16.gmra.mrb[0].mxu0 %v776
    %v4647 = vpop.f32.mrb[0].mxu0
    %v4648 = vadd.f32 %v716, %v4647
    %v4649 = vpop.f32.mrb[0].mxu0
    %v4650 = vadd.f32 %v720, %v4649
    %v4651 = vpop.f32.mrb[0].mxu0
    %v4652 = vpop.f32.mrb[0].mxu0
    %4653 = vdwg.mxu0
    %4654 = vmatprep.subr.bf16.mxu0 %v2985
    %4655 = vmatpush1.bf16.msra.mxu0 %v2984
    %4656 = vmatprep.subr.bf16.mxu0 %v3001
    %4657 = vmatpush1.bf16.msra.mxu0 %v3000
    %4658 = vmatprep.subr.bf16.mxu0 %v3017
    %4659 = vmatpush1.bf16.msra.mxu0 %v3016
    %4660 = vmatprep.subr.bf16.mxu0 %v3033
    %4661 = vmatpush1.bf16.msra.mxu0 %v3032
    %4662 = vmatprep.subr.bf16.mxu0 %v3049
    %4663 = vmatpush1.bf16.msra.mxu0 %v3048
    %4664 = vmatprep.subr.bf16.mxu0 %v3065
    %4665 = vmatpush1.bf16.msra.mxu0 %v3064
    %4666 = vmatprep.subr.bf16.mxu0 %v3081
    %4667 = vmatpush1.bf16.msra.mxu0 %v3080
    %4668 = vmatprep.subr.bf16.mxu0 %v3097
    %4669 = vmatpush1.bf16.msra.mxu0 %v3096
    %4670 = vmatprep.subr.bf16.mxu0 %v3113
    %4671 = vmatpush1.bf16.msra.mxu0 %v3112
    %4672 = vmatprep.subr.bf16.mxu0 %v3129
    %4673 = vmatpush1.bf16.msra.mxu0 %v3128
    %4674 = vmatprep.subr.bf16.mxu0 %v3145
    %4675 = vmatpush1.bf16.msra.mxu0 %v3144
    %4676 = vmatprep.subr.bf16.mxu0 %v3161
    %4677 = vmatpush1.bf16.msra.mxu0 %v3160
    %4678 = vmatprep.subr.bf16.mxu0 %v3177
    %4679 = vmatpush1.bf16.msra.mxu0 %v3176
    %4680 = vmatprep.subr.bf16.mxu0 %v3193
    %4681 = vmatpush1.bf16.msra.mxu0 %v3192
    %4682 = vmatprep.subr.bf16.mxu0 %v3209
    %4683 = vmatpush1.bf16.msra.mxu0 %v3208
    %4684 = vmatprep.subr.bf16.mxu0 %v3225
    %4685 = vmatpush1.bf16.msra.mxu0 %v3224
    %4686 = vmatprep.mubr.bf16.mxu0 %v792
    %4687 = vmatmul.mubr.bf16.gmra.mrb[0].mxu0 %v791
    %v4688 = vpop.f32.mrb[0].mxu0
    %v4689 = vadd.f32 %v4648, %v4688
    %v4690 = vpop.f32.mrb[0].mxu0
    %v4691 = vadd.f32 %v4650, %v4690
    %v4692 = vpop.f32.mrb[0].mxu0
    %v4693 = vpop.f32.mrb[0].mxu0
    %4694 = vdwg.mxu0
    %4695 = vmatprep.subr.bf16.mxu0 %v3241
    %4696 = vmatpush1.bf16.msra.mxu0 %v3240
    %4697 = vmatprep.subr.bf16.mxu0 %v3257
    %4698 = vmatpush1.bf16.msra.mxu0 %v3256
    %4699 = vmatprep.subr.bf16.mxu0 %v3273
    %4700 = vmatpush1.bf16.msra.mxu0 %v3272
    %4701 = vmatprep.subr.bf16.mxu0 %v3289
    %4702 = vmatpush1.bf16.msra.mxu0 %v3288
    %4703 = vmatprep.subr.bf16.mxu0 %v3305
    %4704 = vmatpush1.bf16.msra.mxu0 %v3304
    %4705 = vmatprep.subr.bf16.mxu0 %v3321
    %4706 = vmatpush1.bf16.msra.mxu0 %v3320
    %4707 = vmatprep.subr.bf16.mxu0 %v3337
    %4708 = vmatpush1.bf16.msra.mxu0 %v3336
    %4709 = vmatprep.subr.bf16.mxu0 %v3353
    %4710 = vmatpush1.bf16.msra.mxu0 %v3352
    %4711 = vmatprep.subr.bf16.mxu0 0
    %4712 = vmatpush1.bf16.msra.mxu0 0
    %4713 = vmatprep.subr.bf16.mxu0 0
    %4714 = vmatpush1.bf16.msra.mxu0 0
    %4715 = vmatprep.subr.bf16.mxu0 0
    %4716 = vmatpush1.bf16.msra.mxu0 0
    %4717 = vmatprep.subr.bf16.mxu0 0
    %4718 = vmatpush1.bf16.msra.mxu0 0
    %4719 = vmatprep.subr.bf16.mxu0 0
    %4720 = vmatpush1.bf16.msra.mxu0 0
    %4721 = vmatprep.subr.bf16.mxu0 0
    %4722 = vmatpush1.bf16.msra.mxu0 0
    %4723 = vmatprep.subr.bf16.mxu0 0
    %4724 = vmatpush1.bf16.msra.mxu0 0
    %4725 = vmatprep.subr.bf16.mxu0 0
    %4726 = vmatpush1.bf16.msra.mxu0 0
    %4727 = vmatprep.mubr.bf16.mxu0 0
    %4728 = vmatmul.mubr.bf16.gmra.mrb[0].mxu0 %v783
    %v4729 = vpop.f32.mrb[0].mxu0
    %v4730 = vadd.f32 %v4689, %v4729
    %v4731 = vpop.f32.mrb[0].mxu0
    %v4732 = vadd.f32 %v4691, %v4731
    %v4733 = vpop.f32.mrb[0].mxu0
    %v4734 = vpop.f32.mrb[0].mxu0
    %4735 = vdwg.mxu0
    %4736 = vmatprep.subr.bf16.mxu0 %v2731
    %4737 = vmatpush1.bf16.msra.mxu0 %v2730
    %4738 = vmatprep.subr.bf16.mxu0 %v2747
    %4739 = vmatpush1.bf16.msra.mxu0 %v2746
    %4740 = vmatprep.subr.bf16.mxu0 %v2763
    %4741 = vmatpush1.bf16.msra.mxu0 %v2762
    %4742 = vmatprep.subr.bf16.mxu0 %v2779
    %4743 = vmatpush1.bf16.msra.mxu0 %v2778
    %4744 = vmatprep.subr.bf16.mxu0 %v2795
    %4745 = vmatpush1.bf16.msra.mxu0 %v2794
    %4746 = vmatprep.subr.bf16.mxu0 %v2811
    %4747 = vmatpush1.bf16.msra.mxu0 %v2810
    %4748 = vmatprep.subr.bf16.mxu0 %v2827
    %4749 = vmatpush1.bf16.msra.mxu0 %v2826
    %4750 = vmatprep.subr.bf16.mxu0 %v2843
    %4751 = vmatpush1.bf16.msra.mxu0 %v2842
    %4752 = vmatprep.subr.bf16.mxu0 %v2859
    %4753 = vmatpush1.bf16.msra.mxu0 %v2858
    %4754 = vmatprep.subr.bf16.mxu0 %v2875
    %4755 = vmatpush1.bf16.msra.mxu0 %v2874
    %4756 = vmatprep.subr.bf16.mxu0 %v2891
    %4757 = vmatpush1.bf16.msra.mxu0 %v2890
    %4758 = vmatprep.subr.bf16.mxu0 %v2907
    %4759 = vmatpush1.bf16.msra.mxu0 %v2906
    %4760 = vmatprep.subr.bf16.mxu0 %v2923
    %4761 = vmatpush1.bf16.msra.mxu0 %v2922
    %4762 = vmatprep.subr.bf16.mxu0 %v2939
    %4763 = vmatpush1.bf16.msra.mxu0 %v2938
    %4764 = vmatprep.subr.bf16.mxu0 %v2955
    %4765 = vmatpush1.bf16.msra.mxu0 %v2954
    %4766 = vmatprep.subr.bf16.mxu0 %v2971
    %4767 = vmatpush1.bf16.msra.mxu0 %v2970
    %4768 = vmatprep.mubr.bf16.mxu0 %v790
    %4769 = vmatmul.mubr.bf16.gmra.mrb[0].mxu0 %v776
    %v4770 = vpop.f32.mrb[0].mxu0
    %v4771 = vadd.f32 %v724, %v4770
    %v4772 = vpop.f32.mrb[0].mxu0
    %v4773 = vadd.f32 %v728, %v4772
    %v4774 = vpop.f32.mrb[0].mxu0
    %v4775 = vpop.f32.mrb[0].mxu0
    %4776 = vdwg.mxu0
    %4777 = vmatprep.subr.bf16.mxu0 %v2987
    %4778 = vmatpush1.bf16.msra.mxu0 %v2986
    %4779 = vmatprep.subr.bf16.mxu0 %v3003
    %4780 = vmatpush1.bf16.msra.mxu0 %v3002
    %4781 = vmatprep.subr.bf16.mxu0 %v3019
    %4782 = vmatpush1.bf16.msra.mxu0 %v3018
    %4783 = vmatprep.subr.bf16.mxu0 %v3035
    %4784 = vmatpush1.bf16.msra.mxu0 %v3034
    %4785 = vmatprep.subr.bf16.mxu0 %v3051
    %4786 = vmatpush1.bf16.msra.mxu0 %v3050
    %4787 = vmatprep.subr.bf16.mxu0 %v3067
    %4788 = vmatpush1.bf16.msra.mxu0 %v3066
    %4789 = vmatprep.subr.bf16.mxu0 %v3083
    %4790 = vmatpush1.bf16.msra.mxu0 %v3082
    %4791 = vmatprep.subr.bf16.mxu0 %v3099
    %4792 = vmatpush1.bf16.msra.mxu0 %v3098
    %4793 = vmatprep.subr.bf16.mxu0 %v3115
    %4794 = vmatpush1.bf16.msra.mxu0 %v3114
    %4795 = vmatprep.subr.bf16.mxu0 %v3131
    %4796 = vmatpush1.bf16.msra.mxu0 %v3130
    %4797 = vmatprep.subr.bf16.mxu0 %v3147
    %4798 = vmatpush1.bf16.msra.mxu0 %v3146
    %4799 = vmatprep.subr.bf16.mxu0 %v3163
    %4800 = vmatpush1.bf16.msra.mxu0 %v3162
    %4801 = vmatprep.subr.bf16.mxu0 %v3179
    %4802 = vmatpush1.bf16.msra.mxu0 %v3178
    %4803 = vmatprep.subr.bf16.mxu0 %v3195
    %4804 = vmatpush1.bf16.msra.mxu0 %v3194
    %4805 = vmatprep.subr.bf16.mxu0 %v3211
    %4806 = vmatpush1.bf16.msra.mxu0 %v3210
    %4807 = vmatprep.subr.bf16.mxu0 %v3227
    %4808 = vmatpush1.bf16.msra.mxu0 %v3226
    %4809 = vmatprep.mubr.bf16.mxu0 %v792
    %4810 = vmatmul.mubr.bf16.gmra.mrb[0].mxu0 %v791
    %v4811 = vpop.f32.mrb[0].mxu0
    %v4812 = vadd.f32 %v4771, %v4811
    %v4813 = vpop.f32.mrb[0].mxu0
    %v4814 = vadd.f32 %v4773, %v4813
    %v4815 = vpop.f32.mrb[0].mxu0
    %v4816 = vpop.f32.mrb[0].mxu0
    %4817 = vdwg.mxu0
    %4818 = vmatprep.subr.bf16.mxu0 %v3243
    %4819 = vmatpush1.bf16.msra.mxu0 %v3242
    %4820 = vmatprep.subr.bf16.mxu0 %v3259
    %4821 = vmatpush1.bf16.msra.mxu0 %v3258
    %4822 = vmatprep.subr.bf16.mxu0 %v3275
    %4823 = vmatpush1.bf16.msra.mxu0 %v3274
    %4824 = vmatprep.subr.bf16.mxu0 %v3291
    %4825 = vmatpush1.bf16.msra.mxu0 %v3290
    %4826 = vmatprep.subr.bf16.mxu0 %v3307
    %4827 = vmatpush1.bf16.msra.mxu0 %v3306
    %4828 = vmatprep.subr.bf16.mxu0 %v3323
    %4829 = vmatpush1.bf16.msra.mxu0 %v3322
    %4830 = vmatprep.subr.bf16.mxu0 %v3339
    %4831 = vmatpush1.bf16.msra.mxu0 %v3338
    %4832 = vmatprep.subr.bf16.mxu0 %v3355
    %4833 = vmatpush1.bf16.msra.mxu0 %v3354
    %4834 = vmatprep.subr.bf16.mxu0 0
    %4835 = vmatpush1.bf16.msra.mxu0 0
    %4836 = vmatprep.subr.bf16.mxu0 0
    %4837 = vmatpush1.bf16.msra.mxu0 0
    %4838 = vmatprep.subr.bf16.mxu0 0
    %4839 = vmatpush1.bf16.msra.mxu0 0
    %4840 = vmatprep.subr.bf16.mxu0 0
    %4841 = vmatpush1.bf16.msra.mxu0 0
    %4842 = vmatprep.subr.bf16.mxu0 0
    %4843 = vmatpush1.bf16.msra.mxu0 0
    %4844 = vmatprep.subr.bf16.mxu0 0
    %4845 = vmatpush1.bf16.msra.mxu0 0
    %4846 = vmatprep.subr.bf16.mxu0 0
    %4847 = vmatpush1.bf16.msra.mxu0 0
    %4848 = vmatprep.subr.bf16.mxu0 0
    %4849 = vmatpush1.bf16.msra.mxu0 0
    %4850 = vmatprep.mubr.bf16.mxu0 0
    %4851 = vmatmul.mubr.bf16.gmra.mrb[0].mxu0 %v783
    %v4852 = vpop.f32.mrb[0].mxu0
    %v4853 = vadd.f32 %v4812, %v4852
    %v4854 = vpop.f32.mrb[0].mxu0
    %v4855 = vadd.f32 %v4814, %v4854
    %v4856 = vpop.f32.mrb[0].mxu0
    %v4857 = vpop.f32.mrb[0].mxu0
    %4858 = vdwg.mxu0
    %4859 = vmatprep.subr.bf16.mxu0 %v2733
    %4860 = vmatpush1.bf16.msra.mxu0 %v2732
    %4861 = vmatprep.subr.bf16.mxu0 %v2749
    %4862 = vmatpush1.bf16.msra.mxu0 %v2748
    %4863 = vmatprep.subr.bf16.mxu0 %v2765
    %4864 = vmatpush1.bf16.msra.mxu0 %v2764
    %4865 = vmatprep.subr.bf16.mxu0 %v2781
    %4866 = vmatpush1.bf16.msra.mxu0 %v2780
    %4867 = vmatprep.subr.bf16.mxu0 %v2797
    %4868 = vmatpush1.bf16.msra.mxu0 %v2796
    %4869 = vmatprep.subr.bf16.mxu0 %v2813
    %4870 = vmatpush1.bf16.msra.mxu0 %v2812
    %4871 = vmatprep.subr.bf16.mxu0 %v2829
    %4872 = vmatpush1.bf16.msra.mxu0 %v2828
    %4873 = vmatprep.subr.bf16.mxu0 %v2845
    %4874 = vmatpush1.bf16.msra.mxu0 %v2844
    %4875 = vmatprep.subr.bf16.mxu0 %v2861
    %4876 = vmatpush1.bf16.msra.mxu0 %v2860
    %4877 = vmatprep.subr.bf16.mxu0 %v2877
    %4878 = vmatpush1.bf16.msra.mxu0 %v2876
    %4879 = vmatprep.subr.bf16.mxu0 %v2893
    %4880 = vmatpush1.bf16.msra.mxu0 %v2892
    %4881 = vmatprep.subr.bf16.mxu0 %v2909
    %4882 = vmatpush1.bf16.msra.mxu0 %v2908
    %4883 = vmatprep.subr.bf16.mxu0 %v2925
    %4884 = vmatpush1.bf16.msra.mxu0 %v2924
    %4885 = vmatprep.subr.bf16.mxu0 %v2941
    %4886 = vmatpush1.bf16.msra.mxu0 %v2940
    %4887 = vmatprep.subr.bf16.mxu0 %v2957
    %4888 = vmatpush1.bf16.msra.mxu0 %v2956
    %4889 = vmatprep.subr.bf16.mxu0 %v2973
    %4890 = vmatpush1.bf16.msra.mxu0 %v2972
    %4891 = vmatprep.mubr.bf16.mxu0 %v790
    %4892 = vmatmul.mubr.bf16.gmra.mrb[0].mxu0 %v776
    %v4893 = vpop.f32.mrb[0].mxu0
    %v4894 = vadd.f32 %v732, %v4893
    %v4895 = vpop.f32.mrb[0].mxu0
    %v4896 = vadd.f32 %v736, %v4895
    %v4897 = vpop.f32.mrb[0].mxu0
    %v4898 = vpop.f32.mrb[0].mxu0
    %4899 = vdwg.mxu0
    %4900 = vmatprep.subr.bf16.mxu0 %v2989
    %4901 = vmatpush1.bf16.msra.mxu0 %v2988
    %4902 = vmatprep.subr.bf16.mxu0 %v3005
    %4903 = vmatpush1.bf16.msra.mxu0 %v3004
    %4904 = vmatprep.subr.bf16.mxu0 %v3021
    %4905 = vmatpush1.bf16.msra.mxu0 %v3020
    %4906 = vmatprep.subr.bf16.mxu0 %v3037
    %4907 = vmatpush1.bf16.msra.mxu0 %v3036
    %4908 = vmatprep.subr.bf16.mxu0 %v3053
    %4909 = vmatpush1.bf16.msra.mxu0 %v3052
    %4910 = vmatprep.subr.bf16.mxu0 %v3069
    %4911 = vmatpush1.bf16.msra.mxu0 %v3068
    %4912 = vmatprep.subr.bf16.mxu0 %v3085
    %4913 = vmatpush1.bf16.msra.mxu0 %v3084
    %4914 = vmatprep.subr.bf16.mxu0 %v3101
    %4915 = vmatpush1.bf16.msra.mxu0 %v3100
    %4916 = vmatprep.subr.bf16.mxu0 %v3117
    %4917 = vmatpush1.bf16.msra.mxu0 %v3116
    %4918 = vmatprep.subr.bf16.mxu0 %v3133
    %4919 = vmatpush1.bf16.msra.mxu0 %v3132
    %4920 = vmatprep.subr.bf16.mxu0 %v3149
    %4921 = vmatpush1.bf16.msra.mxu0 %v3148
    %4922 = vmatprep.subr.bf16.mxu0 %v3165
    %4923 = vmatpush1.bf16.msra.mxu0 %v3164
    %4924 = vmatprep.subr.bf16.mxu0 %v3181
    %4925 = vmatpush1.bf16.msra.mxu0 %v3180
    %4926 = vmatprep.subr.bf16.mxu0 %v3197
    %4927 = vmatpush1.bf16.msra.mxu0 %v3196
    %4928 = vmatprep.subr.bf16.mxu0 %v3213
    %4929 = vmatpush1.bf16.msra.mxu0 %v3212
    %4930 = vmatprep.subr.bf16.mxu0 %v3229
    %4931 = vmatpush1.bf16.msra.mxu0 %v3228
    %4932 = vmatprep.mubr.bf16.mxu0 %v792
    %4933 = vmatmul.mubr.bf16.gmra.mrb[0].mxu0 %v791
    %v4934 = vpop.f32.mrb[0].mxu0
    %v4935 = vadd.f32 %v4894, %v4934
    %v4936 = vpop.f32.mrb[0].mxu0
    %v4937 = vadd.f32 %v4896, %v4936
    %v4938 = vpop.f32.mrb[0].mxu0
    %v4939 = vpop.f32.mrb[0].mxu0
    %4940 = vdwg.mxu0
    %4941 = vmatprep.subr.bf16.mxu0 %v3245
    %4942 = vmatpush1.bf16.msra.mxu0 %v3244
    %4943 = vmatprep.subr.bf16.mxu0 %v3261
    %4944 = vmatpush1.bf16.msra.mxu0 %v3260
    %4945 = vmatprep.subr.bf16.mxu0 %v3277
    %4946 = vmatpush1.bf16.msra.mxu0 %v3276
    %4947 = vmatprep.subr.bf16.mxu0 %v3293
    %4948 = vmatpush1.bf16.msra.mxu0 %v3292
    %4949 = vmatprep.subr.bf16.mxu0 %v3309
    %4950 = vmatpush1.bf16.msra.mxu0 %v3308
    %4951 = vmatprep.subr.bf16.mxu0 %v3325
    %4952 = vmatpush1.bf16.msra.mxu0 %v3324
    %4953 = vmatprep.subr.bf16.mxu0 %v3341
    %4954 = vmatpush1.bf16.msra.mxu0 %v3340
    %4955 = vmatprep.subr.bf16.mxu0 %v3357
    %4956 = vmatpush1.bf16.msra.mxu0 %v3356
    %4957 = vmatprep.subr.bf16.mxu0 0
    %4958 = vmatpush1.bf16.msra.mxu0 0
    %4959 = vmatprep.subr.bf16.mxu0 0
    %4960 = vmatpush1.bf16.msra.mxu0 0
    %4961 = vmatprep.subr.bf16.mxu0 0
    %4962 = vmatpush1.bf16.msra.mxu0 0
    %4963 = vmatprep.subr.bf16.mxu0 0
    %4964 = vmatpush1.bf16.msra.mxu0 0
    %4965 = vmatprep.subr.bf16.mxu0 0
    %4966 = vmatpush1.bf16.msra.mxu0 0
    %4967 = vmatprep.subr.bf16.mxu0 0
    %4968 = vmatpush1.bf16.msra.mxu0 0
    %4969 = vmatprep.subr.bf16.mxu0 0
    %4970 = vmatpush1.bf16.msra.mxu0 0
    %4971 = vmatprep.subr.bf16.mxu0 0
    %4972 = vmatpush1.bf16.msra.mxu0 0
    %4973 = vmatprep.mubr.bf16.mxu0 0
    %4974 = vmatmul.mubr.bf16.gmra.mrb[0].mxu0 %v783
    %v4975 = vpop.f32.mrb[0].mxu0
    %v4976 = vadd.f32 %v4935, %v4975
    %v4977 = vpop.f32.mrb[0].mxu0
    %v4978 = vadd.f32 %v4937, %v4977
    %v4979 = vpop.f32.mrb[0].mxu0
    %v4980 = vpop.f32.mrb[0].mxu0
    %4981 = vdwg.mxu0
    %v4982 = vmax.f32 %v4115, 0.0
    %v4983 = vmax.f32 %v4117, 0.0
    %v4984 = vmax.f32 %v4238, 0.0
    %v4985 = vmax.f32 %v4240, 0.0
    %v4986 = vmax.f32 %v4361, 0.0
    %v4987 = vmax.f32 %v4363, 0.0
    %v4988 = vmax.f32 %v4484, 0.0
    %v4989 = vmax.f32 %v4486, 0.0
    %v4990 = vmax.f32 %v4607, 0.0
    %v4991 = vmax.f32 %v4609, 0.0
    %v4992 = vmax.f32 %v4730, 0.0
    %v4993 = vmax.f32 %v4732, 0.0
    %v4994 = vmax.f32 %v4853, 0.0
    %v4995 = vmax.f32 %v4855, 0.0
    %v4996 = vmax.f32 %v4976, 0.0
    %v4997 = vmax.f32 %v4978, 0.0
    %v4998 = vpack.c.bf16 %v4982, %v4982
    %v4999 = vpack.c.bf16 %v4983, %v4983
    %v5000 = vpack.c.bf16 %v4984, %v4984
    %v5001 = vpack.c.bf16 %v4985, %v4985
    %v5002 = vpack.c.bf16 %v4986, %v4986
    %v5003 = vpack.c.bf16 %v4987, %v4987
    %v5004 = vpack.c.bf16 %v4988, %v4988
    %v5005 = vpack.c.bf16 %v4989, %v4989
    %v5006 = vpack.c.bf16 %v4990, %v4990
    %v5007 = vpack.c.bf16 %v4991, %v4991
    %v5008 = vpack.c.bf16 %v4992, %v4992
    %v5009 = vpack.c.bf16 %v4993, %v4993
    %v5010 = vpack.c.bf16 %v4994, %v4994
    %v5011 = vpack.c.bf16 %v4995, %v4995
    %v5012 = vpack.c.bf16 %v4996, %v4996
    %v5013 = vpack.c.bf16 %v4997, %v4997
    %v5014 = vld [vmem:[%s3] sm:$0xff]
    %v5015 = vld [vmem:[%s3 + $0x8] sm:$0xff]
    %v5016 = vld [vmem:[%s3 + $0x10] sm:$0xff]
    %v5017 = vld [vmem:[%s3 + $0x18] sm:$0xff]
    %v5018 = vld [vmem:[%s3 + $0x20] sm:$0xff]
    %v5019 = vld [vmem:[%s3 + $0x28] sm:$0xff]
    %v5020 = vld [vmem:[%s3 + $0x30] sm:$0xff]
    %v5021 = vld [vmem:[%s3 + $0x38] sm:$0xff]
    %v5022 = vld [vmem:[%s3 + $0x40] sm:$0xff]
    %v5023 = vld [vmem:[%s3 + $0x48] sm:$0xff]
    %v5024 = vld [vmem:[%s3 + $0x50] sm:$0xff]
    %v5025 = vld [vmem:[%s3 + $0x58] sm:$0xff]
    %v5026 = vld [vmem:[%s3 + $0x60] sm:$0xff]
    %v5027 = vld [vmem:[%s3 + $0x68] sm:$0xff]
    %v5028 = vld [vmem:[%s3 + $0x70] sm:$0xff]
    %v5029 = vld [vmem:[%s3 + $0x78] sm:$0xff]
    %v5030 = vld [vmem:[%s3 + $0x80] sm:$0xff]
    %v5031 = vld [vmem:[%s3 + $0x88] sm:$0xff]
    %v5032 = vld [vmem:[%s3 + $0x90] sm:$0xff]
    %v5033 = vld [vmem:[%s3 + $0x98] sm:$0xff]
    %v5034 = vld [vmem:[%s3 + $0xa0] sm:$0xff]
    %v5035 = vld [vmem:[%s3 + $0xa8] sm:$0xff]
    %v5036 = vld [vmem:[%s3 + $0xb0] sm:$0xff]
    %v5037 = vld [vmem:[%s3 + $0xb8] sm:$0xff]
    %v5038 = vld [vmem:[%s3 + $0xc0] sm:$0xff]
    %v5039 = vld [vmem:[%s3 + $0xc8] sm:$0xff]
    %v5040 = vld [vmem:[%s3 + $0xd0] sm:$0xff]
    %v5041 = vld [vmem:[%s3 + $0xd8] sm:$0xff]
    %v5042 = vld [vmem:[%s3 + $0xe0] sm:$0xff]
    %v5043 = vld [vmem:[%s3 + $0xe8] sm:$0xff]
    %v5044 = vld [vmem:[%s3 + $0xf0] sm:$0xff]
    %v5045 = vld [vmem:[%s3 + $0xf8] sm:$0xff]
    %v5046 = vld [vmem:[%s3 + $0x100] sm:$0xff]
    %v5047 = vld [vmem:[%s3 + $0x108] sm:$0xff]
    %v5048 = vld [vmem:[%s3 + $0x110] sm:$0xff]
    %v5049 = vld [vmem:[%s3 + $0x118] sm:$0xff]
    %v5050 = vld [vmem:[%s3 + $0x120] sm:$0xff]
    %v5051 = vld [vmem:[%s3 + $0x128] sm:$0xff]
    %v5052 = vld [vmem:[%s3 + $0x130] sm:$0xff]
    %v5053 = vld [vmem:[%s3 + $0x138] sm:$0xff]
    %v5054 = vld [vmem:[%s3 + $0x140] sm:$0xff]
    %v5055 = vld [vmem:[%s3 + $0x148] sm:$0xff]
    %v5056 = vld [vmem:[%s3 + $0x150] sm:$0xff]
    %v5057 = vld [vmem:[%s3 + $0x158] sm:$0xff]
    %v5058 = vld [vmem:[%s3 + $0x160] sm:$0xff]
    %v5059 = vld [vmem:[%s3 + $0x168] sm:$0xff]
    %v5060 = vld [vmem:[%s3 + $0x170] sm:$0xff]
    %v5061 = vld [vmem:[%s3 + $0x178] sm:$0xff]
    %v5062 = vld [vmem:[%s3 + $0x180] sm:$0xff]
    %v5063 = vld [vmem:[%s3 + $0x188] sm:$0xff]
    %v5064 = vld [vmem:[%s3 + $0x190] sm:$0xff]
    %v5065 = vld [vmem:[%s3 + $0x198] sm:$0xff]
    %v5066 = vld [vmem:[%s3 + $0x1a0] sm:$0xff]
    %v5067 = vld [vmem:[%s3 + $0x1a8] sm:$0xff]
    %v5068 = vld [vmem:[%s3 + $0x1b0] sm:$0xff]
    %v5069 = vld [vmem:[%s3 + $0x1b8] sm:$0xff]
    %v5070 = vld [vmem:[%s3 + $0x1c0] sm:$0xff]
    %v5071 = vld [vmem:[%s3 + $0x1c8] sm:$0xff]
    %v5072 = vld [vmem:[%s3 + $0x1d0] sm:$0xff]
    %v5073 = vld [vmem:[%s3 + $0x1d8] sm:$0xff]
    %v5074 = vld [vmem:[%s3 + $0x1e0] sm:$0xff]
    %v5075 = vld [vmem:[%s3 + $0x1e8] sm:$0xff]
    %v5076 = vld [vmem:[%s3 + $0x1f0] sm:$0xff]
    %v5077 = vld [vmem:[%s3 + $0x1f8] sm:$0xff]
    %v5078 = vld [vmem:[%s3 + $0x200] sm:$0xff]
    %v5079 = vld [vmem:[%s3 + $0x208] sm:$0xff]
    %v5080 = vld [vmem:[%s3 + $0x210] sm:$0xff]
    %v5081 = vld [vmem:[%s3 + $0x218] sm:$0xff]
    %v5082 = vld [vmem:[%s3 + $0x220] sm:$0xff]
    %v5083 = vld [vmem:[%s3 + $0x228] sm:$0xff]
    %v5084 = vld [vmem:[%s3 + $0x230] sm:$0xff]
    %v5085 = vld [vmem:[%s3 + $0x238] sm:$0xff]
    %v5086 = vld [vmem:[%s3 + $0x240] sm:$0xff]
    %v5087 = vld [vmem:[%s3 + $0x248] sm:$0xff]
    %v5088 = vld [vmem:[%s3 + $0x250] sm:$0xff]
    %v5089 = vld [vmem:[%s3 + $0x258] sm:$0xff]
    %v5090 = vld [vmem:[%s3 + $0x260] sm:$0xff]
    %v5091 = vld [vmem:[%s3 + $0x268] sm:$0xff]
    %v5092 = vld [vmem:[%s3 + $0x270] sm:$0xff]
    %v5093 = vld [vmem:[%s3 + $0x278] sm:$0xff]
    %v5094 = vld [vmem:[%s3 + $0x280] sm:$0xff]
    %v5095 = vld [vmem:[%s3 + $0x288] sm:$0xff]
    %v5096 = vld [vmem:[%s3 + $0x290] sm:$0xff]
    %v5097 = vld [vmem:[%s3 + $0x298] sm:$0xff]
    %v5098 = vld [vmem:[%s3 + $0x2a0] sm:$0xff]
    %v5099 = vld [vmem:[%s3 + $0x2a8] sm:$0xff]
    %v5100 = vld [vmem:[%s3 + $0x2b0] sm:$0xff]
    %v5101 = vld [vmem:[%s3 + $0x2b8] sm:$0xff]
    %v5102 = vld [vmem:[%s3 + $0x2c0] sm:$0xff]
    %v5103 = vld [vmem:[%s3 + $0x2c8] sm:$0xff]
    %v5104 = vld [vmem:[%s3 + $0x2d0] sm:$0xff]
    %v5105 = vld [vmem:[%s3 + $0x2d8] sm:$0xff]
    %v5106 = vld [vmem:[%s3 + $0x2e0] sm:$0xff]
    %v5107 = vld [vmem:[%s3 + $0x2e8] sm:$0xff]
    %v5108 = vld [vmem:[%s3 + $0x2f0] sm:$0xff]
    %v5109 = vld [vmem:[%s3 + $0x2f8] sm:$0xff]
    %v5110 = vld [vmem:[%s3 + $0x300] sm:$0xff]
    %v5111 = vld [vmem:[%s3 + $0x308] sm:$0xff]
    %v5112 = vld [vmem:[%s3 + $0x310] sm:$0xff]
    %v5113 = vld [vmem:[%s3 + $0x318] sm:$0xff]
    %v5114 = vld [vmem:[%s3 + $0x320] sm:$0xff]
    %v5115 = vld [vmem:[%s3 + $0x328] sm:$0xff]
    %v5116 = vld [vmem:[%s3 + $0x330] sm:$0xff]
    %v5117 = vld [vmem:[%s3 + $0x338] sm:$0xff]
    %v5118 = vld [vmem:[%s3 + $0x340] sm:$0xff]
    %v5119 = vld [vmem:[%s3 + $0x348] sm:$0xff]
    %v5120 = vld [vmem:[%s3 + $0x350] sm:$0xff]
    %v5121 = vld [vmem:[%s3 + $0x358] sm:$0xff]
    %v5122 = vld [vmem:[%s3 + $0x360] sm:$0xff]
    %v5123 = vld [vmem:[%s3 + $0x368] sm:$0xff]
    %v5124 = vld [vmem:[%s3 + $0x370] sm:$0xff]
    %v5125 = vld [vmem:[%s3 + $0x378] sm:$0xff]
    %v5126 = vld [vmem:[%s3 + $0x380] sm:$0xff]
    %v5127 = vld [vmem:[%s3 + $0x388] sm:$0xff]
    %v5128 = vld [vmem:[%s3 + $0x390] sm:$0xff]
    %v5129 = vld [vmem:[%s3 + $0x398] sm:$0xff]
    %v5130 = vld [vmem:[%s3 + $0x3a0] sm:$0xff]
    %v5131 = vld [vmem:[%s3 + $0x3a8] sm:$0xff]
    %v5132 = vld [vmem:[%s3 + $0x3b0] sm:$0xff]
    %v5133 = vld [vmem:[%s3 + $0x3b8] sm:$0xff]
    %v5134 = vld [vmem:[%s3 + $0x3c0] sm:$0xff]
    %v5135 = vld [vmem:[%s3 + $0x3c8] sm:$0xff]
    %v5136 = vld [vmem:[%s3 + $0x3d0] sm:$0xff]
    %v5137 = vld [vmem:[%s3 + $0x3d8] sm:$0xff]
    %v5138 = vld [vmem:[%s3 + $0x3e0] sm:$0xff]
    %v5139 = vld [vmem:[%s3 + $0x3e8] sm:$0xff]
    %v5140 = vld [vmem:[%s3 + $0x3f0] sm:$0xff]
    %v5141 = vld [vmem:[%s3 + $0x3f8] sm:$0xff]
    %v5142 = vld [vmem:[%s3 + $0x400] sm:$0xff]
    %v5143 = vld [vmem:[%s3 + $0x408] sm:$0xff]
    %v5144 = vld [vmem:[%s3 + $0x410] sm:$0xff]
    %v5145 = vld [vmem:[%s3 + $0x418] sm:$0xff]
    %v5146 = vld [vmem:[%s3 + $0x420] sm:$0xff]
    %v5147 = vld [vmem:[%s3 + $0x428] sm:$0xff]
    %v5148 = vld [vmem:[%s3 + $0x430] sm:$0xff]
    %v5149 = vld [vmem:[%s3 + $0x438] sm:$0xff]
    %v5150 = vld [vmem:[%s3 + $0x440] sm:$0xff]
    %v5151 = vld [vmem:[%s3 + $0x448] sm:$0xff]
    %v5152 = vld [vmem:[%s3 + $0x450] sm:$0xff]
    %v5153 = vld [vmem:[%s3 + $0x458] sm:$0xff]
    %v5154 = vld [vmem:[%s3 + $0x460] sm:$0xff]
    %v5155 = vld [vmem:[%s3 + $0x468] sm:$0xff]
    %v5156 = vld [vmem:[%s3 + $0x470] sm:$0xff]
    %v5157 = vld [vmem:[%s3 + $0x478] sm:$0xff]
    %v5158 = vld [vmem:[%s3 + $0x480] sm:$0xff]
    %v5159 = vld [vmem:[%s3 + $0x488] sm:$0xff]
    %v5160 = vld [vmem:[%s3 + $0x490] sm:$0xff]
    %v5161 = vld [vmem:[%s3 + $0x498] sm:$0xff]
    %v5162 = vld [vmem:[%s3 + $0x4a0] sm:$0xff]
    %v5163 = vld [vmem:[%s3 + $0x4a8] sm:$0xff]
    %v5164 = vld [vmem:[%s3 + $0x4b0] sm:$0xff]
    %v5165 = vld [vmem:[%s3 + $0x4b8] sm:$0xff]
    %v5166 = vld [vmem:[%s3 + $0x4c0] sm:$0xff]
    %v5167 = vld [vmem:[%s3 + $0x4c8] sm:$0xff]
    %v5168 = vld [vmem:[%s3 + $0x4d0] sm:$0xff]
    %v5169 = vld [vmem:[%s3 + $0x4d8] sm:$0xff]
    %v5170 = vld [vmem:[%s3 + $0x4e0] sm:$0xff]
    %v5171 = vld [vmem:[%s3 + $0x4e8] sm:$0xff]
    %v5172 = vld [vmem:[%s3 + $0x4f0] sm:$0xff]
    %v5173 = vld [vmem:[%s3 + $0x4f8] sm:$0xff]
    %v5174 = vld [vmem:[%s3 + $0x500] sm:$0xff]
    %v5175 = vld [vmem:[%s3 + $0x508] sm:$0xff]
    %v5176 = vld [vmem:[%s3 + $0x510] sm:$0xff]
    %v5177 = vld [vmem:[%s3 + $0x518] sm:$0xff]
    %v5178 = vld [vmem:[%s3 + $0x520] sm:$0xff]
    %v5179 = vld [vmem:[%s3 + $0x528] sm:$0xff]
    %v5180 = vld [vmem:[%s3 + $0x530] sm:$0xff]
    %v5181 = vld [vmem:[%s3 + $0x538] sm:$0xff]
    %v5182 = vld [vmem:[%s3 + $0x540] sm:$0xff]
    %v5183 = vld [vmem:[%s3 + $0x548] sm:$0xff]
    %v5184 = vld [vmem:[%s3 + $0x550] sm:$0xff]
    %v5185 = vld [vmem:[%s3 + $0x558] sm:$0xff]
    %v5186 = vld [vmem:[%s3 + $0x560] sm:$0xff]
    %v5187 = vld [vmem:[%s3 + $0x568] sm:$0xff]
    %v5188 = vld [vmem:[%s3 + $0x570] sm:$0xff]
    %v5189 = vld [vmem:[%s3 + $0x578] sm:$0xff]
    %v5190 = vld [vmem:[%s3 + $0x580] sm:$0xff]
    %v5191 = vld [vmem:[%s3 + $0x588] sm:$0xff]
    %v5192 = vld [vmem:[%s3 + $0x590] sm:$0xff]
    %v5193 = vld [vmem:[%s3 + $0x598] sm:$0xff]
    %v5194 = vld [vmem:[%s3 + $0x5a0] sm:$0xff]
    %v5195 = vld [vmem:[%s3 + $0x5a8] sm:$0xff]
    %v5196 = vld [vmem:[%s3 + $0x5b0] sm:$0xff]
    %v5197 = vld [vmem:[%s3 + $0x5b8] sm:$0xff]
    %v5198 = vld [vmem:[%s3 + $0x5c0] sm:$0xff]
    %v5199 = vld [vmem:[%s3 + $0x5c8] sm:$0xff]
    %v5200 = vld [vmem:[%s3 + $0x5d0] sm:$0xff]
    %v5201 = vld [vmem:[%s3 + $0x5d8] sm:$0xff]
    %v5202 = vld [vmem:[%s3 + $0x5e0] sm:$0xff]
    %v5203 = vld [vmem:[%s3 + $0x5e8] sm:$0xff]
    %v5204 = vld [vmem:[%s3 + $0x5f0] sm:$0xff]
    %v5205 = vld [vmem:[%s3 + $0x5f8] sm:$0xff]
    %v5206 = vld [vmem:[%s3 + $0x600] sm:$0xff]
    %v5207 = vld [vmem:[%s3 + $0x608] sm:$0xff]
    %v5208 = vld [vmem:[%s3 + $0x610] sm:$0xff]
    %v5209 = vld [vmem:[%s3 + $0x618] sm:$0xff]
    %v5210 = vld [vmem:[%s3 + $0x620] sm:$0xff]
    %v5211 = vld [vmem:[%s3 + $0x628] sm:$0xff]
    %v5212 = vld [vmem:[%s3 + $0x630] sm:$0xff]
    %v5213 = vld [vmem:[%s3 + $0x638] sm:$0xff]
    %v5214 = vld [vmem:[%s3 + $0x640] sm:$0xff]
    %v5215 = vld [vmem:[%s3 + $0x648] sm:$0xff]
    %v5216 = vld [vmem:[%s3 + $0x650] sm:$0xff]
    %v5217 = vld [vmem:[%s3 + $0x658] sm:$0xff]
    %v5218 = vld [vmem:[%s3 + $0x660] sm:$0xff]
    %v5219 = vld [vmem:[%s3 + $0x668] sm:$0xff]
    %v5220 = vld [vmem:[%s3 + $0x670] sm:$0xff]
    %v5221 = vld [vmem:[%s3 + $0x678] sm:$0xff]
    %v5222 = vld [vmem:[%s3 + $0x680] sm:$0xff]
    %v5223 = vld [vmem:[%s3 + $0x688] sm:$0xff]
    %v5224 = vld [vmem:[%s3 + $0x690] sm:$0xff]
    %v5225 = vld [vmem:[%s3 + $0x698] sm:$0xff]
    %v5226 = vld [vmem:[%s3 + $0x6a0] sm:$0xff]
    %v5227 = vld [vmem:[%s3 + $0x6a8] sm:$0xff]
    %v5228 = vld [vmem:[%s3 + $0x6b0] sm:$0xff]
    %v5229 = vld [vmem:[%s3 + $0x6b8] sm:$0xff]
    %v5230 = vld [vmem:[%s3 + $0x6c0] sm:$0xff]
    %v5231 = vld [vmem:[%s3 + $0x6c8] sm:$0xff]
    %v5232 = vld [vmem:[%s3 + $0x6d0] sm:$0xff]
    %v5233 = vld [vmem:[%s3 + $0x6d8] sm:$0xff]
    %v5234 = vld [vmem:[%s3 + $0x6e0] sm:$0xff]
    %v5235 = vld [vmem:[%s3 + $0x6e8] sm:$0xff]
    %v5236 = vld [vmem:[%s3 + $0x6f0] sm:$0xff]
    %v5237 = vld [vmem:[%s3 + $0x6f8] sm:$0xff]
    %v5238 = vld [vmem:[%s3 + $0x700] sm:$0xff]
    %v5239 = vld [vmem:[%s3 + $0x708] sm:$0xff]
    %v5240 = vld [vmem:[%s3 + $0x710] sm:$0xff]
    %v5241 = vld [vmem:[%s3 + $0x718] sm:$0xff]
    %v5242 = vld [vmem:[%s3 + $0x720] sm:$0xff]
    %v5243 = vld [vmem:[%s3 + $0x728] sm:$0xff]
    %v5244 = vld [vmem:[%s3 + $0x730] sm:$0xff]
    %v5245 = vld [vmem:[%s3 + $0x738] sm:$0xff]
    %v5246 = vld [vmem:[%s3 + $0x740] sm:$0xff]
    %v5247 = vld [vmem:[%s3 + $0x748] sm:$0xff]
    %v5248 = vld [vmem:[%s3 + $0x750] sm:$0xff]
    %v5249 = vld [vmem:[%s3 + $0x758] sm:$0xff]
    %v5250 = vld [vmem:[%s3 + $0x760] sm:$0xff]
    %v5251 = vld [vmem:[%s3 + $0x768] sm:$0xff]
    %v5252 = vld [vmem:[%s3 + $0x770] sm:$0xff]
    %v5253 = vld [vmem:[%s3 + $0x778] sm:$0xff]
    %v5254 = vld [vmem:[%s3 + $0x780] sm:$0xff]
    %v5255 = vld [vmem:[%s3 + $0x788] sm:$0xff]
    %v5256 = vld [vmem:[%s3 + $0x790] sm:$0xff]
    %v5257 = vld [vmem:[%s3 + $0x798] sm:$0xff]
    %v5258 = vld [vmem:[%s3 + $0x7a0] sm:$0xff]
    %v5259 = vld [vmem:[%s3 + $0x7a8] sm:$0xff]
    %v5260 = vld [vmem:[%s3 + $0x7b0] sm:$0xff]
    %v5261 = vld [vmem:[%s3 + $0x7b8] sm:$0xff]
    %v5262 = vld [vmem:[%s3 + $0x7c0] sm:$0xff]
    %v5263 = vld [vmem:[%s3 + $0x7c8] sm:$0xff]
    %v5264 = vld [vmem:[%s3 + $0x7d0] sm:$0xff]
    %v5265 = vld [vmem:[%s3 + $0x7d8] sm:$0xff]
    %v5266 = vld [vmem:[%s3 + $0x7e0] sm:$0xff]
    %v5267 = vld [vmem:[%s3 + $0x7e8] sm:$0xff]
    %v5268 = vld [vmem:[%s3 + $0x7f0] sm:$0xff]
    %v5269 = vld [vmem:[%s3 + $0x7f8] sm:$0xff]
    %v5270 = vld [vmem:[%s3 + $0x800] sm:$0xff]
    %v5271 = vld [vmem:[%s3 + $0x808] sm:$0xff]
    %v5272 = vld [vmem:[%s3 + $0x810] sm:$0xff]
    %v5273 = vld [vmem:[%s3 + $0x818] sm:$0xff]
    %v5274 = vld [vmem:[%s3 + $0x820] sm:$0xff]
    %v5275 = vld [vmem:[%s3 + $0x828] sm:$0xff]
    %v5276 = vld [vmem:[%s3 + $0x830] sm:$0xff]
    %v5277 = vld [vmem:[%s3 + $0x838] sm:$0xff]
    %v5278 = vld [vmem:[%s3 + $0x840] sm:$0xff]
    %v5279 = vld [vmem:[%s3 + $0x848] sm:$0xff]
    %v5280 = vld [vmem:[%s3 + $0x850] sm:$0xff]
    %v5281 = vld [vmem:[%s3 + $0x858] sm:$0xff]
    %v5282 = vld [vmem:[%s3 + $0x860] sm:$0xff]
    %v5283 = vld [vmem:[%s3 + $0x868] sm:$0xff]
    %v5284 = vld [vmem:[%s3 + $0x870] sm:$0xff]
    %v5285 = vld [vmem:[%s3 + $0x878] sm:$0xff]
    %v5286 = vld [vmem:[%s3 + $0x880] sm:$0xff]
    %v5287 = vld [vmem:[%s3 + $0x888] sm:$0xff]
    %v5288 = vld [vmem:[%s3 + $0x890] sm:$0xff]
    %v5289 = vld [vmem:[%s3 + $0x898] sm:$0xff]
    %v5290 = vld [vmem:[%s3 + $0x8a0] sm:$0xff]
    %v5291 = vld [vmem:[%s3 + $0x8a8] sm:$0xff]
    %v5292 = vld [vmem:[%s3 + $0x8b0] sm:$0xff]
    %v5293 = vld [vmem:[%s3 + $0x8b8] sm:$0xff]
    %v5294 = vld [vmem:[%s3 + $0x8c0] sm:$0xff]
    %v5295 = vld [vmem:[%s3 + $0x8c8] sm:$0xff]
    %v5296 = vld [vmem:[%s3 + $0x8d0] sm:$0xff]
    %v5297 = vld [vmem:[%s3 + $0x8d8] sm:$0xff]
    %v5298 = vld [vmem:[%s3 + $0x8e0] sm:$0xff]
    %v5299 = vld [vmem:[%s3 + $0x8e8] sm:$0xff]
    %v5300 = vld [vmem:[%s3 + $0x8f0] sm:$0xff]
    %v5301 = vld [vmem:[%s3 + $0x8f8] sm:$0xff]
    %v5302 = vld [vmem:[%s3 + $0x900] sm:$0xff]
    %v5303 = vld [vmem:[%s3 + $0x908] sm:$0xff]
    %v5304 = vld [vmem:[%s3 + $0x910] sm:$0xff]
    %v5305 = vld [vmem:[%s3 + $0x918] sm:$0xff]
    %v5306 = vld [vmem:[%s3 + $0x920] sm:$0xff]
    %v5307 = vld [vmem:[%s3 + $0x928] sm:$0xff]
    %v5308 = vld [vmem:[%s3 + $0x930] sm:$0xff]
    %v5309 = vld [vmem:[%s3 + $0x938] sm:$0xff]
    %v5310 = vld [vmem:[%s3 + $0x940] sm:$0xff]
    %v5311 = vld [vmem:[%s3 + $0x948] sm:$0xff]
    %v5312 = vld [vmem:[%s3 + $0x950] sm:$0xff]
    %v5313 = vld [vmem:[%s3 + $0x958] sm:$0xff]
    %v5314 = vld [vmem:[%s3 + $0x960] sm:$0xff]
    %v5315 = vld [vmem:[%s3 + $0x968] sm:$0xff]
    %v5316 = vld [vmem:[%s3 + $0x970] sm:$0xff]
    %v5317 = vld [vmem:[%s3 + $0x978] sm:$0xff]
    %v5318 = vld [vmem:[%s3 + $0x980] sm:$0xff]
    %v5319 = vld [vmem:[%s3 + $0x988] sm:$0xff]
    %v5320 = vld [vmem:[%s3 + $0x990] sm:$0xff]
    %v5321 = vld [vmem:[%s3 + $0x998] sm:$0xff]
    %v5322 = vld [vmem:[%s3 + $0x9a0] sm:$0xff]
    %v5323 = vld [vmem:[%s3 + $0x9a8] sm:$0xff]
    %v5324 = vld [vmem:[%s3 + $0x9b0] sm:$0xff]
    %v5325 = vld [vmem:[%s3 + $0x9b8] sm:$0xff]
    %v5326 = vld [vmem:[%s3 + $0x9c0] sm:$0xff]
    %v5327 = vld [vmem:[%s3 + $0x9c8] sm:$0xff]
    %v5328 = vld [vmem:[%s3 + $0x9d0] sm:$0xff]
    %v5329 = vld [vmem:[%s3 + $0x9d8] sm:$0xff]
    %v5330 = vld [vmem:[%s3 + $0x9e0] sm:$0xff]
    %v5331 = vld [vmem:[%s3 + $0x9e8] sm:$0xff]
    %v5332 = vld [vmem:[%s3 + $0x9f0] sm:$0xff]
    %v5333 = vld [vmem:[%s3 + $0x9f8] sm:$0xff]
    %v5334 = vld [vmem:[%s3 + $0xa00] sm:$0xff]
    %v5335 = vld [vmem:[%s3 + $0xa08] sm:$0xff]
    %v5336 = vld [vmem:[%s3 + $0xa10] sm:$0xff]
    %v5337 = vld [vmem:[%s3 + $0xa18] sm:$0xff]
    %v5338 = vld [vmem:[%s3 + $0xa20] sm:$0xff]
    %v5339 = vld [vmem:[%s3 + $0xa28] sm:$0xff]
    %v5340 = vld [vmem:[%s3 + $0xa30] sm:$0xff]
    %v5341 = vld [vmem:[%s3 + $0xa38] sm:$0xff]
    %v5342 = vld [vmem:[%s3 + $0xa40] sm:$0xff]
    %v5343 = vld [vmem:[%s3 + $0xa48] sm:$0xff]
    %v5344 = vld [vmem:[%s3 + $0xa50] sm:$0xff]
    %v5345 = vld [vmem:[%s3 + $0xa58] sm:$0xff]
    %v5346 = vld [vmem:[%s3 + $0xa60] sm:$0xff]
    %v5347 = vld [vmem:[%s3 + $0xa68] sm:$0xff]
    %v5348 = vld [vmem:[%s3 + $0xa70] sm:$0xff]
    %v5349 = vld [vmem:[%s3 + $0xa78] sm:$0xff]
    %v5350 = vld [vmem:[%s3 + $0xa80] sm:$0xff]
    %v5351 = vld [vmem:[%s3 + $0xa88] sm:$0xff]
    %v5352 = vld [vmem:[%s3 + $0xa90] sm:$0xff]
    %v5353 = vld [vmem:[%s3 + $0xa98] sm:$0xff]
    %v5354 = vld [vmem:[%s3 + $0xaa0] sm:$0xff]
    %v5355 = vld [vmem:[%s3 + $0xaa8] sm:$0xff]
    %v5356 = vld [vmem:[%s3 + $0xab0] sm:$0xff]
    %v5357 = vld [vmem:[%s3 + $0xab8] sm:$0xff]
    %v5358 = vld [vmem:[%s3 + $0xac0] sm:$0xff]
    %v5359 = vld [vmem:[%s3 + $0xac8] sm:$0xff]
    %v5360 = vld [vmem:[%s3 + $0xad0] sm:$0xff]
    %v5361 = vld [vmem:[%s3 + $0xad8] sm:$0xff]
    %v5362 = vld [vmem:[%s3 + $0xae0] sm:$0xff]
    %v5363 = vld [vmem:[%s3 + $0xae8] sm:$0xff]
    %v5364 = vld [vmem:[%s3 + $0xaf0] sm:$0xff]
    %v5365 = vld [vmem:[%s3 + $0xaf8] sm:$0xff]
    %v5366 = vld [vmem:[%s3 + $0xb00] sm:$0xff]
    %v5367 = vld [vmem:[%s3 + $0xb08] sm:$0xff]
    %v5368 = vld [vmem:[%s3 + $0xb10] sm:$0xff]
    %v5369 = vld [vmem:[%s3 + $0xb18] sm:$0xff]
    %v5370 = vld [vmem:[%s3 + $0xb20] sm:$0xff]
    %v5371 = vld [vmem:[%s3 + $0xb28] sm:$0xff]
    %v5372 = vld [vmem:[%s3 + $0xb30] sm:$0xff]
    %v5373 = vld [vmem:[%s3 + $0xb38] sm:$0xff]
    %v5374 = vld [vmem:[%s3 + $0xb40] sm:$0xff]
    %v5375 = vld [vmem:[%s3 + $0xb48] sm:$0xff]
    %v5376 = vld [vmem:[%s3 + $0xb50] sm:$0xff]
    %v5377 = vld [vmem:[%s3 + $0xb58] sm:$0xff]
    %v5378 = vld [vmem:[%s3 + $0xb60] sm:$0xff]
    %v5379 = vld [vmem:[%s3 + $0xb68] sm:$0xff]
    %v5380 = vld [vmem:[%s3 + $0xb70] sm:$0xff]
    %v5381 = vld [vmem:[%s3 + $0xb78] sm:$0xff]
    %v5382 = vld [vmem:[%s3 + $0xb80] sm:$0xff]
    %v5383 = vld [vmem:[%s3 + $0xb88] sm:$0xff]
    %v5384 = vld [vmem:[%s3 + $0xb90] sm:$0xff]
    %v5385 = vld [vmem:[%s3 + $0xb98] sm:$0xff]
    %v5386 = vld [vmem:[%s3 + $0xba0] sm:$0xff]
    %v5387 = vld [vmem:[%s3 + $0xba8] sm:$0xff]
    %v5388 = vld [vmem:[%s3 + $0xbb0] sm:$0xff]
    %v5389 = vld [vmem:[%s3 + $0xbb8] sm:$0xff]
    %v5390 = vld [vmem:[%s3 + $0xbc0] sm:$0xff]
    %v5391 = vld [vmem:[%s3 + $0xbc8] sm:$0xff]
    %v5392 = vld [vmem:[%s3 + $0xbd0] sm:$0xff]
    %v5393 = vld [vmem:[%s3 + $0xbd8] sm:$0xff]
    %v5394 = vld [vmem:[%s3 + $0xbe0] sm:$0xff]
    %v5395 = vld [vmem:[%s3 + $0xbe8] sm:$0xff]
    %v5396 = vld [vmem:[%s3 + $0xbf0] sm:$0xff]
    %v5397 = vld [vmem:[%s3 + $0xbf8] sm:$0xff]
    %v5398 = vld [vmem:[%s3 + $0xc00] sm:$0xff]
    %v5399 = vld [vmem:[%s3 + $0xc08] sm:$0xff]
    %v5400 = vld [vmem:[%s3 + $0xc10] sm:$0xff]
    %v5401 = vld [vmem:[%s3 + $0xc18] sm:$0xff]
    %v5402 = vld [vmem:[%s3 + $0xc20] sm:$0xff]
    %v5403 = vld [vmem:[%s3 + $0xc28] sm:$0xff]
    %v5404 = vld [vmem:[%s3 + $0xc30] sm:$0xff]
    %v5405 = vld [vmem:[%s3 + $0xc38] sm:$0xff]
    %v5406 = vld [vmem:[%s3 + $0xc40] sm:$0xff]
    %v5407 = vld [vmem:[%s3 + $0xc48] sm:$0xff]
    %v5408 = vld [vmem:[%s3 + $0xc50] sm:$0xff]
    %v5409 = vld [vmem:[%s3 + $0xc58] sm:$0xff]
    %v5410 = vld [vmem:[%s3 + $0xc60] sm:$0xff]
    %v5411 = vld [vmem:[%s3 + $0xc68] sm:$0xff]
    %v5412 = vld [vmem:[%s3 + $0xc70] sm:$0xff]
    %v5413 = vld [vmem:[%s3 + $0xc78] sm:$0xff]
    %v5414 = vld [vmem:[%s3 + $0xc80] sm:$0xff]
    %v5415 = vld [vmem:[%s3 + $0xc88] sm:$0xff]
    %v5416 = vld [vmem:[%s3 + $0xc90] sm:$0xff]
    %v5417 = vld [vmem:[%s3 + $0xc98] sm:$0xff]
    %v5418 = vld [vmem:[%s3 + $0xca0] sm:$0xff]
    %v5419 = vld [vmem:[%s3 + $0xca8] sm:$0xff]
    %v5420 = vld [vmem:[%s3 + $0xcb0] sm:$0xff]
    %v5421 = vld [vmem:[%s3 + $0xcb8] sm:$0xff]
    %v5422 = vld [vmem:[%s3 + $0xcc0] sm:$0xff]
    %v5423 = vld [vmem:[%s3 + $0xcc8] sm:$0xff]
    %v5424 = vld [vmem:[%s3 + $0xcd0] sm:$0xff]
    %v5425 = vld [vmem:[%s3 + $0xcd8] sm:$0xff]
    %v5426 = vld [vmem:[%s3 + $0xce0] sm:$0xff]
    %v5427 = vld [vmem:[%s3 + $0xce8] sm:$0xff]
    %v5428 = vld [vmem:[%s3 + $0xcf0] sm:$0xff]
    %v5429 = vld [vmem:[%s3 + $0xcf8] sm:$0xff]
    %v5430 = vld [vmem:[%s3 + $0xd00] sm:$0xff]
    %v5431 = vld [vmem:[%s3 + $0xd08] sm:$0xff]
    %v5432 = vld [vmem:[%s3 + $0xd10] sm:$0xff]
    %v5433 = vld [vmem:[%s3 + $0xd18] sm:$0xff]
    %v5434 = vld [vmem:[%s3 + $0xd20] sm:$0xff]
    %v5435 = vld [vmem:[%s3 + $0xd28] sm:$0xff]
    %v5436 = vld [vmem:[%s3 + $0xd30] sm:$0xff]
    %v5437 = vld [vmem:[%s3 + $0xd38] sm:$0xff]
    %v5438 = vld [vmem:[%s3 + $0xd40] sm:$0xff]
    %v5439 = vld [vmem:[%s3 + $0xd48] sm:$0xff]
    %v5440 = vld [vmem:[%s3 + $0xd50] sm:$0xff]
    %v5441 = vld [vmem:[%s3 + $0xd58] sm:$0xff]
    %v5442 = vld [vmem:[%s3 + $0xd60] sm:$0xff]
    %v5443 = vld [vmem:[%s3 + $0xd68] sm:$0xff]
    %v5444 = vld [vmem:[%s3 + $0xd70] sm:$0xff]
    %v5445 = vld [vmem:[%s3 + $0xd78] sm:$0xff]
    %v5446 = vld [vmem:[%s3 + $0xd80] sm:$0xff]
    %v5447 = vld [vmem:[%s3 + $0xd88] sm:$0xff]
    %v5448 = vld [vmem:[%s3 + $0xd90] sm:$0xff]
    %v5449 = vld [vmem:[%s3 + $0xd98] sm:$0xff]
    %v5450 = vld [vmem:[%s3 + $0xda0] sm:$0xff]
    %v5451 = vld [vmem:[%s3 + $0xda8] sm:$0xff]
    %v5452 = vld [vmem:[%s3 + $0xdb0] sm:$0xff]
    %v5453 = vld [vmem:[%s3 + $0xdb8] sm:$0xff]
    %v5454 = vld [vmem:[%s3 + $0xdc0] sm:$0xff]
    %v5455 = vld [vmem:[%s3 + $0xdc8] sm:$0xff]
    %v5456 = vld [vmem:[%s3 + $0xdd0] sm:$0xff]
    %v5457 = vld [vmem:[%s3 + $0xdd8] sm:$0xff]
    %v5458 = vld [vmem:[%s3 + $0xde0] sm:$0xff]
    %v5459 = vld [vmem:[%s3 + $0xde8] sm:$0xff]
    %v5460 = vld [vmem:[%s3 + $0xdf0] sm:$0xff]
    %v5461 = vld [vmem:[%s3 + $0xdf8] sm:$0xff]
    %v5462 = vld [vmem:[%s3 + $0xe00] sm:$0xff]
    %v5463 = vld [vmem:[%s3 + $0xe08] sm:$0xff]
    %v5464 = vld [vmem:[%s3 + $0xe10] sm:$0xff]
    %v5465 = vld [vmem:[%s3 + $0xe18] sm:$0xff]
    %v5466 = vld [vmem:[%s3 + $0xe20] sm:$0xff]
    %v5467 = vld [vmem:[%s3 + $0xe28] sm:$0xff]
    %v5468 = vld [vmem:[%s3 + $0xe30] sm:$0xff]
    %v5469 = vld [vmem:[%s3 + $0xe38] sm:$0xff]
    %v5470 = vld [vmem:[%s3 + $0xe40] sm:$0xff]
    %v5471 = vld [vmem:[%s3 + $0xe48] sm:$0xff]
    %v5472 = vld [vmem:[%s3 + $0xe50] sm:$0xff]
    %v5473 = vld [vmem:[%s3 + $0xe58] sm:$0xff]
    %v5474 = vld [vmem:[%s3 + $0xe60] sm:$0xff]
    %v5475 = vld [vmem:[%s3 + $0xe68] sm:$0xff]
    %v5476 = vld [vmem:[%s3 + $0xe70] sm:$0xff]
    %v5477 = vld [vmem:[%s3 + $0xe78] sm:$0xff]
    %v5478 = vld [vmem:[%s3 + $0xe80] sm:$0xff]
    %v5479 = vld [vmem:[%s3 + $0xe88] sm:$0xff]
    %v5480 = vld [vmem:[%s3 + $0xe90] sm:$0xff]
    %v5481 = vld [vmem:[%s3 + $0xe98] sm:$0xff]
    %v5482 = vld [vmem:[%s3 + $0xea0] sm:$0xff]
    %v5483 = vld [vmem:[%s3 + $0xea8] sm:$0xff]
    %v5484 = vld [vmem:[%s3 + $0xeb0] sm:$0xff]
    %v5485 = vld [vmem:[%s3 + $0xeb8] sm:$0xff]
    %v5486 = vld [vmem:[%s3 + $0xec0] sm:$0xff]
    %v5487 = vld [vmem:[%s3 + $0xec8] sm:$0xff]
    %v5488 = vld [vmem:[%s3 + $0xed0] sm:$0xff]
    %v5489 = vld [vmem:[%s3 + $0xed8] sm:$0xff]
    %v5490 = vld [vmem:[%s3 + $0xee0] sm:$0xff]
    %v5491 = vld [vmem:[%s3 + $0xee8] sm:$0xff]
    %v5492 = vld [vmem:[%s3 + $0xef0] sm:$0xff]
    %v5493 = vld [vmem:[%s3 + $0xef8] sm:$0xff]
    %v5494 = vld [vmem:[%s3 + $0xf00] sm:$0xff]
    %v5495 = vld [vmem:[%s3 + $0xf08] sm:$0xff]
    %v5496 = vld [vmem:[%s3 + $0xf10] sm:$0xff]
    %v5497 = vld [vmem:[%s3 + $0xf18] sm:$0xff]
    %v5498 = vld [vmem:[%s3 + $0xf20] sm:$0xff]
    %v5499 = vld [vmem:[%s3 + $0xf28] sm:$0xff]
    %v5500 = vld [vmem:[%s3 + $0xf30] sm:$0xff]
    %v5501 = vld [vmem:[%s3 + $0xf38] sm:$0xff]
    %v5502 = vld [vmem:[%s3 + $0xf40] sm:$0xff]
    %v5503 = vld [vmem:[%s3 + $0xf48] sm:$0xff]
    %v5504 = vld [vmem:[%s3 + $0xf50] sm:$0xff]
    %v5505 = vld [vmem:[%s3 + $0xf58] sm:$0xff]
    %v5506 = vld [vmem:[%s3 + $0xf60] sm:$0xff]
    %v5507 = vld [vmem:[%s3 + $0xf68] sm:$0xff]
    %v5508 = vld [vmem:[%s3 + $0xf70] sm:$0xff]
    %v5509 = vld [vmem:[%s3 + $0xf78] sm:$0xff]
    %v5510 = vld [vmem:[%s3 + $0xf80] sm:$0xff]
    %v5511 = vld [vmem:[%s3 + $0xf88] sm:$0xff]
    %v5512 = vld [vmem:[%s3 + $0xf90] sm:$0xff]
    %v5513 = vld [vmem:[%s3 + $0xf98] sm:$0xff]
    %v5514 = vld [vmem:[%s4] sm:$0xf]
    %v5516 = vlaneseq
    %v5517 = vshrl.u32 %v5516, 7
    %v5518 = vsub.s32 0, %v5517
    %v5519 = vrot.slane %v5514, %v5518
    %v5520 = vlaneseq
    %v5521 = vshrl.u32 %v5520, 7
    %v5522 = vsub.s32 1, %v5521
    %v5523 = vrot.slane %v5514, %v5522
    %v5524 = vlaneseq
    %v5525 = vshrl.u32 %v5524, 7
    %v5526 = vsub.s32 2, %v5525
    %v5527 = vrot.slane %v5514, %v5526
    %v5528 = vlaneseq
    %v5529 = vshrl.u32 %v5528, 7
    %v5530 = vsub.s32 3, %v5529
    %v5531 = vrot.slane %v5514, %v5530
    %v6036 = vunpack.c.l.b16 %v5014
    %v6037 = vunpack.c.h.b16 %v5014
    %v6038 = vunpack.c.l.b16 %v5015
    %v6039 = vunpack.c.h.b16 %v5015
    %v6040 = vunpack.c.l.b16 %v5016
    %v6041 = vunpack.c.h.b16 %v5016
    %v6042 = vunpack.c.l.b16 %v5017
    %v6043 = vunpack.c.h.b16 %v5017
    %v6044 = vunpack.c.l.b16 %v5018
    %v6045 = vunpack.c.h.b16 %v5018
    %v6046 = vunpack.c.l.b16 %v5019
    %v6047 = vunpack.c.h.b16 %v5019
    %v6048 = vunpack.c.l.b16 %v5020
    %v6049 = vunpack.c.h.b16 %v5020
    %v6050 = vunpack.c.l.b16 %v5021
    %v6051 = vunpack.c.h.b16 %v5021
    %v6052 = vunpack.c.l.b16 %v5022
    %v6053 = vunpack.c.h.b16 %v5022
    %v6054 = vunpack.c.l.b16 %v5023
    %v6055 = vunpack.c.h.b16 %v5023
    %v6056 = vunpack.c.l.b16 %v5024
    %v6057 = vunpack.c.h.b16 %v5024
    %v6058 = vunpack.c.l.b16 %v5025
    %v6059 = vunpack.c.h.b16 %v5025
    %v6060 = vunpack.c.l.b16 %v5026
    %v6061 = vunpack.c.h.b16 %v5026
    %v6062 = vunpack.c.l.b16 %v5027
    %v6063 = vunpack.c.h.b16 %v5027
    %v6064 = vunpack.c.l.b16 %v5028
    %v6065 = vunpack.c.h.b16 %v5028
    %v6066 = vunpack.c.l.b16 %v5029
    %v6067 = vunpack.c.h.b16 %v5029
    %v6068 = vunpack.c.l.b16 %v5030
    %v6069 = vunpack.c.h.b16 %v5030
    %v6070 = vunpack.c.l.b16 %v5031
    %v6071 = vunpack.c.h.b16 %v5031
    %v6072 = vunpack.c.l.b16 %v5032
    %v6073 = vunpack.c.h.b16 %v5032
    %v6074 = vunpack.c.l.b16 %v5033
    %v6075 = vunpack.c.h.b16 %v5033
    %v6076 = vunpack.c.l.b16 %v5034
    %v6077 = vunpack.c.h.b16 %v5034
    %v6078 = vunpack.c.l.b16 %v5035
    %v6079 = vunpack.c.h.b16 %v5035
    %v6080 = vunpack.c.l.b16 %v5036
    %v6081 = vunpack.c.h.b16 %v5036
    %v6082 = vunpack.c.l.b16 %v5037
    %v6083 = vunpack.c.h.b16 %v5037
    %v6084 = vunpack.c.l.b16 %v5038
    %v6085 = vunpack.c.h.b16 %v5038
    %v6086 = vunpack.c.l.b16 %v5039
    %v6087 = vunpack.c.h.b16 %v5039
    %v6088 = vunpack.c.l.b16 %v5040
    %v6089 = vunpack.c.h.b16 %v5040
    %v6090 = vunpack.c.l.b16 %v5041
    %v6091 = vunpack.c.h.b16 %v5041
    %v6092 = vunpack.c.l.b16 %v5042
    %v6093 = vunpack.c.h.b16 %v5042
    %v6094 = vunpack.c.l.b16 %v5043
    %v6095 = vunpack.c.h.b16 %v5043
    %v6096 = vunpack.c.l.b16 %v5044
    %v6097 = vunpack.c.h.b16 %v5044
    %v6098 = vunpack.c.l.b16 %v5045
    %v6099 = vunpack.c.h.b16 %v5045
    %v6100 = vunpack.c.l.b16 %v5046
    %v6101 = vunpack.c.h.b16 %v5046
    %v6102 = vunpack.c.l.b16 %v5047
    %v6103 = vunpack.c.h.b16 %v5047
    %v6104 = vunpack.c.l.b16 %v5048
    %v6105 = vunpack.c.h.b16 %v5048
    %v6106 = vunpack.c.l.b16 %v5049
    %v6107 = vunpack.c.h.b16 %v5049
    %v6108 = vunpack.c.l.b16 %v5050
    %v6109 = vunpack.c.h.b16 %v5050
    %v6110 = vunpack.c.l.b16 %v5051
    %v6111 = vunpack.c.h.b16 %v5051
    %v6112 = vunpack.c.l.b16 %v5052
    %v6113 = vunpack.c.h.b16 %v5052
    %v6114 = vunpack.c.l.b16 %v5053
    %v6115 = vunpack.c.h.b16 %v5053
    %v6116 = vunpack.c.l.b16 %v5054
    %v6117 = vunpack.c.h.b16 %v5054
    %v6118 = vunpack.c.l.b16 %v5055
    %v6119 = vunpack.c.h.b16 %v5055
    %v6120 = vunpack.c.l.b16 %v5056
    %v6121 = vunpack.c.h.b16 %v5056
    %v6122 = vunpack.c.l.b16 %v5057
    %v6123 = vunpack.c.h.b16 %v5057
    %v6124 = vunpack.c.l.b16 %v5058
    %v6125 = vunpack.c.h.b16 %v5058
    %v6126 = vunpack.c.l.b16 %v5059
    %v6127 = vunpack.c.h.b16 %v5059
    %v6128 = vunpack.c.l.b16 %v5060
    %v6129 = vunpack.c.h.b16 %v5060
    %v6130 = vunpack.c.l.b16 %v5061
    %v6131 = vunpack.c.h.b16 %v5061
    %v6132 = vunpack.c.l.b16 %v5062
    %v6133 = vunpack.c.h.b16 %v5062
    %v6134 = vunpack.c.l.b16 %v5063
    %v6135 = vunpack.c.h.b16 %v5063
    %v6136 = vunpack.c.l.b16 %v5064
    %v6137 = vunpack.c.h.b16 %v5064
    %v6138 = vunpack.c.l.b16 %v5065
    %v6139 = vunpack.c.h.b16 %v5065
    %v6140 = vunpack.c.l.b16 %v5066
    %v6141 = vunpack.c.h.b16 %v5066
    %v6142 = vunpack.c.l.b16 %v5067
    %v6143 = vunpack.c.h.b16 %v5067
    %v6144 = vunpack.c.l.b16 %v5068
    %v6145 = vunpack.c.h.b16 %v5068
    %v6146 = vunpack.c.l.b16 %v5069
    %v6147 = vunpack.c.h.b16 %v5069
    %v6148 = vunpack.c.l.b16 %v5070
    %v6149 = vunpack.c.h.b16 %v5070
    %v6150 = vunpack.c.l.b16 %v5071
    %v6151 = vunpack.c.h.b16 %v5071
    %v6152 = vunpack.c.l.b16 %v5072
    %v6153 = vunpack.c.h.b16 %v5072
    %v6154 = vunpack.c.l.b16 %v5073
    %v6155 = vunpack.c.h.b16 %v5073
    %v6156 = vunpack.c.l.b16 %v5074
    %v6157 = vunpack.c.h.b16 %v5074
    %v6158 = vunpack.c.l.b16 %v5075
    %v6159 = vunpack.c.h.b16 %v5075
    %v6160 = vunpack.c.l.b16 %v5076
    %v6161 = vunpack.c.h.b16 %v5076
    %v6162 = vunpack.c.l.b16 %v5077
    %v6163 = vunpack.c.h.b16 %v5077
    %v6164 = vunpack.c.l.b16 %v5078
    %v6165 = vunpack.c.h.b16 %v5078
    %v6166 = vunpack.c.l.b16 %v5079
    %v6167 = vunpack.c.h.b16 %v5079
    %v6168 = vunpack.c.l.b16 %v5080
    %v6169 = vunpack.c.h.b16 %v5080
    %v6170 = vunpack.c.l.b16 %v5081
    %v6171 = vunpack.c.h.b16 %v5081
    %v6172 = vunpack.c.l.b16 %v5082
    %v6173 = vunpack.c.h.b16 %v5082
    %v6174 = vunpack.c.l.b16 %v5083
    %v6175 = vunpack.c.h.b16 %v5083
    %v6176 = vunpack.c.l.b16 %v5084
    %v6177 = vunpack.c.h.b16 %v5084
    %v6178 = vunpack.c.l.b16 %v5085
    %v6179 = vunpack.c.h.b16 %v5085
    %v6180 = vunpack.c.l.b16 %v5086
    %v6181 = vunpack.c.h.b16 %v5086
    %v6182 = vunpack.c.l.b16 %v5087
    %v6183 = vunpack.c.h.b16 %v5087
    %v6184 = vunpack.c.l.b16 %v5088
    %v6185 = vunpack.c.h.b16 %v5088
    %v6186 = vunpack.c.l.b16 %v5089
    %v6187 = vunpack.c.h.b16 %v5089
    %v6188 = vunpack.c.l.b16 %v5090
    %v6189 = vunpack.c.h.b16 %v5090
    %v6190 = vunpack.c.l.b16 %v5091
    %v6191 = vunpack.c.h.b16 %v5091
    %v6192 = vunpack.c.l.b16 %v5092
    %v6193 = vunpack.c.h.b16 %v5092
    %v6194 = vunpack.c.l.b16 %v5093
    %v6195 = vunpack.c.h.b16 %v5093
    %v6196 = vunpack.c.l.b16 %v5094
    %v6197 = vunpack.c.h.b16 %v5094
    %v6198 = vunpack.c.l.b16 %v5095
    %v6199 = vunpack.c.h.b16 %v5095
    %v6200 = vunpack.c.l.b16 %v5096
    %v6201 = vunpack.c.h.b16 %v5096
    %v6202 = vunpack.c.l.b16 %v5097
    %v6203 = vunpack.c.h.b16 %v5097
    %v6204 = vunpack.c.l.b16 %v5098
    %v6205 = vunpack.c.h.b16 %v5098
    %v6206 = vunpack.c.l.b16 %v5099
    %v6207 = vunpack.c.h.b16 %v5099
    %v6208 = vunpack.c.l.b16 %v5100
    %v6209 = vunpack.c.h.b16 %v5100
    %v6210 = vunpack.c.l.b16 %v5101
    %v6211 = vunpack.c.h.b16 %v5101
    %v6212 = vunpack.c.l.b16 %v5102
    %v6213 = vunpack.c.h.b16 %v5102
    %v6214 = vunpack.c.l.b16 %v5103
    %v6215 = vunpack.c.h.b16 %v5103
    %v6216 = vunpack.c.l.b16 %v5104
    %v6217 = vunpack.c.h.b16 %v5104
    %v6218 = vunpack.c.l.b16 %v5105
    %v6219 = vunpack.c.h.b16 %v5105
    %v6220 = vunpack.c.l.b16 %v5106
    %v6221 = vunpack.c.h.b16 %v5106
    %v6222 = vunpack.c.l.b16 %v5107
    %v6223 = vunpack.c.h.b16 %v5107
    %v6224 = vunpack.c.l.b16 %v5108
    %v6225 = vunpack.c.h.b16 %v5108
    %v6226 = vunpack.c.l.b16 %v5109
    %v6227 = vunpack.c.h.b16 %v5109
    %v6228 = vunpack.c.l.b16 %v5110
    %v6229 = vunpack.c.h.b16 %v5110
    %v6230 = vunpack.c.l.b16 %v5111
    %v6231 = vunpack.c.h.b16 %v5111
    %v6232 = vunpack.c.l.b16 %v5112
    %v6233 = vunpack.c.h.b16 %v5112
    %v6234 = vunpack.c.l.b16 %v5113
    %v6235 = vunpack.c.h.b16 %v5113
    %v6236 = vunpack.c.l.b16 %v5114
    %v6237 = vunpack.c.h.b16 %v5114
    %v6238 = vunpack.c.l.b16 %v5115
    %v6239 = vunpack.c.h.b16 %v5115
    %v6240 = vunpack.c.l.b16 %v5116
    %v6241 = vunpack.c.h.b16 %v5116
    %v6242 = vunpack.c.l.b16 %v5117
    %v6243 = vunpack.c.h.b16 %v5117
    %v6244 = vunpack.c.l.b16 %v5118
    %v6245 = vunpack.c.h.b16 %v5118
    %v6246 = vunpack.c.l.b16 %v5119
    %v6247 = vunpack.c.h.b16 %v5119
    %v6248 = vunpack.c.l.b16 %v5120
    %v6249 = vunpack.c.h.b16 %v5120
    %v6250 = vunpack.c.l.b16 %v5121
    %v6251 = vunpack.c.h.b16 %v5121
    %v6252 = vunpack.c.l.b16 %v5122
    %v6253 = vunpack.c.h.b16 %v5122
    %v6254 = vunpack.c.l.b16 %v5123
    %v6255 = vunpack.c.h.b16 %v5123
    %v6256 = vunpack.c.l.b16 %v5124
    %v6257 = vunpack.c.h.b16 %v5124
    %v6258 = vunpack.c.l.b16 %v5125
    %v6259 = vunpack.c.h.b16 %v5125
    %v6260 = vunpack.c.l.b16 %v5126
    %v6261 = vunpack.c.h.b16 %v5126
    %v6262 = vunpack.c.l.b16 %v5127
    %v6263 = vunpack.c.h.b16 %v5127
    %v6264 = vunpack.c.l.b16 %v5128
    %v6265 = vunpack.c.h.b16 %v5128
    %v6266 = vunpack.c.l.b16 %v5129
    %v6267 = vunpack.c.h.b16 %v5129
    %v6268 = vunpack.c.l.b16 %v5130
    %v6269 = vunpack.c.h.b16 %v5130
    %v6270 = vunpack.c.l.b16 %v5131
    %v6271 = vunpack.c.h.b16 %v5131
    %v6272 = vunpack.c.l.b16 %v5132
    %v6273 = vunpack.c.h.b16 %v5132
    %v6274 = vunpack.c.l.b16 %v5133
    %v6275 = vunpack.c.h.b16 %v5133
    %v6276 = vunpack.c.l.b16 %v5134
    %v6277 = vunpack.c.h.b16 %v5134
    %v6278 = vunpack.c.l.b16 %v5135
    %v6279 = vunpack.c.h.b16 %v5135
    %v6280 = vunpack.c.l.b16 %v5136
    %v6281 = vunpack.c.h.b16 %v5136
    %v6282 = vunpack.c.l.b16 %v5137
    %v6283 = vunpack.c.h.b16 %v5137
    %v6284 = vunpack.c.l.b16 %v5138
    %v6285 = vunpack.c.h.b16 %v5138
    %v6286 = vunpack.c.l.b16 %v5139
    %v6287 = vunpack.c.h.b16 %v5139
    %v6288 = vunpack.c.l.b16 %v5140
    %v6289 = vunpack.c.h.b16 %v5140
    %v6290 = vunpack.c.l.b16 %v5141
    %v6291 = vunpack.c.h.b16 %v5141
    %v6292 = vunpack.c.l.b16 %v5142
    %v6293 = vunpack.c.h.b16 %v5142
    %v6294 = vunpack.c.l.b16 %v5143
    %v6295 = vunpack.c.h.b16 %v5143
    %v6296 = vunpack.c.l.b16 %v5144
    %v6297 = vunpack.c.h.b16 %v5144
    %v6298 = vunpack.c.l.b16 %v5145
    %v6299 = vunpack.c.h.b16 %v5145
    %v6300 = vunpack.c.l.b16 %v5146
    %v6301 = vunpack.c.h.b16 %v5146
    %v6302 = vunpack.c.l.b16 %v5147
    %v6303 = vunpack.c.h.b16 %v5147
    %v6304 = vunpack.c.l.b16 %v5148
    %v6305 = vunpack.c.h.b16 %v5148
    %v6306 = vunpack.c.l.b16 %v5149
    %v6307 = vunpack.c.h.b16 %v5149
    %v6308 = vunpack.c.l.b16 %v5150
    %v6309 = vunpack.c.h.b16 %v5150
    %v6310 = vunpack.c.l.b16 %v5151
    %v6311 = vunpack.c.h.b16 %v5151
    %v6312 = vunpack.c.l.b16 %v5152
    %v6313 = vunpack.c.h.b16 %v5152
    %v6314 = vunpack.c.l.b16 %v5153
    %v6315 = vunpack.c.h.b16 %v5153
    %v6316 = vunpack.c.l.b16 %v5154
    %v6317 = vunpack.c.h.b16 %v5154
    %v6318 = vunpack.c.l.b16 %v5155
    %v6319 = vunpack.c.h.b16 %v5155
    %v6320 = vunpack.c.l.b16 %v5156
    %v6321 = vunpack.c.h.b16 %v5156
    %v6322 = vunpack.c.l.b16 %v5157
    %v6323 = vunpack.c.h.b16 %v5157
    %v6324 = vunpack.c.l.b16 %v5158
    %v6325 = vunpack.c.h.b16 %v5158
    %v6326 = vunpack.c.l.b16 %v5159
    %v6327 = vunpack.c.h.b16 %v5159
    %v6328 = vunpack.c.l.b16 %v5160
    %v6329 = vunpack.c.h.b16 %v5160
    %v6330 = vunpack.c.l.b16 %v5161
    %v6331 = vunpack.c.h.b16 %v5161
    %v6332 = vunpack.c.l.b16 %v5162
    %v6333 = vunpack.c.h.b16 %v5162
    %v6334 = vunpack.c.l.b16 %v5163
    %v6335 = vunpack.c.h.b16 %v5163
    %v6336 = vunpack.c.l.b16 %v5164
    %v6337 = vunpack.c.h.b16 %v5164
    %v6338 = vunpack.c.l.b16 %v5165
    %v6339 = vunpack.c.h.b16 %v5165
    %v6340 = vunpack.c.l.b16 %v5166
    %v6341 = vunpack.c.h.b16 %v5166
    %v6342 = vunpack.c.l.b16 %v5167
    %v6343 = vunpack.c.h.b16 %v5167
    %v6344 = vunpack.c.l.b16 %v5168
    %v6345 = vunpack.c.h.b16 %v5168
    %v6346 = vunpack.c.l.b16 %v5169
    %v6347 = vunpack.c.h.b16 %v5169
    %v6348 = vunpack.c.l.b16 %v5170
    %v6349 = vunpack.c.h.b16 %v5170
    %v6350 = vunpack.c.l.b16 %v5171
    %v6351 = vunpack.c.h.b16 %v5171
    %v6352 = vunpack.c.l.b16 %v5172
    %v6353 = vunpack.c.h.b16 %v5172
    %v6354 = vunpack.c.l.b16 %v5173
    %v6355 = vunpack.c.h.b16 %v5173
    %v6356 = vunpack.c.l.b16 %v5174
    %v6357 = vunpack.c.h.b16 %v5174
    %v6358 = vunpack.c.l.b16 %v5175
    %v6359 = vunpack.c.h.b16 %v5175
    %v6360 = vunpack.c.l.b16 %v5176
    %v6361 = vunpack.c.h.b16 %v5176
    %v6362 = vunpack.c.l.b16 %v5177
    %v6363 = vunpack.c.h.b16 %v5177
    %v6364 = vunpack.c.l.b16 %v5178
    %v6365 = vunpack.c.h.b16 %v5178
    %v6366 = vunpack.c.l.b16 %v5179
    %v6367 = vunpack.c.h.b16 %v5179
    %v6368 = vunpack.c.l.b16 %v5180
    %v6369 = vunpack.c.h.b16 %v5180
    %v6370 = vunpack.c.l.b16 %v5181
    %v6371 = vunpack.c.h.b16 %v5181
    %v6372 = vunpack.c.l.b16 %v5182
    %v6373 = vunpack.c.h.b16 %v5182
    %v6374 = vunpack.c.l.b16 %v5183
    %v6375 = vunpack.c.h.b16 %v5183
    %v6376 = vunpack.c.l.b16 %v5184
    %v6377 = vunpack.c.h.b16 %v5184
    %v6378 = vunpack.c.l.b16 %v5185
    %v6379 = vunpack.c.h.b16 %v5185
    %v6380 = vunpack.c.l.b16 %v5186
    %v6381 = vunpack.c.h.b16 %v5186
    %v6382 = vunpack.c.l.b16 %v5187
    %v6383 = vunpack.c.h.b16 %v5187
    %v6384 = vunpack.c.l.b16 %v5188
    %v6385 = vunpack.c.h.b16 %v5188
    %v6386 = vunpack.c.l.b16 %v5189
    %v6387 = vunpack.c.h.b16 %v5189
    %v6388 = vunpack.c.l.b16 %v5190
    %v6389 = vunpack.c.h.b16 %v5190
    %v6390 = vunpack.c.l.b16 %v5191
    %v6391 = vunpack.c.h.b16 %v5191
    %v6392 = vunpack.c.l.b16 %v5192
    %v6393 = vunpack.c.h.b16 %v5192
    %v6394 = vunpack.c.l.b16 %v5193
    %v6395 = vunpack.c.h.b16 %v5193
    %v6396 = vunpack.c.l.b16 %v5194
    %v6397 = vunpack.c.h.b16 %v5194
    %v6398 = vunpack.c.l.b16 %v5195
    %v6399 = vunpack.c.h.b16 %v5195
    %v6400 = vunpack.c.l.b16 %v5196
    %v6401 = vunpack.c.h.b16 %v5196
    %v6402 = vunpack.c.l.b16 %v5197
    %v6403 = vunpack.c.h.b16 %v5197
    %v6404 = vunpack.c.l.b16 %v5198
    %v6405 = vunpack.c.h.b16 %v5198
    %v6406 = vunpack.c.l.b16 %v5199
    %v6407 = vunpack.c.h.b16 %v5199
    %v6408 = vunpack.c.l.b16 %v5200
    %v6409 = vunpack.c.h.b16 %v5200
    %v6410 = vunpack.c.l.b16 %v5201
    %v6411 = vunpack.c.h.b16 %v5201
    %v6412 = vunpack.c.l.b16 %v5202
    %v6413 = vunpack.c.h.b16 %v5202
    %v6414 = vunpack.c.l.b16 %v5203
    %v6415 = vunpack.c.h.b16 %v5203
    %v6416 = vunpack.c.l.b16 %v5204
    %v6417 = vunpack.c.h.b16 %v5204
    %v6418 = vunpack.c.l.b16 %v5205
    %v6419 = vunpack.c.h.b16 %v5205
    %v6420 = vunpack.c.l.b16 %v5206
    %v6421 = vunpack.c.h.b16 %v5206
    %v6422 = vunpack.c.l.b16 %v5207
    %v6423 = vunpack.c.h.b16 %v5207
    %v6424 = vunpack.c.l.b16 %v5208
    %v6425 = vunpack.c.h.b16 %v5208
    %v6426 = vunpack.c.l.b16 %v5209
    %v6427 = vunpack.c.h.b16 %v5209
    %v6428 = vunpack.c.l.b16 %v5210
    %v6429 = vunpack.c.h.b16 %v5210
    %v6430 = vunpack.c.l.b16 %v5211
    %v6431 = vunpack.c.h.b16 %v5211
    %v6432 = vunpack.c.l.b16 %v5212
    %v6433 = vunpack.c.h.b16 %v5212
    %v6434 = vunpack.c.l.b16 %v5213
    %v6435 = vunpack.c.h.b16 %v5213
    %v6436 = vunpack.c.l.b16 %v5214
    %v6437 = vunpack.c.h.b16 %v5214
    %v6438 = vunpack.c.l.b16 %v5215
    %v6439 = vunpack.c.h.b16 %v5215
    %v6440 = vunpack.c.l.b16 %v5216
    %v6441 = vunpack.c.h.b16 %v5216
    %v6442 = vunpack.c.l.b16 %v5217
    %v6443 = vunpack.c.h.b16 %v5217
    %v6444 = vunpack.c.l.b16 %v5218
    %v6445 = vunpack.c.h.b16 %v5218
    %v6446 = vunpack.c.l.b16 %v5219
    %v6447 = vunpack.c.h.b16 %v5219
    %v6448 = vunpack.c.l.b16 %v5220
    %v6449 = vunpack.c.h.b16 %v5220
    %v6450 = vunpack.c.l.b16 %v5221
    %v6451 = vunpack.c.h.b16 %v5221
    %v6452 = vunpack.c.l.b16 %v5222
    %v6453 = vunpack.c.h.b16 %v5222
    %v6454 = vunpack.c.l.b16 %v5223
    %v6455 = vunpack.c.h.b16 %v5223
    %v6456 = vunpack.c.l.b16 %v5224
    %v6457 = vunpack.c.h.b16 %v5224
    %v6458 = vunpack.c.l.b16 %v5225
    %v6459 = vunpack.c.h.b16 %v5225
    %v6460 = vunpack.c.l.b16 %v5226
    %v6461 = vunpack.c.h.b16 %v5226
    %v6462 = vunpack.c.l.b16 %v5227
    %v6463 = vunpack.c.h.b16 %v5227
    %v6464 = vunpack.c.l.b16 %v5228
    %v6465 = vunpack.c.h.b16 %v5228
    %v6466 = vunpack.c.l.b16 %v5229
    %v6467 = vunpack.c.h.b16 %v5229
    %v6468 = vunpack.c.l.b16 %v5230
    %v6469 = vunpack.c.h.b16 %v5230
    %v6470 = vunpack.c.l.b16 %v5231
    %v6471 = vunpack.c.h.b16 %v5231
    %v6472 = vunpack.c.l.b16 %v5232
    %v6473 = vunpack.c.h.b16 %v5232
    %v6474 = vunpack.c.l.b16 %v5233
    %v6475 = vunpack.c.h.b16 %v5233
    %v6476 = vunpack.c.l.b16 %v5234
    %v6477 = vunpack.c.h.b16 %v5234
    %v6478 = vunpack.c.l.b16 %v5235
    %v6479 = vunpack.c.h.b16 %v5235
    %v6480 = vunpack.c.l.b16 %v5236
    %v6481 = vunpack.c.h.b16 %v5236
    %v6482 = vunpack.c.l.b16 %v5237
    %v6483 = vunpack.c.h.b16 %v5237
    %v6484 = vunpack.c.l.b16 %v5238
    %v6485 = vunpack.c.h.b16 %v5238
    %v6486 = vunpack.c.l.b16 %v5239
    %v6487 = vunpack.c.h.b16 %v5239
    %v6488 = vunpack.c.l.b16 %v5240
    %v6489 = vunpack.c.h.b16 %v5240
    %v6490 = vunpack.c.l.b16 %v5241
    %v6491 = vunpack.c.h.b16 %v5241
    %v6492 = vunpack.c.l.b16 %v5242
    %v6493 = vunpack.c.h.b16 %v5242
    %v6494 = vunpack.c.l.b16 %v5243
    %v6495 = vunpack.c.h.b16 %v5243
    %v6496 = vunpack.c.l.b16 %v5244
    %v6497 = vunpack.c.h.b16 %v5244
    %v6498 = vunpack.c.l.b16 %v5245
    %v6499 = vunpack.c.h.b16 %v5245
    %v6500 = vunpack.c.l.b16 %v5246
    %v6501 = vunpack.c.h.b16 %v5246
    %v6502 = vunpack.c.l.b16 %v5247
    %v6503 = vunpack.c.h.b16 %v5247
    %v6504 = vunpack.c.l.b16 %v5248
    %v6505 = vunpack.c.h.b16 %v5248
    %v6506 = vunpack.c.l.b16 %v5249
    %v6507 = vunpack.c.h.b16 %v5249
    %v6508 = vunpack.c.l.b16 %v5250
    %v6509 = vunpack.c.h.b16 %v5250
    %v6510 = vunpack.c.l.b16 %v5251
    %v6511 = vunpack.c.h.b16 %v5251
    %v6512 = vunpack.c.l.b16 %v5252
    %v6513 = vunpack.c.h.b16 %v5252
    %v6514 = vunpack.c.l.b16 %v5253
    %v6515 = vunpack.c.h.b16 %v5253
    %v6516 = vunpack.c.l.b16 %v5254
    %v6517 = vunpack.c.h.b16 %v5254
    %v6518 = vunpack.c.l.b16 %v5255
    %v6519 = vunpack.c.h.b16 %v5255
    %v6520 = vunpack.c.l.b16 %v5256
    %v6521 = vunpack.c.h.b16 %v5256
    %v6522 = vunpack.c.l.b16 %v5257
    %v6523 = vunpack.c.h.b16 %v5257
    %v6524 = vunpack.c.l.b16 %v5258
    %v6525 = vunpack.c.h.b16 %v5258
    %v6526 = vunpack.c.l.b16 %v5259
    %v6527 = vunpack.c.h.b16 %v5259
    %v6528 = vunpack.c.l.b16 %v5260
    %v6529 = vunpack.c.h.b16 %v5260
    %v6530 = vunpack.c.l.b16 %v5261
    %v6531 = vunpack.c.h.b16 %v5261
    %v6532 = vunpack.c.l.b16 %v5262
    %v6533 = vunpack.c.h.b16 %v5262
    %v6534 = vunpack.c.l.b16 %v5263
    %v6535 = vunpack.c.h.b16 %v5263
    %v6536 = vunpack.c.l.b16 %v5264
    %v6537 = vunpack.c.h.b16 %v5264
    %v6538 = vunpack.c.l.b16 %v5265
    %v6539 = vunpack.c.h.b16 %v5265
    %v6540 = vunpack.c.l.b16 %v5266
    %v6541 = vunpack.c.h.b16 %v5266
    %v6542 = vunpack.c.l.b16 %v5267
    %v6543 = vunpack.c.h.b16 %v5267
    %v6544 = vunpack.c.l.b16 %v5268
    %v6545 = vunpack.c.h.b16 %v5268
    %v6546 = vunpack.c.l.b16 %v5269
    %v6547 = vunpack.c.h.b16 %v5269
    %v6548 = vunpack.c.l.b16 %v5270
    %v6549 = vunpack.c.h.b16 %v5270
    %v6550 = vunpack.c.l.b16 %v5271
    %v6551 = vunpack.c.h.b16 %v5271
    %v6552 = vunpack.c.l.b16 %v5272
    %v6553 = vunpack.c.h.b16 %v5272
    %v6554 = vunpack.c.l.b16 %v5273
    %v6555 = vunpack.c.h.b16 %v5273
    %v6556 = vunpack.c.l.b16 %v5274
    %v6557 = vunpack.c.h.b16 %v5274
    %v6558 = vunpack.c.l.b16 %v5275
    %v6559 = vunpack.c.h.b16 %v5275
    %v6560 = vunpack.c.l.b16 %v5276
    %v6561 = vunpack.c.h.b16 %v5276
    %v6562 = vunpack.c.l.b16 %v5277
    %v6563 = vunpack.c.h.b16 %v5277
    %v6564 = vunpack.c.l.b16 %v5278
    %v6565 = vunpack.c.h.b16 %v5278
    %v6566 = vunpack.c.l.b16 %v5279
    %v6567 = vunpack.c.h.b16 %v5279
    %v6568 = vunpack.c.l.b16 %v5280
    %v6569 = vunpack.c.h.b16 %v5280
    %v6570 = vunpack.c.l.b16 %v5281
    %v6571 = vunpack.c.h.b16 %v5281
    %v6572 = vunpack.c.l.b16 %v5282
    %v6573 = vunpack.c.h.b16 %v5282
    %v6574 = vunpack.c.l.b16 %v5283
    %v6575 = vunpack.c.h.b16 %v5283
    %v6576 = vunpack.c.l.b16 %v5284
    %v6577 = vunpack.c.h.b16 %v5284
    %v6578 = vunpack.c.l.b16 %v5285
    %v6579 = vunpack.c.h.b16 %v5285
    %v6580 = vunpack.c.l.b16 %v5286
    %v6581 = vunpack.c.h.b16 %v5286
    %v6582 = vunpack.c.l.b16 %v5287
    %v6583 = vunpack.c.h.b16 %v5287
    %v6584 = vunpack.c.l.b16 %v5288
    %v6585 = vunpack.c.h.b16 %v5288
    %v6586 = vunpack.c.l.b16 %v5289
    %v6587 = vunpack.c.h.b16 %v5289
    %v6588 = vunpack.c.l.b16 %v5290
    %v6589 = vunpack.c.h.b16 %v5290
    %v6590 = vunpack.c.l.b16 %v5291
    %v6591 = vunpack.c.h.b16 %v5291
    %v6592 = vunpack.c.l.b16 %v5292
    %v6593 = vunpack.c.h.b16 %v5292
    %v6594 = vunpack.c.l.b16 %v5293
    %v6595 = vunpack.c.h.b16 %v5293
    %v6596 = vunpack.c.l.b16 %v5294
    %v6597 = vunpack.c.h.b16 %v5294
    %v6598 = vunpack.c.l.b16 %v5295
    %v6599 = vunpack.c.h.b16 %v5295
    %v6600 = vunpack.c.l.b16 %v5296
    %v6601 = vunpack.c.h.b16 %v5296
    %v6602 = vunpack.c.l.b16 %v5297
    %v6603 = vunpack.c.h.b16 %v5297
    %v6604 = vunpack.c.l.b16 %v5298
    %v6605 = vunpack.c.h.b16 %v5298
    %v6606 = vunpack.c.l.b16 %v5299
    %v6607 = vunpack.c.h.b16 %v5299
    %v6608 = vunpack.c.l.b16 %v5300
    %v6609 = vunpack.c.h.b16 %v5300
    %v6610 = vunpack.c.l.b16 %v5301
    %v6611 = vunpack.c.h.b16 %v5301
    %v6612 = vunpack.c.l.b16 %v5302
    %v6613 = vunpack.c.h.b16 %v5302
    %v6614 = vunpack.c.l.b16 %v5303
    %v6615 = vunpack.c.h.b16 %v5303
    %v6616 = vunpack.c.l.b16 %v5304
    %v6617 = vunpack.c.h.b16 %v5304
    %v6618 = vunpack.c.l.b16 %v5305
    %v6619 = vunpack.c.h.b16 %v5305
    %v6620 = vunpack.c.l.b16 %v5306
    %v6621 = vunpack.c.h.b16 %v5306
    %v6622 = vunpack.c.l.b16 %v5307
    %v6623 = vunpack.c.h.b16 %v5307
    %v6624 = vunpack.c.l.b16 %v5308
    %v6625 = vunpack.c.h.b16 %v5308
    %v6626 = vunpack.c.l.b16 %v5309
    %v6627 = vunpack.c.h.b16 %v5309
    %v6628 = vunpack.c.l.b16 %v5310
    %v6629 = vunpack.c.h.b16 %v5310
    %v6630 = vunpack.c.l.b16 %v5311
    %v6631 = vunpack.c.h.b16 %v5311
    %v6632 = vunpack.c.l.b16 %v5312
    %v6633 = vunpack.c.h.b16 %v5312
    %v6634 = vunpack.c.l.b16 %v5313
    %v6635 = vunpack.c.h.b16 %v5313
    %v6636 = vunpack.c.l.b16 %v5314
    %v6637 = vunpack.c.h.b16 %v5314
    %v6638 = vunpack.c.l.b16 %v5315
    %v6639 = vunpack.c.h.b16 %v5315
    %v6640 = vunpack.c.l.b16 %v5316
    %v6641 = vunpack.c.h.b16 %v5316
    %v6642 = vunpack.c.l.b16 %v5317
    %v6643 = vunpack.c.h.b16 %v5317
    %v6644 = vunpack.c.l.b16 %v5318
    %v6645 = vunpack.c.h.b16 %v5318
    %v6646 = vunpack.c.l.b16 %v5319
    %v6647 = vunpack.c.h.b16 %v5319
    %v6648 = vunpack.c.l.b16 %v5320
    %v6649 = vunpack.c.h.b16 %v5320
    %v6650 = vunpack.c.l.b16 %v5321
    %v6651 = vunpack.c.h.b16 %v5321
    %v6652 = vunpack.c.l.b16 %v5322
    %v6653 = vunpack.c.h.b16 %v5322
    %v6654 = vunpack.c.l.b16 %v5323
    %v6655 = vunpack.c.h.b16 %v5323
    %v6656 = vunpack.c.l.b16 %v5324
    %v6657 = vunpack.c.h.b16 %v5324
    %v6658 = vunpack.c.l.b16 %v5325
    %v6659 = vunpack.c.h.b16 %v5325
    %v6660 = vunpack.c.l.b16 %v5326
    %v6661 = vunpack.c.h.b16 %v5326
    %v6662 = vunpack.c.l.b16 %v5327
    %v6663 = vunpack.c.h.b16 %v5327
    %v6664 = vunpack.c.l.b16 %v5328
    %v6665 = vunpack.c.h.b16 %v5328
    %v6666 = vunpack.c.l.b16 %v5329
    %v6667 = vunpack.c.h.b16 %v5329
    %v6668 = vunpack.c.l.b16 %v5330
    %v6669 = vunpack.c.h.b16 %v5330
    %v6670 = vunpack.c.l.b16 %v5331
    %v6671 = vunpack.c.h.b16 %v5331
    %v6672 = vunpack.c.l.b16 %v5332
    %v6673 = vunpack.c.h.b16 %v5332
    %v6674 = vunpack.c.l.b16 %v5333
    %v6675 = vunpack.c.h.b16 %v5333
    %v6676 = vunpack.c.l.b16 %v5334
    %v6677 = vunpack.c.h.b16 %v5334
    %v6678 = vunpack.c.l.b16 %v5335
    %v6679 = vunpack.c.h.b16 %v5335
    %v6680 = vunpack.c.l.b16 %v5336
    %v6681 = vunpack.c.h.b16 %v5336
    %v6682 = vunpack.c.l.b16 %v5337
    %v6683 = vunpack.c.h.b16 %v5337
    %v6684 = vunpack.c.l.b16 %v5338
    %v6685 = vunpack.c.h.b16 %v5338
    %v6686 = vunpack.c.l.b16 %v5339
    %v6687 = vunpack.c.h.b16 %v5339
    %v6688 = vunpack.c.l.b16 %v5340
    %v6689 = vunpack.c.h.b16 %v5340
    %v6690 = vunpack.c.l.b16 %v5341
    %v6691 = vunpack.c.h.b16 %v5341
    %v6692 = vunpack.c.l.b16 %v5342
    %v6693 = vunpack.c.h.b16 %v5342
    %v6694 = vunpack.c.l.b16 %v5343
    %v6695 = vunpack.c.h.b16 %v5343
    %v6696 = vunpack.c.l.b16 %v5344
    %v6697 = vunpack.c.h.b16 %v5344
    %v6698 = vunpack.c.l.b16 %v5345
    %v6699 = vunpack.c.h.b16 %v5345
    %v6700 = vunpack.c.l.b16 %v5346
    %v6701 = vunpack.c.h.b16 %v5346
    %v6702 = vunpack.c.l.b16 %v5347
    %v6703 = vunpack.c.h.b16 %v5347
    %v6704 = vunpack.c.l.b16 %v5348
    %v6705 = vunpack.c.h.b16 %v5348
    %v6706 = vunpack.c.l.b16 %v5349
    %v6707 = vunpack.c.h.b16 %v5349
    %v6708 = vunpack.c.l.b16 %v5350
    %v6709 = vunpack.c.h.b16 %v5350
    %v6710 = vunpack.c.l.b16 %v5351
    %v6711 = vunpack.c.h.b16 %v5351
    %v6712 = vunpack.c.l.b16 %v5352
    %v6713 = vunpack.c.h.b16 %v5352
    %v6714 = vunpack.c.l.b16 %v5353
    %v6715 = vunpack.c.h.b16 %v5353
    %v6716 = vunpack.c.l.b16 %v5354
    %v6717 = vunpack.c.h.b16 %v5354
    %v6718 = vunpack.c.l.b16 %v5355
    %v6719 = vunpack.c.h.b16 %v5355
    %v6720 = vunpack.c.l.b16 %v5356
    %v6721 = vunpack.c.h.b16 %v5356
    %v6722 = vunpack.c.l.b16 %v5357
    %v6723 = vunpack.c.h.b16 %v5357
    %v6724 = vunpack.c.l.b16 %v5358
    %v6725 = vunpack.c.h.b16 %v5358
    %v6726 = vunpack.c.l.b16 %v5359
    %v6727 = vunpack.c.h.b16 %v5359
    %v6728 = vunpack.c.l.b16 %v5360
    %v6729 = vunpack.c.h.b16 %v5360
    %v6730 = vunpack.c.l.b16 %v5361
    %v6731 = vunpack.c.h.b16 %v5361
    %v6732 = vunpack.c.l.b16 %v5362
    %v6733 = vunpack.c.h.b16 %v5362
    %v6734 = vunpack.c.l.b16 %v5363
    %v6735 = vunpack.c.h.b16 %v5363
    %v6736 = vunpack.c.l.b16 %v5364
    %v6737 = vunpack.c.h.b16 %v5364
    %v6738 = vunpack.c.l.b16 %v5365
    %v6739 = vunpack.c.h.b16 %v5365
    %v6740 = vunpack.c.l.b16 %v5366
    %v6741 = vunpack.c.h.b16 %v5366
    %v6742 = vunpack.c.l.b16 %v5367
    %v6743 = vunpack.c.h.b16 %v5367
    %v6744 = vunpack.c.l.b16 %v5368
    %v6745 = vunpack.c.h.b16 %v5368
    %v6746 = vunpack.c.l.b16 %v5369
    %v6747 = vunpack.c.h.b16 %v5369
    %v6748 = vunpack.c.l.b16 %v5370
    %v6749 = vunpack.c.h.b16 %v5370
    %v6750 = vunpack.c.l.b16 %v5371
    %v6751 = vunpack.c.h.b16 %v5371
    %v6752 = vunpack.c.l.b16 %v5372
    %v6753 = vunpack.c.h.b16 %v5372
    %v6754 = vunpack.c.l.b16 %v5373
    %v6755 = vunpack.c.h.b16 %v5373
    %v6756 = vunpack.c.l.b16 %v5374
    %v6757 = vunpack.c.h.b16 %v5374
    %v6758 = vunpack.c.l.b16 %v5375
    %v6759 = vunpack.c.h.b16 %v5375
    %v6760 = vunpack.c.l.b16 %v5376
    %v6761 = vunpack.c.h.b16 %v5376
    %v6762 = vunpack.c.l.b16 %v5377
    %v6763 = vunpack.c.h.b16 %v5377
    %v6764 = vunpack.c.l.b16 %v5378
    %v6765 = vunpack.c.h.b16 %v5378
    %v6766 = vunpack.c.l.b16 %v5379
    %v6767 = vunpack.c.h.b16 %v5379
    %v6768 = vunpack.c.l.b16 %v5380
    %v6769 = vunpack.c.h.b16 %v5380
    %v6770 = vunpack.c.l.b16 %v5381
    %v6771 = vunpack.c.h.b16 %v5381
    %v6772 = vunpack.c.l.b16 %v5382
    %v6773 = vunpack.c.h.b16 %v5382
    %v6774 = vunpack.c.l.b16 %v5383
    %v6775 = vunpack.c.h.b16 %v5383
    %v6776 = vunpack.c.l.b16 %v5384
    %v6777 = vunpack.c.h.b16 %v5384
    %v6778 = vunpack.c.l.b16 %v5385
    %v6779 = vunpack.c.h.b16 %v5385
    %v6780 = vunpack.c.l.b16 %v5386
    %v6781 = vunpack.c.h.b16 %v5386
    %v6782 = vunpack.c.l.b16 %v5387
    %v6783 = vunpack.c.h.b16 %v5387
    %v6784 = vunpack.c.l.b16 %v5388
    %v6785 = vunpack.c.h.b16 %v5388
    %v6786 = vunpack.c.l.b16 %v5389
    %v6787 = vunpack.c.h.b16 %v5389
    %v6788 = vunpack.c.l.b16 %v5390
    %v6789 = vunpack.c.h.b16 %v5390
    %v6790 = vunpack.c.l.b16 %v5391
    %v6791 = vunpack.c.h.b16 %v5391
    %v6792 = vunpack.c.l.b16 %v5392
    %v6793 = vunpack.c.h.b16 %v5392
    %v6794 = vunpack.c.l.b16 %v5393
    %v6795 = vunpack.c.h.b16 %v5393
    %v6796 = vunpack.c.l.b16 %v5394
    %v6797 = vunpack.c.h.b16 %v5394
    %v6798 = vunpack.c.l.b16 %v5395
    %v6799 = vunpack.c.h.b16 %v5395
    %v6800 = vunpack.c.l.b16 %v5396
    %v6801 = vunpack.c.h.b16 %v5396
    %v6802 = vunpack.c.l.b16 %v5397
    %v6803 = vunpack.c.h.b16 %v5397
    %v6804 = vunpack.c.l.b16 %v5398
    %v6805 = vunpack.c.h.b16 %v5398
    %v6806 = vunpack.c.l.b16 %v5399
    %v6807 = vunpack.c.h.b16 %v5399
    %v6808 = vunpack.c.l.b16 %v5400
    %v6809 = vunpack.c.h.b16 %v5400
    %v6810 = vunpack.c.l.b16 %v5401
    %v6811 = vunpack.c.h.b16 %v5401
    %v6812 = vunpack.c.l.b16 %v5402
    %v6813 = vunpack.c.h.b16 %v5402
    %v6814 = vunpack.c.l.b16 %v5403
    %v6815 = vunpack.c.h.b16 %v5403
    %v6816 = vunpack.c.l.b16 %v5404
    %v6817 = vunpack.c.h.b16 %v5404
    %v6818 = vunpack.c.l.b16 %v5405
    %v6819 = vunpack.c.h.b16 %v5405
    %v6820 = vunpack.c.l.b16 %v5406
    %v6821 = vunpack.c.h.b16 %v5406
    %v6822 = vunpack.c.l.b16 %v5407
    %v6823 = vunpack.c.h.b16 %v5407
    %v6824 = vunpack.c.l.b16 %v5408
    %v6825 = vunpack.c.h.b16 %v5408
    %v6826 = vunpack.c.l.b16 %v5409
    %v6827 = vunpack.c.h.b16 %v5409
    %v6828 = vunpack.c.l.b16 %v5410
    %v6829 = vunpack.c.h.b16 %v5410
    %v6830 = vunpack.c.l.b16 %v5411
    %v6831 = vunpack.c.h.b16 %v5411
    %v6832 = vunpack.c.l.b16 %v5412
    %v6833 = vunpack.c.h.b16 %v5412
    %v6834 = vunpack.c.l.b16 %v5413
    %v6835 = vunpack.c.h.b16 %v5413
    %v6836 = vunpack.c.l.b16 %v5414
    %v6837 = vunpack.c.h.b16 %v5414
    %v6838 = vunpack.c.l.b16 %v5415
    %v6839 = vunpack.c.h.b16 %v5415
    %v6840 = vunpack.c.l.b16 %v5416
    %v6841 = vunpack.c.h.b16 %v5416
    %v6842 = vunpack.c.l.b16 %v5417
    %v6843 = vunpack.c.h.b16 %v5417
    %v6844 = vunpack.c.l.b16 %v5418
    %v6845 = vunpack.c.h.b16 %v5418
    %v6846 = vunpack.c.l.b16 %v5419
    %v6847 = vunpack.c.h.b16 %v5419
    %v6848 = vunpack.c.l.b16 %v5420
    %v6849 = vunpack.c.h.b16 %v5420
    %v6850 = vunpack.c.l.b16 %v5421
    %v6851 = vunpack.c.h.b16 %v5421
    %v6852 = vunpack.c.l.b16 %v5422
    %v6853 = vunpack.c.h.b16 %v5422
    %v6854 = vunpack.c.l.b16 %v5423
    %v6855 = vunpack.c.h.b16 %v5423
    %v6856 = vunpack.c.l.b16 %v5424
    %v6857 = vunpack.c.h.b16 %v5424
    %v6858 = vunpack.c.l.b16 %v5425
    %v6859 = vunpack.c.h.b16 %v5425
    %v6860 = vunpack.c.l.b16 %v5426
    %v6861 = vunpack.c.h.b16 %v5426
    %v6862 = vunpack.c.l.b16 %v5427
    %v6863 = vunpack.c.h.b16 %v5427
    %v6864 = vunpack.c.l.b16 %v5428
    %v6865 = vunpack.c.h.b16 %v5428
    %v6866 = vunpack.c.l.b16 %v5429
    %v6867 = vunpack.c.h.b16 %v5429
    %v6868 = vunpack.c.l.b16 %v5430
    %v6869 = vunpack.c.h.b16 %v5430
    %v6870 = vunpack.c.l.b16 %v5431
    %v6871 = vunpack.c.h.b16 %v5431
    %v6872 = vunpack.c.l.b16 %v5432
    %v6873 = vunpack.c.h.b16 %v5432
    %v6874 = vunpack.c.l.b16 %v5433
    %v6875 = vunpack.c.h.b16 %v5433
    %v6876 = vunpack.c.l.b16 %v5434
    %v6877 = vunpack.c.h.b16 %v5434
    %v6878 = vunpack.c.l.b16 %v5435
    %v6879 = vunpack.c.h.b16 %v5435
    %v6880 = vunpack.c.l.b16 %v5436
    %v6881 = vunpack.c.h.b16 %v5436
    %v6882 = vunpack.c.l.b16 %v5437
    %v6883 = vunpack.c.h.b16 %v5437
    %v6884 = vunpack.c.l.b16 %v5438
    %v6885 = vunpack.c.h.b16 %v5438
    %v6886 = vunpack.c.l.b16 %v5439
    %v6887 = vunpack.c.h.b16 %v5439
    %v6888 = vunpack.c.l.b16 %v5440
    %v6889 = vunpack.c.h.b16 %v5440
    %v6890 = vunpack.c.l.b16 %v5441
    %v6891 = vunpack.c.h.b16 %v5441
    %v6892 = vunpack.c.l.b16 %v5442
    %v6893 = vunpack.c.h.b16 %v5442
    %v6894 = vunpack.c.l.b16 %v5443
    %v6895 = vunpack.c.h.b16 %v5443
    %v6896 = vunpack.c.l.b16 %v5444
    %v6897 = vunpack.c.h.b16 %v5444
    %v6898 = vunpack.c.l.b16 %v5445
    %v6899 = vunpack.c.h.b16 %v5445
    %v6900 = vunpack.c.l.b16 %v5446
    %v6901 = vunpack.c.h.b16 %v5446
    %v6902 = vunpack.c.l.b16 %v5447
    %v6903 = vunpack.c.h.b16 %v5447
    %v6904 = vunpack.c.l.b16 %v5448
    %v6905 = vunpack.c.h.b16 %v5448
    %v6906 = vunpack.c.l.b16 %v5449
    %v6907 = vunpack.c.h.b16 %v5449
    %v6908 = vunpack.c.l.b16 %v5450
    %v6909 = vunpack.c.h.b16 %v5450
    %v6910 = vunpack.c.l.b16 %v5451
    %v6911 = vunpack.c.h.b16 %v5451
    %v6912 = vunpack.c.l.b16 %v5452
    %v6913 = vunpack.c.h.b16 %v5452
    %v6914 = vunpack.c.l.b16 %v5453
    %v6915 = vunpack.c.h.b16 %v5453
    %v6916 = vunpack.c.l.b16 %v5454
    %v6917 = vunpack.c.h.b16 %v5454
    %v6918 = vunpack.c.l.b16 %v5455
    %v6919 = vunpack.c.h.b16 %v5455
    %v6920 = vunpack.c.l.b16 %v5456
    %v6921 = vunpack.c.h.b16 %v5456
    %v6922 = vunpack.c.l.b16 %v5457
    %v6923 = vunpack.c.h.b16 %v5457
    %v6924 = vunpack.c.l.b16 %v5458
    %v6925 = vunpack.c.h.b16 %v5458
    %v6926 = vunpack.c.l.b16 %v5459
    %v6927 = vunpack.c.h.b16 %v5459
    %v6928 = vunpack.c.l.b16 %v5460
    %v6929 = vunpack.c.h.b16 %v5460
    %v6930 = vunpack.c.l.b16 %v5461
    %v6931 = vunpack.c.h.b16 %v5461
    %v6932 = vunpack.c.l.b16 %v5462
    %v6933 = vunpack.c.h.b16 %v5462
    %v6934 = vunpack.c.l.b16 %v5463
    %v6935 = vunpack.c.h.b16 %v5463
    %v6936 = vunpack.c.l.b16 %v5464
    %v6937 = vunpack.c.h.b16 %v5464
    %v6938 = vunpack.c.l.b16 %v5465
    %v6939 = vunpack.c.h.b16 %v5465
    %v6940 = vunpack.c.l.b16 %v5466
    %v6941 = vunpack.c.h.b16 %v5466
    %v6942 = vunpack.c.l.b16 %v5467
    %v6943 = vunpack.c.h.b16 %v5467
    %v6944 = vunpack.c.l.b16 %v5468
    %v6945 = vunpack.c.h.b16 %v5468
    %v6946 = vunpack.c.l.b16 %v5469
    %v6947 = vunpack.c.h.b16 %v5469
    %v6948 = vunpack.c.l.b16 %v5470
    %v6949 = vunpack.c.h.b16 %v5470
    %v6950 = vunpack.c.l.b16 %v5471
    %v6951 = vunpack.c.h.b16 %v5471
    %v6952 = vunpack.c.l.b16 %v5472
    %v6953 = vunpack.c.h.b16 %v5472
    %v6954 = vunpack.c.l.b16 %v5473
    %v6955 = vunpack.c.h.b16 %v5473
    %v6956 = vunpack.c.l.b16 %v5474
    %v6957 = vunpack.c.h.b16 %v5474
    %v6958 = vunpack.c.l.b16 %v5475
    %v6959 = vunpack.c.h.b16 %v5475
    %v6960 = vunpack.c.l.b16 %v5476
    %v6961 = vunpack.c.h.b16 %v5476
    %v6962 = vunpack.c.l.b16 %v5477
    %v6963 = vunpack.c.h.b16 %v5477
    %v6964 = vunpack.c.l.b16 %v5478
    %v6965 = vunpack.c.h.b16 %v5478
    %v6966 = vunpack.c.l.b16 %v5479
    %v6967 = vunpack.c.h.b16 %v5479
    %v6968 = vunpack.c.l.b16 %v5480
    %v6969 = vunpack.c.h.b16 %v5480
    %v6970 = vunpack.c.l.b16 %v5481
    %v6971 = vunpack.c.h.b16 %v5481
    %v6972 = vunpack.c.l.b16 %v5482
    %v6973 = vunpack.c.h.b16 %v5482
    %v6974 = vunpack.c.l.b16 %v5483
    %v6975 = vunpack.c.h.b16 %v5483
    %v6976 = vunpack.c.l.b16 %v5484
    %v6977 = vunpack.c.h.b16 %v5484
    %v6978 = vunpack.c.l.b16 %v5485
    %v6979 = vunpack.c.h.b16 %v5485
    %v6980 = vunpack.c.l.b16 %v5486
    %v6981 = vunpack.c.h.b16 %v5486
    %v6982 = vunpack.c.l.b16 %v5487
    %v6983 = vunpack.c.h.b16 %v5487
    %v6984 = vunpack.c.l.b16 %v5488
    %v6985 = vunpack.c.h.b16 %v5488
    %v6986 = vunpack.c.l.b16 %v5489
    %v6987 = vunpack.c.h.b16 %v5489
    %v6988 = vunpack.c.l.b16 %v5490
    %v6989 = vunpack.c.h.b16 %v5490
    %v6990 = vunpack.c.l.b16 %v5491
    %v6991 = vunpack.c.h.b16 %v5491
    %v6992 = vunpack.c.l.b16 %v5492
    %v6993 = vunpack.c.h.b16 %v5492
    %v6994 = vunpack.c.l.b16 %v5493
    %v6995 = vunpack.c.h.b16 %v5493
    %v6996 = vunpack.c.l.b16 %v5494
    %v6997 = vunpack.c.h.b16 %v5494
    %v6998 = vunpack.c.l.b16 %v5495
    %v6999 = vunpack.c.h.b16 %v5495
    %v7000 = vunpack.c.l.b16 %v5496
    %v7001 = vunpack.c.h.b16 %v5496
    %v7002 = vunpack.c.l.b16 %v5497
    %v7003 = vunpack.c.h.b16 %v5497
    %v7004 = vunpack.c.l.b16 %v5498
    %v7005 = vunpack.c.h.b16 %v5498
    %v7006 = vunpack.c.l.b16 %v5499
    %v7007 = vunpack.c.h.b16 %v5499
    %v7008 = vunpack.c.l.b16 %v5500
    %v7009 = vunpack.c.h.b16 %v5500
    %v7010 = vunpack.c.l.b16 %v5501
    %v7011 = vunpack.c.h.b16 %v5501
    %v7012 = vunpack.c.l.b16 %v5502
    %v7013 = vunpack.c.h.b16 %v5502
    %v7014 = vunpack.c.l.b16 %v5503
    %v7015 = vunpack.c.h.b16 %v5503
    %v7016 = vunpack.c.l.b16 %v5504
    %v7017 = vunpack.c.h.b16 %v5504
    %v7018 = vunpack.c.l.b16 %v5505
    %v7019 = vunpack.c.h.b16 %v5505
    %v7020 = vunpack.c.l.b16 %v5506
    %v7021 = vunpack.c.h.b16 %v5506
    %v7022 = vunpack.c.l.b16 %v5507
    %v7023 = vunpack.c.h.b16 %v5507
    %v7024 = vunpack.c.l.b16 %v5508
    %v7025 = vunpack.c.h.b16 %v5508
    %v7026 = vunpack.c.l.b16 %v5509
    %v7027 = vunpack.c.h.b16 %v5509
    %v7028 = vunpack.c.l.b16 %v5510
    %v7029 = vunpack.c.h.b16 %v5510
    %v7030 = vunpack.c.l.b16 %v5511
    %v7031 = vunpack.c.h.b16 %v5511
    %v7032 = vunpack.c.l.b16 %v5512
    %v7033 = vunpack.c.h.b16 %v5512
    %v7034 = vunpack.c.l.b16 %v5513
    %v7035 = vunpack.c.h.b16 %v5513
    %v7036 = vpack.c.b16 %v6040, %v6036
    %v7037 = vpack.c.b16 %v6041, %v6037
    %v7038 = vpack.c.b16 %v6042, %v6038
    %v7039 = vpack.c.b16 %v6043, %v6039
    %v7040 = vpack.c.b16 %v6048, %v6044
    %v7041 = vpack.c.b16 %v6049, %v6045
    %v7042 = vpack.c.b16 %v6050, %v6046
    %v7043 = vpack.c.b16 %v6051, %v6047
    %v7044 = vpack.c.b16 %v6056, %v6052
    %v7045 = vpack.c.b16 %v6057, %v6053
    %v7046 = vpack.c.b16 %v6058, %v6054
    %v7047 = vpack.c.b16 %v6059, %v6055
    %v7048 = vpack.c.b16 %v6064, %v6060
    %v7049 = vpack.c.b16 %v6065, %v6061
    %v7050 = vpack.c.b16 %v6066, %v6062
    %v7051 = vpack.c.b16 %v6067, %v6063
    %v7052 = vpack.c.b16 %v6072, %v6068
    %v7053 = vpack.c.b16 %v6073, %v6069
    %v7054 = vpack.c.b16 %v6074, %v6070
    %v7055 = vpack.c.b16 %v6075, %v6071
    %v7056 = vpack.c.b16 %v6080, %v6076
    %v7057 = vpack.c.b16 %v6081, %v6077
    %v7058 = vpack.c.b16 %v6082, %v6078
    %v7059 = vpack.c.b16 %v6083, %v6079
    %v7060 = vpack.c.b16 %v6088, %v6084
    %v7061 = vpack.c.b16 %v6089, %v6085
    %v7062 = vpack.c.b16 %v6090, %v6086
    %v7063 = vpack.c.b16 %v6091, %v6087
    %v7064 = vpack.c.b16 %v6096, %v6092
    %v7065 = vpack.c.b16 %v6097, %v6093
    %v7066 = vpack.c.b16 %v6098, %v6094
    %v7067 = vpack.c.b16 %v6099, %v6095
    %v7068 = vpack.c.b16 %v6104, %v6100
    %v7069 = vpack.c.b16 %v6105, %v6101
    %v7070 = vpack.c.b16 %v6106, %v6102
    %v7071 = vpack.c.b16 %v6107, %v6103
    %v7072 = vpack.c.b16 %v6112, %v6108
    %v7073 = vpack.c.b16 %v6113, %v6109
    %v7074 = vpack.c.b16 %v6114, %v6110
    %v7075 = vpack.c.b16 %v6115, %v6111
    %v7076 = vpack.c.b16 %v6120, %v6116
    %v7077 = vpack.c.b16 %v6121, %v6117
    %v7078 = vpack.c.b16 %v6122, %v6118
    %v7079 = vpack.c.b16 %v6123, %v6119
    %v7080 = vpack.c.b16 %v6128, %v6124
    %v7081 = vpack.c.b16 %v6129, %v6125
    %v7082 = vpack.c.b16 %v6130, %v6126
    %v7083 = vpack.c.b16 %v6131, %v6127
    %v7084 = vpack.c.b16 %v6136, %v6132
    %v7085 = vpack.c.b16 %v6137, %v6133
    %v7086 = vpack.c.b16 %v6138, %v6134
    %v7087 = vpack.c.b16 %v6139, %v6135
    %v7088 = vpack.c.b16 %v6144, %v6140
    %v7089 = vpack.c.b16 %v6145, %v6141
    %v7090 = vpack.c.b16 %v6146, %v6142
    %v7091 = vpack.c.b16 %v6147, %v6143
    %v7092 = vpack.c.b16 %v6152, %v6148
    %v7093 = vpack.c.b16 %v6153, %v6149
    %v7094 = vpack.c.b16 %v6154, %v6150
    %v7095 = vpack.c.b16 %v6155, %v6151
    %v7096 = vpack.c.b16 %v6160, %v6156
    %v7097 = vpack.c.b16 %v6161, %v6157
    %v7098 = vpack.c.b16 %v6162, %v6158
    %v7099 = vpack.c.b16 %v6163, %v6159
    %v7100 = vpack.c.b16 %v6168, %v6164
    %v7101 = vpack.c.b16 %v6169, %v6165
    %v7102 = vpack.c.b16 %v6170, %v6166
    %v7103 = vpack.c.b16 %v6171, %v6167
    %v7104 = vpack.c.b16 %v6176, %v6172
    %v7105 = vpack.c.b16 %v6177, %v6173
    %v7106 = vpack.c.b16 %v6178, %v6174
    %v7107 = vpack.c.b16 %v6179, %v6175
    %v7108 = vpack.c.b16 %v6184, %v6180
    %v7109 = vpack.c.b16 %v6185, %v6181
    %v7110 = vpack.c.b16 %v6186, %v6182
    %v7111 = vpack.c.b16 %v6187, %v6183
    %v7112 = vpack.c.b16 %v6192, %v6188
    %v7113 = vpack.c.b16 %v6193, %v6189
    %v7114 = vpack.c.b16 %v6194, %v6190
    %v7115 = vpack.c.b16 %v6195, %v6191
    %v7116 = vpack.c.b16 %v6200, %v6196
    %v7117 = vpack.c.b16 %v6201, %v6197
    %v7118 = vpack.c.b16 %v6202, %v6198
    %v7119 = vpack.c.b16 %v6203, %v6199
    %v7120 = vpack.c.b16 %v6208, %v6204
    %v7121 = vpack.c.b16 %v6209, %v6205
    %v7122 = vpack.c.b16 %v6210, %v6206
    %v7123 = vpack.c.b16 %v6211, %v6207
    %v7124 = vpack.c.b16 %v6216, %v6212
    %v7125 = vpack.c.b16 %v6217, %v6213
    %v7126 = vpack.c.b16 %v6218, %v6214
    %v7127 = vpack.c.b16 %v6219, %v6215
    %v7128 = vpack.c.b16 %v6224, %v6220
    %v7129 = vpack.c.b16 %v6225, %v6221
    %v7130 = vpack.c.b16 %v6226, %v6222
    %v7131 = vpack.c.b16 %v6227, %v6223
    %v7132 = vpack.c.b16 %v6232, %v6228
    %v7133 = vpack.c.b16 %v6233, %v6229
    %v7134 = vpack.c.b16 %v6234, %v6230
    %v7135 = vpack.c.b16 %v6235, %v6231
    %v7136 = vpack.c.b16 %v6240, %v6236
    %v7137 = vpack.c.b16 %v6241, %v6237
    %v7138 = vpack.c.b16 %v6242, %v6238
    %v7139 = vpack.c.b16 %v6243, %v6239
    %v7140 = vpack.c.b16 %v6248, %v6244
    %v7141 = vpack.c.b16 %v6249, %v6245
    %v7142 = vpack.c.b16 %v6250, %v6246
    %v7143 = vpack.c.b16 %v6251, %v6247
    %v7144 = vpack.c.b16 %v6256, %v6252
    %v7145 = vpack.c.b16 %v6257, %v6253
    %v7146 = vpack.c.b16 %v6258, %v6254
    %v7147 = vpack.c.b16 %v6259, %v6255
    %v7148 = vpack.c.b16 %v6264, %v6260
    %v7149 = vpack.c.b16 %v6265, %v6261
    %v7150 = vpack.c.b16 %v6266, %v6262
    %v7151 = vpack.c.b16 %v6267, %v6263
    %v7152 = vpack.c.b16 %v6272, %v6268
    %v7153 = vpack.c.b16 %v6273, %v6269
    %v7154 = vpack.c.b16 %v6274, %v6270
    %v7155 = vpack.c.b16 %v6275, %v6271
    %v7156 = vpack.c.b16 %v6280, %v6276
    %v7157 = vpack.c.b16 %v6281, %v6277
    %v7158 = vpack.c.b16 %v6282, %v6278
    %v7159 = vpack.c.b16 %v6283, %v6279
    %v7160 = vpack.c.b16 %v6288, %v6284
    %v7161 = vpack.c.b16 %v6289, %v6285
    %v7162 = vpack.c.b16 %v6290, %v6286
    %v7163 = vpack.c.b16 %v6291, %v6287
    %v7164 = vpack.c.b16 %v6296, %v6292
    %v7165 = vpack.c.b16 %v6297, %v6293
    %v7166 = vpack.c.b16 %v6298, %v6294
    %v7167 = vpack.c.b16 %v6299, %v6295
    %v7168 = vpack.c.b16 %v6304, %v6300
    %v7169 = vpack.c.b16 %v6305, %v6301
    %v7170 = vpack.c.b16 %v6306, %v6302
    %v7171 = vpack.c.b16 %v6307, %v6303
    %v7172 = vpack.c.b16 %v6312, %v6308
    %v7173 = vpack.c.b16 %v6313, %v6309
    %v7174 = vpack.c.b16 %v6314, %v6310
    %v7175 = vpack.c.b16 %v6315, %v6311
    %v7176 = vpack.c.b16 %v6320, %v6316
    %v7177 = vpack.c.b16 %v6321, %v6317
    %v7178 = vpack.c.b16 %v6322, %v6318
    %v7179 = vpack.c.b16 %v6323, %v6319
    %v7180 = vpack.c.b16 %v6328, %v6324
    %v7181 = vpack.c.b16 %v6329, %v6325
    %v7182 = vpack.c.b16 %v6330, %v6326
    %v7183 = vpack.c.b16 %v6331, %v6327
    %v7184 = vpack.c.b16 %v6336, %v6332
    %v7185 = vpack.c.b16 %v6337, %v6333
    %v7186 = vpack.c.b16 %v6338, %v6334
    %v7187 = vpack.c.b16 %v6339, %v6335
    %v7188 = vpack.c.b16 %v6344, %v6340
    %v7189 = vpack.c.b16 %v6345, %v6341
    %v7190 = vpack.c.b16 %v6346, %v6342
    %v7191 = vpack.c.b16 %v6347, %v6343
    %v7192 = vpack.c.b16 %v6352, %v6348
    %v7193 = vpack.c.b16 %v6353, %v6349
    %v7194 = vpack.c.b16 %v6354, %v6350
    %v7195 = vpack.c.b16 %v6355, %v6351
    %v7196 = vpack.c.b16 %v6360, %v6356
    %v7197 = vpack.c.b16 %v6361, %v6357
    %v7198 = vpack.c.b16 %v6362, %v6358
    %v7199 = vpack.c.b16 %v6363, %v6359
    %v7200 = vpack.c.b16 %v6368, %v6364
    %v7201 = vpack.c.b16 %v6369, %v6365
    %v7202 = vpack.c.b16 %v6370, %v6366
    %v7203 = vpack.c.b16 %v6371, %v6367
    %v7204 = vpack.c.b16 %v6376, %v6372
    %v7205 = vpack.c.b16 %v6377, %v6373
    %v7206 = vpack.c.b16 %v6378, %v6374
    %v7207 = vpack.c.b16 %v6379, %v6375
    %v7208 = vpack.c.b16 %v6384, %v6380
    %v7209 = vpack.c.b16 %v6385, %v6381
    %v7210 = vpack.c.b16 %v6386, %v6382
    %v7211 = vpack.c.b16 %v6387, %v6383
    %v7212 = vpack.c.b16 %v6392, %v6388
    %v7213 = vpack.c.b16 %v6393, %v6389
    %v7214 = vpack.c.b16 %v6394, %v6390
    %v7215 = vpack.c.b16 %v6395, %v6391
    %v7216 = vpack.c.b16 %v6400, %v6396
    %v7217 = vpack.c.b16 %v6401, %v6397
    %v7218 = vpack.c.b16 %v6402, %v6398
    %v7219 = vpack.c.b16 %v6403, %v6399
    %v7220 = vpack.c.b16 %v6408, %v6404
    %v7221 = vpack.c.b16 %v6409, %v6405
    %v7222 = vpack.c.b16 %v6410, %v6406
    %v7223 = vpack.c.b16 %v6411, %v6407
    %v7224 = vpack.c.b16 %v6416, %v6412
    %v7225 = vpack.c.b16 %v6417, %v6413
    %v7226 = vpack.c.b16 %v6418, %v6414
    %v7227 = vpack.c.b16 %v6419, %v6415
    %v7228 = vpack.c.b16 %v6424, %v6420
    %v7229 = vpack.c.b16 %v6425, %v6421
    %v7230 = vpack.c.b16 %v6426, %v6422
    %v7231 = vpack.c.b16 %v6427, %v6423
    %v7232 = vpack.c.b16 %v6432, %v6428
    %v7233 = vpack.c.b16 %v6433, %v6429
    %v7234 = vpack.c.b16 %v6434, %v6430
    %v7235 = vpack.c.b16 %v6435, %v6431
    %v7236 = vpack.c.b16 %v6440, %v6436
    %v7237 = vpack.c.b16 %v6441, %v6437
    %v7238 = vpack.c.b16 %v6442, %v6438
    %v7239 = vpack.c.b16 %v6443, %v6439
    %v7240 = vpack.c.b16 %v6448, %v6444
    %v7241 = vpack.c.b16 %v6449, %v6445
    %v7242 = vpack.c.b16 %v6450, %v6446
    %v7243 = vpack.c.b16 %v6451, %v6447
    %v7244 = vpack.c.b16 %v6456, %v6452
    %v7245 = vpack.c.b16 %v6457, %v6453
    %v7246 = vpack.c.b16 %v6458, %v6454
    %v7247 = vpack.c.b16 %v6459, %v6455
    %v7248 = vpack.c.b16 %v6464, %v6460
    %v7249 = vpack.c.b16 %v6465, %v6461
    %v7250 = vpack.c.b16 %v6466, %v6462
    %v7251 = vpack.c.b16 %v6467, %v6463
    %v7252 = vpack.c.b16 %v6472, %v6468
    %v7253 = vpack.c.b16 %v6473, %v6469
    %v7254 = vpack.c.b16 %v6474, %v6470
    %v7255 = vpack.c.b16 %v6475, %v6471
    %v7256 = vpack.c.b16 %v6480, %v6476
    %v7257 = vpack.c.b16 %v6481, %v6477
    %v7258 = vpack.c.b16 %v6482, %v6478
    %v7259 = vpack.c.b16 %v6483, %v6479
    %v7260 = vpack.c.b16 %v6488, %v6484
    %v7261 = vpack.c.b16 %v6489, %v6485
    %v7262 = vpack.c.b16 %v6490, %v6486
    %v7263 = vpack.c.b16 %v6491, %v6487
    %v7264 = vpack.c.b16 %v6496, %v6492
    %v7265 = vpack.c.b16 %v6497, %v6493
    %v7266 = vpack.c.b16 %v6498, %v6494
    %v7267 = vpack.c.b16 %v6499, %v6495
    %v7268 = vpack.c.b16 %v6504, %v6500
    %v7269 = vpack.c.b16 %v6505, %v6501
    %v7270 = vpack.c.b16 %v6506, %v6502
    %v7271 = vpack.c.b16 %v6507, %v6503
    %v7272 = vpack.c.b16 %v6512, %v6508
    %v7273 = vpack.c.b16 %v6513, %v6509
    %v7274 = vpack.c.b16 %v6514, %v6510
    %v7275 = vpack.c.b16 %v6515, %v6511
    %v7276 = vpack.c.b16 %v6520, %v6516
    %v7277 = vpack.c.b16 %v6521, %v6517
    %v7278 = vpack.c.b16 %v6522, %v6518
    %v7279 = vpack.c.b16 %v6523, %v6519
    %v7280 = vpack.c.b16 %v6528, %v6524
    %v7281 = vpack.c.b16 %v6529, %v6525
    %v7282 = vpack.c.b16 %v6530, %v6526
    %v7283 = vpack.c.b16 %v6531, %v6527
    %v7284 = vpack.c.b16 %v6536, %v6532
    %v7285 = vpack.c.b16 %v6537, %v6533
    %v7286 = vpack.c.b16 %v6538, %v6534
    %v7287 = vpack.c.b16 %v6539, %v6535
    %v7288 = vpack.c.b16 %v6544, %v6540
    %v7289 = vpack.c.b16 %v6545, %v6541
    %v7290 = vpack.c.b16 %v6546, %v6542
    %v7291 = vpack.c.b16 %v6547, %v6543
    %v7292 = vpack.c.b16 %v6552, %v6548
    %v7293 = vpack.c.b16 %v6553, %v6549
    %v7294 = vpack.c.b16 %v6554, %v6550
    %v7295 = vpack.c.b16 %v6555, %v6551
    %v7296 = vpack.c.b16 %v6560, %v6556
    %v7297 = vpack.c.b16 %v6561, %v6557
    %v7298 = vpack.c.b16 %v6562, %v6558
    %v7299 = vpack.c.b16 %v6563, %v6559
    %v7300 = vpack.c.b16 %v6568, %v6564
    %v7301 = vpack.c.b16 %v6569, %v6565
    %v7302 = vpack.c.b16 %v6570, %v6566
    %v7303 = vpack.c.b16 %v6571, %v6567
    %v7304 = vpack.c.b16 %v6576, %v6572
    %v7305 = vpack.c.b16 %v6577, %v6573
    %v7306 = vpack.c.b16 %v6578, %v6574
    %v7307 = vpack.c.b16 %v6579, %v6575
    %v7308 = vpack.c.b16 %v6584, %v6580
    %v7309 = vpack.c.b16 %v6585, %v6581
    %v7310 = vpack.c.b16 %v6586, %v6582
    %v7311 = vpack.c.b16 %v6587, %v6583
    %v7312 = vpack.c.b16 %v6592, %v6588
    %v7313 = vpack.c.b16 %v6593, %v6589
    %v7314 = vpack.c.b16 %v6594, %v6590
    %v7315 = vpack.c.b16 %v6595, %v6591
    %v7316 = vpack.c.b16 %v6600, %v6596
    %v7317 = vpack.c.b16 %v6601, %v6597
    %v7318 = vpack.c.b16 %v6602, %v6598
    %v7319 = vpack.c.b16 %v6603, %v6599
    %v7320 = vpack.c.b16 %v6608, %v6604
    %v7321 = vpack.c.b16 %v6609, %v6605
    %v7322 = vpack.c.b16 %v6610, %v6606
    %v7323 = vpack.c.b16 %v6611, %v6607
    %v7324 = vpack.c.b16 %v6616, %v6612
    %v7325 = vpack.c.b16 %v6617, %v6613
    %v7326 = vpack.c.b16 %v6618, %v6614
    %v7327 = vpack.c.b16 %v6619, %v6615
    %v7328 = vpack.c.b16 %v6624, %v6620
    %v7329 = vpack.c.b16 %v6625, %v6621
    %v7330 = vpack.c.b16 %v6626, %v6622
    %v7331 = vpack.c.b16 %v6627, %v6623
    %v7332 = vpack.c.b16 %v6632, %v6628
    %v7333 = vpack.c.b16 %v6633, %v6629
    %v7334 = vpack.c.b16 %v6634, %v6630
    %v7335 = vpack.c.b16 %v6635, %v6631
    %v7336 = vpack.c.b16 %v6640, %v6636
    %v7337 = vpack.c.b16 %v6641, %v6637
    %v7338 = vpack.c.b16 %v6642, %v6638
    %v7339 = vpack.c.b16 %v6643, %v6639
    %v7340 = vpack.c.b16 %v6648, %v6644
    %v7341 = vpack.c.b16 %v6649, %v6645
    %v7342 = vpack.c.b16 %v6650, %v6646
    %v7343 = vpack.c.b16 %v6651, %v6647
    %v7344 = vpack.c.b16 %v6656, %v6652
    %v7345 = vpack.c.b16 %v6657, %v6653
    %v7346 = vpack.c.b16 %v6658, %v6654
    %v7347 = vpack.c.b16 %v6659, %v6655
    %v7348 = vpack.c.b16 %v6664, %v6660
    %v7349 = vpack.c.b16 %v6665, %v6661
    %v7350 = vpack.c.b16 %v6666, %v6662
    %v7351 = vpack.c.b16 %v6667, %v6663
    %v7352 = vpack.c.b16 %v6672, %v6668
    %v7353 = vpack.c.b16 %v6673, %v6669
    %v7354 = vpack.c.b16 %v6674, %v6670
    %v7355 = vpack.c.b16 %v6675, %v6671
    %v7356 = vpack.c.b16 %v6680, %v6676
    %v7357 = vpack.c.b16 %v6681, %v6677
    %v7358 = vpack.c.b16 %v6682, %v6678
    %v7359 = vpack.c.b16 %v6683, %v6679
    %v7360 = vpack.c.b16 %v6688, %v6684
    %v7361 = vpack.c.b16 %v6689, %v6685
    %v7362 = vpack.c.b16 %v6690, %v6686
    %v7363 = vpack.c.b16 %v6691, %v6687
    %v7364 = vpack.c.b16 %v6696, %v6692
    %v7365 = vpack.c.b16 %v6697, %v6693
    %v7366 = vpack.c.b16 %v6698, %v6694
    %v7367 = vpack.c.b16 %v6699, %v6695
    %v7368 = vpack.c.b16 %v6704, %v6700
    %v7369 = vpack.c.b16 %v6705, %v6701
    %v7370 = vpack.c.b16 %v6706, %v6702
    %v7371 = vpack.c.b16 %v6707, %v6703
    %v7372 = vpack.c.b16 %v6712, %v6708
    %v7373 = vpack.c.b16 %v6713, %v6709
    %v7374 = vpack.c.b16 %v6714, %v6710
    %v7375 = vpack.c.b16 %v6715, %v6711
    %v7376 = vpack.c.b16 %v6720, %v6716
    %v7377 = vpack.c.b16 %v6721, %v6717
    %v7378 = vpack.c.b16 %v6722, %v6718
    %v7379 = vpack.c.b16 %v6723, %v6719
    %v7380 = vpack.c.b16 %v6728, %v6724
    %v7381 = vpack.c.b16 %v6729, %v6725
    %v7382 = vpack.c.b16 %v6730, %v6726
    %v7383 = vpack.c.b16 %v6731, %v6727
    %v7384 = vpack.c.b16 %v6736, %v6732
    %v7385 = vpack.c.b16 %v6737, %v6733
    %v7386 = vpack.c.b16 %v6738, %v6734
    %v7387 = vpack.c.b16 %v6739, %v6735
    %v7388 = vpack.c.b16 %v6744, %v6740
    %v7389 = vpack.c.b16 %v6745, %v6741
    %v7390 = vpack.c.b16 %v6746, %v6742
    %v7391 = vpack.c.b16 %v6747, %v6743
    %v7392 = vpack.c.b16 %v6752, %v6748
    %v7393 = vpack.c.b16 %v6753, %v6749
    %v7394 = vpack.c.b16 %v6754, %v6750
    %v7395 = vpack.c.b16 %v6755, %v6751
    %v7396 = vpack.c.b16 %v6760, %v6756
    %v7397 = vpack.c.b16 %v6761, %v6757
    %v7398 = vpack.c.b16 %v6762, %v6758
    %v7399 = vpack.c.b16 %v6763, %v6759
    %v7400 = vpack.c.b16 %v6768, %v6764
    %v7401 = vpack.c.b16 %v6769, %v6765
    %v7402 = vpack.c.b16 %v6770, %v6766
    %v7403 = vpack.c.b16 %v6771, %v6767
    %v7404 = vpack.c.b16 %v6776, %v6772
    %v7405 = vpack.c.b16 %v6777, %v6773
    %v7406 = vpack.c.b16 %v6778, %v6774
    %v7407 = vpack.c.b16 %v6779, %v6775
    %v7408 = vpack.c.b16 %v6784, %v6780
    %v7409 = vpack.c.b16 %v6785, %v6781
    %v7410 = vpack.c.b16 %v6786, %v6782
    %v7411 = vpack.c.b16 %v6787, %v6783
    %v7412 = vpack.c.b16 %v6792, %v6788
    %v7413 = vpack.c.b16 %v6793, %v6789
    %v7414 = vpack.c.b16 %v6794, %v6790
    %v7415 = vpack.c.b16 %v6795, %v6791
    %v7416 = vpack.c.b16 %v6800, %v6796
    %v7417 = vpack.c.b16 %v6801, %v6797
    %v7418 = vpack.c.b16 %v6802, %v6798
    %v7419 = vpack.c.b16 %v6803, %v6799
    %v7420 = vpack.c.b16 %v6808, %v6804
    %v7421 = vpack.c.b16 %v6809, %v6805
    %v7422 = vpack.c.b16 %v6810, %v6806
    %v7423 = vpack.c.b16 %v6811, %v6807
    %v7424 = vpack.c.b16 %v6816, %v6812
    %v7425 = vpack.c.b16 %v6817, %v6813
    %v7426 = vpack.c.b16 %v6818, %v6814
    %v7427 = vpack.c.b16 %v6819, %v6815
    %v7428 = vpack.c.b16 %v6824, %v6820
    %v7429 = vpack.c.b16 %v6825, %v6821
    %v7430 = vpack.c.b16 %v6826, %v6822
    %v7431 = vpack.c.b16 %v6827, %v6823
    %v7432 = vpack.c.b16 %v6832, %v6828
    %v7433 = vpack.c.b16 %v6833, %v6829
    %v7434 = vpack.c.b16 %v6834, %v6830
    %v7435 = vpack.c.b16 %v6835, %v6831
    %v7436 = vpack.c.b16 %v6840, %v6836
    %v7437 = vpack.c.b16 %v6841, %v6837
    %v7438 = vpack.c.b16 %v6842, %v6838
    %v7439 = vpack.c.b16 %v6843, %v6839
    %v7440 = vpack.c.b16 %v6848, %v6844
    %v7441 = vpack.c.b16 %v6849, %v6845
    %v7442 = vpack.c.b16 %v6850, %v6846
    %v7443 = vpack.c.b16 %v6851, %v6847
    %v7444 = vpack.c.b16 %v6856, %v6852
    %v7445 = vpack.c.b16 %v6857, %v6853
    %v7446 = vpack.c.b16 %v6858, %v6854
    %v7447 = vpack.c.b16 %v6859, %v6855
    %v7448 = vpack.c.b16 %v6864, %v6860
    %v7449 = vpack.c.b16 %v6865, %v6861
    %v7450 = vpack.c.b16 %v6866, %v6862
    %v7451 = vpack.c.b16 %v6867, %v6863
    %v7452 = vpack.c.b16 %v6872, %v6868
    %v7453 = vpack.c.b16 %v6873, %v6869
    %v7454 = vpack.c.b16 %v6874, %v6870
    %v7455 = vpack.c.b16 %v6875, %v6871
    %v7456 = vpack.c.b16 %v6880, %v6876
    %v7457 = vpack.c.b16 %v6881, %v6877
    %v7458 = vpack.c.b16 %v6882, %v6878
    %v7459 = vpack.c.b16 %v6883, %v6879
    %v7460 = vpack.c.b16 %v6888, %v6884
    %v7461 = vpack.c.b16 %v6889, %v6885
    %v7462 = vpack.c.b16 %v6890, %v6886
    %v7463 = vpack.c.b16 %v6891, %v6887
    %v7464 = vpack.c.b16 %v6896, %v6892
    %v7465 = vpack.c.b16 %v6897, %v6893
    %v7466 = vpack.c.b16 %v6898, %v6894
    %v7467 = vpack.c.b16 %v6899, %v6895
    %v7468 = vpack.c.b16 %v6904, %v6900
    %v7469 = vpack.c.b16 %v6905, %v6901
    %v7470 = vpack.c.b16 %v6906, %v6902
    %v7471 = vpack.c.b16 %v6907, %v6903
    %v7472 = vpack.c.b16 %v6912, %v6908
    %v7473 = vpack.c.b16 %v6913, %v6909
    %v7474 = vpack.c.b16 %v6914, %v6910
    %v7475 = vpack.c.b16 %v6915, %v6911
    %v7476 = vpack.c.b16 %v6920, %v6916
    %v7477 = vpack.c.b16 %v6921, %v6917
    %v7478 = vpack.c.b16 %v6922, %v6918
    %v7479 = vpack.c.b16 %v6923, %v6919
    %v7480 = vpack.c.b16 %v6928, %v6924
    %v7481 = vpack.c.b16 %v6929, %v6925
    %v7482 = vpack.c.b16 %v6930, %v6926
    %v7483 = vpack.c.b16 %v6931, %v6927
    %v7484 = vpack.c.b16 %v6936, %v6932
    %v7485 = vpack.c.b16 %v6937, %v6933
    %v7486 = vpack.c.b16 %v6938, %v6934
    %v7487 = vpack.c.b16 %v6939, %v6935
    %v7488 = vpack.c.b16 %v6944, %v6940
    %v7489 = vpack.c.b16 %v6945, %v6941
    %v7490 = vpack.c.b16 %v6946, %v6942
    %v7491 = vpack.c.b16 %v6947, %v6943
    %v7492 = vpack.c.b16 %v6952, %v6948
    %v7493 = vpack.c.b16 %v6953, %v6949
    %v7494 = vpack.c.b16 %v6954, %v6950
    %v7495 = vpack.c.b16 %v6955, %v6951
    %v7496 = vpack.c.b16 %v6960, %v6956
    %v7497 = vpack.c.b16 %v6961, %v6957
    %v7498 = vpack.c.b16 %v6962, %v6958
    %v7499 = vpack.c.b16 %v6963, %v6959
    %v7500 = vpack.c.b16 %v6968, %v6964
    %v7501 = vpack.c.b16 %v6969, %v6965
    %v7502 = vpack.c.b16 %v6970, %v6966
    %v7503 = vpack.c.b16 %v6971, %v6967
    %v7504 = vpack.c.b16 %v6976, %v6972
    %v7505 = vpack.c.b16 %v6977, %v6973
    %v7506 = vpack.c.b16 %v6978, %v6974
    %v7507 = vpack.c.b16 %v6979, %v6975
    %v7508 = vpack.c.b16 %v6984, %v6980
    %v7509 = vpack.c.b16 %v6985, %v6981
    %v7510 = vpack.c.b16 %v6986, %v6982
    %v7511 = vpack.c.b16 %v6987, %v6983
    %v7512 = vpack.c.b16 %v6992, %v6988
    %v7513 = vpack.c.b16 %v6993, %v6989
    %v7514 = vpack.c.b16 %v6994, %v6990
    %v7515 = vpack.c.b16 %v6995, %v6991
    %v7516 = vpack.c.b16 %v7000, %v6996
    %v7517 = vpack.c.b16 %v7001, %v6997
    %v7518 = vpack.c.b16 %v7002, %v6998
    %v7519 = vpack.c.b16 %v7003, %v6999
    %v7520 = vpack.c.b16 %v7008, %v7004
    %v7521 = vpack.c.b16 %v7009, %v7005
    %v7522 = vpack.c.b16 %v7010, %v7006
    %v7523 = vpack.c.b16 %v7011, %v7007
    %v7524 = vpack.c.b16 %v7016, %v7012
    %v7525 = vpack.c.b16 %v7017, %v7013
    %v7526 = vpack.c.b16 %v7018, %v7014
    %v7527 = vpack.c.b16 %v7019, %v7015
    %v7528 = vpack.c.b16 %v7024, %v7020
    %v7529 = vpack.c.b16 %v7025, %v7021
    %v7530 = vpack.c.b16 %v7026, %v7022
    %v7531 = vpack.c.b16 %v7027, %v7023
    %v7532 = vpack.c.b16 %v7032, %v7028
    %v7533 = vpack.c.b16 %v7033, %v7029
    %v7534 = vpack.c.b16 %v7034, %v7030
    %v7535 = vpack.c.b16 %v7035, %v7031
    %vm8036 = vcmask 654336
    %v8038 = vsel %vm8036, %v5013, 0
    %8040 = vmatprep.subr.bf16.mxu0 %v7037
    %8041 = vmatpush1.bf16.msra.mxu0 %v7036
    %8042 = vmatprep.subr.bf16.mxu0 %v7041
    %8043 = vmatpush1.bf16.msra.mxu0 %v7040
    %8044 = vmatprep.subr.bf16.mxu0 %v7045
    %8045 = vmatpush1.bf16.msra.mxu0 %v7044
    %8046 = vmatprep.subr.bf16.mxu0 %v7049
    %8047 = vmatpush1.bf16.msra.mxu0 %v7048
    %8048 = vmatprep.subr.bf16.mxu0 %v7053
    %8049 = vmatpush1.bf16.msra.mxu0 %v7052
    %8050 = vmatprep.subr.bf16.mxu0 %v7057
    %8051 = vmatpush1.bf16.msra.mxu0 %v7056
    %8052 = vmatprep.subr.bf16.mxu0 %v7061
    %8053 = vmatpush1.bf16.msra.mxu0 %v7060
    %8054 = vmatprep.subr.bf16.mxu0 %v7065
    %8055 = vmatpush1.bf16.msra.mxu0 %v7064
    %8056 = vmatprep.subr.bf16.mxu0 %v7069
    %8057 = vmatpush1.bf16.msra.mxu0 %v7068
    %8058 = vmatprep.subr.bf16.mxu0 %v7073
    %8059 = vmatpush1.bf16.msra.mxu0 %v7072
    %8060 = vmatprep.subr.bf16.mxu0 %v7077
    %8061 = vmatpush1.bf16.msra.mxu0 %v7076
    %8062 = vmatprep.subr.bf16.mxu0 %v7081
    %8063 = vmatpush1.bf16.msra.mxu0 %v7080
    %8064 = vmatprep.subr.bf16.mxu0 %v7085
    %8065 = vmatpush1.bf16.msra.mxu0 %v7084
    %8066 = vmatprep.subr.bf16.mxu0 %v7089
    %8067 = vmatpush1.bf16.msra.mxu0 %v7088
    %8068 = vmatprep.subr.bf16.mxu0 %v7093
    %8069 = vmatpush1.bf16.msra.mxu0 %v7092
    %8070 = vmatprep.subr.bf16.mxu0 %v7097
    %8071 = vmatpush1.bf16.msra.mxu0 %v7096
    %8072 = vmatprep.mubr.bf16.mxu0 %v4999
    %8073 = vmatmul.mubr.bf16.gmra.mrb[0].mxu0 %v4998
    %v8074 = vpop.f32.mrb[0].mxu0
    %v8075 = vadd.f32 %v5519, %v8074
    %v8076 = vpop.f32.mrb[0].mxu0
    %v8077 = vadd.f32 %v5523, %v8076
    %v8078 = vpop.f32.mrb[0].mxu0
    %v8079 = vpop.f32.mrb[0].mxu0
    %8080 = vdwg.mxu0
    %8081 = vmatprep.subr.bf16.mxu0 %v7101
    %8082 = vmatpush1.bf16.msra.mxu0 %v7100
    %8083 = vmatprep.subr.bf16.mxu0 %v7105
    %8084 = vmatpush1.bf16.msra.mxu0 %v7104
    %8085 = vmatprep.subr.bf16.mxu0 %v7109
    %8086 = vmatpush1.bf16.msra.mxu0 %v7108
    %8087 = vmatprep.subr.bf16.mxu0 %v7113
    %8088 = vmatpush1.bf16.msra.mxu0 %v7112
    %8089 = vmatprep.subr.bf16.mxu0 %v7117
    %8090 = vmatpush1.bf16.msra.mxu0 %v7116
    %8091 = vmatprep.subr.bf16.mxu0 %v7121
    %8092 = vmatpush1.bf16.msra.mxu0 %v7120
    %8093 = vmatprep.subr.bf16.mxu0 %v7125
    %8094 = vmatpush1.bf16.msra.mxu0 %v7124
    %8095 = vmatprep.subr.bf16.mxu0 %v7129
    %8096 = vmatpush1.bf16.msra.mxu0 %v7128
    %8097 = vmatprep.subr.bf16.mxu0 %v7133
    %8098 = vmatpush1.bf16.msra.mxu0 %v7132
    %8099 = vmatprep.subr.bf16.mxu0 %v7137
    %8100 = vmatpush1.bf16.msra.mxu0 %v7136
    %8101 = vmatprep.subr.bf16.mxu0 %v7141
    %8102 = vmatpush1.bf16.msra.mxu0 %v7140
    %8103 = vmatprep.subr.bf16.mxu0 %v7145
    %8104 = vmatpush1.bf16.msra.mxu0 %v7144
    %8105 = vmatprep.subr.bf16.mxu0 %v7149
    %8106 = vmatpush1.bf16.msra.mxu0 %v7148
    %8107 = vmatprep.subr.bf16.mxu0 %v7153
    %8108 = vmatpush1.bf16.msra.mxu0 %v7152
    %8109 = vmatprep.subr.bf16.mxu0 %v7157
    %8110 = vmatpush1.bf16.msra.mxu0 %v7156
    %8111 = vmatprep.subr.bf16.mxu0 %v7161
    %8112 = vmatpush1.bf16.msra.mxu0 %v7160
    %8113 = vmatprep.mubr.bf16.mxu0 %v5001
    %8114 = vmatmul.mubr.bf16.gmra.mrb[0].mxu0 %v5000
    %v8115 = vpop.f32.mrb[0].mxu0
    %v8116 = vadd.f32 %v8075, %v8115
    %v8117 = vpop.f32.mrb[0].mxu0
    %v8118 = vadd.f32 %v8077, %v8117
    %v8119 = vpop.f32.mrb[0].mxu0
    %v8120 = vpop.f32.mrb[0].mxu0
    %8121 = vdwg.mxu0
    %8122 = vmatprep.subr.bf16.mxu0 %v7165
    %8123 = vmatpush1.bf16.msra.mxu0 %v7164
    %8124 = vmatprep.subr.bf16.mxu0 %v7169
    %8125 = vmatpush1.bf16.msra.mxu0 %v7168
    %8126 = vmatprep.subr.bf16.mxu0 %v7173
    %8127 = vmatpush1.bf16.msra.mxu0 %v7172
    %8128 = vmatprep.subr.bf16.mxu0 %v7177
    %8129 = vmatpush1.bf16.msra.mxu0 %v7176
    %8130 = vmatprep.subr.bf16.mxu0 %v7181
    %8131 = vmatpush1.bf16.msra.mxu0 %v7180
    %8132 = vmatprep.subr.bf16.mxu0 %v7185
    %8133 = vmatpush1.bf16.msra.mxu0 %v7184
    %8134 = vmatprep.subr.bf16.mxu0 %v7189
    %8135 = vmatpush1.bf16.msra.mxu0 %v7188
    %8136 = vmatprep.subr.bf16.mxu0 %v7193
    %8137 = vmatpush1.bf16.msra.mxu0 %v7192
    %8138 = vmatprep.subr.bf16.mxu0 %v7197
    %8139 = vmatpush1.bf16.msra.mxu0 %v7196
    %8140 = vmatprep.subr.bf16.mxu0 %v7201
    %8141 = vmatpush1.bf16.msra.mxu0 %v7200
    %8142 = vmatprep.subr.bf16.mxu0 %v7205
    %8143 = vmatpush1.bf16.msra.mxu0 %v7204
    %8144 = vmatprep.subr.bf16.mxu0 %v7209
    %8145 = vmatpush1.bf16.msra.mxu0 %v7208
    %8146 = vmatprep.subr.bf16.mxu0 %v7213
    %8147 = vmatpush1.bf16.msra.mxu0 %v7212
    %8148 = vmatprep.subr.bf16.mxu0 %v7217
    %8149 = vmatpush1.bf16.msra.mxu0 %v7216
    %8150 = vmatprep.subr.bf16.mxu0 %v7221
    %8151 = vmatpush1.bf16.msra.mxu0 %v7220
    %8152 = vmatprep.subr.bf16.mxu0 %v7225
    %8153 = vmatpush1.bf16.msra.mxu0 %v7224
    %8154 = vmatprep.mubr.bf16.mxu0 %v5003
    %8155 = vmatmul.mubr.bf16.gmra.mrb[0].mxu0 %v5002
    %v8156 = vpop.f32.mrb[0].mxu0
    %v8157 = vadd.f32 %v8116, %v8156
    %v8158 = vpop.f32.mrb[0].mxu0
    %v8159 = vadd.f32 %v8118, %v8158
    %v8160 = vpop.f32.mrb[0].mxu0
    %v8161 = vpop.f32.mrb[0].mxu0
    %8162 = vdwg.mxu0
    %8163 = vmatprep.subr.bf16.mxu0 %v7229
    %8164 = vmatpush1.bf16.msra.mxu0 %v7228
    %8165 = vmatprep.subr.bf16.mxu0 %v7233
    %8166 = vmatpush1.bf16.msra.mxu0 %v7232
    %8167 = vmatprep.subr.bf16.mxu0 %v7237
    %8168 = vmatpush1.bf16.msra.mxu0 %v7236
    %8169 = vmatprep.subr.bf16.mxu0 %v7241
    %8170 = vmatpush1.bf16.msra.mxu0 %v7240
    %8171 = vmatprep.subr.bf16.mxu0 %v7245
    %8172 = vmatpush1.bf16.msra.mxu0 %v7244
    %8173 = vmatprep.subr.bf16.mxu0 %v7249
    %8174 = vmatpush1.bf16.msra.mxu0 %v7248
    %8175 = vmatprep.subr.bf16.mxu0 %v7253
    %8176 = vmatpush1.bf16.msra.mxu0 %v7252
    %8177 = vmatprep.subr.bf16.mxu0 %v7257
    %8178 = vmatpush1.bf16.msra.mxu0 %v7256
    %8179 = vmatprep.subr.bf16.mxu0 %v7261
    %8180 = vmatpush1.bf16.msra.mxu0 %v7260
    %8181 = vmatprep.subr.bf16.mxu0 %v7265
    %8182 = vmatpush1.bf16.msra.mxu0 %v7264
    %8183 = vmatprep.subr.bf16.mxu0 %v7269
    %8184 = vmatpush1.bf16.msra.mxu0 %v7268
    %8185 = vmatprep.subr.bf16.mxu0 %v7273
    %8186 = vmatpush1.bf16.msra.mxu0 %v7272
    %8187 = vmatprep.subr.bf16.mxu0 %v7277
    %8188 = vmatpush1.bf16.msra.mxu0 %v7276
    %8189 = vmatprep.subr.bf16.mxu0 %v7281
    %8190 = vmatpush1.bf16.msra.mxu0 %v7280
    %8191 = vmatprep.subr.bf16.mxu0 %v7285
    %8192 = vmatpush1.bf16.msra.mxu0 %v7284
    %8193 = vmatprep.subr.bf16.mxu0 %v7289
    %8194 = vmatpush1.bf16.msra.mxu0 %v7288
    %8195 = vmatprep.mubr.bf16.mxu0 %v5005
    %8196 = vmatmul.mubr.bf16.gmra.mrb[0].mxu0 %v5004
    %v8197 = vpop.f32.mrb[0].mxu0
    %v8198 = vadd.f32 %v8157, %v8197
    %v8199 = vpop.f32.mrb[0].mxu0
    %v8200 = vadd.f32 %v8159, %v8199
    %v8201 = vpop.f32.mrb[0].mxu0
    %v8202 = vpop.f32.mrb[0].mxu0
    %8203 = vdwg.mxu0
    %8204 = vmatprep.subr.bf16.mxu0 %v7293
    %8205 = vmatpush1.bf16.msra.mxu0 %v7292
    %8206 = vmatprep.subr.bf16.mxu0 %v7297
    %8207 = vmatpush1.bf16.msra.mxu0 %v7296
    %8208 = vmatprep.subr.bf16.mxu0 %v7301
    %8209 = vmatpush1.bf16.msra.mxu0 %v7300
    %8210 = vmatprep.subr.bf16.mxu0 %v7305
    %8211 = vmatpush1.bf16.msra.mxu0 %v7304
    %8212 = vmatprep.subr.bf16.mxu0 %v7309
    %8213 = vmatpush1.bf16.msra.mxu0 %v7308
    %8214 = vmatprep.subr.bf16.mxu0 %v7313
    %8215 = vmatpush1.bf16.msra.mxu0 %v7312
    %8216 = vmatprep.subr.bf16.mxu0 %v7317
    %8217 = vmatpush1.bf16.msra.mxu0 %v7316
    %8218 = vmatprep.subr.bf16.mxu0 %v7321
    %8219 = vmatpush1.bf16.msra.mxu0 %v7320
    %8220 = vmatprep.subr.bf16.mxu0 %v7325
    %8221 = vmatpush1.bf16.msra.mxu0 %v7324
    %8222 = vmatprep.subr.bf16.mxu0 %v7329
    %8223 = vmatpush1.bf16.msra.mxu0 %v7328
    %8224 = vmatprep.subr.bf16.mxu0 %v7333
    %8225 = vmatpush1.bf16.msra.mxu0 %v7332
    %8226 = vmatprep.subr.bf16.mxu0 %v7337
    %8227 = vmatpush1.bf16.msra.mxu0 %v7336
    %8228 = vmatprep.subr.bf16.mxu0 %v7341
    %8229 = vmatpush1.bf16.msra.mxu0 %v7340
    %8230 = vmatprep.subr.bf16.mxu0 %v7345
    %8231 = vmatpush1.bf16.msra.mxu0 %v7344
    %8232 = vmatprep.subr.bf16.mxu0 %v7349
    %8233 = vmatpush1.bf16.msra.mxu0 %v7348
    %8234 = vmatprep.subr.bf16.mxu0 %v7353
    %8235 = vmatpush1.bf16.msra.mxu0 %v7352
    %8236 = vmatprep.mubr.bf16.mxu0 %v5007
    %8237 = vmatmul.mubr.bf16.gmra.mrb[0].mxu0 %v5006
    %v8238 = vpop.f32.mrb[0].mxu0
    %v8239 = vadd.f32 %v8198, %v8238
    %v8240 = vpop.f32.mrb[0].mxu0
    %v8241 = vadd.f32 %v8200, %v8240
    %v8242 = vpop.f32.mrb[0].mxu0
    %v8243 = vpop.f32.mrb[0].mxu0
    %8244 = vdwg.mxu0
    %8245 = vmatprep.subr.bf16.mxu0 %v7357
    %8246 = vmatpush1.bf16.msra.mxu0 %v7356
    %8247 = vmatprep.subr.bf16.mxu0 %v7361
    %8248 = vmatpush1.bf16.msra.mxu0 %v7360
    %8249 = vmatprep.subr.bf16.mxu0 %v7365
    %8250 = vmatpush1.bf16.msra.mxu0 %v7364
    %8251 = vmatprep.subr.bf16.mxu0 %v7369
    %8252 = vmatpush1.bf16.msra.mxu0 %v7368
    %8253 = vmatprep.subr.bf16.mxu0 %v7373
    %8254 = vmatpush1.bf16.msra.mxu0 %v7372
    %8255 = vmatprep.subr.bf16.mxu0 %v7377
    %8256 = vmatpush1.bf16.msra.mxu0 %v7376
    %8257 = vmatprep.subr.bf16.mxu0 %v7381
    %8258 = vmatpush1.bf16.msra.mxu0 %v7380
    %8259 = vmatprep.subr.bf16.mxu0 %v7385
    %8260 = vmatpush1.bf16.msra.mxu0 %v7384
    %8261 = vmatprep.subr.bf16.mxu0 %v7389
    %8262 = vmatpush1.bf16.msra.mxu0 %v7388
    %8263 = vmatprep.subr.bf16.mxu0 %v7393
    %8264 = vmatpush1.bf16.msra.mxu0 %v7392
    %8265 = vmatprep.subr.bf16.mxu0 %v7397
    %8266 = vmatpush1.bf16.msra.mxu0 %v7396
    %8267 = vmatprep.subr.bf16.mxu0 %v7401
    %8268 = vmatpush1.bf16.msra.mxu0 %v7400
    %8269 = vmatprep.subr.bf16.mxu0 %v7405
    %8270 = vmatpush1.bf16.msra.mxu0 %v7404
    %8271 = vmatprep.subr.bf16.mxu0 %v7409
    %8272 = vmatpush1.bf16.msra.mxu0 %v7408
    %8273 = vmatprep.subr.bf16.mxu0 %v7413
    %8274 = vmatpush1.bf16.msra.mxu0 %v7412
    %8275 = vmatprep.subr.bf16.mxu0 %v7417
    %8276 = vmatpush1.bf16.msra.mxu0 %v7416
    %8277 = vmatprep.mubr.bf16.mxu0 %v5009
    %8278 = vmatmul.mubr.bf16.gmra.mrb[0].mxu0 %v5008
    %v8279 = vpop.f32.mrb[0].mxu0
    %v8280 = vadd.f32 %v8239, %v8279
    %v8281 = vpop.f32.mrb[0].mxu0
    %v8282 = vadd.f32 %v8241, %v8281
    %v8283 = vpop.f32.mrb[0].mxu0
    %v8284 = vpop.f32.mrb[0].mxu0
    %8285 = vdwg.mxu0
    %8286 = vmatprep.subr.bf16.mxu0 %v7421
    %8287 = vmatpush1.bf16.msra.mxu0 %v7420
    %8288 = vmatprep.subr.bf16.mxu0 %v7425
    %8289 = vmatpush1.bf16.msra.mxu0 %v7424
    %8290 = vmatprep.subr.bf16.mxu0 %v7429
    %8291 = vmatpush1.bf16.msra.mxu0 %v7428
    %8292 = vmatprep.subr.bf16.mxu0 %v7433
    %8293 = vmatpush1.bf16.msra.mxu0 %v7432
    %8294 = vmatprep.subr.bf16.mxu0 %v7437
    %8295 = vmatpush1.bf16.msra.mxu0 %v7436
    %8296 = vmatprep.subr.bf16.mxu0 %v7441
    %8297 = vmatpush1.bf16.msra.mxu0 %v7440
    %8298 = vmatprep.subr.bf16.mxu0 %v7445
    %8299 = vmatpush1.bf16.msra.mxu0 %v7444
    %8300 = vmatprep.subr.bf16.mxu0 %v7449
    %8301 = vmatpush1.bf16.msra.mxu0 %v7448
    %8302 = vmatprep.subr.bf16.mxu0 %v7453
    %8303 = vmatpush1.bf16.msra.mxu0 %v7452
    %8304 = vmatprep.subr.bf16.mxu0 %v7457
    %8305 = vmatpush1.bf16.msra.mxu0 %v7456
    %8306 = vmatprep.subr.bf16.mxu0 %v7461
    %8307 = vmatpush1.bf16.msra.mxu0 %v7460
    %8308 = vmatprep.subr.bf16.mxu0 %v7465
    %8309 = vmatpush1.bf16.msra.mxu0 %v7464
    %8310 = vmatprep.subr.bf16.mxu0 %v7469
    %8311 = vmatpush1.bf16.msra.mxu0 %v7468
    %8312 = vmatprep.subr.bf16.mxu0 %v7473
    %8313 = vmatpush1.bf16.msra.mxu0 %v7472
    %8314 = vmatprep.subr.bf16.mxu0 %v7477
    %8315 = vmatpush1.bf16.msra.mxu0 %v7476
    %8316 = vmatprep.subr.bf16.mxu0 %v7481
    %8317 = vmatpush1.bf16.msra.mxu0 %v7480
    %8318 = vmatprep.mubr.bf16.mxu0 %v5011
    %8319 = vmatmul.mubr.bf16.gmra.mrb[0].mxu0 %v5010
    %v8320 = vpop.f32.mrb[0].mxu0
    %v8321 = vadd.f32 %v8280, %v8320
    %v8322 = vpop.f32.mrb[0].mxu0
    %v8323 = vadd.f32 %v8282, %v8322
    %v8324 = vpop.f32.mrb[0].mxu0
    %v8325 = vpop.f32.mrb[0].mxu0
    %8326 = vdwg.mxu0
    %8327 = vmatprep.subr.bf16.mxu0 %v7485
    %8328 = vmatpush1.bf16.msra.mxu0 %v7484
    %8329 = vmatprep.subr.bf16.mxu0 %v7489
    %8330 = vmatpush1.bf16.msra.mxu0 %v7488
    %8331 = vmatprep.subr.bf16.mxu0 %v7493
    %8332 = vmatpush1.bf16.msra.mxu0 %v7492
    %8333 = vmatprep.subr.bf16.mxu0 %v7497
    %8334 = vmatpush1.bf16.msra.mxu0 %v7496
    %8335 = vmatprep.subr.bf16.mxu0 %v7501
    %8336 = vmatpush1.bf16.msra.mxu0 %v7500
    %8337 = vmatprep.subr.bf16.mxu0 %v7505
    %8338 = vmatpush1.bf16.msra.mxu0 %v7504
    %8339 = vmatprep.subr.bf16.mxu0 %v7509
    %8340 = vmatpush1.bf16.msra.mxu0 %v7508
    %8341 = vmatprep.subr.bf16.mxu0 %v7513
    %8342 = vmatpush1.bf16.msra.mxu0 %v7512
    %8343 = vmatprep.subr.bf16.mxu0 %v7517
    %8344 = vmatpush1.bf16.msra.mxu0 %v7516
    %8345 = vmatprep.subr.bf16.mxu0 %v7521
    %8346 = vmatpush1.bf16.msra.mxu0 %v7520
    %8347 = vmatprep.subr.bf16.mxu0 %v7525
    %8348 = vmatpush1.bf16.msra.mxu0 %v7524
    %8349 = vmatprep.subr.bf16.mxu0 %v7529
    %8350 = vmatpush1.bf16.msra.mxu0 %v7528
    %8351 = vmatprep.subr.bf16.mxu0 %v7533
    %8352 = vmatpush1.bf16.msra.mxu0 %v7532
    %8353 = vmatprep.subr.bf16.mxu0 0
    %8354 = vmatpush1.bf16.msra.mxu0 0
    %8355 = vmatprep.subr.bf16.mxu0 0
    %8356 = vmatpush1.bf16.msra.mxu0 0
    %8357 = vmatprep.subr.bf16.mxu0 0
    %8358 = vmatpush1.bf16.msra.mxu0 0
    %8359 = vmatprep.mubr.bf16.mxu0 %v8038
    %8360 = vmatmul.mubr.bf16.gmra.mrb[0].mxu0 %v5012
    %v8361 = vpop.f32.mrb[0].mxu0
    %v8362 = vadd.f32 %v8321, %v8361
    %v8363 = vpop.f32.mrb[0].mxu0
    %v8364 = vadd.f32 %v8323, %v8363
    %v8365 = vpop.f32.mrb[0].mxu0
    %v8366 = vpop.f32.mrb[0].mxu0
    %8367 = vdwg.mxu0
    %8368 = vmatprep.subr.bf16.mxu0 %v7039
    %8369 = vmatpush1.bf16.msra.mxu0 %v7038
    %8370 = vmatprep.subr.bf16.mxu0 %v7043
    %8371 = vmatpush1.bf16.msra.mxu0 %v7042
    %8372 = vmatprep.subr.bf16.mxu0 %v7047
    %8373 = vmatpush1.bf16.msra.mxu0 %v7046
    %8374 = vmatprep.subr.bf16.mxu0 %v7051
    %8375 = vmatpush1.bf16.msra.mxu0 %v7050
    %8376 = vmatprep.subr.bf16.mxu0 %v7055
    %8377 = vmatpush1.bf16.msra.mxu0 %v7054
    %8378 = vmatprep.subr.bf16.mxu0 %v7059
    %8379 = vmatpush1.bf16.msra.mxu0 %v7058
    %8380 = vmatprep.subr.bf16.mxu0 %v7063
    %8381 = vmatpush1.bf16.msra.mxu0 %v7062
    %8382 = vmatprep.subr.bf16.mxu0 %v7067
    %8383 = vmatpush1.bf16.msra.mxu0 %v7066
    %8384 = vmatprep.subr.bf16.mxu0 %v7071
    %8385 = vmatpush1.bf16.msra.mxu0 %v7070
    %8386 = vmatprep.subr.bf16.mxu0 %v7075
    %8387 = vmatpush1.bf16.msra.mxu0 %v7074
    %8388 = vmatprep.subr.bf16.mxu0 %v7079
    %8389 = vmatpush1.bf16.msra.mxu0 %v7078
    %8390 = vmatprep.subr.bf16.mxu0 %v7083
    %8391 = vmatpush1.bf16.msra.mxu0 %v7082
    %8392 = vmatprep.subr.bf16.mxu0 %v7087
    %8393 = vmatpush1.bf16.msra.mxu0 %v7086
    %8394 = vmatprep.subr.bf16.mxu0 %v7091
    %8395 = vmatpush1.bf16.msra.mxu0 %v7090
    %8396 = vmatprep.subr.bf16.mxu0 %v7095
    %8397 = vmatpush1.bf16.msra.mxu0 %v7094
    %8398 = vmatprep.subr.bf16.mxu0 %v7099
    %8399 = vmatpush1.bf16.msra.mxu0 %v7098
    %8400 = vmatprep.mubr.bf16.mxu0 %v4999
    %8401 = vmatmul.mubr.bf16.gmra.mrb[0].mxu0 %v4998
    %v8402 = vpop.f32.mrb[0].mxu0
    %v8403 = vadd.f32 %v5527, %v8402
    %v8404 = vpop.f32.mrb[0].mxu0
    %v8405 = vadd.f32 %v5531, %v8404
    %v8406 = vpop.f32.mrb[0].mxu0
    %v8407 = vpop.f32.mrb[0].mxu0
    %8408 = vdwg.mxu0
    %8409 = vmatprep.subr.bf16.mxu0 %v7103
    %8410 = vmatpush1.bf16.msra.mxu0 %v7102
    %8411 = vmatprep.subr.bf16.mxu0 %v7107
    %8412 = vmatpush1.bf16.msra.mxu0 %v7106
    %8413 = vmatprep.subr.bf16.mxu0 %v7111
    %8414 = vmatpush1.bf16.msra.mxu0 %v7110
    %8415 = vmatprep.subr.bf16.mxu0 %v7115
    %8416 = vmatpush1.bf16.msra.mxu0 %v7114
    %8417 = vmatprep.subr.bf16.mxu0 %v7119
    %8418 = vmatpush1.bf16.msra.mxu0 %v7118
    %8419 = vmatprep.subr.bf16.mxu0 %v7123
    %8420 = vmatpush1.bf16.msra.mxu0 %v7122
    %8421 = vmatprep.subr.bf16.mxu0 %v7127
    %8422 = vmatpush1.bf16.msra.mxu0 %v7126
    %8423 = vmatprep.subr.bf16.mxu0 %v7131
    %8424 = vmatpush1.bf16.msra.mxu0 %v7130
    %8425 = vmatprep.subr.bf16.mxu0 %v7135
    %8426 = vmatpush1.bf16.msra.mxu0 %v7134
    %8427 = vmatprep.subr.bf16.mxu0 %v7139
    %8428 = vmatpush1.bf16.msra.mxu0 %v7138
    %8429 = vmatprep.subr.bf16.mxu0 %v7143
    %8430 = vmatpush1.bf16.msra.mxu0 %v7142
    %8431 = vmatprep.subr.bf16.mxu0 %v7147
    %8432 = vmatpush1.bf16.msra.mxu0 %v7146
    %8433 = vmatprep.subr.bf16.mxu0 %v7151
    %8434 = vmatpush1.bf16.msra.mxu0 %v7150
    %8435 = vmatprep.subr.bf16.mxu0 %v7155
    %8436 = vmatpush1.bf16.msra.mxu0 %v7154
    %8437 = vmatprep.subr.bf16.mxu0 %v7159
    %8438 = vmatpush1.bf16.msra.mxu0 %v7158
    %8439 = vmatprep.subr.bf16.mxu0 %v7163
    %8440 = vmatpush1.bf16.msra.mxu0 %v7162
    %8441 = vmatprep.mubr.bf16.mxu0 %v5001
    %8442 = vmatmul.mubr.bf16.gmra.mrb[0].mxu0 %v5000
    %v8443 = vpop.f32.mrb[0].mxu0
    %v8444 = vadd.f32 %v8403, %v8443
    %v8445 = vpop.f32.mrb[0].mxu0
    %v8446 = vadd.f32 %v8405, %v8445
    %v8447 = vpop.f32.mrb[0].mxu0
    %v8448 = vpop.f32.mrb[0].mxu0
    %8449 = vdwg.mxu0
    %8450 = vmatprep.subr.bf16.mxu0 %v7167
    %8451 = vmatpush1.bf16.msra.mxu0 %v7166
    %8452 = vmatprep.subr.bf16.mxu0 %v7171
    %8453 = vmatpush1.bf16.msra.mxu0 %v7170
    %8454 = vmatprep.subr.bf16.mxu0 %v7175
    %8455 = vmatpush1.bf16.msra.mxu0 %v7174
    %8456 = vmatprep.subr.bf16.mxu0 %v7179
    %8457 = vmatpush1.bf16.msra.mxu0 %v7178
    %8458 = vmatprep.subr.bf16.mxu0 %v7183
    %8459 = vmatpush1.bf16.msra.mxu0 %v7182
    %8460 = vmatprep.subr.bf16.mxu0 %v7187
    %8461 = vmatpush1.bf16.msra.mxu0 %v7186
    %8462 = vmatprep.subr.bf16.mxu0 %v7191
    %8463 = vmatpush1.bf16.msra.mxu0 %v7190
    %8464 = vmatprep.subr.bf16.mxu0 %v7195
    %8465 = vmatpush1.bf16.msra.mxu0 %v7194
    %8466 = vmatprep.subr.bf16.mxu0 %v7199
    %8467 = vmatpush1.bf16.msra.mxu0 %v7198
    %8468 = vmatprep.subr.bf16.mxu0 %v7203
    %8469 = vmatpush1.bf16.msra.mxu0 %v7202
    %8470 = vmatprep.subr.bf16.mxu0 %v7207
    %8471 = vmatpush1.bf16.msra.mxu0 %v7206
    %8472 = vmatprep.subr.bf16.mxu0 %v7211
    %8473 = vmatpush1.bf16.msra.mxu0 %v7210
    %8474 = vmatprep.subr.bf16.mxu0 %v7215
    %8475 = vmatpush1.bf16.msra.mxu0 %v7214
    %8476 = vmatprep.subr.bf16.mxu0 %v7219
    %8477 = vmatpush1.bf16.msra.mxu0 %v7218
    %8478 = vmatprep.subr.bf16.mxu0 %v7223
    %8479 = vmatpush1.bf16.msra.mxu0 %v7222
    %8480 = vmatprep.subr.bf16.mxu0 %v7227
    %8481 = vmatpush1.bf16.msra.mxu0 %v7226
    %8482 = vmatprep.mubr.bf16.mxu0 %v5003
    %8483 = vmatmul.mubr.bf16.gmra.mrb[0].mxu0 %v5002
    %v8484 = vpop.f32.mrb[0].mxu0
    %v8485 = vadd.f32 %v8444, %v8484
    %v8486 = vpop.f32.mrb[0].mxu0
    %v8487 = vadd.f32 %v8446, %v8486
    %v8488 = vpop.f32.mrb[0].mxu0
    %v8489 = vpop.f32.mrb[0].mxu0
    %8490 = vdwg.mxu0
    %8491 = vmatprep.subr.bf16.mxu0 %v7231
    %8492 = vmatpush1.bf16.msra.mxu0 %v7230
    %8493 = vmatprep.subr.bf16.mxu0 %v7235
    %8494 = vmatpush1.bf16.msra.mxu0 %v7234
    %8495 = vmatprep.subr.bf16.mxu0 %v7239
    %8496 = vmatpush1.bf16.msra.mxu0 %v7238
    %8497 = vmatprep.subr.bf16.mxu0 %v7243
    %8498 = vmatpush1.bf16.msra.mxu0 %v7242
    %8499 = vmatprep.subr.bf16.mxu0 %v7247
    %8500 = vmatpush1.bf16.msra.mxu0 %v7246
    %8501 = vmatprep.subr.bf16.mxu0 %v7251
    %8502 = vmatpush1.bf16.msra.mxu0 %v7250
    %8503 = vmatprep.subr.bf16.mxu0 %v7255
    %8504 = vmatpush1.bf16.msra.mxu0 %v7254
    %8505 = vmatprep.subr.bf16.mxu0 %v7259
    %8506 = vmatpush1.bf16.msra.mxu0 %v7258
    %8507 = vmatprep.subr.bf16.mxu0 %v7263
    %8508 = vmatpush1.bf16.msra.mxu0 %v7262
    %8509 = vmatprep.subr.bf16.mxu0 %v7267
    %8510 = vmatpush1.bf16.msra.mxu0 %v7266
    %8511 = vmatprep.subr.bf16.mxu0 %v7271
    %8512 = vmatpush1.bf16.msra.mxu0 %v7270
    %8513 = vmatprep.subr.bf16.mxu0 %v7275
    %8514 = vmatpush1.bf16.msra.mxu0 %v7274
    %8515 = vmatprep.subr.bf16.mxu0 %v7279
    %8516 = vmatpush1.bf16.msra.mxu0 %v7278
    %8517 = vmatprep.subr.bf16.mxu0 %v7283
    %8518 = vmatpush1.bf16.msra.mxu0 %v7282
    %8519 = vmatprep.subr.bf16.mxu0 %v7287
    %8520 = vmatpush1.bf16.msra.mxu0 %v7286
    %8521 = vmatprep.subr.bf16.mxu0 %v7291
    %8522 = vmatpush1.bf16.msra.mxu0 %v7290
    %8523 = vmatprep.mubr.bf16.mxu0 %v5005
    %8524 = vmatmul.mubr.bf16.gmra.mrb[0].mxu0 %v5004
    %v8525 = vpop.f32.mrb[0].mxu0
    %v8526 = vadd.f32 %v8485, %v8525
    %v8527 = vpop.f32.mrb[0].mxu0
    %v8528 = vadd.f32 %v8487, %v8527
    %v8529 = vpop.f32.mrb[0].mxu0
    %v8530 = vpop.f32.mrb[0].mxu0
    %8531 = vdwg.mxu0
    %8532 = vmatprep.subr.bf16.mxu0 %v7295
    %8533 = vmatpush1.bf16.msra.mxu0 %v7294
    %8534 = vmatprep.subr.bf16.mxu0 %v7299
    %8535 = vmatpush1.bf16.msra.mxu0 %v7298
    %8536 = vmatprep.subr.bf16.mxu0 %v7303
    %8537 = vmatpush1.bf16.msra.mxu0 %v7302
    %8538 = vmatprep.subr.bf16.mxu0 %v7307
    %8539 = vmatpush1.bf16.msra.mxu0 %v7306
    %8540 = vmatprep.subr.bf16.mxu0 %v7311
    %8541 = vmatpush1.bf16.msra.mxu0 %v7310
    %8542 = vmatprep.subr.bf16.mxu0 %v7315
    %8543 = vmatpush1.bf16.msra.mxu0 %v7314
    %8544 = vmatprep.subr.bf16.mxu0 %v7319
    %8545 = vmatpush1.bf16.msra.mxu0 %v7318
    %8546 = vmatprep.subr.bf16.mxu0 %v7323
    %8547 = vmatpush1.bf16.msra.mxu0 %v7322
    %8548 = vmatprep.subr.bf16.mxu0 %v7327
    %8549 = vmatpush1.bf16.msra.mxu0 %v7326
    %8550 = vmatprep.subr.bf16.mxu0 %v7331
    %8551 = vmatpush1.bf16.msra.mxu0 %v7330
    %8552 = vmatprep.subr.bf16.mxu0 %v7335
    %8553 = vmatpush1.bf16.msra.mxu0 %v7334
    %8554 = vmatprep.subr.bf16.mxu0 %v7339
    %8555 = vmatpush1.bf16.msra.mxu0 %v7338
    %8556 = vmatprep.subr.bf16.mxu0 %v7343
    %8557 = vmatpush1.bf16.msra.mxu0 %v7342
    %8558 = vmatprep.subr.bf16.mxu0 %v7347
    %8559 = vmatpush1.bf16.msra.mxu0 %v7346
    %8560 = vmatprep.subr.bf16.mxu0 %v7351
    %8561 = vmatpush1.bf16.msra.mxu0 %v7350
    %8562 = vmatprep.subr.bf16.mxu0 %v7355
    %8563 = vmatpush1.bf16.msra.mxu0 %v7354
    %8564 = vmatprep.mubr.bf16.mxu0 %v5007
    %8565 = vmatmul.mubr.bf16.gmra.mrb[0].mxu0 %v5006
    %v8566 = vpop.f32.mrb[0].mxu0
    %v8567 = vadd.f32 %v8526, %v8566
    %v8568 = vpop.f32.mrb[0].mxu0
    %v8569 = vadd.f32 %v8528, %v8568
    %v8570 = vpop.f32.mrb[0].mxu0
    %v8571 = vpop.f32.mrb[0].mxu0
    %8572 = vdwg.mxu0
    %8573 = vmatprep.subr.bf16.mxu0 %v7359
    %8574 = vmatpush1.bf16.msra.mxu0 %v7358
    %8575 = vmatprep.subr.bf16.mxu0 %v7363
    %8576 = vmatpush1.bf16.msra.mxu0 %v7362
    %8577 = vmatprep.subr.bf16.mxu0 %v7367
    %8578 = vmatpush1.bf16.msra.mxu0 %v7366
    %8579 = vmatprep.subr.bf16.mxu0 %v7371
    %8580 = vmatpush1.bf16.msra.mxu0 %v7370
    %8581 = vmatprep.subr.bf16.mxu0 %v7375
    %8582 = vmatpush1.bf16.msra.mxu0 %v7374
    %8583 = vmatprep.subr.bf16.mxu0 %v7379
    %8584 = vmatpush1.bf16.msra.mxu0 %v7378
    %8585 = vmatprep.subr.bf16.mxu0 %v7383
    %8586 = vmatpush1.bf16.msra.mxu0 %v7382
    %8587 = vmatprep.subr.bf16.mxu0 %v7387
    %8588 = vmatpush1.bf16.msra.mxu0 %v7386
    %8589 = vmatprep.subr.bf16.mxu0 %v7391
    %8590 = vmatpush1.bf16.msra.mxu0 %v7390
    %8591 = vmatprep.subr.bf16.mxu0 %v7395
    %8592 = vmatpush1.bf16.msra.mxu0 %v7394
    %8593 = vmatprep.subr.bf16.mxu0 %v7399
    %8594 = vmatpush1.bf16.msra.mxu0 %v7398
    %8595 = vmatprep.subr.bf16.mxu0 %v7403
    %8596 = vmatpush1.bf16.msra.mxu0 %v7402
    %8597 = vmatprep.subr.bf16.mxu0 %v7407
    %8598 = vmatpush1.bf16.msra.mxu0 %v7406
    %8599 = vmatprep.subr.bf16.mxu0 %v7411
    %8600 = vmatpush1.bf16.msra.mxu0 %v7410
    %8601 = vmatprep.subr.bf16.mxu0 %v7415
    %8602 = vmatpush1.bf16.msra.mxu0 %v7414
    %8603 = vmatprep.subr.bf16.mxu0 %v7419
    %8604 = vmatpush1.bf16.msra.mxu0 %v7418
    %8605 = vmatprep.mubr.bf16.mxu0 %v5009
    %8606 = vmatmul.mubr.bf16.gmra.mrb[0].mxu0 %v5008
    %v8607 = vpop.f32.mrb[0].mxu0
    %v8608 = vadd.f32 %v8567, %v8607
    %v8609 = vpop.f32.mrb[0].mxu0
    %v8610 = vadd.f32 %v8569, %v8609
    %v8611 = vpop.f32.mrb[0].mxu0
    %v8612 = vpop.f32.mrb[0].mxu0
    %8613 = vdwg.mxu0
    %8614 = vmatprep.subr.bf16.mxu0 %v7423
    %8615 = vmatpush1.bf16.msra.mxu0 %v7422
    %8616 = vmatprep.subr.bf16.mxu0 %v7427
    %8617 = vmatpush1.bf16.msra.mxu0 %v7426
    %8618 = vmatprep.subr.bf16.mxu0 %v7431
    %8619 = vmatpush1.bf16.msra.mxu0 %v7430
    %8620 = vmatprep.subr.bf16.mxu0 %v7435
    %8621 = vmatpush1.bf16.msra.mxu0 %v7434
    %8622 = vmatprep.subr.bf16.mxu0 %v7439
    %8623 = vmatpush1.bf16.msra.mxu0 %v7438
    %8624 = vmatprep.subr.bf16.mxu0 %v7443
    %8625 = vmatpush1.bf16.msra.mxu0 %v7442
    %8626 = vmatprep.subr.bf16.mxu0 %v7447
    %8627 = vmatpush1.bf16.msra.mxu0 %v7446
    %8628 = vmatprep.subr.bf16.mxu0 %v7451
    %8629 = vmatpush1.bf16.msra.mxu0 %v7450
    %8630 = vmatprep.subr.bf16.mxu0 %v7455
    %8631 = vmatpush1.bf16.msra.mxu0 %v7454
    %8632 = vmatprep.subr.bf16.mxu0 %v7459
    %8633 = vmatpush1.bf16.msra.mxu0 %v7458
    %8634 = vmatprep.subr.bf16.mxu0 %v7463
    %8635 = vmatpush1.bf16.msra.mxu0 %v7462
    %8636 = vmatprep.subr.bf16.mxu0 %v7467
    %8637 = vmatpush1.bf16.msra.mxu0 %v7466
    %8638 = vmatprep.subr.bf16.mxu0 %v7471
    %8639 = vmatpush1.bf16.msra.mxu0 %v7470
    %8640 = vmatprep.subr.bf16.mxu0 %v7475
    %8641 = vmatpush1.bf16.msra.mxu0 %v7474
    %8642 = vmatprep.subr.bf16.mxu0 %v7479
    %8643 = vmatpush1.bf16.msra.mxu0 %v7478
    %8644 = vmatprep.subr.bf16.mxu0 %v7483
    %8645 = vmatpush1.bf16.msra.mxu0 %v7482
    %8646 = vmatprep.mubr.bf16.mxu0 %v5011
    %8647 = vmatmul.mubr.bf16.gmra.mrb[0].mxu0 %v5010
    %v8648 = vpop.f32.mrb[0].mxu0
    %v8649 = vadd.f32 %v8608, %v8648
    %v8650 = vpop.f32.mrb[0].mxu0
    %v8651 = vadd.f32 %v8610, %v8650
    %v8652 = vpop.f32.mrb[0].mxu0
    %v8653 = vpop.f32.mrb[0].mxu0
    %8654 = vdwg.mxu0
    %8655 = vmatprep.subr.bf16.mxu0 %v7487
    %8656 = vmatpush1.bf16.msra.mxu0 %v7486
    %8657 = vmatprep.subr.bf16.mxu0 %v7491
    %8658 = vmatpush1.bf16.msra.mxu0 %v7490
    %8659 = vmatprep.subr.bf16.mxu0 %v7495
    %8660 = vmatpush1.bf16.msra.mxu0 %v7494
    %8661 = vmatprep.subr.bf16.mxu0 %v7499
    %8662 = vmatpush1.bf16.msra.mxu0 %v7498
    %8663 = vmatprep.subr.bf16.mxu0 %v7503
    %8664 = vmatpush1.bf16.msra.mxu0 %v7502
    %8665 = vmatprep.subr.bf16.mxu0 %v7507
    %8666 = vmatpush1.bf16.msra.mxu0 %v7506
    %8667 = vmatprep.subr.bf16.mxu0 %v7511
    %8668 = vmatpush1.bf16.msra.mxu0 %v7510
    %8669 = vmatprep.subr.bf16.mxu0 %v7515
    %8670 = vmatpush1.bf16.msra.mxu0 %v7514
    %8671 = vmatprep.subr.bf16.mxu0 %v7519
    %8672 = vmatpush1.bf16.msra.mxu0 %v7518
    %8673 = vmatprep.subr.bf16.mxu0 %v7523
    %8674 = vmatpush1.bf16.msra.mxu0 %v7522
    %8675 = vmatprep.subr.bf16.mxu0 %v7527
    %8676 = vmatpush1.bf16.msra.mxu0 %v7526
    %8677 = vmatprep.subr.bf16.mxu0 %v7531
    %8678 = vmatpush1.bf16.msra.mxu0 %v7530
    %8679 = vmatprep.subr.bf16.mxu0 %v7535
    %8680 = vmatpush1.bf16.msra.mxu0 %v7534
    %8681 = vmatprep.subr.bf16.mxu0 0
    %8682 = vmatpush1.bf16.msra.mxu0 0
    %8683 = vmatprep.subr.bf16.mxu0 0
    %8684 = vmatpush1.bf16.msra.mxu0 0
    %8685 = vmatprep.subr.bf16.mxu0 0
    %8686 = vmatpush1.bf16.msra.mxu0 0
    %8687 = vmatprep.mubr.bf16.mxu0 %v8038
    %8688 = vmatmul.mubr.bf16.gmra.mrb[0].mxu0 %v5012
    %v8689 = vpop.f32.mrb[0].mxu0
    %v8690 = vadd.f32 %v8649, %v8689
    %v8691 = vpop.f32.mrb[0].mxu0
    %v8692 = vadd.f32 %v8651, %v8691
    %v8693 = vpop.f32.mrb[0].mxu0
    %v8694 = vpop.f32.mrb[0].mxu0
    %8695 = vdwg.mxu0
    %v8696 = vmax.f32 %v8362, 0.0
    %v8697 = vmax.f32 %v8364, 0.0
    %v8698 = vmax.f32 %v8690, 0.0
    %v8699 = vmax.f32 %v8692, 0.0
    %v8700 = vpack.c.bf16 %v8696, %v8696
    %v8701 = vpack.c.bf16 %v8697, %v8697
    %v8702 = vpack.c.bf16 %v8698, %v8698
    %v8703 = vpack.c.bf16 %v8699, %v8699
    %v8704 = vld [vmem:[%s5] sm:$0xf]
    %v8705 = vld [vmem:[%s5 + $0x4] sm:$0xf]
    %v8706 = vld [vmem:[%s5 + $0x8] sm:$0xf]
    %v8707 = vld [vmem:[%s5 + $0xc] sm:$0xf]
    %v8708 = vld [vmem:[%s5 + $0x10] sm:$0xf]
    %v8709 = vld [vmem:[%s5 + $0x14] sm:$0xf]
    %v8710 = vld [vmem:[%s5 + $0x18] sm:$0xf]
    %v8711 = vld [vmem:[%s5 + $0x1c] sm:$0xf]
    %v8712 = vld [vmem:[%s5 + $0x20] sm:$0xf]
    %v8713 = vld [vmem:[%s5 + $0x24] sm:$0xf]
    %v8714 = vld [vmem:[%s5 + $0x28] sm:$0xf]
    %v8715 = vld [vmem:[%s5 + $0x2c] sm:$0xf]
    %v8716 = vld [vmem:[%s5 + $0x30] sm:$0xf]
    %v8717 = vld [vmem:[%s5 + $0x34] sm:$0xf]
    %v8718 = vld [vmem:[%s5 + $0x38] sm:$0xf]
    %v8719 = vld [vmem:[%s5 + $0x3c] sm:$0xf]
    %v8720 = vld [vmem:[%s5 + $0x40] sm:$0xf]
    %v8721 = vld [vmem:[%s5 + $0x44] sm:$0xf]
    %v8722 = vld [vmem:[%s5 + $0x48] sm:$0xf]
    %v8723 = vld [vmem:[%s5 + $0x4c] sm:$0xf]
    %v8724 = vld [vmem:[%s5 + $0x50] sm:$0xf]
    %v8725 = vld [vmem:[%s5 + $0x54] sm:$0xf]
    %v8726 = vld [vmem:[%s5 + $0x58] sm:$0xf]
    %v8727 = vld [vmem:[%s5 + $0x5c] sm:$0xf]
    %v8728 = vld [vmem:[%s5 + $0x60] sm:$0xf]
    %v8729 = vld [vmem:[%s5 + $0x64] sm:$0xf]
    %v8730 = vld [vmem:[%s5 + $0x68] sm:$0xf]
    %v8731 = vld [vmem:[%s5 + $0x6c] sm:$0xf]
    %v8732 = vld [vmem:[%s5 + $0x70] sm:$0xf]
    %v8733 = vld [vmem:[%s5 + $0x74] sm:$0xf]
    %v8734 = vld [vmem:[%s5 + $0x78] sm:$0xf]
    %v8735 = vld [vmem:[%s5 + $0x7c] sm:$0xf]
    %v8736 = vld [vmem:[%s5 + $0x80] sm:$0xf]
    %v8737 = vld [vmem:[%s5 + $0x84] sm:$0xf]
    %v8738 = vld [vmem:[%s5 + $0x88] sm:$0xf]
    %v8739 = vld [vmem:[%s5 + $0x8c] sm:$0xf]
    %v8740 = vld [vmem:[%s5 + $0x90] sm:$0xf]
    %v8741 = vld [vmem:[%s5 + $0x94] sm:$0xf]
    %v8742 = vld [vmem:[%s5 + $0x98] sm:$0xf]
    %v8743 = vld [vmem:[%s5 + $0x9c] sm:$0xf]
    %v8744 = vld [vmem:[%s5 + $0xa0] sm:$0xf]
    %v8745 = vld [vmem:[%s5 + $0xa4] sm:$0xf]
    %v8746 = vld [vmem:[%s5 + $0xa8] sm:$0xf]
    %v8747 = vld [vmem:[%s5 + $0xac] sm:$0xf]
    %v8748 = vld [vmem:[%s5 + $0xb0] sm:$0xf]
    %v8749 = vld [vmem:[%s5 + $0xb4] sm:$0xf]
    %v8750 = vld [vmem:[%s5 + $0xb8] sm:$0xf]
    %v8751 = vld [vmem:[%s5 + $0xbc] sm:$0xf]
    %v8752 = vld [vmem:[%s5 + $0xc0] sm:$0xf]
    %v8753 = vld [vmem:[%s5 + $0xc4] sm:$0xf]
    %v8754 = vld [vmem:[%s5 + $0xc8] sm:$0xf]
    %v8755 = vld [vmem:[%s5 + $0xcc] sm:$0xf]
    %v8756 = vld [vmem:[%s5 + $0xd0] sm:$0xf]
    %v8757 = vld [vmem:[%s5 + $0xd4] sm:$0xf]
    %v8758 = vld [vmem:[%s5 + $0xd8] sm:$0xf]
    %v8759 = vld [vmem:[%s5 + $0xdc] sm:$0xf]
    %v8760 = vld [vmem:[%s5 + $0xe0] sm:$0xf]
    %v8761 = vld [vmem:[%s5 + $0xe4] sm:$0xf]
    %v8762 = vld [vmem:[%s5 + $0xe8] sm:$0xf]
    %v8763 = vld [vmem:[%s5 + $0xec] sm:$0xf]
    %v8764 = vld [vmem:[%s5 + $0xf0] sm:$0xf]
    %v8765 = vld [vmem:[%s5 + $0xf4] sm:$0xf]
    %v8766 = vld [vmem:[%s5 + $0xf8] sm:$0x3]
    %v8767 = vld [vmem:[%s6] sm:$0x1]
    %v8769 = vlaneseq
    %v8770 = vshrl.u32 %v8769, 7
    %v8771 = vsub.s32 0, %v8770
    %v8772 = vrot.slane %v8767, %v8771
    %v8837 = vunpack.c.l.b16 %v8704
    %v8838 = vunpack.c.l.b16 %v8705
    %v8839 = vunpack.c.l.b16 %v8706
    %v8840 = vunpack.c.l.b16 %v8707
    %v8841 = vunpack.c.l.b16 %v8708
    %v8842 = vunpack.c.l.b16 %v8709
    %v8843 = vunpack.c.l.b16 %v8710
    %v8844 = vunpack.c.l.b16 %v8711
    %v8845 = vunpack.c.l.b16 %v8712
    %v8846 = vunpack.c.l.b16 %v8713
    %v8847 = vunpack.c.l.b16 %v8714
    %v8848 = vunpack.c.l.b16 %v8715
    %v8849 = vunpack.c.l.b16 %v8716
    %v8850 = vunpack.c.l.b16 %v8717
    %v8851 = vunpack.c.l.b16 %v8718
    %v8852 = vunpack.c.l.b16 %v8719
    %v8853 = vunpack.c.l.b16 %v8720
    %v8854 = vunpack.c.l.b16 %v8721
    %v8855 = vunpack.c.l.b16 %v8722
    %v8856 = vunpack.c.l.b16 %v8723
    %v8857 = vunpack.c.l.b16 %v8724
    %v8858 = vunpack.c.l.b16 %v8725
    %v8859 = vunpack.c.l.b16 %v8726
    %v8860 = vunpack.c.l.b16 %v8727
    %v8861 = vunpack.c.l.b16 %v8728
    %v8862 = vunpack.c.l.b16 %v8729
    %v8863 = vunpack.c.l.b16 %v8730
    %v8864 = vunpack.c.l.b16 %v8731
    %v8865 = vunpack.c.l.b16 %v8732
    %v8866 = vunpack.c.l.b16 %v8733
    %v8867 = vunpack.c.l.b16 %v8734
    %v8868 = vunpack.c.l.b16 %v8735
    %v8869 = vunpack.c.l.b16 %v8736
    %v8870 = vunpack.c.l.b16 %v8737
    %v8871 = vunpack.c.l.b16 %v8738
    %v8872 = vunpack.c.l.b16 %v8739
    %v8873 = vunpack.c.l.b16 %v8740
    %v8874 = vunpack.c.l.b16 %v8741
    %v8875 = vunpack.c.l.b16 %v8742
    %v8876 = vunpack.c.l.b16 %v8743
    %v8877 = vunpack.c.l.b16 %v8744
    %v8878 = vunpack.c.l.b16 %v8745
    %v8879 = vunpack.c.l.b16 %v8746
    %v8880 = vunpack.c.l.b16 %v8747
    %v8881 = vunpack.c.l.b16 %v8748
    %v8882 = vunpack.c.l.b16 %v8749
    %v8883 = vunpack.c.l.b16 %v8750
    %v8884 = vunpack.c.l.b16 %v8751
    %v8885 = vunpack.c.l.b16 %v8752
    %v8886 = vunpack.c.l.b16 %v8753
    %v8887 = vunpack.c.l.b16 %v8754
    %v8888 = vunpack.c.l.b16 %v8755
    %v8889 = vunpack.c.l.b16 %v8756
    %v8890 = vunpack.c.l.b16 %v8757
    %v8891 = vunpack.c.l.b16 %v8758
    %v8892 = vunpack.c.l.b16 %v8759
    %v8893 = vunpack.c.l.b16 %v8760
    %v8894 = vunpack.c.l.b16 %v8761
    %v8895 = vunpack.c.l.b16 %v8762
    %v8896 = vunpack.c.l.b16 %v8763
    %v8897 = vunpack.c.l.b16 %v8764
    %v8898 = vunpack.c.l.b16 %v8765
    %v8899 = vunpack.c.l.b16 %v8766
    %v8900 = vpack.c.b16 %v8838, %v8837
    %v8901 = vpack.c.b16 %v8840, %v8839
    %v8902 = vpack.c.b16 %v8842, %v8841
    %v8903 = vpack.c.b16 %v8844, %v8843
    %v8904 = vpack.c.b16 %v8846, %v8845
    %v8905 = vpack.c.b16 %v8848, %v8847
    %v8906 = vpack.c.b16 %v8850, %v8849
    %v8907 = vpack.c.b16 %v8852, %v8851
    %v8908 = vpack.c.b16 %v8854, %v8853
    %v8909 = vpack.c.b16 %v8856, %v8855
    %v8910 = vpack.c.b16 %v8858, %v8857
    %v8911 = vpack.c.b16 %v8860, %v8859
    %v8912 = vpack.c.b16 %v8862, %v8861
    %v8913 = vpack.c.b16 %v8864, %v8863
    %v8914 = vpack.c.b16 %v8866, %v8865
    %v8915 = vpack.c.b16 %v8868, %v8867
    %v8916 = vpack.c.b16 %v8870, %v8869
    %v8917 = vpack.c.b16 %v8872, %v8871
    %v8918 = vpack.c.b16 %v8874, %v8873
    %v8919 = vpack.c.b16 %v8876, %v8875
    %v8920 = vpack.c.b16 %v8878, %v8877
    %v8921 = vpack.c.b16 %v8880, %v8879
    %v8922 = vpack.c.b16 %v8882, %v8881
    %v8923 = vpack.c.b16 %v8884, %v8883
    %v8924 = vpack.c.b16 %v8886, %v8885
    %v8925 = vpack.c.b16 %v8888, %v8887
    %v8926 = vpack.c.b16 %v8890, %v8889
    %v8927 = vpack.c.b16 %v8892, %v8891
    %v8928 = vpack.c.b16 %v8894, %v8893
    %v8929 = vpack.c.b16 %v8896, %v8895
    %v8930 = vpack.c.b16 %v8898, %v8897
    %v8931 = vpack.c.b16 %v8899, %v8899
    %vm8963 = vcmask 949248
    %v8965 = vsel %vm8963, %v8703, 0
    %vm8967 = vcmask 1041408
    %v8969 = vsel %vm8967, %v8931, 0
    %8971 = vmatprep.subr.bf16.mxu0 0
    %8972 = vmatpush1.bf16.msra.mxu0 %v8900
    %8973 = vmatprep.subr.bf16.mxu0 0
    %8974 = vmatpush1.bf16.msra.mxu0 %v8901
    %8975 = vmatprep.subr.bf16.mxu0 0
    %8976 = vmatpush1.bf16.msra.mxu0 %v8902
    %8977 = vmatprep.subr.bf16.mxu0 0
    %8978 = vmatpush1.bf16.msra.mxu0 %v8903
    %8979 = vmatprep.subr.bf16.mxu0 0
    %8980 = vmatpush1.bf16.msra.mxu0 %v8904
    %8981 = vmatprep.subr.bf16.mxu0 0
    %8982 = vmatpush1.bf16.msra.mxu0 %v8905
    %8983 = vmatprep.subr.bf16.mxu0 0
    %8984 = vmatpush1.bf16.msra.mxu0 %v8906
    %8985 = vmatprep.subr.bf16.mxu0 0
    %8986 = vmatpush1.bf16.msra.mxu0 %v8907
    %8987 = vmatprep.subr.bf16.mxu0 0
    %8988 = vmatpush1.bf16.msra.mxu0 %v8908
    %8989 = vmatprep.subr.bf16.mxu0 0
    %8990 = vmatpush1.bf16.msra.mxu0 %v8909
    %8991 = vmatprep.subr.bf16.mxu0 0
    %8992 = vmatpush1.bf16.msra.mxu0 %v8910
    %8993 = vmatprep.subr.bf16.mxu0 0
    %8994 = vmatpush1.bf16.msra.mxu0 %v8911
    %8995 = vmatprep.subr.bf16.mxu0 0
    %8996 = vmatpush1.bf16.msra.mxu0 %v8912
    %8997 = vmatprep.subr.bf16.mxu0 0
    %8998 = vmatpush1.bf16.msra.mxu0 %v8913
    %8999 = vmatprep.subr.bf16.mxu0 0
    %9000 = vmatpush1.bf16.msra.mxu0 %v8914
    %9001 = vmatprep.subr.bf16.mxu0 0
    %9002 = vmatpush1.bf16.msra.mxu0 %v8915
    %9003 = vmatprep.mubr.bf16.mxu0 %v8701
    %9004 = vmatmul.mubr.bf16.gmra.mrb[0].mxu0 %v8700
    %v9005 = vpop.f32.mrb[0].mxu0
    %v9006 = vadd.f32 %v8772, %v9005
    %v9007 = vpop.f32.mrb[0].mxu0
    %v9008 = vpop.f32.mrb[0].mxu0
    %v9009 = vpop.f32.mrb[0].mxu0
    %9010 = vdwg.mxu0
    %9011 = vmatprep.subr.bf16.mxu0 0
    %9012 = vmatpush1.bf16.msra.mxu0 %v8916
    %9013 = vmatprep.subr.bf16.mxu0 0
    %9014 = vmatpush1.bf16.msra.mxu0 %v8917
    %9015 = vmatprep.subr.bf16.mxu0 0
    %9016 = vmatpush1.bf16.msra.mxu0 %v8918
    %9017 = vmatprep.subr.bf16.mxu0 0
    %9018 = vmatpush1.bf16.msra.mxu0 %v8919
    %9019 = vmatprep.subr.bf16.mxu0 0
    %9020 = vmatpush1.bf16.msra.mxu0 %v8920
    %9021 = vmatprep.subr.bf16.mxu0 0
    %9022 = vmatpush1.bf16.msra.mxu0 %v8921
    %9023 = vmatprep.subr.bf16.mxu0 0
    %9024 = vmatpush1.bf16.msra.mxu0 %v8922
    %9025 = vmatprep.subr.bf16.mxu0 0
    %9026 = vmatpush1.bf16.msra.mxu0 %v8923
    %9027 = vmatprep.subr.bf16.mxu0 0
    %9028 = vmatpush1.bf16.msra.mxu0 %v8924
    %9029 = vmatprep.subr.bf16.mxu0 0
    %9030 = vmatpush1.bf16.msra.mxu0 %v8925
    %9031 = vmatprep.subr.bf16.mxu0 0
    %9032 = vmatpush1.bf16.msra.mxu0 %v8926
    %9033 = vmatprep.subr.bf16.mxu0 0
    %9034 = vmatpush1.bf16.msra.mxu0 %v8927
    %9035 = vmatprep.subr.bf16.mxu0 0
    %9036 = vmatpush1.bf16.msra.mxu0 %v8928
    %9037 = vmatprep.subr.bf16.mxu0 0
    %9038 = vmatpush1.bf16.msra.mxu0 %v8929
    %9039 = vmatprep.subr.bf16.mxu0 0
    %9040 = vmatpush1.bf16.msra.mxu0 %v8930
    %9041 = vmatprep.subr.bf16.mxu0 0
    %9042 = vmatpush1.bf16.msra.mxu0 %v8969
    %9043 = vmatprep.mubr.bf16.mxu0 %v8965
    %9044 = vmatmul.mubr.bf16.gmra.mrb[0].mxu0 %v8702
    %v9045 = vpop.f32.mrb[0].mxu0
    %v9046 = vadd.f32 %v9006, %v9045
    %v9047 = vpop.f32.mrb[0].mxu0
    %v9048 = vpop.f32.mrb[0].mxu0
    %v9049 = vpop.f32.mrb[0].mxu0
    %9050 = vdwg.mxu0
    %9051 = vst [vmem:[#allocation2] sm:$0x3] %v9046
    // Predicated region
    $region30: #{pfmcnn2_forward.5} parent=1 // pred_check
      _
    $region31: #{pfmcnn2_forward.5} parent=1 // pred_check_branch
      %9053 = sbr.rel (0) target = $region33
    $region32: #{pfmcnn2_forward.5} parent=1 // pred_region
      %s9055 = ssub.s32 32, 32
      %9056 = vsyncadd [#allocation3], %s9055
      %s9058 = sshll.u32 [#allocation2], 4
      %s9059 = int_to_ptr.vmem [resolvable:$true] %s9058
      %9061 = dma.vmem_to_hbm [thread:$0]  %s9059, 32, %s7, [#allocation3]
    $region33: #{pfmcnn2_forward.5} parent=1 // pred_fallthru
      _
    // Predicated region
    $region34: #{pfmcnn2_forward.5} parent=1 // pred_check
      _
    $region35: #{pfmcnn2_forward.5} parent=1 // pred_check_branch
      %9063 = sbr.rel (0) target = $region37
    $region36: #{pfmcnn2_forward.5} parent=1 // pred_region
      %9064 = dma.done [#allocation3], 32
    $region37: #{pfmcnn2_forward.5} parent=1 // pred_fallthru
      _
    %9065 = vsyncpa [#allocation3], 1

</llo_original>
